<compile_context>
chip_gen: v7x
topology: tpu7x:2x2x1
jax: 0.10.0
libtpu: 0.0.40
codegen_flags: <defaults>
</compile_context>

<pallas_src>
import functools
import math

import jax
import jax.numpy as jnp
from jax.experimental import pallas as pl
from jax.experimental.pallas import tpu as pltpu

_LN_EPS = 1e-5


# ---------------------------------------------------------------------------
# In-kernel helpers
# ---------------------------------------------------------------------------

def _gelu(x):
    # TODO(synk): PyTorch TransformerEncoderLayer('gelu') uses exact erf-GELU;
    # tanh approximation used because erf lowering is not guaranteed in Mosaic.
    c = math.sqrt(2.0 / math.pi)
    return 0.5 * x * (1.0 + jnp.tanh(c * (x + 0.044715 * x * x * x)))


def _layer_norm(y, g, b):
    mean = jnp.mean(y, axis=-1, keepdims=True)
    var = jnp.mean(jnp.square(y - mean), axis=-1, keepdims=True)
    return (y - mean) * jax.lax.rsqrt(var + _LN_EPS) * g + b


# ---------------------------------------------------------------------------
# Fused kernel: one grid step == Bt batch elements, full forward pass
# ---------------------------------------------------------------------------

def fused_transformer_kernel(
        x_ref, enc_w_ref, enc_b_ref,
        wqkv_ref, bqkv_ref, wo_ref, bo_ref, ln1_g_ref, ln1_b_ref,
        w1_ref, b1_ref, w2_ref, b2_ref, ln2_g_ref, ln2_b_ref,
        out_w_ref, out_b_ref, o_ref,
        *, n_layers, n_heads):
    cdt = wqkv_ref.dtype                      # matmul operand dtype (bf16)
    Bt, S, F_in = x_ref.shape
    D = wo_ref.shape[-1]
    hd = D // n_heads

    # Input projection: all Bt*S rows in one matmul (f32 accumulation).
    x2 = x_ref[...].reshape(Bt * S, F_in)     # already in compute dtype
    h = (jnp.dot(x2, enc_w_ref[...], preferred_element_type=jnp.float32)
         + enc_b_ref[...])                    # [Bt*S, D] f32

    for l in range(n_layers):                 # static unroll (small n_layers)
        # ---- fused lane-dense QKV projection (scale pre-folded into Q) ----
        qkv = (jnp.dot(h.astype(cdt), wqkv_ref[l],
                       preferred_element_type=jnp.float32)
               + bqkv_ref[l])                 # [Bt*S, 3D] f32

        # ---- attention: per (batch, head) score / PV matmuls --------------
        # (these are inherently K=hd / K=S; projections & merge stay fused)
        o_rows = []
        for b in range(Bt):
            rows = slice(b * S, (b + 1) * S)
            heads = []
            for hh in range(n_heads):
                cq = slice(hh * hd, (hh + 1) * hd)
                ck = slice(D + hh * hd, D + (hh + 1) * hd)
                cv = slice(2 * D + hh * hd, 2 * D + (hh + 1) * hd)
                q = qkv[rows, cq].astype(cdt)             # [S, hd]
                k = qkv[rows, ck].astype(cdt)             # [S, hd]
                v = qkv[rows, cv].astype(cdt)             # [S, hd]
                s = jax.lax.dot_general(                  # q @ k.T  [S, S]
                    q, k, (((1,), (1,)), ((), ())),
                    preferred_element_type=jnp.float32)
                s = s - jnp.max(s, axis=-1, keepdims=True)
                p = jnp.exp(s)
                # EUP reciprocal instead of a VALU divide (approximate).
                p = p * pl.reciprocal(jnp.sum(p, axis=-1, keepdims=True),
                                      approx=True)
                heads.append(jnp.dot(p.astype(cdt), v,
                                     preferred_element_type=jnp.float32))
            o_rows.append(jnp.concatenate(heads, axis=-1))   # [S, D]
        o_all = o_rows[0] if Bt == 1 else jnp.concatenate(o_rows, axis=0)

        # ---- single lane-dense head-merge matmul + add & LayerNorm --------
        attn = (jnp.dot(o_all.astype(cdt), wo_ref[l],
                        preferred_element_type=jnp.float32) + bo_ref[l])
        h = _layer_norm(h + attn, ln1_g_ref[l], ln1_b_ref[l])

        # ------------------------------ FFN --------------------------------
        ff = (jnp.dot(h.astype(cdt), w1_ref[l],
                      preferred_element_type=jnp.float32) + b1_ref[l])
        ff = _gelu(ff)
        ff = (jnp.dot(ff.astype(cdt), w2_ref[l],
                      preferred_element_type=jnp.float32) + b2_ref[l])
        h = _layer_norm(h + ff, ln2_g_ref[l], ln2_b_ref[l])

    # lane-dense (128-padded) output projection; wrapper slices to output_size
    out = (jnp.dot(h.astype(cdt), out_w_ref[...],
                   preferred_element_type=jnp.float32) + out_b_ref[...])
    o_ref[...] = out.reshape(Bt, S, o_ref.shape[-1]).astype(o_ref.dtype)


# ---------------------------------------------------------------------------
# Host-side weight packing (done once; lane-dense layouts, bf16 MXU operands)
# ---------------------------------------------------------------------------

def _pack_params(params, compute_dtype=jnp.bfloat16):
    layers = params["layers"]
    L = len(layers)
    D = params["enc_w"].shape[1]
    H = params["n_heads"]
    hd = D // H
    out_size = params["out_w"].shape[1]
    n_pad = ((out_size + 127) // 128) * 128

    def stack(name):
        return jnp.stack([lp[name] for lp in layers]).astype(jnp.float32)

    # QKV stays packed lane-dense as [L, D, 3D]; fold softmax scale into Q.
    scale = 1.0 / math.sqrt(hd)
    wqkv = stack("wqkv")                              # [L, D, 3D]
    bqkv = stack("bqkv").reshape(L, 1, 3 * D)         # [L, 1, 3D]
    wqkv = wqkv.at[:, :, :D].multiply(scale)
    bqkv = bqkv.at[:, :, :D].multiply(scale)

    wo = stack("wo")                                  # [L, D, D]
    bo = stack("bo").reshape(L, 1, D)
    ln1_g = stack("ln1_g").reshape(L, 1, D)
    ln1_b = stack("ln1_b").reshape(L, 1, D)
    w1 = stack("w1")                                  # [L, D, F_ff]
    b1 = stack("b1").reshape(L, 1, -1)
    w2 = stack("w2")                                  # [L, F_ff, D]
    b2 = stack("b2").reshape(L, 1, D)
    ln2_g = stack("ln2_g").reshape(L, 1, D)
    ln2_b = stack("ln2_b").reshape(L, 1, D)

    enc_w = params["enc_w"].astype(jnp.float32)       # [F_in, D]
    enc_b = params["enc_b"].reshape(1, D).astype(jnp.float32)

    # Lane-dense (128-padded) output projection slab.
    out_w = jnp.zeros((D, n_pad), jnp.float32).at[:, :out_size].set(
        params["out_w"].astype(jnp.float32))
    out_b = jnp.zeros((1, n_pad), jnp.float32).at[:, :out_size].set(
        params["out_b"].reshape(1, -1).astype(jnp.float32))

    # MXU operands in bf16 (f32 accumulation in-kernel); biases / LN stay f32.
    cd = compute_dtype
    packed = (enc_w.astype(cd), enc_b,
              wqkv.astype(cd), bqkv,
              wo.astype(cd), bo, ln1_g, ln1_b,
              w1.astype(cd), b1, w2.astype(cd), b2, ln2_g, ln2_b,
              out_w.astype(cd), out_b)
    meta = dict(L=L, H=H, hd=hd, n_pad=n_pad, out_size=out_size,
                compute_dtype=cd)
    return packed, meta


def _zero_index_map(b, *, ndim):
    return (0,) * ndim


def _choose_bt(B, S, target_rows=256):
    """Largest batch block (divisor of B) with Bt*S <= target_rows, keeping
    >= 2 grid steps when B >= 2 so both v7x TensorCores get work."""
    best = 1
    for bt in range(1, B + 1):
        if B % bt:
            continue
        if bt * S > target_rows:
            break
        if B >= 2 and B // bt < 2:
            break
        best = bt
    return best


# ---------------------------------------------------------------------------
# Forward pass
# ---------------------------------------------------------------------------

def _build_forward(B, S, F_in, Bt, packed, meta, *, buffered_weights):
    kernel = functools.partial(fused_transformer_kernel,
                               n_layers=meta["L"], n_heads=meta["H"])
    n_pad = meta["n_pad"]

    def pinned_spec(a):
        idx = functools.partial(_zero_index_map, ndim=a.ndim)
        if buffered_weights:
            try:
                # Constant index_map: the block never changes across grid
                # steps, so single-buffer it (halves resident weight VMEM).
                return pl.BlockSpec(a.shape, idx, pipeline_mode=pl.Buffered(1))
            except TypeError:
                pass
        return pl.BlockSpec(a.shape, idx)

    x_spec = pl.BlockSpec((Bt, S, F_in), lambda b: (b, 0, 0))
    out_spec = pl.BlockSpec((Bt, S, n_pad), lambda b: (b, 0, 0))

    return pl.pallas_call(
        kernel,
        grid=(B // Bt,),
        in_specs=[x_spec] + [pinned_spec(a) for a in packed],
        out_specs=out_spec,
        out_shape=jax.ShapeDtypeStruct((B, S, n_pad), jnp.float32),
        compiler_params=pltpu.CompilerParams(
            dimension_semantics=("parallel",),
            vmem_limit_bytes=64 * 1024 * 1024),
    )


def time_series_transformer(x, params):
    B, S, F_in = x.shape
    packed, meta = _pack_params(params)
    Bt = _choose_bt(B, S)
    x_c = x.astype(meta["compute_dtype"])          # single cast, wrapper only

    err = None
    for buffered in (True, False):                 # graceful fallback if the
        try:                                       # Buffered(1) pipeline mode
            fwd = _build_forward(B, S, F_in, Bt, packed, meta,  # is rejected
                                 buffered_weights=buffered)
            out = jax.block_until_ready(fwd(x_c, *packed))
            return out[:, :, :meta["out_size"]]
        except Exception as e:  # pragma: no cover
            err = e
    raise err


# ---------------------------------------------------------------------------
# Deterministic parameter construction (PyTorch-like layout, x @ W convention)
# ---------------------------------------------------------------------------

def init_params(key, input_size, output_size, d_model, n_heads, n_layers, dim_ff):
    def dense(k, fan_in, fan_out):
        return jax.random.normal(k, (fan_in, fan_out), jnp.float32) * 0.02

    keys = jax.random.split(key, 2 + 4 * n_layers)
    params = {
        "n_heads": n_heads,
        "enc_w": dense(keys[0], input_size, d_model),
        "enc_b": jnp.zeros((d_model,), jnp.float32),
        "out_w": dense(keys[1], d_model, output_size),
        "out_b": jnp.zeros((output_size,), jnp.float32),
        "layers": [],
    }
    for i in range(n_layers):
        k0, k1, k2, k3 = keys[2 + 4 * i: 6 + 4 * i]
        params["layers"].append({
            "wqkv": dense(k0, d_model, 3 * d_model),
            "bqkv": jnp.zeros((3 * d_model,), jnp.float32),
            "wo": dense(k1, d_model, d_model),
            "bo": jnp.zeros((d_model,), jnp.float32),
            "ln1_g": jnp.ones((d_model,), jnp.float32),
            "ln1_b": jnp.zeros((d_model,), jnp.float32),
            "w1": dense(k2, d_model, dim_ff),
            "b1": jnp.zeros((dim_ff,), jnp.float32),
            "w2": dense(k3, dim_ff, d_model),
            "b2": jnp.zeros((d_model,), jnp.float32),
            "ln2_g": jnp.ones((d_model,), jnp.float32),
            "ln2_b": jnp.zeros((d_model,), jnp.float32),
        })
    return params


# ---------------------------------------------------------------------------
# Main
# ---------------------------------------------------------------------------

if __name__ == "__main__":
    B, S = 2, 8
    input_size, output_size = 4, 4
    d_model, n_heads, n_layers, dim_ff = 32, 4, 2, 64

    key = jax.random.PRNGKey(0)
    k_x, k_p = jax.random.split(key)
    x = jax.random.normal(k_x, (B, S, input_size), jnp.float32)
    params = init_params(k_p, input_size, output_size,
                         d_model, n_heads, n_layers, dim_ff)

    out = time_series_transformer(x, params)
    out = jax.block_until_ready(out)
    assert out.shape == (B, S, output_size)
    assert bool(jnp.all(jnp.isfinite(out)))
    print("KERNEL_OK")
</pallas_src>

<mosaic_0001>
module attributes {stable_mosaic.version = 11 : i64} {
  func.func @fused_transformer_kernel(%arg0: i32, %arg1: memref<1x8x4xbf16, #tpu.memory_space<vmem>>, %arg2: memref<4x32xbf16, #tpu.memory_space<vmem>>, %arg3: memref<1x32xf32, #tpu.memory_space<vmem>>, %arg4: memref<2x32x96xbf16, #tpu.memory_space<vmem>>, %arg5: memref<2x1x96xf32, #tpu.memory_space<vmem>>, %arg6: memref<2x32x32xbf16, #tpu.memory_space<vmem>>, %arg7: memref<2x1x32xf32, #tpu.memory_space<vmem>>, %arg8: memref<2x1x32xf32, #tpu.memory_space<vmem>>, %arg9: memref<2x1x32xf32, #tpu.memory_space<vmem>>, %arg10: memref<2x32x64xbf16, #tpu.memory_space<vmem>>, %arg11: memref<2x1x64xf32, #tpu.memory_space<vmem>>, %arg12: memref<2x64x32xbf16, #tpu.memory_space<vmem>>, %arg13: memref<2x1x32xf32, #tpu.memory_space<vmem>>, %arg14: memref<2x1x32xf32, #tpu.memory_space<vmem>>, %arg15: memref<2x1x32xf32, #tpu.memory_space<vmem>>, %arg16: memref<32x128xbf16, #tpu.memory_space<vmem>>, %arg17: memref<1x128xf32, #tpu.memory_space<vmem>>, %arg18: memref<1x8x128xf32, #tpu.memory_space<vmem>>) attributes {dimension_semantics = [#tpu.dimension_semantics<parallel>], iteration_bounds = array<i64: 2>, scalar_prefetch = 0 : i64, scratch_operands = 0 : i64, tpu.core_type = #tpu.core_type<tc>, window_params = [{transform_indices = @transform_0, window_bounds = array<i64: 1, 8, 4>}, {pipeline_mode = #tpu.pipeline_mode<synchronous>, transform_indices = @transform_1, window_bounds = array<i64: 4, 32>}, {pipeline_mode = #tpu.pipeline_mode<synchronous>, transform_indices = @transform_2, window_bounds = array<i64: 1, 32>}, {pipeline_mode = #tpu.pipeline_mode<synchronous>, transform_indices = @transform_3, window_bounds = array<i64: 2, 32, 96>}, {pipeline_mode = #tpu.pipeline_mode<synchronous>, transform_indices = @transform_4, window_bounds = array<i64: 2, 1, 96>}, {pipeline_mode = #tpu.pipeline_mode<synchronous>, transform_indices = @transform_5, window_bounds = array<i64: 2, 32, 32>}, {pipeline_mode = #tpu.pipeline_mode<synchronous>, transform_indices = @transform_6, window_bounds = array<i64: 2, 1, 32>}, {pipeline_mode = #tpu.pipeline_mode<synchronous>, transform_indices = @transform_7, window_bounds = array<i64: 2, 1, 32>}, {pipeline_mode = #tpu.pipeline_mode<synchronous>, transform_indices = @transform_8, window_bounds = array<i64: 2, 1, 32>}, {pipeline_mode = #tpu.pipeline_mode<synchronous>, transform_indices = @transform_9, window_bounds = array<i64: 2, 32, 64>}, {pipeline_mode = #tpu.pipeline_mode<synchronous>, transform_indices = @transform_10, window_bounds = array<i64: 2, 1, 64>}, {pipeline_mode = #tpu.pipeline_mode<synchronous>, transform_indices = @transform_11, window_bounds = array<i64: 2, 64, 32>}, {pipeline_mode = #tpu.pipeline_mode<synchronous>, transform_indices = @transform_12, window_bounds = array<i64: 2, 1, 32>}, {pipeline_mode = #tpu.pipeline_mode<synchronous>, transform_indices = @transform_13, window_bounds = array<i64: 2, 1, 32>}, {pipeline_mode = #tpu.pipeline_mode<synchronous>, transform_indices = @transform_14, window_bounds = array<i64: 2, 1, 32>}, {pipeline_mode = #tpu.pipeline_mode<synchronous>, transform_indices = @transform_15, window_bounds = array<i64: 32, 128>}, {pipeline_mode = #tpu.pipeline_mode<synchronous>, transform_indices = @transform_16, window_bounds = array<i64: 1, 128>}, {transform_indices = @transform_17, window_bounds = array<i64: 1, 8, 128>}]} {
    %c0 = arith.constant 0 : index
    %c0_0 = arith.constant 0 : index
    %c0_1 = arith.constant 0 : index
    %0 = vector.load %arg1[%c0, %c0_0, %c0_1] : memref<1x8x4xbf16, #tpu.memory_space<vmem>>, vector<1x8x4xbf16>
    %1 = vector.shape_cast %0 : vector<1x8x4xbf16> to vector<8x4xbf16>
    %c0_2 = arith.constant 0 : index
    %c0_3 = arith.constant 0 : index
    %2 = vector.load %arg2[%c0_2, %c0_3] : memref<4x32xbf16, #tpu.memory_space<vmem>>, vector<4x32xbf16>
    %cst = arith.constant dense<0.000000e+00> : vector<8x32xf32>
    %3 = tpu.matmul %1, %2, %cst {dimension_numbers = #tpu.dot_dimension_numbers<[1], [0], [0], [1], [0, 0, 1, 1], [], []>} : vector<8x4xbf16>, vector<4x32xbf16>, vector<8x32xf32> -> vector<8x32xf32>
    %c0_4 = arith.constant 0 : index
    %c0_5 = arith.constant 0 : index
    %4 = vector.load %arg3[%c0_4, %c0_5] : memref<1x32xf32, #tpu.memory_space<vmem>>, vector<1x32xf32>
    %5 = vector.broadcast %4 : vector<1x32xf32> to vector<8x32xf32>
    %6 = arith.addf %3, %5 : vector<8x32xf32>
    %7 = arith.truncf %6 : vector<8x32xf32> to vector<8x32xbf16>
    %c0_6 = arith.constant 0 : index
    %c0_7 = arith.constant 0 : index
    %c0_8 = arith.constant 0 : index
    %8 = vector.load %arg4[%c0_6, %c0_7, %c0_8] : memref<2x32x96xbf16, #tpu.memory_space<vmem>>, vector<1x32x96xbf16>
    %9 = vector.shape_cast %8 : vector<1x32x96xbf16> to vector<32x96xbf16>
    %cst_9 = arith.constant dense<0.000000e+00> : vector<8x96xf32>
    %10 = tpu.matmul %7, %9, %cst_9 {dimension_numbers = #tpu.dot_dimension_numbers<[1], [0], [0], [1], [0, 0, 1, 1], [], []>} : vector<8x32xbf16>, vector<32x96xbf16>, vector<8x96xf32> -> vector<8x96xf32>
    %c0_10 = arith.constant 0 : index
    %c0_11 = arith.constant 0 : index
    %c0_12 = arith.constant 0 : index
    %11 = vector.load %arg5[%c0_10, %c0_11, %c0_12] : memref<2x1x96xf32, #tpu.memory_space<vmem>>, vector<1x1x96xf32>
    %12 = vector.shape_cast %11 : vector<1x1x96xf32> to vector<1x96xf32>
    %13 = vector.broadcast %12 : vector<1x96xf32> to vector<8x96xf32>
    %14 = arith.addf %10, %13 : vector<8x96xf32>
    %15 = vector.extract_strided_slice %14 {offsets = [0, 0], sizes = [8, 8], strides = [1, 1]} : vector<8x96xf32> to vector<8x8xf32>
    %16 = arith.truncf %15 : vector<8x8xf32> to vector<8x8xbf16>
    %17 = vector.extract_strided_slice %14 {offsets = [0, 32], sizes = [8, 8], strides = [1, 1]} : vector<8x96xf32> to vector<8x8xf32>
    %18 = arith.truncf %17 : vector<8x8xf32> to vector<8x8xbf16>
    %19 = vector.extract_strided_slice %14 {offsets = [0, 64], sizes = [8, 8], strides = [1, 1]} : vector<8x96xf32> to vector<8x8xf32>
    %20 = arith.truncf %19 : vector<8x8xf32> to vector<8x8xbf16>
    %cst_13 = arith.constant dense<0.000000e+00> : vector<8x8xf32>
    %21 = tpu.matmul %16, %18, %cst_13 {dimension_numbers = #tpu.dot_dimension_numbers<[1], [1], [0], [0], [0, 0, 1, 0], [], []>} : vector<8x8xbf16>, vector<8x8xbf16>, vector<8x8xf32> -> vector<8x8xf32>
    %cst_14 = arith.constant dense<0xFF800000> : vector<8xf32>
    %22 = vector.multi_reduction <maximumf>, %21, %cst_14 [1] : vector<8x8xf32> to vector<8xf32>
    %23 = vector.shape_cast %22 : vector<8xf32> to vector<8x1xf32>
    %24 = vector.broadcast %23 : vector<8x1xf32> to vector<8x8xf32>
    %25 = arith.subf %21, %24 : vector<8x8xf32>
    %26 = math.exp %25 : vector<8x8xf32>
    %cst_15 = arith.constant dense<0.000000e+00> : vector<8xf32>
    %27 = vector.multi_reduction <add>, %26, %cst_15 [1] : vector<8x8xf32> to vector<8xf32>
    %28 = vector.shape_cast %27 : vector<8xf32> to vector<8x1xf32>
    %29 = tpu.reciprocal %28 {approx = true} : vector<8x1xf32> -> vector<8x1xf32>
    %30 = vector.broadcast %29 : vector<8x1xf32> to vector<8x8xf32>
    %31 = arith.mulf %26, %30 : vector<8x8xf32>
    %32 = arith.truncf %31 : vector<8x8xf32> to vector<8x8xbf16>
    %cst_16 = arith.constant dense<0.000000e+00> : vector<8x8xf32>
    %33 = tpu.matmul %32, %20, %cst_16 {dimension_numbers = #tpu.dot_dimension_numbers<[1], [0], [0], [1], [0, 0, 1, 1], [], []>} : vector<8x8xbf16>, vector<8x8xbf16>, vector<8x8xf32> -> vector<8x8xf32>
    %34 = vector.extract_strided_slice %14 {offsets = [0, 8], sizes = [8, 8], strides = [1, 1]} : vector<8x96xf32> to vector<8x8xf32>
    %35 = arith.truncf %34 : vector<8x8xf32> to vector<8x8xbf16>
    %36 = vector.extract_strided_slice %14 {offsets = [0, 40], sizes = [8, 8], strides = [1, 1]} : vector<8x96xf32> to vector<8x8xf32>
    %37 = arith.truncf %36 : vector<8x8xf32> to vector<8x8xbf16>
    %38 = vector.extract_strided_slice %14 {offsets = [0, 72], sizes = [8, 8], strides = [1, 1]} : vector<8x96xf32> to vector<8x8xf32>
    %39 = arith.truncf %38 : vector<8x8xf32> to vector<8x8xbf16>
    %cst_17 = arith.constant dense<0.000000e+00> : vector<8x8xf32>
    %40 = tpu.matmul %35, %37, %cst_17 {dimension_numbers = #tpu.dot_dimension_numbers<[1], [1], [0], [0], [0, 0, 1, 0], [], []>} : vector<8x8xbf16>, vector<8x8xbf16>, vector<8x8xf32> -> vector<8x8xf32>
    %cst_18 = arith.constant dense<0xFF800000> : vector<8xf32>
    %41 = vector.multi_reduction <maximumf>, %40, %cst_18 [1] : vector<8x8xf32> to vector<8xf32>
    %42 = vector.shape_cast %41 : vector<8xf32> to vector<8x1xf32>
    %43 = vector.broadcast %42 : vector<8x1xf32> to vector<8x8xf32>
    %44 = arith.subf %40, %43 : vector<8x8xf32>
    %45 = math.exp %44 : vector<8x8xf32>
    %cst_19 = arith.constant dense<0.000000e+00> : vector<8xf32>
    %46 = vector.multi_reduction <add>, %45, %cst_19 [1] : vector<8x8xf32> to vector<8xf32>
    %47 = vector.shape_cast %46 : vector<8xf32> to vector<8x1xf32>
    %48 = tpu.reciprocal %47 {approx = true} : vector<8x1xf32> -> vector<8x1xf32>
    %49 = vector.broadcast %48 : vector<8x1xf32> to vector<8x8xf32>
    %50 = arith.mulf %45, %49 : vector<8x8xf32>
    %51 = arith.truncf %50 : vector<8x8xf32> to vector<8x8xbf16>
    %cst_20 = arith.constant dense<0.000000e+00> : vector<8x8xf32>
    %52 = tpu.matmul %51, %39, %cst_20 {dimension_numbers = #tpu.dot_dimension_numbers<[1], [0], [0], [1], [0, 0, 1, 1], [], []>} : vector<8x8xbf16>, vector<8x8xbf16>, vector<8x8xf32> -> vector<8x8xf32>
    %53 = vector.extract_strided_slice %14 {offsets = [0, 16], sizes = [8, 8], strides = [1, 1]} : vector<8x96xf32> to vector<8x8xf32>
    %54 = arith.truncf %53 : vector<8x8xf32> to vector<8x8xbf16>
    %55 = vector.extract_strided_slice %14 {offsets = [0, 48], sizes = [8, 8], strides = [1, 1]} : vector<8x96xf32> to vector<8x8xf32>
    %56 = arith.truncf %55 : vector<8x8xf32> to vector<8x8xbf16>
    %57 = vector.extract_strided_slice %14 {offsets = [0, 80], sizes = [8, 8], strides = [1, 1]} : vector<8x96xf32> to vector<8x8xf32>
    %58 = arith.truncf %57 : vector<8x8xf32> to vector<8x8xbf16>
    %cst_21 = arith.constant dense<0.000000e+00> : vector<8x8xf32>
    %59 = tpu.matmul %54, %56, %cst_21 {dimension_numbers = #tpu.dot_dimension_numbers<[1], [1], [0], [0], [0, 0, 1, 0], [], []>} : vector<8x8xbf16>, vector<8x8xbf16>, vector<8x8xf32> -> vector<8x8xf32>
    %cst_22 = arith.constant dense<0xFF800000> : vector<8xf32>
    %60 = vector.multi_reduction <maximumf>, %59, %cst_22 [1] : vector<8x8xf32> to vector<8xf32>
    %61 = vector.shape_cast %60 : vector<8xf32> to vector<8x1xf32>
    %62 = vector.broadcast %61 : vector<8x1xf32> to vector<8x8xf32>
    %63 = arith.subf %59, %62 : vector<8x8xf32>
    %64 = math.exp %63 : vector<8x8xf32>
    %cst_23 = arith.constant dense<0.000000e+00> : vector<8xf32>
    %65 = vector.multi_reduction <add>, %64, %cst_23 [1] : vector<8x8xf32> to vector<8xf32>
    %66 = vector.shape_cast %65 : vector<8xf32> to vector<8x1xf32>
    %67 = tpu.reciprocal %66 {approx = true} : vector<8x1xf32> -> vector<8x1xf32>
    %68 = vector.broadcast %67 : vector<8x1xf32> to vector<8x8xf32>
    %69 = arith.mulf %64, %68 : vector<8x8xf32>
    %70 = arith.truncf %69 : vector<8x8xf32> to vector<8x8xbf16>
    %cst_24 = arith.constant dense<0.000000e+00> : vector<8x8xf32>
    %71 = tpu.matmul %70, %58, %cst_24 {dimension_numbers = #tpu.dot_dimension_numbers<[1], [0], [0], [1], [0, 0, 1, 1], [], []>} : vector<8x8xbf16>, vector<8x8xbf16>, vector<8x8xf32> -> vector<8x8xf32>
    %72 = vector.extract_strided_slice %14 {offsets = [0, 24], sizes = [8, 8], strides = [1, 1]} : vector<8x96xf32> to vector<8x8xf32>
    %73 = arith.truncf %72 : vector<8x8xf32> to vector<8x8xbf16>
    %74 = vector.extract_strided_slice %14 {offsets = [0, 56], sizes = [8, 8], strides = [1, 1]} : vector<8x96xf32> to vector<8x8xf32>
    %75 = arith.truncf %74 : vector<8x8xf32> to vector<8x8xbf16>
    %76 = vector.extract_strided_slice %14 {offsets = [0, 88], sizes = [8, 8], strides = [1, 1]} : vector<8x96xf32> to vector<8x8xf32>
    %77 = arith.truncf %76 : vector<8x8xf32> to vector<8x8xbf16>
    %cst_25 = arith.constant dense<0.000000e+00> : vector<8x8xf32>
    %78 = tpu.matmul %73, %75, %cst_25 {dimension_numbers = #tpu.dot_dimension_numbers<[1], [1], [0], [0], [0, 0, 1, 0], [], []>} : vector<8x8xbf16>, vector<8x8xbf16>, vector<8x8xf32> -> vector<8x8xf32>
    %cst_26 = arith.constant dense<0xFF800000> : vector<8xf32>
    %79 = vector.multi_reduction <maximumf>, %78, %cst_26 [1] : vector<8x8xf32> to vector<8xf32>
    %80 = vector.shape_cast %79 : vector<8xf32> to vector<8x1xf32>
    %81 = vector.broadcast %80 : vector<8x1xf32> to vector<8x8xf32>
    %82 = arith.subf %78, %81 : vector<8x8xf32>
    %83 = math.exp %82 : vector<8x8xf32>
    %cst_27 = arith.constant dense<0.000000e+00> : vector<8xf32>
    %84 = vector.multi_reduction <add>, %83, %cst_27 [1] : vector<8x8xf32> to vector<8xf32>
    %85 = vector.shape_cast %84 : vector<8xf32> to vector<8x1xf32>
    %86 = tpu.reciprocal %85 {approx = true} : vector<8x1xf32> -> vector<8x1xf32>
    %87 = vector.broadcast %86 : vector<8x1xf32> to vector<8x8xf32>
    %88 = arith.mulf %83, %87 : vector<8x8xf32>
    %89 = arith.truncf %88 : vector<8x8xf32> to vector<8x8xbf16>
    %cst_28 = arith.constant dense<0.000000e+00> : vector<8x8xf32>
    %90 = tpu.matmul %89, %77, %cst_28 {dimension_numbers = #tpu.dot_dimension_numbers<[1], [0], [0], [1], [0, 0, 1, 1], [], []>} : vector<8x8xbf16>, vector<8x8xbf16>, vector<8x8xf32> -> vector<8x8xf32>
    %91 = tpu.concatenate %33, %52, %71, %90 in 1 : vector<8x8xf32>, vector<8x8xf32>, vector<8x8xf32>, vector<8x8xf32> -> vector<8x32xf32>
    %92 = arith.truncf %91 : vector<8x32xf32> to vector<8x32xbf16>
    %c0_29 = arith.constant 0 : index
    %c0_30 = arith.constant 0 : index
    %c0_31 = arith.constant 0 : index
    %93 = vector.load %arg6[%c0_29, %c0_30, %c0_31] : memref<2x32x32xbf16, #tpu.memory_space<vmem>>, vector<1x32x32xbf16>
    %94 = vector.shape_cast %93 : vector<1x32x32xbf16> to vector<32x32xbf16>
    %cst_32 = arith.constant dense<0.000000e+00> : vector<8x32xf32>
    %95 = tpu.matmul %92, %94, %cst_32 {dimension_numbers = #tpu.dot_dimension_numbers<[1], [0], [0], [1], [0, 0, 1, 1], [], []>} : vector<8x32xbf16>, vector<32x32xbf16>, vector<8x32xf32> -> vector<8x32xf32>
    %c0_33 = arith.constant 0 : index
    %c0_34 = arith.constant 0 : index
    %c0_35 = arith.constant 0 : index
    %96 = vector.load %arg7[%c0_33, %c0_34, %c0_35] : memref<2x1x32xf32, #tpu.memory_space<vmem>>, vector<1x1x32xf32>
    %97 = vector.shape_cast %96 : vector<1x1x32xf32> to vector<1x32xf32>
    %98 = vector.broadcast %97 : vector<1x32xf32> to vector<8x32xf32>
    %99 = arith.addf %95, %98 : vector<8x32xf32>
    %100 = arith.addf %6, %99 : vector<8x32xf32>
    %c0_36 = arith.constant 0 : index
    %c0_37 = arith.constant 0 : index
    %c0_38 = arith.constant 0 : index
    %101 = vector.load %arg8[%c0_36, %c0_37, %c0_38] : memref<2x1x32xf32, #tpu.memory_space<vmem>>, vector<1x1x32xf32>
    %102 = vector.shape_cast %101 : vector<1x1x32xf32> to vector<1x32xf32>
    %c0_39 = arith.constant 0 : index
    %c0_40 = arith.constant 0 : index
    %c0_41 = arith.constant 0 : index
    %103 = vector.load %arg9[%c0_39, %c0_40, %c0_41] : memref<2x1x32xf32, #tpu.memory_space<vmem>>, vector<1x1x32xf32>
    %104 = vector.shape_cast %103 : vector<1x1x32xf32> to vector<1x32xf32>
    %cst_42 = arith.constant dense<0.000000e+00> : vector<8xf32>
    %105 = vector.multi_reduction <add>, %100, %cst_42 [1] : vector<8x32xf32> to vector<8xf32>
    %106 = vector.shape_cast %105 : vector<8xf32> to vector<8x1xf32>
    %cst_43 = arith.constant 3.200000e+01 : f32
    %107 = vector.broadcast %cst_43 : f32 to vector<8x1xf32>
    %108 = arith.divf %106, %107 : vector<8x1xf32>
    %109 = vector.broadcast %108 : vector<8x1xf32> to vector<8x32xf32>
    %110 = arith.subf %100, %109 : vector<8x32xf32>
    %111 = arith.mulf %110, %110 : vector<8x32xf32>
    %cst_44 = arith.constant dense<0.000000e+00> : vector<8xf32>
    %112 = vector.multi_reduction <add>, %111, %cst_44 [1] : vector<8x32xf32> to vector<8xf32>
    %113 = vector.shape_cast %112 : vector<8xf32> to vector<8x1xf32>
    %cst_45 = arith.constant 3.200000e+01 : f32
    %114 = vector.broadcast %cst_45 : f32 to vector<8x1xf32>
    %115 = arith.divf %113, %114 : vector<8x1xf32>
    %116 = vector.broadcast %108 : vector<8x1xf32> to vector<8x32xf32>
    %117 = arith.subf %100, %116 : vector<8x32xf32>
    %cst_46 = arith.constant 9.99999974E-6 : f32
    %118 = vector.broadcast %cst_46 : f32 to vector<8x1xf32>
    %119 = arith.addf %115, %118 : vector<8x1xf32>
    %120 = math.rsqrt %119 : vector<8x1xf32>
    %121 = vector.broadcast %120 : vector<8x1xf32> to vector<8x32xf32>
    %122 = arith.mulf %117, %121 : vector<8x32xf32>
    %123 = vector.broadcast %102 : vector<1x32xf32> to vector<8x32xf32>
    %124 = arith.mulf %122, %123 : vector<8x32xf32>
    %125 = vector.broadcast %104 : vector<1x32xf32> to vector<8x32xf32>
    %126 = arith.addf %124, %125 : vector<8x32xf32>
    %127 = arith.truncf %126 : vector<8x32xf32> to vector<8x32xbf16>
    %c0_47 = arith.constant 0 : index
    %c0_48 = arith.constant 0 : index
    %c0_49 = arith.constant 0 : index
    %128 = vector.load %arg10[%c0_47, %c0_48, %c0_49] : memref<2x32x64xbf16, #tpu.memory_space<vmem>>, vector<1x32x64xbf16>
    %129 = vector.shape_cast %128 : vector<1x32x64xbf16> to vector<32x64xbf16>
    %cst_50 = arith.constant dense<0.000000e+00> : vector<8x64xf32>
    %130 = tpu.matmul %127, %129, %cst_50 {dimension_numbers = #tpu.dot_dimension_numbers<[1], [0], [0], [1], [0, 0, 1, 1], [], []>} : vector<8x32xbf16>, vector<32x64xbf16>, vector<8x64xf32> -> vector<8x64xf32>
    %c0_51 = arith.constant 0 : index
    %c0_52 = arith.constant 0 : index
    %c0_53 = arith.constant 0 : index
    %131 = vector.load %arg11[%c0_51, %c0_52, %c0_53] : memref<2x1x64xf32, #tpu.memory_space<vmem>>, vector<1x1x64xf32>
    %132 = vector.shape_cast %131 : vector<1x1x64xf32> to vector<1x64xf32>
    %133 = vector.broadcast %132 : vector<1x64xf32> to vector<8x64xf32>
    %134 = arith.addf %130, %133 : vector<8x64xf32>
    %cst_54 = arith.constant 5.000000e-01 : f32
    %135 = vector.broadcast %cst_54 : f32 to vector<8x64xf32>
    %136 = arith.mulf %135, %134 : vector<8x64xf32>
    %cst_55 = arith.constant 4.471500e-02 : f32
    %137 = vector.broadcast %cst_55 : f32 to vector<8x64xf32>
    %138 = arith.mulf %137, %134 : vector<8x64xf32>
    %139 = arith.mulf %138, %134 : vector<8x64xf32>
    %140 = arith.mulf %139, %134 : vector<8x64xf32>
    %141 = arith.addf %134, %140 : vector<8x64xf32>
    %cst_56 = arith.constant 0.797884583 : f32
    %142 = vector.broadcast %cst_56 : f32 to vector<8x64xf32>
    %143 = arith.mulf %142, %141 : vector<8x64xf32>
    %144 = math.tanh %143 : vector<8x64xf32>
    %cst_57 = arith.constant 1.000000e+00 : f32
    %145 = vector.broadcast %cst_57 : f32 to vector<8x64xf32>
    %146 = arith.addf %145, %144 : vector<8x64xf32>
    %147 = arith.mulf %136, %146 : vector<8x64xf32>
    %148 = arith.truncf %147 : vector<8x64xf32> to vector<8x64xbf16>
    %c0_58 = arith.constant 0 : index
    %c0_59 = arith.constant 0 : index
    %c0_60 = arith.constant 0 : index
    %149 = vector.load %arg12[%c0_58, %c0_59, %c0_60] : memref<2x64x32xbf16, #tpu.memory_space<vmem>>, vector<1x64x32xbf16>
    %150 = vector.shape_cast %149 : vector<1x64x32xbf16> to vector<64x32xbf16>
    %cst_61 = arith.constant dense<0.000000e+00> : vector<8x32xf32>
    %151 = tpu.matmul %148, %150, %cst_61 {dimension_numbers = #tpu.dot_dimension_numbers<[1], [0], [0], [1], [0, 0, 1, 1], [], []>} : vector<8x64xbf16>, vector<64x32xbf16>, vector<8x32xf32> -> vector<8x32xf32>
    %c0_62 = arith.constant 0 : index
    %c0_63 = arith.constant 0 : index
    %c0_64 = arith.constant 0 : index
    %152 = vector.load %arg13[%c0_62, %c0_63, %c0_64] : memref<2x1x32xf32, #tpu.memory_space<vmem>>, vector<1x1x32xf32>
    %153 = vector.shape_cast %152 : vector<1x1x32xf32> to vector<1x32xf32>
    %154 = vector.broadcast %153 : vector<1x32xf32> to vector<8x32xf32>
    %155 = arith.addf %151, %154 : vector<8x32xf32>
    %156 = arith.addf %126, %155 : vector<8x32xf32>
    %c0_65 = arith.constant 0 : index
    %c0_66 = arith.constant 0 : index
    %c0_67 = arith.constant 0 : index
    %157 = vector.load %arg14[%c0_65, %c0_66, %c0_67] : memref<2x1x32xf32, #tpu.memory_space<vmem>>, vector<1x1x32xf32>
    %158 = vector.shape_cast %157 : vector<1x1x32xf32> to vector<1x32xf32>
    %c0_68 = arith.constant 0 : index
    %c0_69 = arith.constant 0 : index
    %c0_70 = arith.constant 0 : index
    %159 = vector.load %arg15[%c0_68, %c0_69, %c0_70] : memref<2x1x32xf32, #tpu.memory_space<vmem>>, vector<1x1x32xf32>
    %160 = vector.shape_cast %159 : vector<1x1x32xf32> to vector<1x32xf32>
    %cst_71 = arith.constant dense<0.000000e+00> : vector<8xf32>
    %161 = vector.multi_reduction <add>, %156, %cst_71 [1] : vector<8x32xf32> to vector<8xf32>
    %162 = vector.shape_cast %161 : vector<8xf32> to vector<8x1xf32>
    %cst_72 = arith.constant 3.200000e+01 : f32
    %163 = vector.broadcast %cst_72 : f32 to vector<8x1xf32>
    %164 = arith.divf %162, %163 : vector<8x1xf32>
    %165 = vector.broadcast %164 : vector<8x1xf32> to vector<8x32xf32>
    %166 = arith.subf %156, %165 : vector<8x32xf32>
    %167 = arith.mulf %166, %166 : vector<8x32xf32>
    %cst_73 = arith.constant dense<0.000000e+00> : vector<8xf32>
    %168 = vector.multi_reduction <add>, %167, %cst_73 [1] : vector<8x32xf32> to vector<8xf32>
    %169 = vector.shape_cast %168 : vector<8xf32> to vector<8x1xf32>
    %cst_74 = arith.constant 3.200000e+01 : f32
    %170 = vector.broadcast %cst_74 : f32 to vector<8x1xf32>
    %171 = arith.divf %169, %170 : vector<8x1xf32>
    %172 = vector.broadcast %164 : vector<8x1xf32> to vector<8x32xf32>
    %173 = arith.subf %156, %172 : vector<8x32xf32>
    %cst_75 = arith.constant 9.99999974E-6 : f32
    %174 = vector.broadcast %cst_75 : f32 to vector<8x1xf32>
    %175 = arith.addf %171, %174 : vector<8x1xf32>
    %176 = math.rsqrt %175 : vector<8x1xf32>
    %177 = vector.broadcast %176 : vector<8x1xf32> to vector<8x32xf32>
    %178 = arith.mulf %173, %177 : vector<8x32xf32>
    %179 = vector.broadcast %158 : vector<1x32xf32> to vector<8x32xf32>
    %180 = arith.mulf %178, %179 : vector<8x32xf32>
    %181 = vector.broadcast %160 : vector<1x32xf32> to vector<8x32xf32>
    %182 = arith.addf %180, %181 : vector<8x32xf32>
    %183 = arith.truncf %182 : vector<8x32xf32> to vector<8x32xbf16>
    %c1 = arith.constant 1 : index
    %c0_76 = arith.constant 0 : index
    %c0_77 = arith.constant 0 : index
    %184 = vector.load %arg4[%c1, %c0_76, %c0_77] : memref<2x32x96xbf16, #tpu.memory_space<vmem>>, vector<1x32x96xbf16>
    %185 = vector.shape_cast %184 : vector<1x32x96xbf16> to vector<32x96xbf16>
    %cst_78 = arith.constant dense<0.000000e+00> : vector<8x96xf32>
    %186 = tpu.matmul %183, %185, %cst_78 {dimension_numbers = #tpu.dot_dimension_numbers<[1], [0], [0], [1], [0, 0, 1, 1], [], []>} : vector<8x32xbf16>, vector<32x96xbf16>, vector<8x96xf32> -> vector<8x96xf32>
    %c1_79 = arith.constant 1 : index
    %c0_80 = arith.constant 0 : index
    %c0_81 = arith.constant 0 : index
    %187 = vector.load %arg5[%c1_79, %c0_80, %c0_81] : memref<2x1x96xf32, #tpu.memory_space<vmem>>, vector<1x1x96xf32>
    %188 = vector.shape_cast %187 : vector<1x1x96xf32> to vector<1x96xf32>
    %189 = vector.broadcast %188 : vector<1x96xf32> to vector<8x96xf32>
    %190 = arith.addf %186, %189 : vector<8x96xf32>
    %191 = vector.extract_strided_slice %190 {offsets = [0, 0], sizes = [8, 8], strides = [1, 1]} : vector<8x96xf32> to vector<8x8xf32>
    %192 = arith.truncf %191 : vector<8x8xf32> to vector<8x8xbf16>
    %193 = vector.extract_strided_slice %190 {offsets = [0, 32], sizes = [8, 8], strides = [1, 1]} : vector<8x96xf32> to vector<8x8xf32>
    %194 = arith.truncf %193 : vector<8x8xf32> to vector<8x8xbf16>
    %195 = vector.extract_strided_slice %190 {offsets = [0, 64], sizes = [8, 8], strides = [1, 1]} : vector<8x96xf32> to vector<8x8xf32>
    %196 = arith.truncf %195 : vector<8x8xf32> to vector<8x8xbf16>
    %cst_82 = arith.constant dense<0.000000e+00> : vector<8x8xf32>
    %197 = tpu.matmul %192, %194, %cst_82 {dimension_numbers = #tpu.dot_dimension_numbers<[1], [1], [0], [0], [0, 0, 1, 0], [], []>} : vector<8x8xbf16>, vector<8x8xbf16>, vector<8x8xf32> -> vector<8x8xf32>
    %cst_83 = arith.constant dense<0xFF800000> : vector<8xf32>
    %198 = vector.multi_reduction <maximumf>, %197, %cst_83 [1] : vector<8x8xf32> to vector<8xf32>
    %199 = vector.shape_cast %198 : vector<8xf32> to vector<8x1xf32>
    %200 = vector.broadcast %199 : vector<8x1xf32> to vector<8x8xf32>
    %201 = arith.subf %197, %200 : vector<8x8xf32>
    %202 = math.exp %201 : vector<8x8xf32>
    %cst_84 = arith.constant dense<0.000000e+00> : vector<8xf32>
    %203 = vector.multi_reduction <add>, %202, %cst_84 [1] : vector<8x8xf32> to vector<8xf32>
    %204 = vector.shape_cast %203 : vector<8xf32> to vector<8x1xf32>
    %205 = tpu.reciprocal %204 {approx = true} : vector<8x1xf32> -> vector<8x1xf32>
    %206 = vector.broadcast %205 : vector<8x1xf32> to vector<8x8xf32>
    %207 = arith.mulf %202, %206 : vector<8x8xf32>
    %208 = arith.truncf %207 : vector<8x8xf32> to vector<8x8xbf16>
    %cst_85 = arith.constant dense<0.000000e+00> : vector<8x8xf32>
    %209 = tpu.matmul %208, %196, %cst_85 {dimension_numbers = #tpu.dot_dimension_numbers<[1], [0], [0], [1], [0, 0, 1, 1], [], []>} : vector<8x8xbf16>, vector<8x8xbf16>, vector<8x8xf32> -> vector<8x8xf32>
    %210 = vector.extract_strided_slice %190 {offsets = [0, 8], sizes = [8, 8], strides = [1, 1]} : vector<8x96xf32> to vector<8x8xf32>
    %211 = arith.truncf %210 : vector<8x8xf32> to vector<8x8xbf16>
    %212 = vector.extract_strided_slice %190 {offsets = [0, 40], sizes = [8, 8], strides = [1, 1]} : vector<8x96xf32> to vector<8x8xf32>
    %213 = arith.truncf %212 : vector<8x8xf32> to vector<8x8xbf16>
    %214 = vector.extract_strided_slice %190 {offsets = [0, 72], sizes = [8, 8], strides = [1, 1]} : vector<8x96xf32> to vector<8x8xf32>
    %215 = arith.truncf %214 : vector<8x8xf32> to vector<8x8xbf16>
    %cst_86 = arith.constant dense<0.000000e+00> : vector<8x8xf32>
    %216 = tpu.matmul %211, %213, %cst_86 {dimension_numbers = #tpu.dot_dimension_numbers<[1], [1], [0], [0], [0, 0, 1, 0], [], []>} : vector<8x8xbf16>, vector<8x8xbf16>, vector<8x8xf32> -> vector<8x8xf32>
    %cst_87 = arith.constant dense<0xFF800000> : vector<8xf32>
    %217 = vector.multi_reduction <maximumf>, %216, %cst_87 [1] : vector<8x8xf32> to vector<8xf32>
    %218 = vector.shape_cast %217 : vector<8xf32> to vector<8x1xf32>
    %219 = vector.broadcast %218 : vector<8x1xf32> to vector<8x8xf32>
    %220 = arith.subf %216, %219 : vector<8x8xf32>
    %221 = math.exp %220 : vector<8x8xf32>
    %cst_88 = arith.constant dense<0.000000e+00> : vector<8xf32>
    %222 = vector.multi_reduction <add>, %221, %cst_88 [1] : vector<8x8xf32> to vector<8xf32>
    %223 = vector.shape_cast %222 : vector<8xf32> to vector<8x1xf32>
    %224 = tpu.reciprocal %223 {approx = true} : vector<8x1xf32> -> vector<8x1xf32>
    %225 = vector.broadcast %224 : vector<8x1xf32> to vector<8x8xf32>
    %226 = arith.mulf %221, %225 : vector<8x8xf32>
    %227 = arith.truncf %226 : vector<8x8xf32> to vector<8x8xbf16>
    %cst_89 = arith.constant dense<0.000000e+00> : vector<8x8xf32>
    %228 = tpu.matmul %227, %215, %cst_89 {dimension_numbers = #tpu.dot_dimension_numbers<[1], [0], [0], [1], [0, 0, 1, 1], [], []>} : vector<8x8xbf16>, vector<8x8xbf16>, vector<8x8xf32> -> vector<8x8xf32>
    %229 = vector.extract_strided_slice %190 {offsets = [0, 16], sizes = [8, 8], strides = [1, 1]} : vector<8x96xf32> to vector<8x8xf32>
    %230 = arith.truncf %229 : vector<8x8xf32> to vector<8x8xbf16>
    %231 = vector.extract_strided_slice %190 {offsets = [0, 48], sizes = [8, 8], strides = [1, 1]} : vector<8x96xf32> to vector<8x8xf32>
    %232 = arith.truncf %231 : vector<8x8xf32> to vector<8x8xbf16>
    %233 = vector.extract_strided_slice %190 {offsets = [0, 80], sizes = [8, 8], strides = [1, 1]} : vector<8x96xf32> to vector<8x8xf32>
    %234 = arith.truncf %233 : vector<8x8xf32> to vector<8x8xbf16>
    %cst_90 = arith.constant dense<0.000000e+00> : vector<8x8xf32>
    %235 = tpu.matmul %230, %232, %cst_90 {dimension_numbers = #tpu.dot_dimension_numbers<[1], [1], [0], [0], [0, 0, 1, 0], [], []>} : vector<8x8xbf16>, vector<8x8xbf16>, vector<8x8xf32> -> vector<8x8xf32>
    %cst_91 = arith.constant dense<0xFF800000> : vector<8xf32>
    %236 = vector.multi_reduction <maximumf>, %235, %cst_91 [1] : vector<8x8xf32> to vector<8xf32>
    %237 = vector.shape_cast %236 : vector<8xf32> to vector<8x1xf32>
    %238 = vector.broadcast %237 : vector<8x1xf32> to vector<8x8xf32>
    %239 = arith.subf %235, %238 : vector<8x8xf32>
    %240 = math.exp %239 : vector<8x8xf32>
    %cst_92 = arith.constant dense<0.000000e+00> : vector<8xf32>
    %241 = vector.multi_reduction <add>, %240, %cst_92 [1] : vector<8x8xf32> to vector<8xf32>
    %242 = vector.shape_cast %241 : vector<8xf32> to vector<8x1xf32>
    %243 = tpu.reciprocal %242 {approx = true} : vector<8x1xf32> -> vector<8x1xf32>
    %244 = vector.broadcast %243 : vector<8x1xf32> to vector<8x8xf32>
    %245 = arith.mulf %240, %244 : vector<8x8xf32>
    %246 = arith.truncf %245 : vector<8x8xf32> to vector<8x8xbf16>
    %cst_93 = arith.constant dense<0.000000e+00> : vector<8x8xf32>
    %247 = tpu.matmul %246, %234, %cst_93 {dimension_numbers = #tpu.dot_dimension_numbers<[1], [0], [0], [1], [0, 0, 1, 1], [], []>} : vector<8x8xbf16>, vector<8x8xbf16>, vector<8x8xf32> -> vector<8x8xf32>
    %248 = vector.extract_strided_slice %190 {offsets = [0, 24], sizes = [8, 8], strides = [1, 1]} : vector<8x96xf32> to vector<8x8xf32>
    %249 = arith.truncf %248 : vector<8x8xf32> to vector<8x8xbf16>
    %250 = vector.extract_strided_slice %190 {offsets = [0, 56], sizes = [8, 8], strides = [1, 1]} : vector<8x96xf32> to vector<8x8xf32>
    %251 = arith.truncf %250 : vector<8x8xf32> to vector<8x8xbf16>
    %252 = vector.extract_strided_slice %190 {offsets = [0, 88], sizes = [8, 8], strides = [1, 1]} : vector<8x96xf32> to vector<8x8xf32>
    %253 = arith.truncf %252 : vector<8x8xf32> to vector<8x8xbf16>
    %cst_94 = arith.constant dense<0.000000e+00> : vector<8x8xf32>
    %254 = tpu.matmul %249, %251, %cst_94 {dimension_numbers = #tpu.dot_dimension_numbers<[1], [1], [0], [0], [0, 0, 1, 0], [], []>} : vector<8x8xbf16>, vector<8x8xbf16>, vector<8x8xf32> -> vector<8x8xf32>
    %cst_95 = arith.constant dense<0xFF800000> : vector<8xf32>
    %255 = vector.multi_reduction <maximumf>, %254, %cst_95 [1] : vector<8x8xf32> to vector<8xf32>
    %256 = vector.shape_cast %255 : vector<8xf32> to vector<8x1xf32>
    %257 = vector.broadcast %256 : vector<8x1xf32> to vector<8x8xf32>
    %258 = arith.subf %254, %257 : vector<8x8xf32>
    %259 = math.exp %258 : vector<8x8xf32>
    %cst_96 = arith.constant dense<0.000000e+00> : vector<8xf32>
    %260 = vector.multi_reduction <add>, %259, %cst_96 [1] : vector<8x8xf32> to vector<8xf32>
    %261 = vector.shape_cast %260 : vector<8xf32> to vector<8x1xf32>
    %262 = tpu.reciprocal %261 {approx = true} : vector<8x1xf32> -> vector<8x1xf32>
    %263 = vector.broadcast %262 : vector<8x1xf32> to vector<8x8xf32>
    %264 = arith.mulf %259, %263 : vector<8x8xf32>
    %265 = arith.truncf %264 : vector<8x8xf32> to vector<8x8xbf16>
    %cst_97 = arith.constant dense<0.000000e+00> : vector<8x8xf32>
    %266 = tpu.matmul %265, %253, %cst_97 {dimension_numbers = #tpu.dot_dimension_numbers<[1], [0], [0], [1], [0, 0, 1, 1], [], []>} : vector<8x8xbf16>, vector<8x8xbf16>, vector<8x8xf32> -> vector<8x8xf32>
    %267 = tpu.concatenate %209, %228, %247, %266 in 1 : vector<8x8xf32>, vector<8x8xf32>, vector<8x8xf32>, vector<8x8xf32> -> vector<8x32xf32>
    %268 = arith.truncf %267 : vector<8x32xf32> to vector<8x32xbf16>
    %c1_98 = arith.constant 1 : index
    %c0_99 = arith.constant 0 : index
    %c0_100 = arith.constant 0 : index
    %269 = vector.load %arg6[%c1_98, %c0_99, %c0_100] : memref<2x32x32xbf16, #tpu.memory_space<vmem>>, vector<1x32x32xbf16>
    %270 = vector.shape_cast %269 : vector<1x32x32xbf16> to vector<32x32xbf16>
    %cst_101 = arith.constant dense<0.000000e+00> : vector<8x32xf32>
    %271 = tpu.matmul %268, %270, %cst_101 {dimension_numbers = #tpu.dot_dimension_numbers<[1], [0], [0], [1], [0, 0, 1, 1], [], []>} : vector<8x32xbf16>, vector<32x32xbf16>, vector<8x32xf32> -> vector<8x32xf32>
    %c1_102 = arith.constant 1 : index
    %c0_103 = arith.constant 0 : index
    %c0_104 = arith.constant 0 : index
    %272 = vector.load %arg7[%c1_102, %c0_103, %c0_104] : memref<2x1x32xf32, #tpu.memory_space<vmem>>, vector<1x1x32xf32>
    %273 = vector.shape_cast %272 : vector<1x1x32xf32> to vector<1x32xf32>
    %274 = vector.broadcast %273 : vector<1x32xf32> to vector<8x32xf32>
    %275 = arith.addf %271, %274 : vector<8x32xf32>
    %276 = arith.addf %182, %275 : vector<8x32xf32>
    %c1_105 = arith.constant 1 : index
    %c0_106 = arith.constant 0 : index
    %c0_107 = arith.constant 0 : index
    %277 = vector.load %arg8[%c1_105, %c0_106, %c0_107] : memref<2x1x32xf32, #tpu.memory_space<vmem>>, vector<1x1x32xf32>
    %278 = vector.shape_cast %277 : vector<1x1x32xf32> to vector<1x32xf32>
    %c1_108 = arith.constant 1 : index
    %c0_109 = arith.constant 0 : index
    %c0_110 = arith.constant 0 : index
    %279 = vector.load %arg9[%c1_108, %c0_109, %c0_110] : memref<2x1x32xf32, #tpu.memory_space<vmem>>, vector<1x1x32xf32>
    %280 = vector.shape_cast %279 : vector<1x1x32xf32> to vector<1x32xf32>
    %cst_111 = arith.constant dense<0.000000e+00> : vector<8xf32>
    %281 = vector.multi_reduction <add>, %276, %cst_111 [1] : vector<8x32xf32> to vector<8xf32>
    %282 = vector.shape_cast %281 : vector<8xf32> to vector<8x1xf32>
    %cst_112 = arith.constant 3.200000e+01 : f32
    %283 = vector.broadcast %cst_112 : f32 to vector<8x1xf32>
    %284 = arith.divf %282, %283 : vector<8x1xf32>
    %285 = vector.broadcast %284 : vector<8x1xf32> to vector<8x32xf32>
    %286 = arith.subf %276, %285 : vector<8x32xf32>
    %287 = arith.mulf %286, %286 : vector<8x32xf32>
    %cst_113 = arith.constant dense<0.000000e+00> : vector<8xf32>
    %288 = vector.multi_reduction <add>, %287, %cst_113 [1] : vector<8x32xf32> to vector<8xf32>
    %289 = vector.shape_cast %288 : vector<8xf32> to vector<8x1xf32>
    %cst_114 = arith.constant 3.200000e+01 : f32
    %290 = vector.broadcast %cst_114 : f32 to vector<8x1xf32>
    %291 = arith.divf %289, %290 : vector<8x1xf32>
    %292 = vector.broadcast %284 : vector<8x1xf32> to vector<8x32xf32>
    %293 = arith.subf %276, %292 : vector<8x32xf32>
    %cst_115 = arith.constant 9.99999974E-6 : f32
    %294 = vector.broadcast %cst_115 : f32 to vector<8x1xf32>
    %295 = arith.addf %291, %294 : vector<8x1xf32>
    %296 = math.rsqrt %295 : vector<8x1xf32>
    %297 = vector.broadcast %296 : vector<8x1xf32> to vector<8x32xf32>
    %298 = arith.mulf %293, %297 : vector<8x32xf32>
    %299 = vector.broadcast %278 : vector<1x32xf32> to vector<8x32xf32>
    %300 = arith.mulf %298, %299 : vector<8x32xf32>
    %301 = vector.broadcast %280 : vector<1x32xf32> to vector<8x32xf32>
    %302 = arith.addf %300, %301 : vector<8x32xf32>
    %303 = arith.truncf %302 : vector<8x32xf32> to vector<8x32xbf16>
    %c1_116 = arith.constant 1 : index
    %c0_117 = arith.constant 0 : index
    %c0_118 = arith.constant 0 : index
    %304 = vector.load %arg10[%c1_116, %c0_117, %c0_118] : memref<2x32x64xbf16, #tpu.memory_space<vmem>>, vector<1x32x64xbf16>
    %305 = vector.shape_cast %304 : vector<1x32x64xbf16> to vector<32x64xbf16>
    %cst_119 = arith.constant dense<0.000000e+00> : vector<8x64xf32>
    %306 = tpu.matmul %303, %305, %cst_119 {dimension_numbers = #tpu.dot_dimension_numbers<[1], [0], [0], [1], [0, 0, 1, 1], [], []>} : vector<8x32xbf16>, vector<32x64xbf16>, vector<8x64xf32> -> vector<8x64xf32>
    %c1_120 = arith.constant 1 : index
    %c0_121 = arith.constant 0 : index
    %c0_122 = arith.constant 0 : index
    %307 = vector.load %arg11[%c1_120, %c0_121, %c0_122] : memref<2x1x64xf32, #tpu.memory_space<vmem>>, vector<1x1x64xf32>
    %308 = vector.shape_cast %307 : vector<1x1x64xf32> to vector<1x64xf32>
    %309 = vector.broadcast %308 : vector<1x64xf32> to vector<8x64xf32>
    %310 = arith.addf %306, %309 : vector<8x64xf32>
    %cst_123 = arith.constant 5.000000e-01 : f32
    %311 = vector.broadcast %cst_123 : f32 to vector<8x64xf32>
    %312 = arith.mulf %311, %310 : vector<8x64xf32>
    %cst_124 = arith.constant 4.471500e-02 : f32
    %313 = vector.broadcast %cst_124 : f32 to vector<8x64xf32>
    %314 = arith.mulf %313, %310 : vector<8x64xf32>
    %315 = arith.mulf %314, %310 : vector<8x64xf32>
    %316 = arith.mulf %315, %310 : vector<8x64xf32>
    %317 = arith.addf %310, %316 : vector<8x64xf32>
    %cst_125 = arith.constant 0.797884583 : f32
    %318 = vector.broadcast %cst_125 : f32 to vector<8x64xf32>
    %319 = arith.mulf %318, %317 : vector<8x64xf32>
    %320 = math.tanh %319 : vector<8x64xf32>
    %cst_126 = arith.constant 1.000000e+00 : f32
    %321 = vector.broadcast %cst_126 : f32 to vector<8x64xf32>
    %322 = arith.addf %321, %320 : vector<8x64xf32>
    %323 = arith.mulf %312, %322 : vector<8x64xf32>
    %324 = arith.truncf %323 : vector<8x64xf32> to vector<8x64xbf16>
    %c1_127 = arith.constant 1 : index
    %c0_128 = arith.constant 0 : index
    %c0_129 = arith.constant 0 : index
    %325 = vector.load %arg12[%c1_127, %c0_128, %c0_129] : memref<2x64x32xbf16, #tpu.memory_space<vmem>>, vector<1x64x32xbf16>
    %326 = vector.shape_cast %325 : vector<1x64x32xbf16> to vector<64x32xbf16>
    %cst_130 = arith.constant dense<0.000000e+00> : vector<8x32xf32>
    %327 = tpu.matmul %324, %326, %cst_130 {dimension_numbers = #tpu.dot_dimension_numbers<[1], [0], [0], [1], [0, 0, 1, 1], [], []>} : vector<8x64xbf16>, vector<64x32xbf16>, vector<8x32xf32> -> vector<8x32xf32>
    %c1_131 = arith.constant 1 : index
    %c0_132 = arith.constant 0 : index
    %c0_133 = arith.constant 0 : index
    %328 = vector.load %arg13[%c1_131, %c0_132, %c0_133] : memref<2x1x32xf32, #tpu.memory_space<vmem>>, vector<1x1x32xf32>
    %329 = vector.shape_cast %328 : vector<1x1x32xf32> to vector<1x32xf32>
    %330 = vector.broadcast %329 : vector<1x32xf32> to vector<8x32xf32>
    %331 = arith.addf %327, %330 : vector<8x32xf32>
    %332 = arith.addf %302, %331 : vector<8x32xf32>
    %c1_134 = arith.constant 1 : index
    %c0_135 = arith.constant 0 : index
    %c0_136 = arith.constant 0 : index
    %333 = vector.load %arg14[%c1_134, %c0_135, %c0_136] : memref<2x1x32xf32, #tpu.memory_space<vmem>>, vector<1x1x32xf32>
    %334 = vector.shape_cast %333 : vector<1x1x32xf32> to vector<1x32xf32>
    %c1_137 = arith.constant 1 : index
    %c0_138 = arith.constant 0 : index
    %c0_139 = arith.constant 0 : index
    %335 = vector.load %arg15[%c1_137, %c0_138, %c0_139] : memref<2x1x32xf32, #tpu.memory_space<vmem>>, vector<1x1x32xf32>
    %336 = vector.shape_cast %335 : vector<1x1x32xf32> to vector<1x32xf32>
    %cst_140 = arith.constant dense<0.000000e+00> : vector<8xf32>
    %337 = vector.multi_reduction <add>, %332, %cst_140 [1] : vector<8x32xf32> to vector<8xf32>
    %338 = vector.shape_cast %337 : vector<8xf32> to vector<8x1xf32>
    %cst_141 = arith.constant 3.200000e+01 : f32
    %339 = vector.broadcast %cst_141 : f32 to vector<8x1xf32>
    %340 = arith.divf %338, %339 : vector<8x1xf32>
    %341 = vector.broadcast %340 : vector<8x1xf32> to vector<8x32xf32>
    %342 = arith.subf %332, %341 : vector<8x32xf32>
    %343 = arith.mulf %342, %342 : vector<8x32xf32>
    %cst_142 = arith.constant dense<0.000000e+00> : vector<8xf32>
    %344 = vector.multi_reduction <add>, %343, %cst_142 [1] : vector<8x32xf32> to vector<8xf32>
    %345 = vector.shape_cast %344 : vector<8xf32> to vector<8x1xf32>
    %cst_143 = arith.constant 3.200000e+01 : f32
    %346 = vector.broadcast %cst_143 : f32 to vector<8x1xf32>
    %347 = arith.divf %345, %346 : vector<8x1xf32>
    %348 = vector.broadcast %340 : vector<8x1xf32> to vector<8x32xf32>
    %349 = arith.subf %332, %348 : vector<8x32xf32>
    %cst_144 = arith.constant 9.99999974E-6 : f32
    %350 = vector.broadcast %cst_144 : f32 to vector<8x1xf32>
    %351 = arith.addf %347, %350 : vector<8x1xf32>
    %352 = math.rsqrt %351 : vector<8x1xf32>
    %353 = vector.broadcast %352 : vector<8x1xf32> to vector<8x32xf32>
    %354 = arith.mulf %349, %353 : vector<8x32xf32>
    %355 = vector.broadcast %334 : vector<1x32xf32> to vector<8x32xf32>
    %356 = arith.mulf %354, %355 : vector<8x32xf32>
    %357 = vector.broadcast %336 : vector<1x32xf32> to vector<8x32xf32>
    %358 = arith.addf %356, %357 : vector<8x32xf32>
    %359 = arith.truncf %358 : vector<8x32xf32> to vector<8x32xbf16>
    %c0_145 = arith.constant 0 : index
    %c0_146 = arith.constant 0 : index
    %360 = vector.load %arg16[%c0_145, %c0_146] : memref<32x128xbf16, #tpu.memory_space<vmem>>, vector<32x128xbf16>
    %cst_147 = arith.constant dense<0.000000e+00> : vector<8x128xf32>
    %361 = tpu.matmul %359, %360, %cst_147 {dimension_numbers = #tpu.dot_dimension_numbers<[1], [0], [0], [1], [0, 0, 1, 1], [], []>} : vector<8x32xbf16>, vector<32x128xbf16>, vector<8x128xf32> -> vector<8x128xf32>
    %c0_148 = arith.constant 0 : index
    %c0_149 = arith.constant 0 : index
    %362 = vector.load %arg17[%c0_148, %c0_149] : memref<1x128xf32, #tpu.memory_space<vmem>>, vector<1x128xf32>
    %363 = vector.broadcast %362 : vector<1x128xf32> to vector<8x128xf32>
    %364 = arith.addf %361, %363 : vector<8x128xf32>
    %365 = vector.shape_cast %364 : vector<8x128xf32> to vector<1x8x128xf32>
    %c0_150 = arith.constant 0 : index
    %c0_151 = arith.constant 0 : index
    %c0_152 = arith.constant 0 : index
    %366 = vector.load %arg18[%c0_150, %c0_151, %c0_152] : memref<1x8x128xf32, #tpu.memory_space<vmem>>, vector<1x8x128xf32>
    tpu.vector_store %arg18[%c0_150, %c0_151, %c0_152], %365 {strides = array<i32>} : memref<1x8x128xf32, #tpu.memory_space<vmem>>, vector<1x8x128xf32>,
    return
  }
  func.func @transform_0(%arg0: i32) -> (i32, i32, i32) {
    %c0_i32 = arith.constant 0 : i32
    %c0_i32_0 = arith.constant 0 : i32
    %c0_i32_1 = arith.constant 0 : i32
    return %arg0, %c0_i32, %c0_i32_0 : i32, i32, i32
  }
  func.func @transform_1(%arg0: i32) -> (i32, i32) {
    %c0_i32 = arith.constant 0 : i32
    %c0_i32_0 = arith.constant 0 : i32
    %c0_i32_1 = arith.constant 0 : i32
    return %c0_i32, %c0_i32_0 : i32, i32
  }
  func.func @transform_2(%arg0: i32) -> (i32, i32) {
    %c0_i32 = arith.constant 0 : i32
    %c0_i32_0 = arith.constant 0 : i32
    %c0_i32_1 = arith.constant 0 : i32
    return %c0_i32, %c0_i32_0 : i32, i32
  }
  func.func @transform_3(%arg0: i32) -> (i32, i32, i32) {
    %c0_i32 = arith.constant 0 : i32
    %c0_i32_0 = arith.constant 0 : i32
    %c0_i32_1 = arith.constant 0 : i32
    %c0_i32_2 = arith.constant 0 : i32
    return %c0_i32, %c0_i32_0, %c0_i32_1 : i32, i32, i32
  }
  func.func @transform_4(%arg0: i32) -> (i32, i32, i32) {
    %c0_i32 = arith.constant 0 : i32
    %c0_i32_0 = arith.constant 0 : i32
    %c0_i32_1 = arith.constant 0 : i32
    %c0_i32_2 = arith.constant 0 : i32
    return %c0_i32, %c0_i32_0, %c0_i32_1 : i32, i32, i32
  }
  func.func @transform_5(%arg0: i32) -> (i32, i32, i32) {
    %c0_i32 = arith.constant 0 : i32
    %c0_i32_0 = arith.constant 0 : i32
    %c0_i32_1 = arith.constant 0 : i32
    %c0_i32_2 = arith.constant 0 : i32
    return %c0_i32, %c0_i32_0, %c0_i32_1 : i32, i32, i32
  }
  func.func @transform_6(%arg0: i32) -> (i32, i32, i32) {
    %c0_i32 = arith.constant 0 : i32
    %c0_i32_0 = arith.constant 0 : i32
    %c0_i32_1 = arith.constant 0 : i32
    %c0_i32_2 = arith.constant 0 : i32
    return %c0_i32, %c0_i32_0, %c0_i32_1 : i32, i32, i32
  }
  func.func @transform_7(%arg0: i32) -> (i32, i32, i32) {
    %c0_i32 = arith.constant 0 : i32
    %c0_i32_0 = arith.constant 0 : i32
    %c0_i32_1 = arith.constant 0 : i32
    %c0_i32_2 = arith.constant 0 : i32
    return %c0_i32, %c0_i32_0, %c0_i32_1 : i32, i32, i32
  }
  func.func @transform_8(%arg0: i32) -> (i32, i32, i32) {
    %c0_i32 = arith.constant 0 : i32
    %c0_i32_0 = arith.constant 0 : i32
    %c0_i32_1 = arith.constant 0 : i32
    %c0_i32_2 = arith.constant 0 : i32
    return %c0_i32, %c0_i32_0, %c0_i32_1 : i32, i32, i32
  }
  func.func @transform_9(%arg0: i32) -> (i32, i32, i32) {
    %c0_i32 = arith.constant 0 : i32
    %c0_i32_0 = arith.constant 0 : i32
    %c0_i32_1 = arith.constant 0 : i32
    %c0_i32_2 = arith.constant 0 : i32
    return %c0_i32, %c0_i32_0, %c0_i32_1 : i32, i32, i32
  }
  func.func @transform_10(%arg0: i32) -> (i32, i32, i32) {
    %c0_i32 = arith.constant 0 : i32
    %c0_i32_0 = arith.constant 0 : i32
    %c0_i32_1 = arith.constant 0 : i32
    %c0_i32_2 = arith.constant 0 : i32
    return %c0_i32, %c0_i32_0, %c0_i32_1 : i32, i32, i32
  }
  func.func @transform_11(%arg0: i32) -> (i32, i32, i32) {
    %c0_i32 = arith.constant 0 : i32
    %c0_i32_0 = arith.constant 0 : i32
    %c0_i32_1 = arith.constant 0 : i32
    %c0_i32_2 = arith.constant 0 : i32
    return %c0_i32, %c0_i32_0, %c0_i32_1 : i32, i32, i32
  }
  func.func @transform_12(%arg0: i32) -> (i32, i32, i32) {
    %c0_i32 = arith.constant 0 : i32
    %c0_i32_0 = arith.constant 0 : i32
    %c0_i32_1 = arith.constant 0 : i32
    %c0_i32_2 = arith.constant 0 : i32
    return %c0_i32, %c0_i32_0, %c0_i32_1 : i32, i32, i32
  }
  func.func @transform_13(%arg0: i32) -> (i32, i32, i32) {
    %c0_i32 = arith.constant 0 : i32
    %c0_i32_0 = arith.constant 0 : i32
    %c0_i32_1 = arith.constant 0 : i32
    %c0_i32_2 = arith.constant 0 : i32
    return %c0_i32, %c0_i32_0, %c0_i32_1 : i32, i32, i32
  }
  func.func @transform_14(%arg0: i32) -> (i32, i32, i32) {
    %c0_i32 = arith.constant 0 : i32
    %c0_i32_0 = arith.constant 0 : i32
    %c0_i32_1 = arith.constant 0 : i32
    %c0_i32_2 = arith.constant 0 : i32
    return %c0_i32, %c0_i32_0, %c0_i32_1 : i32, i32, i32
  }
  func.func @transform_15(%arg0: i32) -> (i32, i32) {
    %c0_i32 = arith.constant 0 : i32
    %c0_i32_0 = arith.constant 0 : i32
    %c0_i32_1 = arith.constant 0 : i32
    return %c0_i32, %c0_i32_0 : i32, i32
  }
  func.func @transform_16(%arg0: i32) -> (i32, i32) {
    %c0_i32 = arith.constant 0 : i32
    %c0_i32_0 = arith.constant 0 : i32
    %c0_i32_1 = arith.constant 0 : i32
    return %c0_i32, %c0_i32_0 : i32, i32
  }
  func.func @transform_17(%arg0: i32) -> (i32, i32, i32) {
    %c0_i32 = arith.constant 0 : i32
    %c0_i32_0 = arith.constant 0 : i32
    %c0_i32_1 = arith.constant 0 : i32
    return %arg0, %c0_i32, %c0_i32_0 : i32, i32, i32
  }
}

module attributes {stable_mosaic.version = 11 : i64} {
  func.func @fused_transformer_kernel(%arg0: i32, %arg1: memref<1x8x4xbf16, #tpu.memory_space<vmem>>, %arg2: memref<4x32xbf16, #tpu.memory_space<vmem>>, %arg3: memref<1x32xf32, #tpu.memory_space<vmem>>, %arg4: memref<2x32x96xbf16, #tpu.memory_space<vmem>>, %arg5: memref<2x1x96xf32, #tpu.memory_space<vmem>>, %arg6: memref<2x32x32xbf16, #tpu.memory_space<vmem>>, %arg7: memref<2x1x32xf32, #tpu.memory_space<vmem>>, %arg8: memref<2x1x32xf32, #tpu.memory_space<vmem>>, %arg9: memref<2x1x32xf32, #tpu.memory_space<vmem>>, %arg10: memref<2x32x64xbf16, #tpu.memory_space<vmem>>, %arg11: memref<2x1x64xf32, #tpu.memory_space<vmem>>, %arg12: memref<2x64x32xbf16, #tpu.memory_space<vmem>>, %arg13: memref<2x1x32xf32, #tpu.memory_space<vmem>>, %arg14: memref<2x1x32xf32, #tpu.memory_space<vmem>>, %arg15: memref<2x1x32xf32, #tpu.memory_space<vmem>>, %arg16: memref<32x128xbf16, #tpu.memory_space<vmem>>, %arg17: memref<1x128xf32, #tpu.memory_space<vmem>>, %arg18: memref<1x8x128xf32, #tpu.memory_space<vmem>>) attributes {dimension_semantics = [#tpu.dimension_semantics<parallel>], iteration_bounds = array<i64: 2>, scalar_prefetch = 0 : i64, scratch_operands = 0 : i64, tpu.core_type = #tpu.core_type<tc>, window_params = [{transform_indices = @transform_0, window_bounds = array<i64: 1, 8, 4>}, {pipeline_mode = #tpu.pipeline_mode<synchronous>, transform_indices = @transform_1, window_bounds = array<i64: 4, 32>}, {pipeline_mode = #tpu.pipeline_mode<synchronous>, transform_indices = @transform_2, window_bounds = array<i64: 1, 32>}, {pipeline_mode = #tpu.pipeline_mode<synchronous>, transform_indices = @transform_3, window_bounds = array<i64: 2, 32, 96>}, {pipeline_mode = #tpu.pipeline_mode<synchronous>, transform_indices = @transform_4, window_bounds = array<i64: 2, 1, 96>}, {pipeline_mode = #tpu.pipeline_mode<synchronous>, transform_indices = @transform_5, window_bounds = array<i64: 2, 32, 32>}, {pipeline_mode = #tpu.pipeline_mode<synchronous>, transform_indices = @transform_6, window_bounds = array<i64: 2, 1, 32>}, {pipeline_mode = #tpu.pipeline_mode<synchronous>, transform_indices = @transform_7, window_bounds = array<i64: 2, 1, 32>}, {pipeline_mode = #tpu.pipeline_mode<synchronous>, transform_indices = @transform_8, window_bounds = array<i64: 2, 1, 32>}, {pipeline_mode = #tpu.pipeline_mode<synchronous>, transform_indices = @transform_9, window_bounds = array<i64: 2, 32, 64>}, {pipeline_mode = #tpu.pipeline_mode<synchronous>, transform_indices = @transform_10, window_bounds = array<i64: 2, 1, 64>}, {pipeline_mode = #tpu.pipeline_mode<synchronous>, transform_indices = @transform_11, window_bounds = array<i64: 2, 64, 32>}, {pipeline_mode = #tpu.pipeline_mode<synchronous>, transform_indices = @transform_12, window_bounds = array<i64: 2, 1, 32>}, {pipeline_mode = #tpu.pipeline_mode<synchronous>, transform_indices = @transform_13, window_bounds = array<i64: 2, 1, 32>}, {pipeline_mode = #tpu.pipeline_mode<synchronous>, transform_indices = @transform_14, window_bounds = array<i64: 2, 1, 32>}, {pipeline_mode = #tpu.pipeline_mode<synchronous>, transform_indices = @transform_15, window_bounds = array<i64: 32, 128>}, {pipeline_mode = #tpu.pipeline_mode<synchronous>, transform_indices = @transform_16, window_bounds = array<i64: 1, 128>}, {transform_indices = @transform_17, window_bounds = array<i64: 1, 8, 128>}]} {
    %c0 = arith.constant 0 : index
    %c0_0 = arith.constant 0 : index
    %c0_1 = arith.constant 0 : index
    %0 = vector.load %arg1[%c0, %c0_0, %c0_1] : memref<1x8x4xbf16, #tpu.memory_space<vmem>>, vector<1x8x4xbf16>
    %1 = vector.shape_cast %0 : vector<1x8x4xbf16> to vector<8x4xbf16>
    %c0_2 = arith.constant 0 : index
    %c0_3 = arith.constant 0 : index
    %2 = vector.load %arg2[%c0_2, %c0_3] : memref<4x32xbf16, #tpu.memory_space<vmem>>, vector<4x32xbf16>
    %cst = arith.constant dense<0.000000e+00> : vector<8x32xf32>
    %3 = tpu.matmul %1, %2, %cst {dimension_numbers = #tpu.dot_dimension_numbers<[1], [0], [0], [1], [0, 0, 1, 1], [], []>} : vector<8x4xbf16>, vector<4x32xbf16>, vector<8x32xf32> -> vector<8x32xf32>
    %c0_4 = arith.constant 0 : index
    %c0_5 = arith.constant 0 : index
    %4 = vector.load %arg3[%c0_4, %c0_5] : memref<1x32xf32, #tpu.memory_space<vmem>>, vector<1x32xf32>
    %5 = vector.broadcast %4 : vector<1x32xf32> to vector<8x32xf32>
    %6 = arith.addf %3, %5 : vector<8x32xf32>
    %7 = arith.truncf %6 : vector<8x32xf32> to vector<8x32xbf16>
    %c0_6 = arith.constant 0 : index
    %c0_7 = arith.constant 0 : index
    %c0_8 = arith.constant 0 : index
    %8 = vector.load %arg4[%c0_6, %c0_7, %c0_8] : memref<2x32x96xbf16, #tpu.memory_space<vmem>>, vector<1x32x96xbf16>
    %9 = vector.shape_cast %8 : vector<1x32x96xbf16> to vector<32x96xbf16>
    %cst_9 = arith.constant dense<0.000000e+00> : vector<8x96xf32>
    %10 = tpu.matmul %7, %9, %cst_9 {dimension_numbers = #tpu.dot_dimension_numbers<[1], [0], [0], [1], [0, 0, 1, 1], [], []>} : vector<8x32xbf16>, vector<32x96xbf16>, vector<8x96xf32> -> vector<8x96xf32>
    %c0_10 = arith.constant 0 : index
    %c0_11 = arith.constant 0 : index
    %c0_12 = arith.constant 0 : index
    %11 = vector.load %arg5[%c0_10, %c0_11, %c0_12] : memref<2x1x96xf32, #tpu.memory_space<vmem>>, vector<1x1x96xf32>
    %12 = vector.shape_cast %11 : vector<1x1x96xf32> to vector<1x96xf32>
    %13 = vector.broadcast %12 : vector<1x96xf32> to vector<8x96xf32>
    %14 = arith.addf %10, %13 : vector<8x96xf32>
    %15 = vector.extract_strided_slice %14 {offsets = [0, 0], sizes = [8, 8], strides = [1, 1]} : vector<8x96xf32> to vector<8x8xf32>
    %16 = arith.truncf %15 : vector<8x8xf32> to vector<8x8xbf16>
    %17 = vector.extract_strided_slice %14 {offsets = [0, 32], sizes = [8, 8], strides = [1, 1]} : vector<8x96xf32> to vector<8x8xf32>
    %18 = arith.truncf %17 : vector<8x8xf32> to vector<8x8xbf16>
    %19 = vector.extract_strided_slice %14 {offsets = [0, 64], sizes = [8, 8], strides = [1, 1]} : vector<8x96xf32> to vector<8x8xf32>
    %20 = arith.truncf %19 : vector<8x8xf32> to vector<8x8xbf16>
    %cst_13 = arith.constant dense<0.000000e+00> : vector<8x8xf32>
    %21 = tpu.matmul %16, %18, %cst_13 {dimension_numbers = #tpu.dot_dimension_numbers<[1], [1], [0], [0], [0, 0, 1, 0], [], []>} : vector<8x8xbf16>, vector<8x8xbf16>, vector<8x8xf32> -> vector<8x8xf32>
    %cst_14 = arith.constant dense<0xFF800000> : vector<8xf32>
    %22 = vector.multi_reduction <maximumf>, %21, %cst_14 [1] : vector<8x8xf32> to vector<8xf32>
    %23 = vector.shape_cast %22 : vector<8xf32> to vector<8x1xf32>
    %24 = vector.broadcast %23 : vector<8x1xf32> to vector<8x8xf32>
    %25 = arith.subf %21, %24 : vector<8x8xf32>
    %26 = math.exp %25 : vector<8x8xf32>
    %cst_15 = arith.constant dense<0.000000e+00> : vector<8xf32>
    %27 = vector.multi_reduction <add>, %26, %cst_15 [1] : vector<8x8xf32> to vector<8xf32>
    %28 = vector.shape_cast %27 : vector<8xf32> to vector<8x1xf32>
    %29 = tpu.reciprocal %28 {approx = true} : vector<8x1xf32> -> vector<8x1xf32>
    %30 = vector.broadcast %29 : vector<8x1xf32> to vector<8x8xf32>
    %31 = arith.mulf %26, %30 : vector<8x8xf32>
    %32 = arith.truncf %31 : vector<8x8xf32> to vector<8x8xbf16>
    %cst_16 = arith.constant dense<0.000000e+00> : vector<8x8xf32>
    %33 = tpu.matmul %32, %20, %cst_16 {dimension_numbers = #tpu.dot_dimension_numbers<[1], [0], [0], [1], [0, 0, 1, 1], [], []>} : vector<8x8xbf16>, vector<8x8xbf16>, vector<8x8xf32> -> vector<8x8xf32>
    %34 = vector.extract_strided_slice %14 {offsets = [0, 8], sizes = [8, 8], strides = [1, 1]} : vector<8x96xf32> to vector<8x8xf32>
    %35 = arith.truncf %34 : vector<8x8xf32> to vector<8x8xbf16>
    %36 = vector.extract_strided_slice %14 {offsets = [0, 40], sizes = [8, 8], strides = [1, 1]} : vector<8x96xf32> to vector<8x8xf32>
    %37 = arith.truncf %36 : vector<8x8xf32> to vector<8x8xbf16>
    %38 = vector.extract_strided_slice %14 {offsets = [0, 72], sizes = [8, 8], strides = [1, 1]} : vector<8x96xf32> to vector<8x8xf32>
    %39 = arith.truncf %38 : vector<8x8xf32> to vector<8x8xbf16>
    %cst_17 = arith.constant dense<0.000000e+00> : vector<8x8xf32>
    %40 = tpu.matmul %35, %37, %cst_17 {dimension_numbers = #tpu.dot_dimension_numbers<[1], [1], [0], [0], [0, 0, 1, 0], [], []>} : vector<8x8xbf16>, vector<8x8xbf16>, vector<8x8xf32> -> vector<8x8xf32>
    %cst_18 = arith.constant dense<0xFF800000> : vector<8xf32>
    %41 = vector.multi_reduction <maximumf>, %40, %cst_18 [1] : vector<8x8xf32> to vector<8xf32>
    %42 = vector.shape_cast %41 : vector<8xf32> to vector<8x1xf32>
    %43 = vector.broadcast %42 : vector<8x1xf32> to vector<8x8xf32>
    %44 = arith.subf %40, %43 : vector<8x8xf32>
    %45 = math.exp %44 : vector<8x8xf32>
    %cst_19 = arith.constant dense<0.000000e+00> : vector<8xf32>
    %46 = vector.multi_reduction <add>, %45, %cst_19 [1] : vector<8x8xf32> to vector<8xf32>
    %47 = vector.shape_cast %46 : vector<8xf32> to vector<8x1xf32>
    %48 = tpu.reciprocal %47 {approx = true} : vector<8x1xf32> -> vector<8x1xf32>
    %49 = vector.broadcast %48 : vector<8x1xf32> to vector<8x8xf32>
    %50 = arith.mulf %45, %49 : vector<8x8xf32>
    %51 = arith.truncf %50 : vector<8x8xf32> to vector<8x8xbf16>
    %cst_20 = arith.constant dense<0.000000e+00> : vector<8x8xf32>
    %52 = tpu.matmul %51, %39, %cst_20 {dimension_numbers = #tpu.dot_dimension_numbers<[1], [0], [0], [1], [0, 0, 1, 1], [], []>} : vector<8x8xbf16>, vector<8x8xbf16>, vector<8x8xf32> -> vector<8x8xf32>
    %53 = vector.extract_strided_slice %14 {offsets = [0, 16], sizes = [8, 8], strides = [1, 1]} : vector<8x96xf32> to vector<8x8xf32>
    %54 = arith.truncf %53 : vector<8x8xf32> to vector<8x8xbf16>
    %55 = vector.extract_strided_slice %14 {offsets = [0, 48], sizes = [8, 8], strides = [1, 1]} : vector<8x96xf32> to vector<8x8xf32>
    %56 = arith.truncf %55 : vector<8x8xf32> to vector<8x8xbf16>
    %57 = vector.extract_strided_slice %14 {offsets = [0, 80], sizes = [8, 8], strides = [1, 1]} : vector<8x96xf32> to vector<8x8xf32>
    %58 = arith.truncf %57 : vector<8x8xf32> to vector<8x8xbf16>
    %cst_21 = arith.constant dense<0.000000e+00> : vector<8x8xf32>
    %59 = tpu.matmul %54, %56, %cst_21 {dimension_numbers = #tpu.dot_dimension_numbers<[1], [1], [0], [0], [0, 0, 1, 0], [], []>} : vector<8x8xbf16>, vector<8x8xbf16>, vector<8x8xf32> -> vector<8x8xf32>
    %cst_22 = arith.constant dense<0xFF800000> : vector<8xf32>
    %60 = vector.multi_reduction <maximumf>, %59, %cst_22 [1] : vector<8x8xf32> to vector<8xf32>
    %61 = vector.shape_cast %60 : vector<8xf32> to vector<8x1xf32>
    %62 = vector.broadcast %61 : vector<8x1xf32> to vector<8x8xf32>
    %63 = arith.subf %59, %62 : vector<8x8xf32>
    %64 = math.exp %63 : vector<8x8xf32>
    %cst_23 = arith.constant dense<0.000000e+00> : vector<8xf32>
    %65 = vector.multi_reduction <add>, %64, %cst_23 [1] : vector<8x8xf32> to vector<8xf32>
    %66 = vector.shape_cast %65 : vector<8xf32> to vector<8x1xf32>
    %67 = tpu.reciprocal %66 {approx = true} : vector<8x1xf32> -> vector<8x1xf32>
    %68 = vector.broadcast %67 : vector<8x1xf32> to vector<8x8xf32>
    %69 = arith.mulf %64, %68 : vector<8x8xf32>
    %70 = arith.truncf %69 : vector<8x8xf32> to vector<8x8xbf16>
    %cst_24 = arith.constant dense<0.000000e+00> : vector<8x8xf32>
    %71 = tpu.matmul %70, %58, %cst_24 {dimension_numbers = #tpu.dot_dimension_numbers<[1], [0], [0], [1], [0, 0, 1, 1], [], []>} : vector<8x8xbf16>, vector<8x8xbf16>, vector<8x8xf32> -> vector<8x8xf32>
    %72 = vector.extract_strided_slice %14 {offsets = [0, 24], sizes = [8, 8], strides = [1, 1]} : vector<8x96xf32> to vector<8x8xf32>
    %73 = arith.truncf %72 : vector<8x8xf32> to vector<8x8xbf16>
    %74 = vector.extract_strided_slice %14 {offsets = [0, 56], sizes = [8, 8], strides = [1, 1]} : vector<8x96xf32> to vector<8x8xf32>
    %75 = arith.truncf %74 : vector<8x8xf32> to vector<8x8xbf16>
    %76 = vector.extract_strided_slice %14 {offsets = [0, 88], sizes = [8, 8], strides = [1, 1]} : vector<8x96xf32> to vector<8x8xf32>
    %77 = arith.truncf %76 : vector<8x8xf32> to vector<8x8xbf16>
    %cst_25 = arith.constant dense<0.000000e+00> : vector<8x8xf32>
    %78 = tpu.matmul %73, %75, %cst_25 {dimension_numbers = #tpu.dot_dimension_numbers<[1], [1], [0], [0], [0, 0, 1, 0], [], []>} : vector<8x8xbf16>, vector<8x8xbf16>, vector<8x8xf32> -> vector<8x8xf32>
    %cst_26 = arith.constant dense<0xFF800000> : vector<8xf32>
    %79 = vector.multi_reduction <maximumf>, %78, %cst_26 [1] : vector<8x8xf32> to vector<8xf32>
    %80 = vector.shape_cast %79 : vector<8xf32> to vector<8x1xf32>
    %81 = vector.broadcast %80 : vector<8x1xf32> to vector<8x8xf32>
    %82 = arith.subf %78, %81 : vector<8x8xf32>
    %83 = math.exp %82 : vector<8x8xf32>
    %cst_27 = arith.constant dense<0.000000e+00> : vector<8xf32>
    %84 = vector.multi_reduction <add>, %83, %cst_27 [1] : vector<8x8xf32> to vector<8xf32>
    %85 = vector.shape_cast %84 : vector<8xf32> to vector<8x1xf32>
    %86 = tpu.reciprocal %85 {approx = true} : vector<8x1xf32> -> vector<8x1xf32>
    %87 = vector.broadcast %86 : vector<8x1xf32> to vector<8x8xf32>
    %88 = arith.mulf %83, %87 : vector<8x8xf32>
    %89 = arith.truncf %88 : vector<8x8xf32> to vector<8x8xbf16>
    %cst_28 = arith.constant dense<0.000000e+00> : vector<8x8xf32>
    %90 = tpu.matmul %89, %77, %cst_28 {dimension_numbers = #tpu.dot_dimension_numbers<[1], [0], [0], [1], [0, 0, 1, 1], [], []>} : vector<8x8xbf16>, vector<8x8xbf16>, vector<8x8xf32> -> vector<8x8xf32>
    %91 = tpu.concatenate %33, %52, %71, %90 in 1 : vector<8x8xf32>, vector<8x8xf32>, vector<8x8xf32>, vector<8x8xf32> -> vector<8x32xf32>
    %92 = arith.truncf %91 : vector<8x32xf32> to vector<8x32xbf16>
    %c0_29 = arith.constant 0 : index
    %c0_30 = arith.constant 0 : index
    %c0_31 = arith.constant 0 : index
    %93 = vector.load %arg6[%c0_29, %c0_30, %c0_31] : memref<2x32x32xbf16, #tpu.memory_space<vmem>>, vector<1x32x32xbf16>
    %94 = vector.shape_cast %93 : vector<1x32x32xbf16> to vector<32x32xbf16>
    %cst_32 = arith.constant dense<0.000000e+00> : vector<8x32xf32>
    %95 = tpu.matmul %92, %94, %cst_32 {dimension_numbers = #tpu.dot_dimension_numbers<[1], [0], [0], [1], [0, 0, 1, 1], [], []>} : vector<8x32xbf16>, vector<32x32xbf16>, vector<8x32xf32> -> vector<8x32xf32>
    %c0_33 = arith.constant 0 : index
    %c0_34 = arith.constant 0 : index
    %c0_35 = arith.constant 0 : index
    %96 = vector.load %arg7[%c0_33, %c0_34, %c0_35] : memref<2x1x32xf32, #tpu.memory_space<vmem>>, vector<1x1x32xf32>
    %97 = vector.shape_cast %96 : vector<1x1x32xf32> to vector<1x32xf32>
    %98 = vector.broadcast %97 : vector<1x32xf32> to vector<8x32xf32>
    %99 = arith.addf %95, %98 : vector<8x32xf32>
    %100 = arith.addf %6, %99 : vector<8x32xf32>
    %c0_36 = arith.constant 0 : index
    %c0_37 = arith.constant 0 : index
    %c0_38 = arith.constant 0 : index
    %101 = vector.load %arg8[%c0_36, %c0_37, %c0_38] : memref<2x1x32xf32, #tpu.memory_space<vmem>>, vector<1x1x32xf32>
    %102 = vector.shape_cast %101 : vector<1x1x32xf32> to vector<1x32xf32>
    %c0_39 = arith.constant 0 : index
    %c0_40 = arith.constant 0 : index
    %c0_41 = arith.constant 0 : index
    %103 = vector.load %arg9[%c0_39, %c0_40, %c0_41] : memref<2x1x32xf32, #tpu.memory_space<vmem>>, vector<1x1x32xf32>
    %104 = vector.shape_cast %103 : vector<1x1x32xf32> to vector<1x32xf32>
    %cst_42 = arith.constant dense<0.000000e+00> : vector<8xf32>
    %105 = vector.multi_reduction <add>, %100, %cst_42 [1] : vector<8x32xf32> to vector<8xf32>
    %106 = vector.shape_cast %105 : vector<8xf32> to vector<8x1xf32>
    %cst_43 = arith.constant 3.200000e+01 : f32
    %107 = vector.broadcast %cst_43 : f32 to vector<8x1xf32>
    %108 = arith.divf %106, %107 : vector<8x1xf32>
    %109 = vector.broadcast %108 : vector<8x1xf32> to vector<8x32xf32>
    %110 = arith.subf %100, %109 : vector<8x32xf32>
    %111 = arith.mulf %110, %110 : vector<8x32xf32>
    %cst_44 = arith.constant dense<0.000000e+00> : vector<8xf32>
    %112 = vector.multi_reduction <add>, %111, %cst_44 [1] : vector<8x32xf32> to vector<8xf32>
    %113 = vector.shape_cast %112 : vector<8xf32> to vector<8x1xf32>
    %cst_45 = arith.constant 3.200000e+01 : f32
    %114 = vector.broadcast %cst_45 : f32 to vector<8x1xf32>
    %115 = arith.divf %113, %114 : vector<8x1xf32>
    %116 = vector.broadcast %108 : vector<8x1xf32> to vector<8x32xf32>
    %117 = arith.subf %100, %116 : vector<8x32xf32>
    %cst_46 = arith.constant 9.99999974E-6 : f32
    %118 = vector.broadcast %cst_46 : f32 to vector<8x1xf32>
    %119 = arith.addf %115, %118 : vector<8x1xf32>
    %120 = math.rsqrt %119 : vector<8x1xf32>
    %121 = vector.broadcast %120 : vector<8x1xf32> to vector<8x32xf32>
    %122 = arith.mulf %117, %121 : vector<8x32xf32>
    %123 = vector.broadcast %102 : vector<1x32xf32> to vector<8x32xf32>
    %124 = arith.mulf %122, %123 : vector<8x32xf32>
    %125 = vector.broadcast %104 : vector<1x32xf32> to vector<8x32xf32>
    %126 = arith.addf %124, %125 : vector<8x32xf32>
    %127 = arith.truncf %126 : vector<8x32xf32> to vector<8x32xbf16>
    %c0_47 = arith.constant 0 : index
    %c0_48 = arith.constant 0 : index
    %c0_49 = arith.constant 0 : index
    %128 = vector.load %arg10[%c0_47, %c0_48, %c0_49] : memref<2x32x64xbf16, #tpu.memory_space<vmem>>, vector<1x32x64xbf16>
    %129 = vector.shape_cast %128 : vector<1x32x64xbf16> to vector<32x64xbf16>
    %cst_50 = arith.constant dense<0.000000e+00> : vector<8x64xf32>
    %130 = tpu.matmul %127, %129, %cst_50 {dimension_numbers = #tpu.dot_dimension_numbers<[1], [0], [0], [1], [0, 0, 1, 1], [], []>} : vector<8x32xbf16>, vector<32x64xbf16>, vector<8x64xf32> -> vector<8x64xf32>
    %c0_51 = arith.constant 0 : index
    %c0_52 = arith.constant 0 : index
    %c0_53 = arith.constant 0 : index
    %131 = vector.load %arg11[%c0_51, %c0_52, %c0_53] : memref<2x1x64xf32, #tpu.memory_space<vmem>>, vector<1x1x64xf32>
    %132 = vector.shape_cast %131 : vector<1x1x64xf32> to vector<1x64xf32>
    %133 = vector.broadcast %132 : vector<1x64xf32> to vector<8x64xf32>
    %134 = arith.addf %130, %133 : vector<8x64xf32>
    %cst_54 = arith.constant 5.000000e-01 : f32
    %135 = vector.broadcast %cst_54 : f32 to vector<8x64xf32>
    %136 = arith.mulf %135, %134 : vector<8x64xf32>
    %cst_55 = arith.constant 4.471500e-02 : f32
    %137 = vector.broadcast %cst_55 : f32 to vector<8x64xf32>
    %138 = arith.mulf %137, %134 : vector<8x64xf32>
    %139 = arith.mulf %138, %134 : vector<8x64xf32>
    %140 = arith.mulf %139, %134 : vector<8x64xf32>
    %141 = arith.addf %134, %140 : vector<8x64xf32>
    %cst_56 = arith.constant 0.797884583 : f32
    %142 = vector.broadcast %cst_56 : f32 to vector<8x64xf32>
    %143 = arith.mulf %142, %141 : vector<8x64xf32>
    %144 = math.tanh %143 : vector<8x64xf32>
    %cst_57 = arith.constant 1.000000e+00 : f32
    %145 = vector.broadcast %cst_57 : f32 to vector<8x64xf32>
    %146 = arith.addf %145, %144 : vector<8x64xf32>
    %147 = arith.mulf %136, %146 : vector<8x64xf32>
    %148 = arith.truncf %147 : vector<8x64xf32> to vector<8x64xbf16>
    %c0_58 = arith.constant 0 : index
    %c0_59 = arith.constant 0 : index
    %c0_60 = arith.constant 0 : index
    %149 = vector.load %arg12[%c0_58, %c0_59, %c0_60] : memref<2x64x32xbf16, #tpu.memory_space<vmem>>, vector<1x64x32xbf16>
    %150 = vector.shape_cast %149 : vector<1x64x32xbf16> to vector<64x32xbf16>
    %cst_61 = arith.constant dense<0.000000e+00> : vector<8x32xf32>
    %151 = tpu.matmul %148, %150, %cst_61 {dimension_numbers = #tpu.dot_dimension_numbers<[1], [0], [0], [1], [0, 0, 1, 1], [], []>} : vector<8x64xbf16>, vector<64x32xbf16>, vector<8x32xf32> -> vector<8x32xf32>
    %c0_62 = arith.constant 0 : index
    %c0_63 = arith.constant 0 : index
    %c0_64 = arith.constant 0 : index
    %152 = vector.load %arg13[%c0_62, %c0_63, %c0_64] : memref<2x1x32xf32, #tpu.memory_space<vmem>>, vector<1x1x32xf32>
    %153 = vector.shape_cast %152 : vector<1x1x32xf32> to vector<1x32xf32>
    %154 = vector.broadcast %153 : vector<1x32xf32> to vector<8x32xf32>
    %155 = arith.addf %151, %154 : vector<8x32xf32>
    %156 = arith.addf %126, %155 : vector<8x32xf32>
    %c0_65 = arith.constant 0 : index
    %c0_66 = arith.constant 0 : index
    %c0_67 = arith.constant 0 : index
    %157 = vector.load %arg14[%c0_65, %c0_66, %c0_67] : memref<2x1x32xf32, #tpu.memory_space<vmem>>, vector<1x1x32xf32>
    %158 = vector.shape_cast %157 : vector<1x1x32xf32> to vector<1x32xf32>
    %c0_68 = arith.constant 0 : index
    %c0_69 = arith.constant 0 : index
    %c0_70 = arith.constant 0 : index
    %159 = vector.load %arg15[%c0_68, %c0_69, %c0_70] : memref<2x1x32xf32, #tpu.memory_space<vmem>>, vector<1x1x32xf32>
    %160 = vector.shape_cast %159 : vector<1x1x32xf32> to vector<1x32xf32>
    %cst_71 = arith.constant dense<0.000000e+00> : vector<8xf32>
    %161 = vector.multi_reduction <add>, %156, %cst_71 [1] : vector<8x32xf32> to vector<8xf32>
    %162 = vector.shape_cast %161 : vector<8xf32> to vector<8x1xf32>
    %cst_72 = arith.constant 3.200000e+01 : f32
    %163 = vector.broadcast %cst_72 : f32 to vector<8x1xf32>
    %164 = arith.divf %162, %163 : vector<8x1xf32>
    %165 = vector.broadcast %164 : vector<8x1xf32> to vector<8x32xf32>
    %166 = arith.subf %156, %165 : vector<8x32xf32>
    %167 = arith.mulf %166, %166 : vector<8x32xf32>
    %cst_73 = arith.constant dense<0.000000e+00> : vector<8xf32>
    %168 = vector.multi_reduction <add>, %167, %cst_73 [1] : vector<8x32xf32> to vector<8xf32>
    %169 = vector.shape_cast %168 : vector<8xf32> to vector<8x1xf32>
    %cst_74 = arith.constant 3.200000e+01 : f32
    %170 = vector.broadcast %cst_74 : f32 to vector<8x1xf32>
    %171 = arith.divf %169, %170 : vector<8x1xf32>
    %172 = vector.broadcast %164 : vector<8x1xf32> to vector<8x32xf32>
    %173 = arith.subf %156, %172 : vector<8x32xf32>
    %cst_75 = arith.constant 9.99999974E-6 : f32
    %174 = vector.broadcast %cst_75 : f32 to vector<8x1xf32>
    %175 = arith.addf %171, %174 : vector<8x1xf32>
    %176 = math.rsqrt %175 : vector<8x1xf32>
    %177 = vector.broadcast %176 : vector<8x1xf32> to vector<8x32xf32>
    %178 = arith.mulf %173, %177 : vector<8x32xf32>
    %179 = vector.broadcast %158 : vector<1x32xf32> to vector<8x32xf32>
    %180 = arith.mulf %178, %179 : vector<8x32xf32>
    %181 = vector.broadcast %160 : vector<1x32xf32> to vector<8x32xf32>
    %182 = arith.addf %180, %181 : vector<8x32xf32>
    %183 = arith.truncf %182 : vector<8x32xf32> to vector<8x32xbf16>
    %c1 = arith.constant 1 : index
    %c0_76 = arith.constant 0 : index
    %c0_77 = arith.constant 0 : index
    %184 = vector.load %arg4[%c1, %c0_76, %c0_77] : memref<2x32x96xbf16, #tpu.memory_space<vmem>>, vector<1x32x96xbf16>
    %185 = vector.shape_cast %184 : vector<1x32x96xbf16> to vector<32x96xbf16>
    %cst_78 = arith.constant dense<0.000000e+00> : vector<8x96xf32>
    %186 = tpu.matmul %183, %185, %cst_78 {dimension_numbers = #tpu.dot_dimension_numbers<[1], [0], [0], [1], [0, 0, 1, 1], [], []>} : vector<8x32xbf16>, vector<32x96xbf16>, vector<8x96xf32> -> vector<8x96xf32>
    %c1_79 = arith.constant 1 : index
    %c0_80 = arith.constant 0 : index
    %c0_81 = arith.constant 0 : index
    %187 = vector.load %arg5[%c1_79, %c0_80, %c0_81] : memref<2x1x96xf32, #tpu.memory_space<vmem>>, vector<1x1x96xf32>
    %188 = vector.shape_cast %187 : vector<1x1x96xf32> to vector<1x96xf32>
    %189 = vector.broadcast %188 : vector<1x96xf32> to vector<8x96xf32>
    %190 = arith.addf %186, %189 : vector<8x96xf32>
    %191 = vector.extract_strided_slice %190 {offsets = [0, 0], sizes = [8, 8], strides = [1, 1]} : vector<8x96xf32> to vector<8x8xf32>
    %192 = arith.truncf %191 : vector<8x8xf32> to vector<8x8xbf16>
    %193 = vector.extract_strided_slice %190 {offsets = [0, 32], sizes = [8, 8], strides = [1, 1]} : vector<8x96xf32> to vector<8x8xf32>
    %194 = arith.truncf %193 : vector<8x8xf32> to vector<8x8xbf16>
    %195 = vector.extract_strided_slice %190 {offsets = [0, 64], sizes = [8, 8], strides = [1, 1]} : vector<8x96xf32> to vector<8x8xf32>
    %196 = arith.truncf %195 : vector<8x8xf32> to vector<8x8xbf16>
    %cst_82 = arith.constant dense<0.000000e+00> : vector<8x8xf32>
    %197 = tpu.matmul %192, %194, %cst_82 {dimension_numbers = #tpu.dot_dimension_numbers<[1], [1], [0], [0], [0, 0, 1, 0], [], []>} : vector<8x8xbf16>, vector<8x8xbf16>, vector<8x8xf32> -> vector<8x8xf32>
    %cst_83 = arith.constant dense<0xFF800000> : vector<8xf32>
    %198 = vector.multi_reduction <maximumf>, %197, %cst_83 [1] : vector<8x8xf32> to vector<8xf32>
    %199 = vector.shape_cast %198 : vector<8xf32> to vector<8x1xf32>
    %200 = vector.broadcast %199 : vector<8x1xf32> to vector<8x8xf32>
    %201 = arith.subf %197, %200 : vector<8x8xf32>
    %202 = math.exp %201 : vector<8x8xf32>
    %cst_84 = arith.constant dense<0.000000e+00> : vector<8xf32>
    %203 = vector.multi_reduction <add>, %202, %cst_84 [1] : vector<8x8xf32> to vector<8xf32>
    %204 = vector.shape_cast %203 : vector<8xf32> to vector<8x1xf32>
    %205 = tpu.reciprocal %204 {approx = true} : vector<8x1xf32> -> vector<8x1xf32>
    %206 = vector.broadcast %205 : vector<8x1xf32> to vector<8x8xf32>
    %207 = arith.mulf %202, %206 : vector<8x8xf32>
    %208 = arith.truncf %207 : vector<8x8xf32> to vector<8x8xbf16>
    %cst_85 = arith.constant dense<0.000000e+00> : vector<8x8xf32>
    %209 = tpu.matmul %208, %196, %cst_85 {dimension_numbers = #tpu.dot_dimension_numbers<[1], [0], [0], [1], [0, 0, 1, 1], [], []>} : vector<8x8xbf16>, vector<8x8xbf16>, vector<8x8xf32> -> vector<8x8xf32>
    %210 = vector.extract_strided_slice %190 {offsets = [0, 8], sizes = [8, 8], strides = [1, 1]} : vector<8x96xf32> to vector<8x8xf32>
    %211 = arith.truncf %210 : vector<8x8xf32> to vector<8x8xbf16>
    %212 = vector.extract_strided_slice %190 {offsets = [0, 40], sizes = [8, 8], strides = [1, 1]} : vector<8x96xf32> to vector<8x8xf32>
    %213 = arith.truncf %212 : vector<8x8xf32> to vector<8x8xbf16>
    %214 = vector.extract_strided_slice %190 {offsets = [0, 72], sizes = [8, 8], strides = [1, 1]} : vector<8x96xf32> to vector<8x8xf32>
    %215 = arith.truncf %214 : vector<8x8xf32> to vector<8x8xbf16>
    %cst_86 = arith.constant dense<0.000000e+00> : vector<8x8xf32>
    %216 = tpu.matmul %211, %213, %cst_86 {dimension_numbers = #tpu.dot_dimension_numbers<[1], [1], [0], [0], [0, 0, 1, 0], [], []>} : vector<8x8xbf16>, vector<8x8xbf16>, vector<8x8xf32> -> vector<8x8xf32>
    %cst_87 = arith.constant dense<0xFF800000> : vector<8xf32>
    %217 = vector.multi_reduction <maximumf>, %216, %cst_87 [1] : vector<8x8xf32> to vector<8xf32>
    %218 = vector.shape_cast %217 : vector<8xf32> to vector<8x1xf32>
    %219 = vector.broadcast %218 : vector<8x1xf32> to vector<8x8xf32>
    %220 = arith.subf %216, %219 : vector<8x8xf32>
    %221 = math.exp %220 : vector<8x8xf32>
    %cst_88 = arith.constant dense<0.000000e+00> : vector<8xf32>
    %222 = vector.multi_reduction <add>, %221, %cst_88 [1] : vector<8x8xf32> to vector<8xf32>
    %223 = vector.shape_cast %222 : vector<8xf32> to vector<8x1xf32>
    %224 = tpu.reciprocal %223 {approx = true} : vector<8x1xf32> -> vector<8x1xf32>
    %225 = vector.broadcast %224 : vector<8x1xf32> to vector<8x8xf32>
    %226 = arith.mulf %221, %225 : vector<8x8xf32>
    %227 = arith.truncf %226 : vector<8x8xf32> to vector<8x8xbf16>
    %cst_89 = arith.constant dense<0.000000e+00> : vector<8x8xf32>
    %228 = tpu.matmul %227, %215, %cst_89 {dimension_numbers = #tpu.dot_dimension_numbers<[1], [0], [0], [1], [0, 0, 1, 1], [], []>} : vector<8x8xbf16>, vector<8x8xbf16>, vector<8x8xf32> -> vector<8x8xf32>
    %229 = vector.extract_strided_slice %190 {offsets = [0, 16], sizes = [8, 8], strides = [1, 1]} : vector<8x96xf32> to vector<8x8xf32>
    %230 = arith.truncf %229 : vector<8x8xf32> to vector<8x8xbf16>
    %231 = vector.extract_strided_slice %190 {offsets = [0, 48], sizes = [8, 8], strides = [1, 1]} : vector<8x96xf32> to vector<8x8xf32>
    %232 = arith.truncf %231 : vector<8x8xf32> to vector<8x8xbf16>
    %233 = vector.extract_strided_slice %190 {offsets = [0, 80], sizes = [8, 8], strides = [1, 1]} : vector<8x96xf32> to vector<8x8xf32>
    %234 = arith.truncf %233 : vector<8x8xf32> to vector<8x8xbf16>
    %cst_90 = arith.constant dense<0.000000e+00> : vector<8x8xf32>
    %235 = tpu.matmul %230, %232, %cst_90 {dimension_numbers = #tpu.dot_dimension_numbers<[1], [1], [0], [0], [0, 0, 1, 0], [], []>} : vector<8x8xbf16>, vector<8x8xbf16>, vector<8x8xf32> -> vector<8x8xf32>
    %cst_91 = arith.constant dense<0xFF800000> : vector<8xf32>
    %236 = vector.multi_reduction <maximumf>, %235, %cst_91 [1] : vector<8x8xf32> to vector<8xf32>
    %237 = vector.shape_cast %236 : vector<8xf32> to vector<8x1xf32>
    %238 = vector.broadcast %237 : vector<8x1xf32> to vector<8x8xf32>
    %239 = arith.subf %235, %238 : vector<8x8xf32>
    %240 = math.exp %239 : vector<8x8xf32>
    %cst_92 = arith.constant dense<0.000000e+00> : vector<8xf32>
    %241 = vector.multi_reduction <add>, %240, %cst_92 [1] : vector<8x8xf32> to vector<8xf32>
    %242 = vector.shape_cast %241 : vector<8xf32> to vector<8x1xf32>
    %243 = tpu.reciprocal %242 {approx = true} : vector<8x1xf32> -> vector<8x1xf32>
    %244 = vector.broadcast %243 : vector<8x1xf32> to vector<8x8xf32>
    %245 = arith.mulf %240, %244 : vector<8x8xf32>
    %246 = arith.truncf %245 : vector<8x8xf32> to vector<8x8xbf16>
    %cst_93 = arith.constant dense<0.000000e+00> : vector<8x8xf32>
    %247 = tpu.matmul %246, %234, %cst_93 {dimension_numbers = #tpu.dot_dimension_numbers<[1], [0], [0], [1], [0, 0, 1, 1], [], []>} : vector<8x8xbf16>, vector<8x8xbf16>, vector<8x8xf32> -> vector<8x8xf32>
    %248 = vector.extract_strided_slice %190 {offsets = [0, 24], sizes = [8, 8], strides = [1, 1]} : vector<8x96xf32> to vector<8x8xf32>
    %249 = arith.truncf %248 : vector<8x8xf32> to vector<8x8xbf16>
    %250 = vector.extract_strided_slice %190 {offsets = [0, 56], sizes = [8, 8], strides = [1, 1]} : vector<8x96xf32> to vector<8x8xf32>
    %251 = arith.truncf %250 : vector<8x8xf32> to vector<8x8xbf16>
    %252 = vector.extract_strided_slice %190 {offsets = [0, 88], sizes = [8, 8], strides = [1, 1]} : vector<8x96xf32> to vector<8x8xf32>
    %253 = arith.truncf %252 : vector<8x8xf32> to vector<8x8xbf16>
    %cst_94 = arith.constant dense<0.000000e+00> : vector<8x8xf32>
    %254 = tpu.matmul %249, %251, %cst_94 {dimension_numbers = #tpu.dot_dimension_numbers<[1], [1], [0], [0], [0, 0, 1, 0], [], []>} : vector<8x8xbf16>, vector<8x8xbf16>, vector<8x8xf32> -> vector<8x8xf32>
    %cst_95 = arith.constant dense<0xFF800000> : vector<8xf32>
    %255 = vector.multi_reduction <maximumf>, %254, %cst_95 [1] : vector<8x8xf32> to vector<8xf32>
    %256 = vector.shape_cast %255 : vector<8xf32> to vector<8x1xf32>
    %257 = vector.broadcast %256 : vector<8x1xf32> to vector<8x8xf32>
    %258 = arith.subf %254, %257 : vector<8x8xf32>
    %259 = math.exp %258 : vector<8x8xf32>
    %cst_96 = arith.constant dense<0.000000e+00> : vector<8xf32>
    %260 = vector.multi_reduction <add>, %259, %cst_96 [1] : vector<8x8xf32> to vector<8xf32>
    %261 = vector.shape_cast %260 : vector<8xf32> to vector<8x1xf32>
    %262 = tpu.reciprocal %261 {approx = true} : vector<8x1xf32> -> vector<8x1xf32>
    %263 = vector.broadcast %262 : vector<8x1xf32> to vector<8x8xf32>
    %264 = arith.mulf %259, %263 : vector<8x8xf32>
    %265 = arith.truncf %264 : vector<8x8xf32> to vector<8x8xbf16>
    %cst_97 = arith.constant dense<0.000000e+00> : vector<8x8xf32>
    %266 = tpu.matmul %265, %253, %cst_97 {dimension_numbers = #tpu.dot_dimension_numbers<[1], [0], [0], [1], [0, 0, 1, 1], [], []>} : vector<8x8xbf16>, vector<8x8xbf16>, vector<8x8xf32> -> vector<8x8xf32>
    %267 = tpu.concatenate %209, %228, %247, %266 in 1 : vector<8x8xf32>, vector<8x8xf32>, vector<8x8xf32>, vector<8x8xf32> -> vector<8x32xf32>
    %268 = arith.truncf %267 : vector<8x32xf32> to vector<8x32xbf16>
    %c1_98 = arith.constant 1 : index
    %c0_99 = arith.constant 0 : index
    %c0_100 = arith.constant 0 : index
    %269 = vector.load %arg6[%c1_98, %c0_99, %c0_100] : memref<2x32x32xbf16, #tpu.memory_space<vmem>>, vector<1x32x32xbf16>
    %270 = vector.shape_cast %269 : vector<1x32x32xbf16> to vector<32x32xbf16>
    %cst_101 = arith.constant dense<0.000000e+00> : vector<8x32xf32>
    %271 = tpu.matmul %268, %270, %cst_101 {dimension_numbers = #tpu.dot_dimension_numbers<[1], [0], [0], [1], [0, 0, 1, 1], [], []>} : vector<8x32xbf16>, vector<32x32xbf16>, vector<8x32xf32> -> vector<8x32xf32>
    %c1_102 = arith.constant 1 : index
    %c0_103 = arith.constant 0 : index
    %c0_104 = arith.constant 0 : index
    %272 = vector.load %arg7[%c1_102, %c0_103, %c0_104] : memref<2x1x32xf32, #tpu.memory_space<vmem>>, vector<1x1x32xf32>
    %273 = vector.shape_cast %272 : vector<1x1x32xf32> to vector<1x32xf32>
    %274 = vector.broadcast %273 : vector<1x32xf32> to vector<8x32xf32>
    %275 = arith.addf %271, %274 : vector<8x32xf32>
    %276 = arith.addf %182, %275 : vector<8x32xf32>
    %c1_105 = arith.constant 1 : index
    %c0_106 = arith.constant 0 : index
    %c0_107 = arith.constant 0 : index
    %277 = vector.load %arg8[%c1_105, %c0_106, %c0_107] : memref<2x1x32xf32, #tpu.memory_space<vmem>>, vector<1x1x32xf32>
    %278 = vector.shape_cast %277 : vector<1x1x32xf32> to vector<1x32xf32>
    %c1_108 = arith.constant 1 : index
    %c0_109 = arith.constant 0 : index
    %c0_110 = arith.constant 0 : index
    %279 = vector.load %arg9[%c1_108, %c0_109, %c0_110] : memref<2x1x32xf32, #tpu.memory_space<vmem>>, vector<1x1x32xf32>
    %280 = vector.shape_cast %279 : vector<1x1x32xf32> to vector<1x32xf32>
    %cst_111 = arith.constant dense<0.000000e+00> : vector<8xf32>
    %281 = vector.multi_reduction <add>, %276, %cst_111 [1] : vector<8x32xf32> to vector<8xf32>
    %282 = vector.shape_cast %281 : vector<8xf32> to vector<8x1xf32>
    %cst_112 = arith.constant 3.200000e+01 : f32
    %283 = vector.broadcast %cst_112 : f32 to vector<8x1xf32>
    %284 = arith.divf %282, %283 : vector<8x1xf32>
    %285 = vector.broadcast %284 : vector<8x1xf32> to vector<8x32xf32>
    %286 = arith.subf %276, %285 : vector<8x32xf32>
    %287 = arith.mulf %286, %286 : vector<8x32xf32>
    %cst_113 = arith.constant dense<0.000000e+00> : vector<8xf32>
    %288 = vector.multi_reduction <add>, %287, %cst_113 [1] : vector<8x32xf32> to vector<8xf32>
    %289 = vector.shape_cast %288 : vector<8xf32> to vector<8x1xf32>
    %cst_114 = arith.constant 3.200000e+01 : f32
    %290 = vector.broadcast %cst_114 : f32 to vector<8x1xf32>
    %291 = arith.divf %289, %290 : vector<8x1xf32>
    %292 = vector.broadcast %284 : vector<8x1xf32> to vector<8x32xf32>
    %293 = arith.subf %276, %292 : vector<8x32xf32>
    %cst_115 = arith.constant 9.99999974E-6 : f32
    %294 = vector.broadcast %cst_115 : f32 to vector<8x1xf32>
    %295 = arith.addf %291, %294 : vector<8x1xf32>
    %296 = math.rsqrt %295 : vector<8x1xf32>
    %297 = vector.broadcast %296 : vector<8x1xf32> to vector<8x32xf32>
    %298 = arith.mulf %293, %297 : vector<8x32xf32>
    %299 = vector.broadcast %278 : vector<1x32xf32> to vector<8x32xf32>
    %300 = arith.mulf %298, %299 : vector<8x32xf32>
    %301 = vector.broadcast %280 : vector<1x32xf32> to vector<8x32xf32>
    %302 = arith.addf %300, %301 : vector<8x32xf32>
    %303 = arith.truncf %302 : vector<8x32xf32> to vector<8x32xbf16>
    %c1_116 = arith.constant 1 : index
    %c0_117 = arith.constant 0 : index
    %c0_118 = arith.constant 0 : index
    %304 = vector.load %arg10[%c1_116, %c0_117, %c0_118] : memref<2x32x64xbf16, #tpu.memory_space<vmem>>, vector<1x32x64xbf16>
    %305 = vector.shape_cast %304 : vector<1x32x64xbf16> to vector<32x64xbf16>
    %cst_119 = arith.constant dense<0.000000e+00> : vector<8x64xf32>
    %306 = tpu.matmul %303, %305, %cst_119 {dimension_numbers = #tpu.dot_dimension_numbers<[1], [0], [0], [1], [0, 0, 1, 1], [], []>} : vector<8x32xbf16>, vector<32x64xbf16>, vector<8x64xf32> -> vector<8x64xf32>
    %c1_120 = arith.constant 1 : index
    %c0_121 = arith.constant 0 : index
    %c0_122 = arith.constant 0 : index
    %307 = vector.load %arg11[%c1_120, %c0_121, %c0_122] : memref<2x1x64xf32, #tpu.memory_space<vmem>>, vector<1x1x64xf32>
    %308 = vector.shape_cast %307 : vector<1x1x64xf32> to vector<1x64xf32>
    %309 = vector.broadcast %308 : vector<1x64xf32> to vector<8x64xf32>
    %310 = arith.addf %306, %309 : vector<8x64xf32>
    %cst_123 = arith.constant 5.000000e-01 : f32
    %311 = vector.broadcast %cst_123 : f32 to vector<8x64xf32>
    %312 = arith.mulf %311, %310 : vector<8x64xf32>
    %cst_124 = arith.constant 4.471500e-02 : f32
    %313 = vector.broadcast %cst_124 : f32 to vector<8x64xf32>
    %314 = arith.mulf %313, %310 : vector<8x64xf32>
    %315 = arith.mulf %314, %310 : vector<8x64xf32>
    %316 = arith.mulf %315, %310 : vector<8x64xf32>
    %317 = arith.addf %310, %316 : vector<8x64xf32>
    %cst_125 = arith.constant 0.797884583 : f32
    %318 = vector.broadcast %cst_125 : f32 to vector<8x64xf32>
    %319 = arith.mulf %318, %317 : vector<8x64xf32>
    %320 = math.tanh %319 : vector<8x64xf32>
    %cst_126 = arith.constant 1.000000e+00 : f32
    %321 = vector.broadcast %cst_126 : f32 to vector<8x64xf32>
    %322 = arith.addf %321, %320 : vector<8x64xf32>
    %323 = arith.mulf %312, %322 : vector<8x64xf32>
    %324 = arith.truncf %323 : vector<8x64xf32> to vector<8x64xbf16>
    %c1_127 = arith.constant 1 : index
    %c0_128 = arith.constant 0 : index
    %c0_129 = arith.constant 0 : index
    %325 = vector.load %arg12[%c1_127, %c0_128, %c0_129] : memref<2x64x32xbf16, #tpu.memory_space<vmem>>, vector<1x64x32xbf16>
    %326 = vector.shape_cast %325 : vector<1x64x32xbf16> to vector<64x32xbf16>
    %cst_130 = arith.constant dense<0.000000e+00> : vector<8x32xf32>
    %327 = tpu.matmul %324, %326, %cst_130 {dimension_numbers = #tpu.dot_dimension_numbers<[1], [0], [0], [1], [0, 0, 1, 1], [], []>} : vector<8x64xbf16>, vector<64x32xbf16>, vector<8x32xf32> -> vector<8x32xf32>
    %c1_131 = arith.constant 1 : index
    %c0_132 = arith.constant 0 : index
    %c0_133 = arith.constant 0 : index
    %328 = vector.load %arg13[%c1_131, %c0_132, %c0_133] : memref<2x1x32xf32, #tpu.memory_space<vmem>>, vector<1x1x32xf32>
    %329 = vector.shape_cast %328 : vector<1x1x32xf32> to vector<1x32xf32>
    %330 = vector.broadcast %329 : vector<1x32xf32> to vector<8x32xf32>
    %331 = arith.addf %327, %330 : vector<8x32xf32>
    %332 = arith.addf %302, %331 : vector<8x32xf32>
    %c1_134 = arith.constant 1 : index
    %c0_135 = arith.constant 0 : index
    %c0_136 = arith.constant 0 : index
    %333 = vector.load %arg14[%c1_134, %c0_135, %c0_136] : memref<2x1x32xf32, #tpu.memory_space<vmem>>, vector<1x1x32xf32>
    %334 = vector.shape_cast %333 : vector<1x1x32xf32> to vector<1x32xf32>
    %c1_137 = arith.constant 1 : index
    %c0_138 = arith.constant 0 : index
    %c0_139 = arith.constant 0 : index
    %335 = vector.load %arg15[%c1_137, %c0_138, %c0_139] : memref<2x1x32xf32, #tpu.memory_space<vmem>>, vector<1x1x32xf32>
    %336 = vector.shape_cast %335 : vector<1x1x32xf32> to vector<1x32xf32>
    %cst_140 = arith.constant dense<0.000000e+00> : vector<8xf32>
    %337 = vector.multi_reduction <add>, %332, %cst_140 [1] : vector<8x32xf32> to vector<8xf32>
    %338 = vector.shape_cast %337 : vector<8xf32> to vector<8x1xf32>
    %cst_141 = arith.constant 3.200000e+01 : f32
    %339 = vector.broadcast %cst_141 : f32 to vector<8x1xf32>
    %340 = arith.divf %338, %339 : vector<8x1xf32>
    %341 = vector.broadcast %340 : vector<8x1xf32> to vector<8x32xf32>
    %342 = arith.subf %332, %341 : vector<8x32xf32>
    %343 = arith.mulf %342, %342 : vector<8x32xf32>
    %cst_142 = arith.constant dense<0.000000e+00> : vector<8xf32>
    %344 = vector.multi_reduction <add>, %343, %cst_142 [1] : vector<8x32xf32> to vector<8xf32>
    %345 = vector.shape_cast %344 : vector<8xf32> to vector<8x1xf32>
    %cst_143 = arith.constant 3.200000e+01 : f32
    %346 = vector.broadcast %cst_143 : f32 to vector<8x1xf32>
    %347 = arith.divf %345, %346 : vector<8x1xf32>
    %348 = vector.broadcast %340 : vector<8x1xf32> to vector<8x32xf32>
    %349 = arith.subf %332, %348 : vector<8x32xf32>
    %cst_144 = arith.constant 9.99999974E-6 : f32
    %350 = vector.broadcast %cst_144 : f32 to vector<8x1xf32>
    %351 = arith.addf %347, %350 : vector<8x1xf32>
    %352 = math.rsqrt %351 : vector<8x1xf32>
    %353 = vector.broadcast %352 : vector<8x1xf32> to vector<8x32xf32>
    %354 = arith.mulf %349, %353 : vector<8x32xf32>
    %355 = vector.broadcast %334 : vector<1x32xf32> to vector<8x32xf32>
    %356 = arith.mulf %354, %355 : vector<8x32xf32>
    %357 = vector.broadcast %336 : vector<1x32xf32> to vector<8x32xf32>
    %358 = arith.addf %356, %357 : vector<8x32xf32>
    %359 = arith.truncf %358 : vector<8x32xf32> to vector<8x32xbf16>
    %c0_145 = arith.constant 0 : index
    %c0_146 = arith.constant 0 : index
    %360 = vector.load %arg16[%c0_145, %c0_146] : memref<32x128xbf16, #tpu.memory_space<vmem>>, vector<32x128xbf16>
    %cst_147 = arith.constant dense<0.000000e+00> : vector<8x128xf32>
    %361 = tpu.matmul %359, %360, %cst_147 {dimension_numbers = #tpu.dot_dimension_numbers<[1], [0], [0], [1], [0, 0, 1, 1], [], []>} : vector<8x32xbf16>, vector<32x128xbf16>, vector<8x128xf32> -> vector<8x128xf32>
    %c0_148 = arith.constant 0 : index
    %c0_149 = arith.constant 0 : index
    %362 = vector.load %arg17[%c0_148, %c0_149] : memref<1x128xf32, #tpu.memory_space<vmem>>, vector<1x128xf32>
    %363 = vector.broadcast %362 : vector<1x128xf32> to vector<8x128xf32>
    %364 = arith.addf %361, %363 : vector<8x128xf32>
    %365 = vector.shape_cast %364 : vector<8x128xf32> to vector<1x8x128xf32>
    %c0_150 = arith.constant 0 : index
    %c0_151 = arith.constant 0 : index
    %c0_152 = arith.constant 0 : index
    %366 = vector.load %arg18[%c0_150, %c0_151, %c0_152] : memref<1x8x128xf32, #tpu.memory_space<vmem>>, vector<1x8x128xf32>
    tpu.vector_store %arg18[%c0_150, %c0_151, %c0_152], %365 {strides = array<i32>} : memref<1x8x128xf32, #tpu.memory_space<vmem>>, vector<1x8x128xf32>,
    return
  }
  func.func @transform_0(%arg0: i32) -> (i32, i32, i32) {
    %c0_i32 = arith.constant 0 : i32
    %c0_i32_0 = arith.constant 0 : i32
    %c0_i32_1 = arith.constant 0 : i32
    return %arg0, %c0_i32, %c0_i32_0 : i32, i32, i32
  }
  func.func @transform_1(%arg0: i32) -> (i32, i32) {
    %c0_i32 = arith.constant 0 : i32
    %c0_i32_0 = arith.constant 0 : i32
    %c0_i32_1 = arith.constant 0 : i32
    return %c0_i32, %c0_i32_0 : i32, i32
  }
  func.func @transform_2(%arg0: i32) -> (i32, i32) {
    %c0_i32 = arith.constant 0 : i32
    %c0_i32_0 = arith.constant 0 : i32
    %c0_i32_1 = arith.constant 0 : i32
    return %c0_i32, %c0_i32_0 : i32, i32
  }
  func.func @transform_3(%arg0: i32) -> (i32, i32, i32) {
    %c0_i32 = arith.constant 0 : i32
    %c0_i32_0 = arith.constant 0 : i32
    %c0_i32_1 = arith.constant 0 : i32
    %c0_i32_2 = arith.constant 0 : i32
    return %c0_i32, %c0_i32_0, %c0_i32_1 : i32, i32, i32
  }
  func.func @transform_4(%arg0: i32) -> (i32, i32, i32) {
    %c0_i32 = arith.constant 0 : i32
    %c0_i32_0 = arith.constant 0 : i32
    %c0_i32_1 = arith.constant 0 : i32
    %c0_i32_2 = arith.constant 0 : i32
    return %c0_i32, %c0_i32_0, %c0_i32_1 : i32, i32, i32
  }
  func.func @transform_5(%arg0: i32) -> (i32, i32, i32) {
    %c0_i32 = arith.constant 0 : i32
    %c0_i32_0 = arith.constant 0 : i32
    %c0_i32_1 = arith.constant 0 : i32
    %c0_i32_2 = arith.constant 0 : i32
    return %c0_i32, %c0_i32_0, %c0_i32_1 : i32, i32, i32
  }
  func.func @transform_6(%arg0: i32) -> (i32, i32, i32) {
    %c0_i32 = arith.constant 0 : i32
    %c0_i32_0 = arith.constant 0 : i32
    %c0_i32_1 = arith.constant 0 : i32
    %c0_i32_2 = arith.constant 0 : i32
    return %c0_i32, %c0_i32_0, %c0_i32_1 : i32, i32, i32
  }
  func.func @transform_7(%arg0: i32) -> (i32, i32, i32) {
    %c0_i32 = arith.constant 0 : i32
    %c0_i32_0 = arith.constant 0 : i32
    %c0_i32_1 = arith.constant 0 : i32
    %c0_i32_2 = arith.constant 0 : i32
    return %c0_i32, %c0_i32_0, %c0_i32_1 : i32, i32, i32
  }
  func.func @transform_8(%arg0: i32) -> (i32, i32, i32) {
    %c0_i32 = arith.constant 0 : i32
    %c0_i32_0 = arith.constant 0 : i32
    %c0_i32_1 = arith.constant 0 : i32
    %c0_i32_2 = arith.constant 0 : i32
    return %c0_i32, %c0_i32_0, %c0_i32_1 : i32, i32, i32
  }
  func.func @transform_9(%arg0: i32) -> (i32, i32, i32) {
    %c0_i32 = arith.constant 0 : i32
    %c0_i32_0 = arith.constant 0 : i32
    %c0_i32_1 = arith.constant 0 : i32
    %c0_i32_2 = arith.constant 0 : i32
    return %c0_i32, %c0_i32_0, %c0_i32_1 : i32, i32, i32
  }
  func.func @transform_10(%arg0: i32) -> (i32, i32, i32) {
    %c0_i32 = arith.constant 0 : i32
    %c0_i32_0 = arith.constant 0 : i32
    %c0_i32_1 = arith.constant 0 : i32
    %c0_i32_2 = arith.constant 0 : i32
    return %c0_i32, %c0_i32_0, %c0_i32_1 : i32, i32, i32
  }
  func.func @transform_11(%arg0: i32) -> (i32, i32, i32) {
    %c0_i32 = arith.constant 0 : i32
    %c0_i32_0 = arith.constant 0 : i32
    %c0_i32_1 = arith.constant 0 : i32
    %c0_i32_2 = arith.constant 0 : i32
    return %c0_i32, %c0_i32_0, %c0_i32_1 : i32, i32, i32
  }
  func.func @transform_12(%arg0: i32) -> (i32, i32, i32) {
    %c0_i32 = arith.constant 0 : i32
    %c0_i32_0 = arith.constant 0 : i32
    %c0_i32_1 = arith.constant 0 : i32
    %c0_i32_2 = arith.constant 0 : i32
    return %c0_i32, %c0_i32_0, %c0_i32_1 : i32, i32, i32
  }
  func.func @transform_13(%arg0: i32) -> (i32, i32, i32) {
    %c0_i32 = arith.constant 0 : i32
    %c0_i32_0 = arith.constant 0 : i32
    %c0_i32_1 = arith.constant 0 : i32
    %c0_i32_2 = arith.constant 0 : i32
    return %c0_i32, %c0_i32_0, %c0_i32_1 : i32, i32, i32
  }
  func.func @transform_14(%arg0: i32) -> (i32, i32, i32) {
    %c0_i32 = arith.constant 0 : i32
    %c0_i32_0 = arith.constant 0 : i32
    %c0_i32_1 = arith.constant 0 : i32
    %c0_i32_2 = arith.constant 0 : i32
    return %c0_i32, %c0_i32_0, %c0_i32_1 : i32, i32, i32
  }
  func.func @transform_15(%arg0: i32) -> (i32, i32) {
    %c0_i32 = arith.constant 0 : i32
    %c0_i32_0 = arith.constant 0 : i32
    %c0_i32_1 = arith.constant 0 : i32
    return %c0_i32, %c0_i32_0 : i32, i32
  }
  func.func @transform_16(%arg0: i32) -> (i32, i32) {
    %c0_i32 = arith.constant 0 : i32
    %c0_i32_0 = arith.constant 0 : i32
    %c0_i32_1 = arith.constant 0 : i32
    return %c0_i32, %c0_i32_0 : i32, i32
  }
  func.func @transform_17(%arg0: i32) -> (i32, i32, i32) {
    %c0_i32 = arith.constant 0 : i32
    %c0_i32_0 = arith.constant 0 : i32
    %c0_i32_1 = arith.constant 0 : i32
    return %arg0, %c0_i32, %c0_i32_0 : i32, i32, i32
  }
}

</mosaic_0001>

<llo_original>
// kernel: tpu_custom_call.1
$region0: #{tpu_custom_call.1}
  #allocation0 [shape = 'u32[]', space=smem, size = 0x4, offset = 0x4, fixed_abs, tag = 'smem constant byte address 0x4 - core index']
  #allocation1 [shape = 'u32[144,128]{1,0:T(1,128)}', space=vmem, size = 0x12000, scoped, tag = 'internal scratch']
  %s0 = inlined_call_operand.hbm [shape: bf16[2,8,4], index: 0, kind: input, shape index: {}]
  %s1 = inlined_call_operand.hbm [shape: bf16[4,32], index: 1, kind: input, shape index: {}]
  %s2 = inlined_call_operand.hbm [shape: f32[1,32], index: 2, kind: input, shape index: {}]
  %s3 = inlined_call_operand.hbm [shape: bf16[2,32,96], index: 3, kind: input, shape index: {}]
  %s4 = inlined_call_operand.hbm [shape: f32[2,1,96], index: 4, kind: input, shape index: {}]
  %s5 = inlined_call_operand.hbm [shape: bf16[2,32,32], index: 5, kind: input, shape index: {}]
  %s6 = inlined_call_operand.hbm [shape: f32[2,1,32], index: 6, kind: input, shape index: {}]
  %s7 = inlined_call_operand.hbm [shape: f32[2,1,32], index: 7, kind: input, shape index: {}]
  %s8 = inlined_call_operand.hbm [shape: f32[2,1,32], index: 8, kind: input, shape index: {}]
  %s9 = inlined_call_operand.hbm [shape: bf16[2,32,64], index: 9, kind: input, shape index: {}]
  %s10 = inlined_call_operand.hbm [shape: f32[2,1,64], index: 10, kind: input, shape index: {}]
  %s11 = inlined_call_operand.hbm [shape: bf16[2,64,32], index: 11, kind: input, shape index: {}]
  %s12 = inlined_call_operand.hbm [shape: f32[2,1,32], index: 12, kind: input, shape index: {}]
  %s13 = inlined_call_operand.hbm [shape: f32[2,1,32], index: 13, kind: input, shape index: {}]
  %s14 = inlined_call_operand.hbm [shape: f32[2,1,32], index: 14, kind: input, shape index: {}]
  %s15 = inlined_call_operand.hbm [shape: bf16[32,128], index: 15, kind: input, shape index: {}]
  %s16 = inlined_call_operand.hbm [shape: f32[1,128], index: 16, kind: input, shape index: {}]
  %s17 = inlined_call_operand.hbm [shape: f32[2,8,128], index: 17, kind: output, shape index: {}]
  %s18 = sld [smem:[#allocation0]]
  $region169: #{tpu_custom_call.1} parent=0
    _
  %s20 = ssub.s32 1, %s18
  %s21 = scalar_select 0, %s20, %s18
  $region1: #{tpu_custom_call.1} parent=0
    #allocation2 [shape = 'u8[4096]{0}', space=vmem, size = 0x1000, scoped, tag = 'input window, operand 0']
    #allocation3 [shape = 's32[2]{0}', space=sflag, size = 0x8, scoped, tag = 'scoped memory for tpu_custom_call.1']
    #allocation4 [shape = 's32[2]{0}', space=sflag, size = 0x8, scoped, tag = 'scoped memory for tpu_custom_call.1']
    #allocation5 [shape = 'u8[1024]{0}', space=vmem, size = 0x400, scoped, tag = 'input window, operand 1, single buffered']
    #allocation6 [shape = 's32[1]{0}', space=sflag, size = 0x4, scoped, tag = 'scoped memory for tpu_custom_call.1']
    #allocation7 [shape = 'u8[512]{0}', space=vmem, size = 0x400, scoped, tag = 'input window, operand 2, single buffered']
    #allocation8 [shape = 'u8[16384]{0}', space=vmem, size = 0x4000, scoped, tag = 'input window, operand 3, single buffered']
    #allocation9 [shape = 's32[1]{0}', space=sflag, size = 0x4, scoped, tag = 'scoped memory for tpu_custom_call.1']
    #allocation10 [shape = 'u8[1024]{0}', space=vmem, size = 0x400, scoped, tag = 'input window, operand 4, single buffered']
    #allocation11 [shape = 'u8[16384]{0}', space=vmem, size = 0x4000, scoped, tag = 'input window, operand 5, single buffered']
    #allocation12 [shape = 's32[1]{0}', space=sflag, size = 0x4, scoped, tag = 'scoped memory for tpu_custom_call.1']
    #allocation13 [shape = 'u8[1024]{0}', space=vmem, size = 0x400, scoped, tag = 'input window, operand 6, single buffered']
    #allocation14 [shape = 'u8[1024]{0}', space=vmem, size = 0x400, scoped, tag = 'input window, operand 7, single buffered']
    #allocation15 [shape = 's32[1]{0}', space=sflag, size = 0x4, scoped, tag = 'scoped memory for tpu_custom_call.1']
    #allocation16 [shape = 'u8[1024]{0}', space=vmem, size = 0x400, scoped, tag = 'input window, operand 8, single buffered']
    #allocation17 [shape = 'u8[16384]{0}', space=vmem, size = 0x4000, scoped, tag = 'input window, operand 9, single buffered']
    #allocation18 [shape = 's32[1]{0}', space=sflag, size = 0x4, scoped, tag = 'scoped memory for tpu_custom_call.1']
    #allocation19 [shape = 'u8[1024]{0}', space=vmem, size = 0x400, scoped, tag = 'input window, operand 10, single buffered']
    #allocation20 [shape = 'u8[32768]{0}', space=vmem, size = 0x8000, scoped, tag = 'input window, operand 11, single buffered']
    #allocation21 [shape = 's32[1]{0}', space=sflag, size = 0x4, scoped, tag = 'scoped memory for tpu_custom_call.1']
    #allocation22 [shape = 'u8[1024]{0}', space=vmem, size = 0x400, scoped, tag = 'input window, operand 12, single buffered']
    #allocation23 [shape = 'u8[1024]{0}', space=vmem, size = 0x400, scoped, tag = 'input window, operand 13, single buffered']
    #allocation24 [shape = 's32[1]{0}', space=sflag, size = 0x4, scoped, tag = 'scoped memory for tpu_custom_call.1']
    #allocation25 [shape = 'u8[1024]{0}', space=vmem, size = 0x400, scoped, tag = 'input window, operand 14, single buffered']
    #allocation26 [shape = 'u8[8192]{0}', space=vmem, size = 0x2000, scoped, tag = 'input window, operand 15, single buffered']
    #allocation27 [shape = 's32[1]{0}', space=sflag, size = 0x4, scoped, tag = 'scoped memory for tpu_custom_call.1']
    #allocation28 [shape = 'u8[512]{0}', space=vmem, size = 0x400, scoped, tag = 'input window, operand 16, single buffered']
    #allocation29 [shape = 'u8[8192]{0}', space=vmem, size = 0x2000, scoped, tag = 'output window, operand 0']
    %22 = vsyncpa [#allocation3], 0
    %s23 = scalar_lea.sflag [#allocation3], 1
    %24 = vsyncpa %s23, 0
    %25 = vsyncpa [#allocation6], 0
    %26 = vsyncpa [#allocation9], 0
    %27 = vsyncpa [#allocation12], 0
    %28 = vsyncpa [#allocation15], 0
    %29 = vsyncpa [#allocation18], 0
    %30 = vsyncpa [#allocation21], 0
    %31 = vsyncpa [#allocation24], 0
    %32 = vsyncpa [#allocation27], 0
    %33 = vsyncpa [#allocation4], 0
    %s34 = scalar_lea.sflag [#allocation4], 1
    %35 = vsyncpa %s34, 0
    loop: start=0, step=1, limit=4
    $region2: #{tpu_custom_call.1} parent=1 // loop_pre_header
      _
    $region3: #{tpu_custom_call.1} parent=1 // loop_header
      %s37 = sphi 0, %s41
      %p38 = scmp.ge.s32.totalorder %s37, 4
      %s47 = sphi 0, %s49
      %s50 = sphi 0, %s47
      %s51 = sphi 0, %s50
      %s67 = sphi 0, %s51
      %s71 = sphi 0, %s71
      %s73 = sphi 0, %s71
      %s74 = sphi 0, %s73
      %s88 = sphi 0, %s74
      %s92 = sphi 0, %s92
      %s94 = sphi 0, %s92
      %s95 = sphi 0, %s94
      %s109 = sphi 0, %s95
      %s113 = sphi 0, %s113
      %s115 = sphi 0, %s113
      %s116 = sphi 0, %s115
      %s130 = sphi 0, %s116
      %s134 = sphi 0, %s134
      %s136 = sphi 0, %s134
      %s137 = sphi 0, %s136
      %s151 = sphi 0, %s137
      %s155 = sphi 0, %s155
      %s157 = sphi 0, %s155
      %s158 = sphi 0, %s157
      %s172 = sphi 0, %s158
      %s176 = sphi 0, %s176
      %s178 = sphi 0, %s176
      %s179 = sphi 0, %s178
      %s193 = sphi 0, %s179
      %s197 = sphi 0, %s197
      %s199 = sphi 0, %s197
      %s200 = sphi 0, %s199
      %s214 = sphi 0, %s200
      %s218 = sphi 0, %s218
      %s220 = sphi 0, %s218
      %s221 = sphi 0, %s220
      %s235 = sphi 0, %s221
      %s239 = sphi 0, %s239
      %s241 = sphi 0, %s239
      %s242 = sphi 0, %s241
      %s256 = sphi 0, %s242
      %s260 = sphi 0, %s260
      %s262 = sphi 0, %s260
      %s263 = sphi 0, %s262
      %s277 = sphi 0, %s263
      %s281 = sphi 0, %s281
      %s283 = sphi 0, %s281
      %s284 = sphi 0, %s283
      %s298 = sphi 0, %s284
      %s302 = sphi 0, %s302
      %s304 = sphi 0, %s302
      %s305 = sphi 0, %s304
      %s319 = sphi 0, %s305
      %s323 = sphi 0, %s323
      %s325 = sphi 0, %s323
      %s326 = sphi 0, %s325
      %s340 = sphi 0, %s326
      %s344 = sphi 0, %s344
      %s346 = sphi 0, %s344
      %s347 = sphi 0, %s346
      %s361 = sphi 0, %s347
      %s365 = sphi 0, %s365
      %s367 = sphi 0, %s365
      %s368 = sphi 0, %s367
      %s382 = sphi 0, %s368
      %s386 = sphi 0, %s386
      %s388 = sphi 0, %s386
      %s389 = sphi 0, %s388
      %s403 = sphi 0, %s389
      %s409 = sphi 0, %s411
      %s412 = sphi 0, %s409
      %s413 = sphi 0, %s412
      %s429 = sphi 0, %s413
    $region4: #{tpu_custom_call.1} parent=1 // loop_header_branch
      %40 = sbr.rel (%p38) target = $region8
    $region5: #{tpu_custom_call.1} parent=1 // loop_body
      %s42 = ssub.s32 %s37, 1
      %s43 = ssub.s32 %s37, 2
      %s44 = sadd.s32 %s37, 1
      %s45 = ssub.s32 %s37, %s44
      %p46 = scmp.eq.s32.totalorder %s45, 0
      %s48 = sadd.s32 %s47, 1
      %s49 = scalar_select %p46, %s47, %s48
      %p52 = pneg %p46
      %p53 = scmp.eq.s32.totalorder %s37, 1
      %p54 = por %p52, %p53
      %p55 = scmp.ne.s32.totalorder %s47, %s50
      %p56 = scmp.eq.s32.totalorder %s37, 0
      %p57 = por %p55, %p56
      %p58 = scmp.ne.s32.totalorder %s47, %s50
      %p59 = scmp.eq.s32.totalorder %s42, 1
      %p60 = por %p58, %p59
      %p61 = scmp.ne.s32.totalorder %s50, %s51
      %p62 = scmp.eq.s32.totalorder %s42, 0
      %p63 = por %p61, %p62
      %p64 = scmp.ne.s32.totalorder %s50, %s51
      %p65 = scmp.eq.s32.totalorder %s43, 1
      %p66 = por %p64, %p65
      %p68 = scmp.ne.s32.totalorder %s51, %s67
      %p69 = scmp.eq.s32.totalorder %s43, 0
      %p70 = por %p68, %p69
      %s72 = sadd.s32 %s71, 1
      %p75 = scmp.eq.s32.totalorder %s37, 1
      %p76 = scmp.ne.s32.totalorder %s71, %s73
      %p77 = scmp.eq.s32.totalorder %s37, 0
      %p78 = por %p76, %p77
      %p79 = scmp.ne.s32.totalorder %s71, %s73
      %p80 = scmp.eq.s32.totalorder %s42, 1
      %p81 = por %p79, %p80
      %p82 = scmp.ne.s32.totalorder %s73, %s74
      %p83 = scmp.eq.s32.totalorder %s42, 0
      %p84 = por %p82, %p83
      %p85 = scmp.ne.s32.totalorder %s73, %s74
      %p86 = scmp.eq.s32.totalorder %s43, 1
      %p87 = por %p85, %p86
      %p89 = scmp.ne.s32.totalorder %s74, %s88
      %p90 = scmp.eq.s32.totalorder %s43, 0
      %p91 = por %p89, %p90
      %s93 = sadd.s32 %s92, 1
      %p96 = scmp.eq.s32.totalorder %s37, 1
      %p97 = scmp.ne.s32.totalorder %s92, %s94
      %p98 = scmp.eq.s32.totalorder %s37, 0
      %p99 = por %p97, %p98
      %p100 = scmp.ne.s32.totalorder %s92, %s94
      %p101 = scmp.eq.s32.totalorder %s42, 1
      %p102 = por %p100, %p101
      %p103 = scmp.ne.s32.totalorder %s94, %s95
      %p104 = scmp.eq.s32.totalorder %s42, 0
      %p105 = por %p103, %p104
      %p106 = scmp.ne.s32.totalorder %s94, %s95
      %p107 = scmp.eq.s32.totalorder %s43, 1
      %p108 = por %p106, %p107
      %p110 = scmp.ne.s32.totalorder %s95, %s109
      %p111 = scmp.eq.s32.totalorder %s43, 0
      %p112 = por %p110, %p111
      %s114 = sadd.s32 %s113, 1
      %p117 = scmp.eq.s32.totalorder %s37, 1
      %p118 = scmp.ne.s32.totalorder %s113, %s115
      %p119 = scmp.eq.s32.totalorder %s37, 0
      %p120 = por %p118, %p119
      %p121 = scmp.ne.s32.totalorder %s113, %s115
      %p122 = scmp.eq.s32.totalorder %s42, 1
      %p123 = por %p121, %p122
      %p124 = scmp.ne.s32.totalorder %s115, %s116
      %p125 = scmp.eq.s32.totalorder %s42, 0
      %p126 = por %p124, %p125
      %p127 = scmp.ne.s32.totalorder %s115, %s116
      %p128 = scmp.eq.s32.totalorder %s43, 1
      %p129 = por %p127, %p128
      %p131 = scmp.ne.s32.totalorder %s116, %s130
      %p132 = scmp.eq.s32.totalorder %s43, 0
      %p133 = por %p131, %p132
      %s135 = sadd.s32 %s134, 1
      %p138 = scmp.eq.s32.totalorder %s37, 1
      %p139 = scmp.ne.s32.totalorder %s134, %s136
      %p140 = scmp.eq.s32.totalorder %s37, 0
      %p141 = por %p139, %p140
      %p142 = scmp.ne.s32.totalorder %s134, %s136
      %p143 = scmp.eq.s32.totalorder %s42, 1
      %p144 = por %p142, %p143
      %p145 = scmp.ne.s32.totalorder %s136, %s137
      %p146 = scmp.eq.s32.totalorder %s42, 0
      %p147 = por %p145, %p146
      %p148 = scmp.ne.s32.totalorder %s136, %s137
      %p149 = scmp.eq.s32.totalorder %s43, 1
      %p150 = por %p148, %p149
      %p152 = scmp.ne.s32.totalorder %s137, %s151
      %p153 = scmp.eq.s32.totalorder %s43, 0
      %p154 = por %p152, %p153
      %s156 = sadd.s32 %s155, 1
      %p159 = scmp.eq.s32.totalorder %s37, 1
      %p160 = scmp.ne.s32.totalorder %s155, %s157
      %p161 = scmp.eq.s32.totalorder %s37, 0
      %p162 = por %p160, %p161
      %p163 = scmp.ne.s32.totalorder %s155, %s157
      %p164 = scmp.eq.s32.totalorder %s42, 1
      %p165 = por %p163, %p164
      %p166 = scmp.ne.s32.totalorder %s157, %s158
      %p167 = scmp.eq.s32.totalorder %s42, 0
      %p168 = por %p166, %p167
      %p169 = scmp.ne.s32.totalorder %s157, %s158
      %p170 = scmp.eq.s32.totalorder %s43, 1
      %p171 = por %p169, %p170
      %p173 = scmp.ne.s32.totalorder %s158, %s172
      %p174 = scmp.eq.s32.totalorder %s43, 0
      %p175 = por %p173, %p174
      %s177 = sadd.s32 %s176, 1
      %p180 = scmp.eq.s32.totalorder %s37, 1
      %p181 = scmp.ne.s32.totalorder %s176, %s178
      %p182 = scmp.eq.s32.totalorder %s37, 0
      %p183 = por %p181, %p182
      %p184 = scmp.ne.s32.totalorder %s176, %s178
      %p185 = scmp.eq.s32.totalorder %s42, 1
      %p186 = por %p184, %p185
      %p187 = scmp.ne.s32.totalorder %s178, %s179
      %p188 = scmp.eq.s32.totalorder %s42, 0
      %p189 = por %p187, %p188
      %p190 = scmp.ne.s32.totalorder %s178, %s179
      %p191 = scmp.eq.s32.totalorder %s43, 1
      %p192 = por %p190, %p191
      %p194 = scmp.ne.s32.totalorder %s179, %s193
      %p195 = scmp.eq.s32.totalorder %s43, 0
      %p196 = por %p194, %p195
      %s198 = sadd.s32 %s197, 1
      %p201 = scmp.eq.s32.totalorder %s37, 1
      %p202 = scmp.ne.s32.totalorder %s197, %s199
      %p203 = scmp.eq.s32.totalorder %s37, 0
      %p204 = por %p202, %p203
      %p205 = scmp.ne.s32.totalorder %s197, %s199
      %p206 = scmp.eq.s32.totalorder %s42, 1
      %p207 = por %p205, %p206
      %p208 = scmp.ne.s32.totalorder %s199, %s200
      %p209 = scmp.eq.s32.totalorder %s42, 0
      %p210 = por %p208, %p209
      %p211 = scmp.ne.s32.totalorder %s199, %s200
      %p212 = scmp.eq.s32.totalorder %s43, 1
      %p213 = por %p211, %p212
      %p215 = scmp.ne.s32.totalorder %s200, %s214
      %p216 = scmp.eq.s32.totalorder %s43, 0
      %p217 = por %p215, %p216
      %s219 = sadd.s32 %s218, 1
      %p222 = scmp.eq.s32.totalorder %s37, 1
      %p223 = scmp.ne.s32.totalorder %s218, %s220
      %p224 = scmp.eq.s32.totalorder %s37, 0
      %p225 = por %p223, %p224
      %p226 = scmp.ne.s32.totalorder %s218, %s220
      %p227 = scmp.eq.s32.totalorder %s42, 1
      %p228 = por %p226, %p227
      %p229 = scmp.ne.s32.totalorder %s220, %s221
      %p230 = scmp.eq.s32.totalorder %s42, 0
      %p231 = por %p229, %p230
      %p232 = scmp.ne.s32.totalorder %s220, %s221
      %p233 = scmp.eq.s32.totalorder %s43, 1
      %p234 = por %p232, %p233
      %p236 = scmp.ne.s32.totalorder %s221, %s235
      %p237 = scmp.eq.s32.totalorder %s43, 0
      %p238 = por %p236, %p237
      %s240 = sadd.s32 %s239, 1
      %p243 = scmp.eq.s32.totalorder %s37, 1
      %p244 = scmp.ne.s32.totalorder %s239, %s241
      %p245 = scmp.eq.s32.totalorder %s37, 0
      %p246 = por %p244, %p245
      %p247 = scmp.ne.s32.totalorder %s239, %s241
      %p248 = scmp.eq.s32.totalorder %s42, 1
      %p249 = por %p247, %p248
      %p250 = scmp.ne.s32.totalorder %s241, %s242
      %p251 = scmp.eq.s32.totalorder %s42, 0
      %p252 = por %p250, %p251
      %p253 = scmp.ne.s32.totalorder %s241, %s242
      %p254 = scmp.eq.s32.totalorder %s43, 1
      %p255 = por %p253, %p254
      %p257 = scmp.ne.s32.totalorder %s242, %s256
      %p258 = scmp.eq.s32.totalorder %s43, 0
      %p259 = por %p257, %p258
      %s261 = sadd.s32 %s260, 1
      %p264 = scmp.eq.s32.totalorder %s37, 1
      %p265 = scmp.ne.s32.totalorder %s260, %s262
      %p266 = scmp.eq.s32.totalorder %s37, 0
      %p267 = por %p265, %p266
      %p268 = scmp.ne.s32.totalorder %s260, %s262
      %p269 = scmp.eq.s32.totalorder %s42, 1
      %p270 = por %p268, %p269
      %p271 = scmp.ne.s32.totalorder %s262, %s263
      %p272 = scmp.eq.s32.totalorder %s42, 0
      %p273 = por %p271, %p272
      %p274 = scmp.ne.s32.totalorder %s262, %s263
      %p275 = scmp.eq.s32.totalorder %s43, 1
      %p276 = por %p274, %p275
      %p278 = scmp.ne.s32.totalorder %s263, %s277
      %p279 = scmp.eq.s32.totalorder %s43, 0
      %p280 = por %p278, %p279
      %s282 = sadd.s32 %s281, 1
      %p285 = scmp.eq.s32.totalorder %s37, 1
      %p286 = scmp.ne.s32.totalorder %s281, %s283
      %p287 = scmp.eq.s32.totalorder %s37, 0
      %p288 = por %p286, %p287
      %p289 = scmp.ne.s32.totalorder %s281, %s283
      %p290 = scmp.eq.s32.totalorder %s42, 1
      %p291 = por %p289, %p290
      %p292 = scmp.ne.s32.totalorder %s283, %s284
      %p293 = scmp.eq.s32.totalorder %s42, 0
      %p294 = por %p292, %p293
      %p295 = scmp.ne.s32.totalorder %s283, %s284
      %p296 = scmp.eq.s32.totalorder %s43, 1
      %p297 = por %p295, %p296
      %p299 = scmp.ne.s32.totalorder %s284, %s298
      %p300 = scmp.eq.s32.totalorder %s43, 0
      %p301 = por %p299, %p300
      %s303 = sadd.s32 %s302, 1
      %p306 = scmp.eq.s32.totalorder %s37, 1
      %p307 = scmp.ne.s32.totalorder %s302, %s304
      %p308 = scmp.eq.s32.totalorder %s37, 0
      %p309 = por %p307, %p308
      %p310 = scmp.ne.s32.totalorder %s302, %s304
      %p311 = scmp.eq.s32.totalorder %s42, 1
      %p312 = por %p310, %p311
      %p313 = scmp.ne.s32.totalorder %s304, %s305
      %p314 = scmp.eq.s32.totalorder %s42, 0
      %p315 = por %p313, %p314
      %p316 = scmp.ne.s32.totalorder %s304, %s305
      %p317 = scmp.eq.s32.totalorder %s43, 1
      %p318 = por %p316, %p317
      %p320 = scmp.ne.s32.totalorder %s305, %s319
      %p321 = scmp.eq.s32.totalorder %s43, 0
      %p322 = por %p320, %p321
      %s324 = sadd.s32 %s323, 1
      %p327 = scmp.eq.s32.totalorder %s37, 1
      %p328 = scmp.ne.s32.totalorder %s323, %s325
      %p329 = scmp.eq.s32.totalorder %s37, 0
      %p330 = por %p328, %p329
      %p331 = scmp.ne.s32.totalorder %s323, %s325
      %p332 = scmp.eq.s32.totalorder %s42, 1
      %p333 = por %p331, %p332
      %p334 = scmp.ne.s32.totalorder %s325, %s326
      %p335 = scmp.eq.s32.totalorder %s42, 0
      %p336 = por %p334, %p335
      %p337 = scmp.ne.s32.totalorder %s325, %s326
      %p338 = scmp.eq.s32.totalorder %s43, 1
      %p339 = por %p337, %p338
      %p341 = scmp.ne.s32.totalorder %s326, %s340
      %p342 = scmp.eq.s32.totalorder %s43, 0
      %p343 = por %p341, %p342
      %s345 = sadd.s32 %s344, 1
      %p348 = scmp.eq.s32.totalorder %s37, 1
      %p349 = scmp.ne.s32.totalorder %s344, %s346
      %p350 = scmp.eq.s32.totalorder %s37, 0
      %p351 = por %p349, %p350
      %p352 = scmp.ne.s32.totalorder %s344, %s346
      %p353 = scmp.eq.s32.totalorder %s42, 1
      %p354 = por %p352, %p353
      %p355 = scmp.ne.s32.totalorder %s346, %s347
      %p356 = scmp.eq.s32.totalorder %s42, 0
      %p357 = por %p355, %p356
      %p358 = scmp.ne.s32.totalorder %s346, %s347
      %p359 = scmp.eq.s32.totalorder %s43, 1
      %p360 = por %p358, %p359
      %p362 = scmp.ne.s32.totalorder %s347, %s361
      %p363 = scmp.eq.s32.totalorder %s43, 0
      %p364 = por %p362, %p363
      %s366 = sadd.s32 %s365, 1
      %p369 = scmp.eq.s32.totalorder %s37, 1
      %p370 = scmp.ne.s32.totalorder %s365, %s367
      %p371 = scmp.eq.s32.totalorder %s37, 0
      %p372 = por %p370, %p371
      %p373 = scmp.ne.s32.totalorder %s365, %s367
      %p374 = scmp.eq.s32.totalorder %s42, 1
      %p375 = por %p373, %p374
      %p376 = scmp.ne.s32.totalorder %s367, %s368
      %p377 = scmp.eq.s32.totalorder %s42, 0
      %p378 = por %p376, %p377
      %p379 = scmp.ne.s32.totalorder %s367, %s368
      %p380 = scmp.eq.s32.totalorder %s43, 1
      %p381 = por %p379, %p380
      %p383 = scmp.ne.s32.totalorder %s368, %s382
      %p384 = scmp.eq.s32.totalorder %s43, 0
      %p385 = por %p383, %p384
      %s387 = sadd.s32 %s386, 1
      %p390 = scmp.eq.s32.totalorder %s37, 1
      %p391 = scmp.ne.s32.totalorder %s386, %s388
      %p392 = scmp.eq.s32.totalorder %s37, 0
      %p393 = por %p391, %p392
      %p394 = scmp.ne.s32.totalorder %s386, %s388
      %p395 = scmp.eq.s32.totalorder %s42, 1
      %p396 = por %p394, %p395
      %p397 = scmp.ne.s32.totalorder %s388, %s389
      %p398 = scmp.eq.s32.totalorder %s42, 0
      %p399 = por %p397, %p398
      %p400 = scmp.ne.s32.totalorder %s388, %s389
      %p401 = scmp.eq.s32.totalorder %s43, 1
      %p402 = por %p400, %p401
      %p404 = scmp.ne.s32.totalorder %s389, %s403
      %p405 = scmp.eq.s32.totalorder %s43, 0
      %p406 = por %p404, %p405
      %s407 = ssub.s32 %s37, %s44
      %p408 = scmp.eq.s32.totalorder %s407, 0
      %s410 = sadd.s32 %s409, 1
      %s411 = scalar_select %p408, %s409, %s410
      %p414 = pneg %p408
      %p415 = scmp.eq.s32.totalorder %s37, 1
      %p416 = por %p414, %p415
      %p417 = scmp.ne.s32.totalorder %s409, %s412
      %p418 = scmp.eq.s32.totalorder %s37, 0
      %p419 = por %p417, %p418
      %p420 = scmp.ne.s32.totalorder %s409, %s412
      %p421 = scmp.eq.s32.totalorder %s42, 1
      %p422 = por %p420, %p421
      %p423 = scmp.ne.s32.totalorder %s412, %s413
      %p424 = scmp.eq.s32.totalorder %s42, 0
      %p425 = por %p423, %p424
      %p426 = scmp.ne.s32.totalorder %s412, %s413
      %p427 = scmp.eq.s32.totalorder %s43, 1
      %p428 = por %p426, %p427
      %p430 = scmp.ne.s32.totalorder %s413, %s429
      %p431 = scmp.eq.s32.totalorder %s43, 0
      %p432 = por %p430, %p431
      %p433 = scmp.le.s32.totalorder 1, %s37
      %p434 = scmp.lt.s32.totalorder %s37, 3
      %p435 = pnand %p433, %p434
      %p436 = pneg %p435
      // Predicated region
      $region9: #{tpu_custom_call.1} parent=5 // pred_check
        _
      $region10: #{tpu_custom_call.1} parent=5 // pred_check_branch
        %438 = sbr.rel (%p435) target = $region12
      $region11: #{tpu_custom_call.1} parent=5 // pred_region
        %s439 = ssub.s32 %s37, 1
        // Predicated region
        $region13: #{tpu_custom_call.1} parent=11 // pred_check
          %p440 = pneg %p84
        $region14: #{tpu_custom_call.1} parent=11 // pred_check_branch
          %442 = sbr.rel (%p440) target = $region16
        $region15: #{tpu_custom_call.1} parent=11 // pred_region
          %s444 = ssub.s32 32, 32
          %445 = vsyncadd [#allocation6], %s444
          %s447 = sshll.u32 [#allocation5], 4
          %s448 = int_to_ptr.vmem [resolvable:$true] %s447
          %450 = dma.hbm_to_vmem [thread:$0]  %s1, 32, %s448, [#allocation6]
        $region16: #{tpu_custom_call.1} parent=11 // pred_fallthru
          _
        // Predicated region
        $region17: #{tpu_custom_call.1} parent=11 // pred_check
          %p451 = pneg %p105
        $region18: #{tpu_custom_call.1} parent=11 // pred_check_branch
          %453 = sbr.rel (%p451) target = $region20
        $region19: #{tpu_custom_call.1} parent=11 // pred_region
          %s455 = ssub.s32 16, 16
          %456 = vsyncadd [#allocation6], %s455
          %s458 = sshll.u32 [#allocation7], 4
          %s459 = int_to_ptr.vmem [resolvable:$true] %s458
          %461 = dma.hbm_to_vmem [thread:$0]  %s2, 16, %s459, [#allocation6]
        $region20: #{tpu_custom_call.1} parent=11 // pred_fallthru
          _
        // Predicated region
        $region21: #{tpu_custom_call.1} parent=11 // pred_check
          %p462 = pneg %p126
        $region22: #{tpu_custom_call.1} parent=11 // pred_check_branch
          %464 = sbr.rel (%p462) target = $region24
        $region23: #{tpu_custom_call.1} parent=11 // pred_region
          %s466 = ssub.s32 512, 512
          %467 = vsyncadd [#allocation9], %s466
          %s468 = sshll.u32 [#allocation8], 4
          %s469 = int_to_ptr.vmem [resolvable:$true] %s468
          %474 = dma.hbm_to_vmem [thread:$0]  %s3, 512, %s469, [#allocation9], 64, 64, 4
        $region24: #{tpu_custom_call.1} parent=11 // pred_fallthru
          _
        // Predicated region
        $region25: #{tpu_custom_call.1} parent=11 // pred_check
          %p475 = pneg %p147
        $region26: #{tpu_custom_call.1} parent=11 // pred_check_branch
          %477 = sbr.rel (%p475) target = $region28
        $region27: #{tpu_custom_call.1} parent=11 // pred_region
          %s479 = ssub.s32 32, 32
          %480 = vsyncadd [#allocation9], %s479
          %s481 = sshll.u32 [#allocation10], 4
          %s482 = int_to_ptr.vmem [resolvable:$true] %s481
          %487 = dma.hbm_to_vmem [thread:$0]  %s4, 32, %s482, [#allocation9], 16, 16, 1
        $region28: #{tpu_custom_call.1} parent=11 // pred_fallthru
          _
        // Predicated region
        $region29: #{tpu_custom_call.1} parent=11 // pred_check
          %p488 = pneg %p168
        $region30: #{tpu_custom_call.1} parent=11 // pred_check_branch
          %490 = sbr.rel (%p488) target = $region32
        $region31: #{tpu_custom_call.1} parent=11 // pred_region
          %s492 = ssub.s32 512, 512
          %493 = vsyncadd [#allocation12], %s492
          %s494 = sshll.u32 [#allocation11], 4
          %s495 = int_to_ptr.vmem [resolvable:$true] %s494
          %500 = dma.hbm_to_vmem [thread:$0]  %s5, 512, %s495, [#allocation12], 64, 64, 4
        $region32: #{tpu_custom_call.1} parent=11 // pred_fallthru
          _
        // Predicated region
        $region33: #{tpu_custom_call.1} parent=11 // pred_check
          %p501 = pneg %p189
        $region34: #{tpu_custom_call.1} parent=11 // pred_check_branch
          %503 = sbr.rel (%p501) target = $region36
        $region35: #{tpu_custom_call.1} parent=11 // pred_region
          %s505 = ssub.s32 32, 32
          %506 = vsyncadd [#allocation12], %s505
          %s507 = sshll.u32 [#allocation13], 4
          %s508 = int_to_ptr.vmem [resolvable:$true] %s507
          %513 = dma.hbm_to_vmem [thread:$0]  %s6, 32, %s508, [#allocation12], 16, 16, 1
        $region36: #{tpu_custom_call.1} parent=11 // pred_fallthru
          _
        // Predicated region
        $region37: #{tpu_custom_call.1} parent=11 // pred_check
          %p514 = pneg %p210
        $region38: #{tpu_custom_call.1} parent=11 // pred_check_branch
          %516 = sbr.rel (%p514) target = $region40
        $region39: #{tpu_custom_call.1} parent=11 // pred_region
          %s518 = ssub.s32 32, 32
          %519 = vsyncadd [#allocation15], %s518
          %s520 = sshll.u32 [#allocation14], 4
          %s521 = int_to_ptr.vmem [resolvable:$true] %s520
          %526 = dma.hbm_to_vmem [thread:$0]  %s7, 32, %s521, [#allocation15], 16, 16, 1
        $region40: #{tpu_custom_call.1} parent=11 // pred_fallthru
          _
        // Predicated region
        $region41: #{tpu_custom_call.1} parent=11 // pred_check
          %p527 = pneg %p231
        $region42: #{tpu_custom_call.1} parent=11 // pred_check_branch
          %529 = sbr.rel (%p527) target = $region44
        $region43: #{tpu_custom_call.1} parent=11 // pred_region
          %s531 = ssub.s32 32, 32
          %532 = vsyncadd [#allocation15], %s531
          %s533 = sshll.u32 [#allocation16], 4
          %s534 = int_to_ptr.vmem [resolvable:$true] %s533
          %539 = dma.hbm_to_vmem [thread:$0]  %s8, 32, %s534, [#allocation15], 16, 16, 1
        $region44: #{tpu_custom_call.1} parent=11 // pred_fallthru
          _
        // Predicated region
        $region45: #{tpu_custom_call.1} parent=11 // pred_check
          %p540 = pneg %p252
        $region46: #{tpu_custom_call.1} parent=11 // pred_check_branch
          %542 = sbr.rel (%p540) target = $region48
        $region47: #{tpu_custom_call.1} parent=11 // pred_region
          %s544 = ssub.s32 512, 512
          %545 = vsyncadd [#allocation18], %s544
          %s546 = sshll.u32 [#allocation17], 4
          %s547 = int_to_ptr.vmem [resolvable:$true] %s546
          %552 = dma.hbm_to_vmem [thread:$0]  %s9, 512, %s547, [#allocation18], 64, 64, 4
        $region48: #{tpu_custom_call.1} parent=11 // pred_fallthru
          _
        // Predicated region
        $region49: #{tpu_custom_call.1} parent=11 // pred_check
          %p553 = pneg %p273
        $region50: #{tpu_custom_call.1} parent=11 // pred_check_branch
          %555 = sbr.rel (%p553) target = $region52
        $region51: #{tpu_custom_call.1} parent=11 // pred_region
          %s557 = ssub.s32 32, 32
          %558 = vsyncadd [#allocation18], %s557
          %s559 = sshll.u32 [#allocation19], 4
          %s560 = int_to_ptr.vmem [resolvable:$true] %s559
          %565 = dma.hbm_to_vmem [thread:$0]  %s10, 32, %s560, [#allocation18], 16, 16, 1
        $region52: #{tpu_custom_call.1} parent=11 // pred_fallthru
          _
        // Predicated region
        $region53: #{tpu_custom_call.1} parent=11 // pred_check
          %p566 = pneg %p294
        $region54: #{tpu_custom_call.1} parent=11 // pred_check_branch
          %568 = sbr.rel (%p566) target = $region56
        $region55: #{tpu_custom_call.1} parent=11 // pred_region
          %s570 = ssub.s32 1024, 1024
          %571 = vsyncadd [#allocation21], %s570
          %s572 = sshll.u32 [#allocation20], 4
          %s573 = int_to_ptr.vmem [resolvable:$true] %s572
          %578 = dma.hbm_to_vmem [thread:$0]  %s11, 1024, %s573, [#allocation21], 64, 64, 4
        $region56: #{tpu_custom_call.1} parent=11 // pred_fallthru
          _
        // Predicated region
        $region57: #{tpu_custom_call.1} parent=11 // pred_check
          %p579 = pneg %p315
        $region58: #{tpu_custom_call.1} parent=11 // pred_check_branch
          %581 = sbr.rel (%p579) target = $region60
        $region59: #{tpu_custom_call.1} parent=11 // pred_region
          %s583 = ssub.s32 32, 32
          %584 = vsyncadd [#allocation21], %s583
          %s585 = sshll.u32 [#allocation22], 4
          %s586 = int_to_ptr.vmem [resolvable:$true] %s585
          %591 = dma.hbm_to_vmem [thread:$0]  %s12, 32, %s586, [#allocation21], 16, 16, 1
        $region60: #{tpu_custom_call.1} parent=11 // pred_fallthru
          _
        // Predicated region
        $region61: #{tpu_custom_call.1} parent=11 // pred_check
          %p592 = pneg %p336
        $region62: #{tpu_custom_call.1} parent=11 // pred_check_branch
          %594 = sbr.rel (%p592) target = $region64
        $region63: #{tpu_custom_call.1} parent=11 // pred_region
          %s596 = ssub.s32 32, 32
          %597 = vsyncadd [#allocation24], %s596
          %s598 = sshll.u32 [#allocation23], 4
          %s599 = int_to_ptr.vmem [resolvable:$true] %s598
          %604 = dma.hbm_to_vmem [thread:$0]  %s13, 32, %s599, [#allocation24], 16, 16, 1
        $region64: #{tpu_custom_call.1} parent=11 // pred_fallthru
          _
        // Predicated region
        $region65: #{tpu_custom_call.1} parent=11 // pred_check
          %p605 = pneg %p357
        $region66: #{tpu_custom_call.1} parent=11 // pred_check_branch
          %607 = sbr.rel (%p605) target = $region68
        $region67: #{tpu_custom_call.1} parent=11 // pred_region
          %s609 = ssub.s32 32, 32
          %610 = vsyncadd [#allocation24], %s609
          %s611 = sshll.u32 [#allocation25], 4
          %s612 = int_to_ptr.vmem [resolvable:$true] %s611
          %617 = dma.hbm_to_vmem [thread:$0]  %s14, 32, %s612, [#allocation24], 16, 16, 1
        $region68: #{tpu_custom_call.1} parent=11 // pred_fallthru
          _
        // Predicated region
        $region69: #{tpu_custom_call.1} parent=11 // pred_check
          %p618 = pneg %p378
        $region70: #{tpu_custom_call.1} parent=11 // pred_check_branch
          %620 = sbr.rel (%p618) target = $region72
        $region71: #{tpu_custom_call.1} parent=11 // pred_region
          %s622 = ssub.s32 256, 256
          %623 = vsyncadd [#allocation27], %s622
          %s624 = sshll.u32 [#allocation26], 4
          %s625 = int_to_ptr.vmem [resolvable:$true] %s624
          %630 = dma.hbm_to_vmem [thread:$0]  %s15, 256, %s625, [#allocation27], 64, 64, 4
        $region72: #{tpu_custom_call.1} parent=11 // pred_fallthru
          _
        // Predicated region
        $region73: #{tpu_custom_call.1} parent=11 // pred_check
          %p631 = pneg %p399
        $region74: #{tpu_custom_call.1} parent=11 // pred_check_branch
          %633 = sbr.rel (%p631) target = $region76
        $region75: #{tpu_custom_call.1} parent=11 // pred_region
          %s635 = ssub.s32 16, 16
          %636 = vsyncadd [#allocation27], %s635
          %s638 = sshll.u32 [#allocation28], 4
          %s639 = int_to_ptr.vmem [resolvable:$true] %s638
          %641 = dma.hbm_to_vmem [thread:$0]  %s16, 16, %s639, [#allocation27]
        $region76: #{tpu_custom_call.1} parent=11 // pred_fallthru
          _
      $region12: #{tpu_custom_call.1} parent=5 // pred_fallthru
        _
      %p642 = scmp.lt.s32.totalorder %s37, 2
      // Predicated region
      $region77: #{tpu_custom_call.1} parent=5 // pred_check
        %p643 = pneg %p642
      $region78: #{tpu_custom_call.1} parent=5 // pred_check_branch
        %645 = sbr.rel (%p643) target = $region80
      $region79: #{tpu_custom_call.1} parent=5 // pred_region
        // Predicated region
        $region81: #{tpu_custom_call.1} parent=79 // pred_check
          %p646 = pneg %p57
        $region82: #{tpu_custom_call.1} parent=79 // pred_check_branch
          %648 = sbr.rel (%p646) target = $region84
        $region83: #{tpu_custom_call.1} parent=79 // pred_region
          %s649 = sand.u32 %s47, 1
          %s650 = scalar_lea.sflag [#allocation3], %s649
          %s651 = sand.u32 %s47, 1
          %s652 = smul.addr %s651, 4
          %s653 = scalar_lea.vmem [#allocation2], %s652
          %s655 = ssub.s32 64, 64
          %656 = vsyncadd %s650, %s655
          %s657 = smul.addr %s37, 64
          %s658 = scalar_lea.hbm %s0, %s657
          %s660 = sshll.u32 %s653, 4
          %s661 = int_to_ptr.vmem [resolvable:$true] %s660
          %663 = dma.hbm_to_vmem [thread:$0]  %s658, 64, %s661, %s650
        $region84: #{tpu_custom_call.1} parent=79 // pred_fallthru
          _
      $region80: #{tpu_custom_call.1} parent=5 // pred_fallthru
        _
      %p664 = scmp.le.s32.totalorder 1, %s37
      %p665 = scmp.lt.s32.totalorder %s37, 3
      %p666 = pnand %p664, %p665
      %p667 = pneg %p666
      // Predicated region
      $region85: #{tpu_custom_call.1} parent=5 // pred_check
        _
      $region86: #{tpu_custom_call.1} parent=5 // pred_check_branch
        %669 = sbr.rel (%p666) target = $region88
      $region87: #{tpu_custom_call.1} parent=5 // pred_region
        %s670 = ssub.s32 %s37, 1
        %s671 = sand.u32 %s50, 1
        %s672 = scalar_lea.sflag [#allocation3], %s671
        %s673 = sand.u32 %s50, 1
        %s674 = smul.addr %s673, 4
        %s675 = scalar_lea.vmem [#allocation2], %s674
        // Predicated region
        $region89: #{tpu_custom_call.1} parent=87 // pred_check
          %p676 = pneg %p63
        $region90: #{tpu_custom_call.1} parent=87 // pred_check_branch
          %678 = sbr.rel (%p676) target = $region92
        $region91: #{tpu_custom_call.1} parent=87 // pred_region
          %679 = dma.done %s672, 64
        $region92: #{tpu_custom_call.1} parent=87 // pred_fallthru
          _
        // Predicated region
        $region93: #{tpu_custom_call.1} parent=87 // pred_check
          %p680 = pneg %p84
        $region94: #{tpu_custom_call.1} parent=87 // pred_check_branch
          %682 = sbr.rel (%p680) target = $region96
        $region95: #{tpu_custom_call.1} parent=87 // pred_region
          %683 = dma.done [#allocation6], 32
        $region96: #{tpu_custom_call.1} parent=87 // pred_fallthru
          _
        // Predicated region
        $region97: #{tpu_custom_call.1} parent=87 // pred_check
          %p684 = pneg %p105
        $region98: #{tpu_custom_call.1} parent=87 // pred_check_branch
          %686 = sbr.rel (%p684) target = $region100
        $region99: #{tpu_custom_call.1} parent=87 // pred_region
          %687 = dma.done [#allocation6], 16
        $region100: #{tpu_custom_call.1} parent=87 // pred_fallthru
          _
        // Predicated region
        $region101: #{tpu_custom_call.1} parent=87 // pred_check
          %p688 = pneg %p126
        $region102: #{tpu_custom_call.1} parent=87 // pred_check_branch
          %690 = sbr.rel (%p688) target = $region104
        $region103: #{tpu_custom_call.1} parent=87 // pred_region
          %691 = dma.done [#allocation9], 512
        $region104: #{tpu_custom_call.1} parent=87 // pred_fallthru
          _
        // Predicated region
        $region105: #{tpu_custom_call.1} parent=87 // pred_check
          %p692 = pneg %p147
        $region106: #{tpu_custom_call.1} parent=87 // pred_check_branch
          %694 = sbr.rel (%p692) target = $region108
        $region107: #{tpu_custom_call.1} parent=87 // pred_region
          %695 = dma.done [#allocation9], 32
        $region108: #{tpu_custom_call.1} parent=87 // pred_fallthru
          _
        // Predicated region
        $region109: #{tpu_custom_call.1} parent=87 // pred_check
          %p696 = pneg %p168
        $region110: #{tpu_custom_call.1} parent=87 // pred_check_branch
          %698 = sbr.rel (%p696) target = $region112
        $region111: #{tpu_custom_call.1} parent=87 // pred_region
          %699 = dma.done [#allocation12], 512
        $region112: #{tpu_custom_call.1} parent=87 // pred_fallthru
          _
        // Predicated region
        $region113: #{tpu_custom_call.1} parent=87 // pred_check
          %p700 = pneg %p189
        $region114: #{tpu_custom_call.1} parent=87 // pred_check_branch
          %702 = sbr.rel (%p700) target = $region116
        $region115: #{tpu_custom_call.1} parent=87 // pred_region
          %703 = dma.done [#allocation12], 32
        $region116: #{tpu_custom_call.1} parent=87 // pred_fallthru
          _
        // Predicated region
        $region117: #{tpu_custom_call.1} parent=87 // pred_check
          %p704 = pneg %p210
        $region118: #{tpu_custom_call.1} parent=87 // pred_check_branch
          %706 = sbr.rel (%p704) target = $region120
        $region119: #{tpu_custom_call.1} parent=87 // pred_region
          %707 = dma.done [#allocation15], 32
        $region120: #{tpu_custom_call.1} parent=87 // pred_fallthru
          _
        // Predicated region
        $region121: #{tpu_custom_call.1} parent=87 // pred_check
          %p708 = pneg %p231
        $region122: #{tpu_custom_call.1} parent=87 // pred_check_branch
          %710 = sbr.rel (%p708) target = $region124
        $region123: #{tpu_custom_call.1} parent=87 // pred_region
          %711 = dma.done [#allocation15], 32
        $region124: #{tpu_custom_call.1} parent=87 // pred_fallthru
          _
        // Predicated region
        $region125: #{tpu_custom_call.1} parent=87 // pred_check
          %p712 = pneg %p252
        $region126: #{tpu_custom_call.1} parent=87 // pred_check_branch
          %714 = sbr.rel (%p712) target = $region128
        $region127: #{tpu_custom_call.1} parent=87 // pred_region
          %715 = dma.done [#allocation18], 512
        $region128: #{tpu_custom_call.1} parent=87 // pred_fallthru
          _
        // Predicated region
        $region129: #{tpu_custom_call.1} parent=87 // pred_check
          %p716 = pneg %p273
        $region130: #{tpu_custom_call.1} parent=87 // pred_check_branch
          %718 = sbr.rel (%p716) target = $region132
        $region131: #{tpu_custom_call.1} parent=87 // pred_region
          %719 = dma.done [#allocation18], 32
        $region132: #{tpu_custom_call.1} parent=87 // pred_fallthru
          _
        // Predicated region
        $region133: #{tpu_custom_call.1} parent=87 // pred_check
          %p720 = pneg %p294
        $region134: #{tpu_custom_call.1} parent=87 // pred_check_branch
          %722 = sbr.rel (%p720) target = $region136
        $region135: #{tpu_custom_call.1} parent=87 // pred_region
          %723 = dma.done [#allocation21], 1024
        $region136: #{tpu_custom_call.1} parent=87 // pred_fallthru
          _
        // Predicated region
        $region137: #{tpu_custom_call.1} parent=87 // pred_check
          %p724 = pneg %p315
        $region138: #{tpu_custom_call.1} parent=87 // pred_check_branch
          %726 = sbr.rel (%p724) target = $region140
        $region139: #{tpu_custom_call.1} parent=87 // pred_region
          %727 = dma.done [#allocation21], 32
        $region140: #{tpu_custom_call.1} parent=87 // pred_fallthru
          _
        // Predicated region
        $region141: #{tpu_custom_call.1} parent=87 // pred_check
          %p728 = pneg %p336
        $region142: #{tpu_custom_call.1} parent=87 // pred_check_branch
          %730 = sbr.rel (%p728) target = $region144
        $region143: #{tpu_custom_call.1} parent=87 // pred_region
          %731 = dma.done [#allocation24], 32
        $region144: #{tpu_custom_call.1} parent=87 // pred_fallthru
          _
        // Predicated region
        $region145: #{tpu_custom_call.1} parent=87 // pred_check
          %p732 = pneg %p357
        $region146: #{tpu_custom_call.1} parent=87 // pred_check_branch
          %734 = sbr.rel (%p732) target = $region148
        $region147: #{tpu_custom_call.1} parent=87 // pred_region
          %735 = dma.done [#allocation24], 32
        $region148: #{tpu_custom_call.1} parent=87 // pred_fallthru
          _
        // Predicated region
        $region149: #{tpu_custom_call.1} parent=87 // pred_check
          %p736 = pneg %p378
        $region150: #{tpu_custom_call.1} parent=87 // pred_check_branch
          %738 = sbr.rel (%p736) target = $region152
        $region151: #{tpu_custom_call.1} parent=87 // pred_region
          %739 = dma.done [#allocation27], 256
        $region152: #{tpu_custom_call.1} parent=87 // pred_fallthru
          _
        // Predicated region
        $region153: #{tpu_custom_call.1} parent=87 // pred_check
          %p740 = pneg %p399
        $region154: #{tpu_custom_call.1} parent=87 // pred_check_branch
          %742 = sbr.rel (%p740) target = $region156
        $region155: #{tpu_custom_call.1} parent=87 // pred_region
          %743 = dma.done [#allocation27], 16
        $region156: #{tpu_custom_call.1} parent=87 // pred_fallthru
          _
        %s744 = sand.u32 %s50, 1
        %s745 = scalar_lea.sflag [#allocation3], %s744
        %s746 = sand.u32 %s50, 1
        %s747 = smul.addr %s746, 4
        %s748 = scalar_lea.vmem [#allocation2], %s747
        %p749 = pneg %p63
        %p750 = pneg %p60
        %p751 = pneg %p84
        %p752 = pneg %p81
        %p753 = pneg %p105
        %p754 = pneg %p102
        %p755 = pneg %p126
        %p756 = pneg %p123
        %p757 = pneg %p147
        %p758 = pneg %p144
        %p759 = pneg %p168
        %p760 = pneg %p165
        %p761 = pneg %p189
        %p762 = pneg %p186
        %p763 = pneg %p210
        %p764 = pneg %p207
        %p765 = pneg %p231
        %p766 = pneg %p228
        %p767 = pneg %p252
        %p768 = pneg %p249
        %p769 = pneg %p273
        %p770 = pneg %p270
        %p771 = pneg %p294
        %p772 = pneg %p291
        %p773 = pneg %p315
        %p774 = pneg %p312
        %p775 = pneg %p336
        %p776 = pneg %p333
        %p777 = pneg %p357
        %p778 = pneg %p354
        %p779 = pneg %p378
        %p780 = pneg %p375
        %p781 = pneg %p399
        %p782 = pneg %p396
        %p783 = pneg %p425
        %p784 = pneg %p422
        %s785 = sand.u32 %s412, 1
        %s786 = scalar_lea.sflag [#allocation4], %s785
        %s787 = sand.u32 %s412, 1
        %s788 = smul.addr %s787, 8
        %s789 = scalar_lea.vmem [#allocation29], %s788
        %v791 = vld [vmem:[%s675] sm:$0xf]
        %v792 = vld [vmem:[#allocation5] sm:$0x3]
        %v793 = vld [vmem:[#allocation7] sm:$0x1]
        %v795 = vlaneseq
        %v796 = vshrl.u32 %v795, 7
        %v797 = vsub.s32 0, %v796
        %v798 = vrot.slane %v793, %v797
        %vm800 = vcmask 31744
        %v802 = vsel %vm800, %v791, 0
        %vm804 = vcmask 1041408
        %v806 = vsel %vm804, %v792, 0
        %808 = vmatprep.subr.bf16.mxu0 0
        %809 = vmatpush1.bf16.msra.mxu0 %v806
        %810 = vmatprep.subr.bf16.mxu0 0
        %811 = vmatpush1.bf16.msra.mxu0 0
        %812 = vmatprep.subr.bf16.mxu0 0
        %813 = vmatpush1.bf16.msra.mxu0 0
        %814 = vmatprep.subr.bf16.mxu0 0
        %815 = vmatpush1.bf16.msra.mxu0 0
        %816 = vmatprep.subr.bf16.mxu0 0
        %817 = vmatpush1.bf16.msra.mxu0 0
        %818 = vmatprep.subr.bf16.mxu0 0
        %819 = vmatpush1.bf16.msra.mxu0 0
        %820 = vmatprep.subr.bf16.mxu0 0
        %821 = vmatpush1.bf16.msra.mxu0 0
        %822 = vmatprep.subr.bf16.mxu0 0
        %823 = vmatpush1.bf16.msra.mxu0 0
        %824 = vmatprep.subr.bf16.mxu0 0
        %825 = vmatpush1.bf16.msra.mxu0 0
        %826 = vmatprep.subr.bf16.mxu0 0
        %827 = vmatpush1.bf16.msra.mxu0 0
        %828 = vmatprep.subr.bf16.mxu0 0
        %829 = vmatpush1.bf16.msra.mxu0 0
        %830 = vmatprep.subr.bf16.mxu0 0
        %831 = vmatpush1.bf16.msra.mxu0 0
        %832 = vmatprep.subr.bf16.mxu0 0
        %833 = vmatpush1.bf16.msra.mxu0 0
        %834 = vmatprep.subr.bf16.mxu0 0
        %835 = vmatpush1.bf16.msra.mxu0 0
        %836 = vmatprep.subr.bf16.mxu0 0
        %837 = vmatpush1.bf16.msra.mxu0 0
        %838 = vmatprep.subr.bf16.mxu0 0
        %839 = vmatpush1.bf16.msra.mxu0 0
        %840 = vmatprep.mubr.bf16.mxu0 0
        %841 = vmatmul.mubr.bf16.gmra.mrb[0].mxu0 %v802
        %v842 = vpop.f32.mrb[0].mxu0
        %v843 = vadd.f32 %v798, %v842
        %v844 = vpop.f32.mrb[0].mxu0
        %v845 = vpop.f32.mrb[0].mxu0
        %v846 = vpop.f32.mrb[0].mxu0
        %847 = vdwg.mxu0
        %v848 = vpack.c.bf16 %v843, %v843
        %v849 = vld [vmem:[#allocation8] sm:$0xf]
        %v850 = vld [vmem:[#allocation8 + $0x4] sm:$0xf]
        %v851 = vld [vmem:[#allocation8 + $0x8] sm:$0xf]
        %v852 = vld [vmem:[#allocation8 + $0xc] sm:$0xf]
        %v853 = vld [vmem:[#allocation10] sm:$0x1]
        %v855 = vlaneseq
        %v856 = vshrl.u32 %v855, 7
        %v857 = vsub.s32 0, %v856
        %v858 = vrot.slane %v853, %v857
        %v864 = vunpack.c.l.b16 %v849
        %v865 = vunpack.c.l.b16 %v850
        %v866 = vunpack.c.l.b16 %v851
        %v867 = vunpack.c.l.b16 %v852
        %v868 = vpack.c.b16 %v865, %v864
        %v869 = vpack.c.b16 %v867, %v866
        %vm872 = vcmask 261120
        %v874 = vsel %vm872, %v848, 0
        %876 = vmatprep.subr.bf16.mxu0 0
        %877 = vmatpush1.bf16.msra.mxu0 %v868
        %878 = vmatprep.subr.bf16.mxu0 0
        %879 = vmatpush1.bf16.msra.mxu0 %v869
        %880 = vmatprep.subr.bf16.mxu0 0
        %881 = vmatpush1.bf16.msra.mxu0 0
        %882 = vmatprep.subr.bf16.mxu0 0
        %883 = vmatpush1.bf16.msra.mxu0 0
        %884 = vmatprep.subr.bf16.mxu0 0
        %885 = vmatpush1.bf16.msra.mxu0 0
        %886 = vmatprep.subr.bf16.mxu0 0
        %887 = vmatpush1.bf16.msra.mxu0 0
        %888 = vmatprep.subr.bf16.mxu0 0
        %889 = vmatpush1.bf16.msra.mxu0 0
        %890 = vmatprep.subr.bf16.mxu0 0
        %891 = vmatpush1.bf16.msra.mxu0 0
        %892 = vmatprep.subr.bf16.mxu0 0
        %893 = vmatpush1.bf16.msra.mxu0 0
        %894 = vmatprep.subr.bf16.mxu0 0
        %895 = vmatpush1.bf16.msra.mxu0 0
        %896 = vmatprep.subr.bf16.mxu0 0
        %897 = vmatpush1.bf16.msra.mxu0 0
        %898 = vmatprep.subr.bf16.mxu0 0
        %899 = vmatpush1.bf16.msra.mxu0 0
        %900 = vmatprep.subr.bf16.mxu0 0
        %901 = vmatpush1.bf16.msra.mxu0 0
        %902 = vmatprep.subr.bf16.mxu0 0
        %903 = vmatpush1.bf16.msra.mxu0 0
        %904 = vmatprep.subr.bf16.mxu0 0
        %905 = vmatpush1.bf16.msra.mxu0 0
        %906 = vmatprep.subr.bf16.mxu0 0
        %907 = vmatpush1.bf16.msra.mxu0 0
        %908 = vmatprep.mubr.bf16.mxu0 0
        %909 = vmatmul.mubr.bf16.gmra.mrb[0].mxu0 %v874
        %v910 = vpop.f32.mrb[0].mxu0
        %v911 = vadd.f32 %v858, %v910
        %v912 = vpop.f32.mrb[0].mxu0
        %v913 = vpop.f32.mrb[0].mxu0
        %v914 = vpop.f32.mrb[0].mxu0
        %915 = vdwg.mxu0
        %v916 = vpack.c.bf16 %v911, %v911
        %918 = vrot.lane.b32.xlu0 %v916, 96
        %v919 = vpop.permute.xlu0 %918
        %vm920 = vcmask 64512
        %v922 = vsel %vm920, %v916, 0
        %v925 = vsel %vm920, %v919, 0
        %927 = vmatprep.subr.bf16.mxu0 0
        %928 = vmatpush1.bf16.xpose.msra.mxu0 %v925
        %929 = vmatprep.subr.bf16.mxu0 0
        %930 = vmatpush1.bf16.xpose.msra.mxu0 0
        %931 = vmatprep.subr.bf16.mxu0 0
        %932 = vmatpush1.bf16.xpose.msra.mxu0 0
        %933 = vmatprep.subr.bf16.mxu0 0
        %934 = vmatpush1.bf16.xpose.msra.mxu0 0
        %935 = vmatprep.subr.bf16.mxu0 0
        %936 = vmatpush1.bf16.xpose.msra.mxu0 0
        %937 = vmatprep.subr.bf16.mxu0 0
        %938 = vmatpush1.bf16.xpose.msra.mxu0 0
        %939 = vmatprep.subr.bf16.mxu0 0
        %940 = vmatpush1.bf16.xpose.msra.mxu0 0
        %941 = vmatprep.subr.bf16.mxu0 0
        %942 = vmatpush1.bf16.xpose.msra.mxu0 0
        %943 = vmatprep.subr.bf16.mxu0 0
        %944 = vmatpush1.bf16.xpose.msra.mxu0 0
        %945 = vmatprep.subr.bf16.mxu0 0
        %946 = vmatpush1.bf16.xpose.msra.mxu0 0
        %947 = vmatprep.subr.bf16.mxu0 0
        %948 = vmatpush1.bf16.xpose.msra.mxu0 0
        %949 = vmatprep.subr.bf16.mxu0 0
        %950 = vmatpush1.bf16.xpose.msra.mxu0 0
        %951 = vmatprep.subr.bf16.mxu0 0
        %952 = vmatpush1.bf16.xpose.msra.mxu0 0
        %953 = vmatprep.subr.bf16.mxu0 0
        %954 = vmatpush1.bf16.xpose.msra.mxu0 0
        %955 = vmatprep.subr.bf16.mxu0 0
        %956 = vmatpush1.bf16.xpose.msra.mxu0 0
        %957 = vmatprep.subr.bf16.mxu0 0
        %958 = vmatpush1.bf16.xpose.msra.mxu0 0
        %959 = vmatprep.mubr.bf16.mxu0 0
        %960 = vmatmul.mubr.bf16.gmra.mrb[0].mxu0 %v922
        %v961 = vpop.f32.mrb[0].mxu0
        %v962 = vadd.f32 0.0, %v961
        %v963 = vpop.f32.mrb[0].mxu0
        %v964 = vpop.f32.mrb[0].mxu0
        %v965 = vpop.f32.mrb[0].mxu0
        %966 = vdwg.mxu0
        %v967 = vsel %vm920, %v962, -inf
        %968 = vmax.xlane.f32.xlu0 %v967
        %v969 = vpop.xlane.xlu0 %968
        %v970 = vsub.f32 %v962, %v969
        %v971 = vmul.f32 %v970, 1.442695
        %v972 = vpow.pop %v971
        %v973 = vsel %vm920, %v972, 0.0
        %974 = vadd.xlane.f32.xlu0 %v973
        %v975 = vpop.xlane.xlu0 %974
        %v976 = vrcp.pop %v975
        %v977 = vmul.f32 %v972, %v976
        %v978 = vpack.c.bf16 %v977, %v977
        %979 = vrot.lane.b32.xlu0 %v916, 64
        %v980 = vpop.permute.xlu0 %979
        %v982 = vsel %vm920, %v978, 0
        %vm984 = vcmask 1043456
        %v986 = vsel %vm984, %v980, 0
        %988 = vmatprep.subr.bf16.mxu0 0
        %989 = vmatpush1.bf16.msra.mxu0 %v986
        %990 = vmatprep.subr.bf16.mxu0 0
        %991 = vmatpush1.bf16.msra.mxu0 0
        %992 = vmatprep.subr.bf16.mxu0 0
        %993 = vmatpush1.bf16.msra.mxu0 0
        %994 = vmatprep.subr.bf16.mxu0 0
        %995 = vmatpush1.bf16.msra.mxu0 0
        %996 = vmatprep.subr.bf16.mxu0 0
        %997 = vmatpush1.bf16.msra.mxu0 0
        %998 = vmatprep.subr.bf16.mxu0 0
        %999 = vmatpush1.bf16.msra.mxu0 0
        %1000 = vmatprep.subr.bf16.mxu0 0
        %1001 = vmatpush1.bf16.msra.mxu0 0
        %1002 = vmatprep.subr.bf16.mxu0 0
        %1003 = vmatpush1.bf16.msra.mxu0 0
        %1004 = vmatprep.subr.bf16.mxu0 0
        %1005 = vmatpush1.bf16.msra.mxu0 0
        %1006 = vmatprep.subr.bf16.mxu0 0
        %1007 = vmatpush1.bf16.msra.mxu0 0
        %1008 = vmatprep.subr.bf16.mxu0 0
        %1009 = vmatpush1.bf16.msra.mxu0 0
        %1010 = vmatprep.subr.bf16.mxu0 0
        %1011 = vmatpush1.bf16.msra.mxu0 0
        %1012 = vmatprep.subr.bf16.mxu0 0
        %1013 = vmatpush1.bf16.msra.mxu0 0
        %1014 = vmatprep.subr.bf16.mxu0 0
        %1015 = vmatpush1.bf16.msra.mxu0 0
        %1016 = vmatprep.subr.bf16.mxu0 0
        %1017 = vmatpush1.bf16.msra.mxu0 0
        %1018 = vmatprep.subr.bf16.mxu0 0
        %1019 = vmatpush1.bf16.msra.mxu0 0
        %1020 = vmatprep.mubr.bf16.mxu0 0
        %1021 = vmatmul.mubr.bf16.gmra.mrb[0].mxu0 %v982
        %v1022 = vpop.f32.mrb[0].mxu0
        %v1023 = vadd.f32 0.0, %v1022
        %v1024 = vpop.f32.mrb[0].mxu0
        %v1025 = vpop.f32.mrb[0].mxu0
        %v1026 = vpop.f32.mrb[0].mxu0
        %1027 = vdwg.mxu0
        %1028 = vrot.lane.b32.xlu0 %v916, 120
        %v1029 = vpop.permute.xlu0 %1028
        %1030 = vrot.lane.b32.xlu0 %v916, 88
        %v1031 = vpop.permute.xlu0 %1030
        %v1033 = vsel %vm920, %v1029, 0
        %v1036 = vsel %vm920, %v1031, 0
        %1038 = vmatprep.subr.bf16.mxu0 0
        %1039 = vmatpush1.bf16.xpose.msra.mxu0 %v1036
        %1040 = vmatprep.subr.bf16.mxu0 0
        %1041 = vmatpush1.bf16.xpose.msra.mxu0 0
        %1042 = vmatprep.subr.bf16.mxu0 0
        %1043 = vmatpush1.bf16.xpose.msra.mxu0 0
        %1044 = vmatprep.subr.bf16.mxu0 0
        %1045 = vmatpush1.bf16.xpose.msra.mxu0 0
        %1046 = vmatprep.subr.bf16.mxu0 0
        %1047 = vmatpush1.bf16.xpose.msra.mxu0 0
        %1048 = vmatprep.subr.bf16.mxu0 0
        %1049 = vmatpush1.bf16.xpose.msra.mxu0 0
        %1050 = vmatprep.subr.bf16.mxu0 0
        %1051 = vmatpush1.bf16.xpose.msra.mxu0 0
        %1052 = vmatprep.subr.bf16.mxu0 0
        %1053 = vmatpush1.bf16.xpose.msra.mxu0 0
        %1054 = vmatprep.subr.bf16.mxu0 0
        %1055 = vmatpush1.bf16.xpose.msra.mxu0 0
        %1056 = vmatprep.subr.bf16.mxu0 0
        %1057 = vmatpush1.bf16.xpose.msra.mxu0 0
        %1058 = vmatprep.subr.bf16.mxu0 0
        %1059 = vmatpush1.bf16.xpose.msra.mxu0 0
        %1060 = vmatprep.subr.bf16.mxu0 0
        %1061 = vmatpush1.bf16.xpose.msra.mxu0 0
        %1062 = vmatprep.subr.bf16.mxu0 0
        %1063 = vmatpush1.bf16.xpose.msra.mxu0 0
        %1064 = vmatprep.subr.bf16.mxu0 0
        %1065 = vmatpush1.bf16.xpose.msra.mxu0 0
        %1066 = vmatprep.subr.bf16.mxu0 0
        %1067 = vmatpush1.bf16.xpose.msra.mxu0 0
        %1068 = vmatprep.subr.bf16.mxu0 0
        %1069 = vmatpush1.bf16.xpose.msra.mxu0 0
        %1070 = vmatprep.mubr.bf16.mxu0 0
        %1071 = vmatmul.mubr.bf16.gmra.mrb[0].mxu0 %v1033
        %v1072 = vpop.f32.mrb[0].mxu0
        %v1073 = vadd.f32 0.0, %v1072
        %v1074 = vpop.f32.mrb[0].mxu0
        %v1075 = vpop.f32.mrb[0].mxu0
        %v1076 = vpop.f32.mrb[0].mxu0
        %1077 = vdwg.mxu0
        %v1078 = vsel %vm920, %v1073, -inf
        %1079 = vmax.xlane.f32.xlu0 %v1078
        %v1080 = vpop.xlane.xlu0 %1079
        %v1081 = vsub.f32 %v1073, %v1080
        %v1082 = vmul.f32 %v1081, 1.442695
        %v1083 = vpow.pop %v1082
        %v1084 = vsel %vm920, %v1083, 0.0
        %1085 = vadd.xlane.f32.xlu0 %v1084
        %v1086 = vpop.xlane.xlu0 %1085
        %v1087 = vrcp.pop %v1086
        %v1088 = vmul.f32 %v1083, %v1087
        %v1089 = vpack.c.bf16 %v1088, %v1088
        %1090 = vrot.lane.b32.xlu0 %v916, 56
        %v1091 = vpop.permute.xlu0 %1090
        %v1093 = vsel %vm920, %v1089, 0
        %v1096 = vsel %vm984, %v1091, 0
        %1098 = vmatprep.subr.bf16.mxu0 0
        %1099 = vmatpush1.bf16.msra.mxu0 %v1096
        %1100 = vmatprep.subr.bf16.mxu0 0
        %1101 = vmatpush1.bf16.msra.mxu0 0
        %1102 = vmatprep.subr.bf16.mxu0 0
        %1103 = vmatpush1.bf16.msra.mxu0 0
        %1104 = vmatprep.subr.bf16.mxu0 0
        %1105 = vmatpush1.bf16.msra.mxu0 0
        %1106 = vmatprep.subr.bf16.mxu0 0
        %1107 = vmatpush1.bf16.msra.mxu0 0
        %1108 = vmatprep.subr.bf16.mxu0 0
        %1109 = vmatpush1.bf16.msra.mxu0 0
        %1110 = vmatprep.subr.bf16.mxu0 0
        %1111 = vmatpush1.bf16.msra.mxu0 0
        %1112 = vmatprep.subr.bf16.mxu0 0
        %1113 = vmatpush1.bf16.msra.mxu0 0
        %1114 = vmatprep.subr.bf16.mxu0 0
        %1115 = vmatpush1.bf16.msra.mxu0 0
        %1116 = vmatprep.subr.bf16.mxu0 0
        %1117 = vmatpush1.bf16.msra.mxu0 0
        %1118 = vmatprep.subr.bf16.mxu0 0
        %1119 = vmatpush1.bf16.msra.mxu0 0
        %1120 = vmatprep.subr.bf16.mxu0 0
        %1121 = vmatpush1.bf16.msra.mxu0 0
        %1122 = vmatprep.subr.bf16.mxu0 0
        %1123 = vmatpush1.bf16.msra.mxu0 0
        %1124 = vmatprep.subr.bf16.mxu0 0
        %1125 = vmatpush1.bf16.msra.mxu0 0
        %1126 = vmatprep.subr.bf16.mxu0 0
        %1127 = vmatpush1.bf16.msra.mxu0 0
        %1128 = vmatprep.subr.bf16.mxu0 0
        %1129 = vmatpush1.bf16.msra.mxu0 0
        %1130 = vmatprep.mubr.bf16.mxu0 0
        %1131 = vmatmul.mubr.bf16.gmra.mrb[0].mxu0 %v1093
        %v1132 = vpop.f32.mrb[0].mxu0
        %v1133 = vadd.f32 0.0, %v1132
        %v1134 = vpop.f32.mrb[0].mxu0
        %v1135 = vpop.f32.mrb[0].mxu0
        %v1136 = vpop.f32.mrb[0].mxu0
        %1137 = vdwg.mxu0
        %1138 = vrot.lane.b32.xlu0 %v916, 112
        %v1139 = vpop.permute.xlu0 %1138
        %1140 = vrot.lane.b32.xlu0 %v916, 80
        %v1141 = vpop.permute.xlu0 %1140
        %v1143 = vsel %vm920, %v1139, 0
        %v1146 = vsel %vm920, %v1141, 0
        %1148 = vmatprep.subr.bf16.mxu0 0
        %1149 = vmatpush1.bf16.xpose.msra.mxu0 %v1146
        %1150 = vmatprep.subr.bf16.mxu0 0
        %1151 = vmatpush1.bf16.xpose.msra.mxu0 0
        %1152 = vmatprep.subr.bf16.mxu0 0
        %1153 = vmatpush1.bf16.xpose.msra.mxu0 0
        %1154 = vmatprep.subr.bf16.mxu0 0
        %1155 = vmatpush1.bf16.xpose.msra.mxu0 0
        %1156 = vmatprep.subr.bf16.mxu0 0
        %1157 = vmatpush1.bf16.xpose.msra.mxu0 0
        %1158 = vmatprep.subr.bf16.mxu0 0
        %1159 = vmatpush1.bf16.xpose.msra.mxu0 0
        %1160 = vmatprep.subr.bf16.mxu0 0
        %1161 = vmatpush1.bf16.xpose.msra.mxu0 0
        %1162 = vmatprep.subr.bf16.mxu0 0
        %1163 = vmatpush1.bf16.xpose.msra.mxu0 0
        %1164 = vmatprep.subr.bf16.mxu0 0
        %1165 = vmatpush1.bf16.xpose.msra.mxu0 0
        %1166 = vmatprep.subr.bf16.mxu0 0
        %1167 = vmatpush1.bf16.xpose.msra.mxu0 0
        %1168 = vmatprep.subr.bf16.mxu0 0
        %1169 = vmatpush1.bf16.xpose.msra.mxu0 0
        %1170 = vmatprep.subr.bf16.mxu0 0
        %1171 = vmatpush1.bf16.xpose.msra.mxu0 0
        %1172 = vmatprep.subr.bf16.mxu0 0
        %1173 = vmatpush1.bf16.xpose.msra.mxu0 0
        %1174 = vmatprep.subr.bf16.mxu0 0
        %1175 = vmatpush1.bf16.xpose.msra.mxu0 0
        %1176 = vmatprep.subr.bf16.mxu0 0
        %1177 = vmatpush1.bf16.xpose.msra.mxu0 0
        %1178 = vmatprep.subr.bf16.mxu0 0
        %1179 = vmatpush1.bf16.xpose.msra.mxu0 0
        %1180 = vmatprep.mubr.bf16.mxu0 0
        %1181 = vmatmul.mubr.bf16.gmra.mrb[0].mxu0 %v1143
        %v1182 = vpop.f32.mrb[0].mxu0
        %v1183 = vadd.f32 0.0, %v1182
        %v1184 = vpop.f32.mrb[0].mxu0
        %v1185 = vpop.f32.mrb[0].mxu0
        %v1186 = vpop.f32.mrb[0].mxu0
        %1187 = vdwg.mxu0
        %v1188 = vsel %vm920, %v1183, -inf
        %1189 = vmax.xlane.f32.xlu0 %v1188
        %v1190 = vpop.xlane.xlu0 %1189
        %v1191 = vsub.f32 %v1183, %v1190
        %v1192 = vmul.f32 %v1191, 1.442695
        %v1193 = vpow.pop %v1192
        %v1194 = vsel %vm920, %v1193, 0.0
        %1195 = vadd.xlane.f32.xlu0 %v1194
        %v1196 = vpop.xlane.xlu0 %1195
        %v1197 = vrcp.pop %v1196
        %v1198 = vmul.f32 %v1193, %v1197
        %v1199 = vpack.c.bf16 %v1198, %v1198
        %1200 = vrot.lane.b32.xlu0 %v916, 48
        %v1201 = vpop.permute.xlu0 %1200
        %v1203 = vsel %vm920, %v1199, 0
        %v1206 = vsel %vm984, %v1201, 0
        %1208 = vmatprep.subr.bf16.mxu0 0
        %1209 = vmatpush1.bf16.msra.mxu0 %v1206
        %1210 = vmatprep.subr.bf16.mxu0 0
        %1211 = vmatpush1.bf16.msra.mxu0 0
        %1212 = vmatprep.subr.bf16.mxu0 0
        %1213 = vmatpush1.bf16.msra.mxu0 0
        %1214 = vmatprep.subr.bf16.mxu0 0
        %1215 = vmatpush1.bf16.msra.mxu0 0
        %1216 = vmatprep.subr.bf16.mxu0 0
        %1217 = vmatpush1.bf16.msra.mxu0 0
        %1218 = vmatprep.subr.bf16.mxu0 0
        %1219 = vmatpush1.bf16.msra.mxu0 0
        %1220 = vmatprep.subr.bf16.mxu0 0
        %1221 = vmatpush1.bf16.msra.mxu0 0
        %1222 = vmatprep.subr.bf16.mxu0 0
        %1223 = vmatpush1.bf16.msra.mxu0 0
        %1224 = vmatprep.subr.bf16.mxu0 0
        %1225 = vmatpush1.bf16.msra.mxu0 0
        %1226 = vmatprep.subr.bf16.mxu0 0
        %1227 = vmatpush1.bf16.msra.mxu0 0
        %1228 = vmatprep.subr.bf16.mxu0 0
        %1229 = vmatpush1.bf16.msra.mxu0 0
        %1230 = vmatprep.subr.bf16.mxu0 0
        %1231 = vmatpush1.bf16.msra.mxu0 0
        %1232 = vmatprep.subr.bf16.mxu0 0
        %1233 = vmatpush1.bf16.msra.mxu0 0
        %1234 = vmatprep.subr.bf16.mxu0 0
        %1235 = vmatpush1.bf16.msra.mxu0 0
        %1236 = vmatprep.subr.bf16.mxu0 0
        %1237 = vmatpush1.bf16.msra.mxu0 0
        %1238 = vmatprep.subr.bf16.mxu0 0
        %1239 = vmatpush1.bf16.msra.mxu0 0
        %1240 = vmatprep.mubr.bf16.mxu0 0
        %1241 = vmatmul.mubr.bf16.gmra.mrb[0].mxu0 %v1203
        %v1242 = vpop.f32.mrb[0].mxu0
        %v1243 = vadd.f32 0.0, %v1242
        %v1244 = vpop.f32.mrb[0].mxu0
        %v1245 = vpop.f32.mrb[0].mxu0
        %v1246 = vpop.f32.mrb[0].mxu0
        %1247 = vdwg.mxu0
        %1248 = vrot.lane.b32.xlu0 %v916, 104
        %v1249 = vpop.permute.xlu0 %1248
        %1250 = vrot.lane.b32.xlu0 %v916, 72
        %v1251 = vpop.permute.xlu0 %1250
        %v1253 = vsel %vm920, %v1249, 0
        %v1256 = vsel %vm920, %v1251, 0
        %1258 = vmatprep.subr.bf16.mxu0 0
        %1259 = vmatpush1.bf16.xpose.msra.mxu0 %v1256
        %1260 = vmatprep.subr.bf16.mxu0 0
        %1261 = vmatpush1.bf16.xpose.msra.mxu0 0
        %1262 = vmatprep.subr.bf16.mxu0 0
        %1263 = vmatpush1.bf16.xpose.msra.mxu0 0
        %1264 = vmatprep.subr.bf16.mxu0 0
        %1265 = vmatpush1.bf16.xpose.msra.mxu0 0
        %1266 = vmatprep.subr.bf16.mxu0 0
        %1267 = vmatpush1.bf16.xpose.msra.mxu0 0
        %1268 = vmatprep.subr.bf16.mxu0 0
        %1269 = vmatpush1.bf16.xpose.msra.mxu0 0
        %1270 = vmatprep.subr.bf16.mxu0 0
        %1271 = vmatpush1.bf16.xpose.msra.mxu0 0
        %1272 = vmatprep.subr.bf16.mxu0 0
        %1273 = vmatpush1.bf16.xpose.msra.mxu0 0
        %1274 = vmatprep.subr.bf16.mxu0 0
        %1275 = vmatpush1.bf16.xpose.msra.mxu0 0
        %1276 = vmatprep.subr.bf16.mxu0 0
        %1277 = vmatpush1.bf16.xpose.msra.mxu0 0
        %1278 = vmatprep.subr.bf16.mxu0 0
        %1279 = vmatpush1.bf16.xpose.msra.mxu0 0
        %1280 = vmatprep.subr.bf16.mxu0 0
        %1281 = vmatpush1.bf16.xpose.msra.mxu0 0
        %1282 = vmatprep.subr.bf16.mxu0 0
        %1283 = vmatpush1.bf16.xpose.msra.mxu0 0
        %1284 = vmatprep.subr.bf16.mxu0 0
        %1285 = vmatpush1.bf16.xpose.msra.mxu0 0
        %1286 = vmatprep.subr.bf16.mxu0 0
        %1287 = vmatpush1.bf16.xpose.msra.mxu0 0
        %1288 = vmatprep.subr.bf16.mxu0 0
        %1289 = vmatpush1.bf16.xpose.msra.mxu0 0
        %1290 = vmatprep.mubr.bf16.mxu0 0
        %1291 = vmatmul.mubr.bf16.gmra.mrb[0].mxu0 %v1253
        %v1292 = vpop.f32.mrb[0].mxu0
        %v1293 = vadd.f32 0.0, %v1292
        %v1294 = vpop.f32.mrb[0].mxu0
        %v1295 = vpop.f32.mrb[0].mxu0
        %v1296 = vpop.f32.mrb[0].mxu0
        %1297 = vdwg.mxu0
        %v1298 = vsel %vm920, %v1293, -inf
        %1299 = vmax.xlane.f32.xlu0 %v1298
        %v1300 = vpop.xlane.xlu0 %1299
        %v1301 = vsub.f32 %v1293, %v1300
        %v1302 = vmul.f32 %v1301, 1.442695
        %v1303 = vpow.pop %v1302
        %v1304 = vsel %vm920, %v1303, 0.0
        %1305 = vadd.xlane.f32.xlu0 %v1304
        %v1306 = vpop.xlane.xlu0 %1305
        %v1307 = vrcp.pop %v1306
        %v1308 = vmul.f32 %v1303, %v1307
        %v1309 = vpack.c.bf16 %v1308, %v1308
        %1310 = vrot.lane.b32.xlu0 %v916, 40
        %v1311 = vpop.permute.xlu0 %1310
        %v1313 = vsel %vm920, %v1309, 0
        %v1316 = vsel %vm984, %v1311, 0
        %1318 = vmatprep.subr.bf16.mxu0 0
        %1319 = vmatpush1.bf16.msra.mxu0 %v1316
        %1320 = vmatprep.subr.bf16.mxu0 0
        %1321 = vmatpush1.bf16.msra.mxu0 0
        %1322 = vmatprep.subr.bf16.mxu0 0
        %1323 = vmatpush1.bf16.msra.mxu0 0
        %1324 = vmatprep.subr.bf16.mxu0 0
        %1325 = vmatpush1.bf16.msra.mxu0 0
        %1326 = vmatprep.subr.bf16.mxu0 0
        %1327 = vmatpush1.bf16.msra.mxu0 0
        %1328 = vmatprep.subr.bf16.mxu0 0
        %1329 = vmatpush1.bf16.msra.mxu0 0
        %1330 = vmatprep.subr.bf16.mxu0 0
        %1331 = vmatpush1.bf16.msra.mxu0 0
        %1332 = vmatprep.subr.bf16.mxu0 0
        %1333 = vmatpush1.bf16.msra.mxu0 0
        %1334 = vmatprep.subr.bf16.mxu0 0
        %1335 = vmatpush1.bf16.msra.mxu0 0
        %1336 = vmatprep.subr.bf16.mxu0 0
        %1337 = vmatpush1.bf16.msra.mxu0 0
        %1338 = vmatprep.subr.bf16.mxu0 0
        %1339 = vmatpush1.bf16.msra.mxu0 0
        %1340 = vmatprep.subr.bf16.mxu0 0
        %1341 = vmatpush1.bf16.msra.mxu0 0
        %1342 = vmatprep.subr.bf16.mxu0 0
        %1343 = vmatpush1.bf16.msra.mxu0 0
        %1344 = vmatprep.subr.bf16.mxu0 0
        %1345 = vmatpush1.bf16.msra.mxu0 0
        %1346 = vmatprep.subr.bf16.mxu0 0
        %1347 = vmatpush1.bf16.msra.mxu0 0
        %1348 = vmatprep.subr.bf16.mxu0 0
        %1349 = vmatpush1.bf16.msra.mxu0 0
        %1350 = vmatprep.mubr.bf16.mxu0 0
        %1351 = vmatmul.mubr.bf16.gmra.mrb[0].mxu0 %v1313
        %v1352 = vpop.f32.mrb[0].mxu0
        %v1353 = vadd.f32 0.0, %v1352
        %v1354 = vpop.f32.mrb[0].mxu0
        %v1355 = vpop.f32.mrb[0].mxu0
        %v1356 = vpop.f32.mrb[0].mxu0
        %1357 = vdwg.mxu0
        %1359 = vrot.lane.b32.xlu0 %v1133, 8
        %v1360 = vpop.permute.xlu0 %1359
        %1363 = vrot.lane.b32.xlu0 %v1243, 16
        %v1364 = vpop.permute.xlu0 %1363
        %1367 = vrot.lane.b32.xlu0 %v1353, 24
        %v1368 = vpop.permute.xlu0 %1367
        %v1370 = vsel %vm920, %v1023, %v1360
        %vm1371 = vcmask 130048
        %v1372 = vsel %vm1371, %v1370, %v1364
        %vm1373 = vcmask 195584
        %v1374 = vsel %vm1373, %v1372, %v1368
        %v1375 = vpack.c.bf16 %v1374, %v1374
        %v1376 = vld [vmem:[#allocation11] sm:$0xf]
        %v1377 = vld [vmem:[#allocation11 + $0x4] sm:$0xf]
        %v1378 = vld [vmem:[#allocation11 + $0x8] sm:$0xf]
        %v1379 = vld [vmem:[#allocation11 + $0xc] sm:$0xf]
        %v1380 = vld [vmem:[#allocation13] sm:$0x1]
        %v1382 = vlaneseq
        %v1383 = vshrl.u32 %v1382, 7
        %v1384 = vsub.s32 0, %v1383
        %v1385 = vrot.slane %v1380, %v1384
        %v1391 = vunpack.c.l.b16 %v1376
        %v1392 = vunpack.c.l.b16 %v1377
        %v1393 = vunpack.c.l.b16 %v1378
        %v1394 = vunpack.c.l.b16 %v1379
        %v1395 = vpack.c.b16 %v1392, %v1391
        %v1396 = vpack.c.b16 %v1394, %v1393
        %v1400 = vsel %vm872, %v1375, 0
        %1402 = vmatprep.subr.bf16.mxu0 0
        %1403 = vmatpush1.bf16.msra.mxu0 %v1395
        %1404 = vmatprep.subr.bf16.mxu0 0
        %1405 = vmatpush1.bf16.msra.mxu0 %v1396
        %1406 = vmatprep.subr.bf16.mxu0 0
        %1407 = vmatpush1.bf16.msra.mxu0 0
        %1408 = vmatprep.subr.bf16.mxu0 0
        %1409 = vmatpush1.bf16.msra.mxu0 0
        %1410 = vmatprep.subr.bf16.mxu0 0
        %1411 = vmatpush1.bf16.msra.mxu0 0
        %1412 = vmatprep.subr.bf16.mxu0 0
        %1413 = vmatpush1.bf16.msra.mxu0 0
        %1414 = vmatprep.subr.bf16.mxu0 0
        %1415 = vmatpush1.bf16.msra.mxu0 0
        %1416 = vmatprep.subr.bf16.mxu0 0
        %1417 = vmatpush1.bf16.msra.mxu0 0
        %1418 = vmatprep.subr.bf16.mxu0 0
        %1419 = vmatpush1.bf16.msra.mxu0 0
        %1420 = vmatprep.subr.bf16.mxu0 0
        %1421 = vmatpush1.bf16.msra.mxu0 0
        %1422 = vmatprep.subr.bf16.mxu0 0
        %1423 = vmatpush1.bf16.msra.mxu0 0
        %1424 = vmatprep.subr.bf16.mxu0 0
        %1425 = vmatpush1.bf16.msra.mxu0 0
        %1426 = vmatprep.subr.bf16.mxu0 0
        %1427 = vmatpush1.bf16.msra.mxu0 0
        %1428 = vmatprep.subr.bf16.mxu0 0
        %1429 = vmatpush1.bf16.msra.mxu0 0
        %1430 = vmatprep.subr.bf16.mxu0 0
        %1431 = vmatpush1.bf16.msra.mxu0 0
        %1432 = vmatprep.subr.bf16.mxu0 0
        %1433 = vmatpush1.bf16.msra.mxu0 0
        %1434 = vmatprep.mubr.bf16.mxu0 0
        %1435 = vmatmul.mubr.bf16.gmra.mrb[0].mxu0 %v1400
        %v1436 = vpop.f32.mrb[0].mxu0
        %v1437 = vadd.f32 %v1385, %v1436
        %v1438 = vpop.f32.mrb[0].mxu0
        %v1439 = vpop.f32.mrb[0].mxu0
        %v1440 = vpop.f32.mrb[0].mxu0
        %1441 = vdwg.mxu0
        %v1442 = vadd.f32 %v843, %v1437
        %v1443 = vld [vmem:[#allocation14] sm:$0x1]
        %v1444 = vld [vmem:[#allocation16] sm:$0x1]
        %v1445 = vsel %vm872, %v1442, 0.0
        %1446 = vadd.xlane.f32.xlu0 %v1445
        %v1447 = vpop.xlane.xlu0 %1446
        %v1448 = vrcp.pop 32.0
        %v1449 = vmul.f32 %v1447, %v1448
        %v1450 = vsub.f32 %v1442, %v1449
        %v1451 = vmul.f32 %v1450, %v1450
        %v1452 = vsel %vm872, %v1451, 0.0
        %1453 = vadd.xlane.f32.xlu0 %v1452
        %v1454 = vpop.xlane.xlu0 %1453
        %v1455 = vmul.f32 %v1454, %v1448
        %v1456 = vadd.f32 %v1455, 1e-05
        %v1457 = vrsqrt.pop %v1456
        %v1458 = vmul.f32 %v1450, %v1457
        %v1460 = vlaneseq
        %v1461 = vshrl.u32 %v1460, 7
        %v1462 = vsub.s32 0, %v1461
        %v1463 = vrot.slane %v1443, %v1462
        %v1465 = vmul.f32 %v1458, %v1463
        %v1467 = vlaneseq
        %v1468 = vshrl.u32 %v1467, 7
        %v1469 = vsub.s32 0, %v1468
        %v1470 = vrot.slane %v1444, %v1469
        %v1472 = vadd.f32 %v1465, %v1470
        %v1473 = vpack.c.bf16 %v1472, %v1472
        %v1474 = vld [vmem:[#allocation17] sm:$0xf]
        %v1475 = vld [vmem:[#allocation17 + $0x4] sm:$0xf]
        %v1476 = vld [vmem:[#allocation17 + $0x8] sm:$0xf]
        %v1477 = vld [vmem:[#allocation17 + $0xc] sm:$0xf]
        %v1478 = vld [vmem:[#allocation19] sm:$0x1]
        %v1480 = vlaneseq
        %v1481 = vshrl.u32 %v1480, 7
        %v1482 = vsub.s32 0, %v1481
        %v1483 = vrot.slane %v1478, %v1482
        %v1489 = vunpack.c.l.b16 %v1474
        %v1490 = vunpack.c.l.b16 %v1475
        %v1491 = vunpack.c.l.b16 %v1476
        %v1492 = vunpack.c.l.b16 %v1477
        %v1493 = vpack.c.b16 %v1490, %v1489
        %v1494 = vpack.c.b16 %v1492, %v1491
        %v1498 = vsel %vm872, %v1473, 0
        %1500 = vmatprep.subr.bf16.mxu0 0
        %1501 = vmatpush1.bf16.msra.mxu0 %v1493
        %1502 = vmatprep.subr.bf16.mxu0 0
        %1503 = vmatpush1.bf16.msra.mxu0 %v1494
        %1504 = vmatprep.subr.bf16.mxu0 0
        %1505 = vmatpush1.bf16.msra.mxu0 0
        %1506 = vmatprep.subr.bf16.mxu0 0
        %1507 = vmatpush1.bf16.msra.mxu0 0
        %1508 = vmatprep.subr.bf16.mxu0 0
        %1509 = vmatpush1.bf16.msra.mxu0 0
        %1510 = vmatprep.subr.bf16.mxu0 0
        %1511 = vmatpush1.bf16.msra.mxu0 0
        %1512 = vmatprep.subr.bf16.mxu0 0
        %1513 = vmatpush1.bf16.msra.mxu0 0
        %1514 = vmatprep.subr.bf16.mxu0 0
        %1515 = vmatpush1.bf16.msra.mxu0 0
        %1516 = vmatprep.subr.bf16.mxu0 0
        %1517 = vmatpush1.bf16.msra.mxu0 0
        %1518 = vmatprep.subr.bf16.mxu0 0
        %1519 = vmatpush1.bf16.msra.mxu0 0
        %1520 = vmatprep.subr.bf16.mxu0 0
        %1521 = vmatpush1.bf16.msra.mxu0 0
        %1522 = vmatprep.subr.bf16.mxu0 0
        %1523 = vmatpush1.bf16.msra.mxu0 0
        %1524 = vmatprep.subr.bf16.mxu0 0
        %1525 = vmatpush1.bf16.msra.mxu0 0
        %1526 = vmatprep.subr.bf16.mxu0 0
        %1527 = vmatpush1.bf16.msra.mxu0 0
        %1528 = vmatprep.subr.bf16.mxu0 0
        %1529 = vmatpush1.bf16.msra.mxu0 0
        %1530 = vmatprep.subr.bf16.mxu0 0
        %1531 = vmatpush1.bf16.msra.mxu0 0
        %1532 = vmatprep.mubr.bf16.mxu0 0
        %1533 = vmatmul.mubr.bf16.gmra.mrb[0].mxu0 %v1498
        %v1534 = vpop.f32.mrb[0].mxu0
        %v1535 = vadd.f32 %v1483, %v1534
        %v1536 = vpop.f32.mrb[0].mxu0
        %v1537 = vpop.f32.mrb[0].mxu0
        %v1538 = vpop.f32.mrb[0].mxu0
        %1539 = vdwg.mxu0
        %v1540 = vmul.f32 %v1535, 0.5
        %v1541 = vmul.f32 %v1535, 0.044715
        %v1542 = vmul.f32 %v1541, %v1535
        %v1543 = vmul.f32 %v1542, %v1535
        %v1544 = vadd.f32 %v1535, %v1543
        %v1545 = vmul.f32 %v1544, 0.7978846
        %v1546 = vtanh.pop %v1545
        %v1547 = vadd.f32 %v1546, 1.0
        %v1548 = vmul.f32 %v1540, %v1547
        %v1549 = vpack.c.bf16 %v1548, %v1548
        %v1550 = vld [vmem:[#allocation20] sm:$0xf]
        %v1551 = vld [vmem:[#allocation20 + $0x4] sm:$0xf]
        %v1552 = vld [vmem:[#allocation20 + $0x8] sm:$0xf]
        %v1553 = vld [vmem:[#allocation20 + $0xc] sm:$0xf]
        %v1554 = vld [vmem:[#allocation20 + $0x10] sm:$0xf]
        %v1555 = vld [vmem:[#allocation20 + $0x14] sm:$0xf]
        %v1556 = vld [vmem:[#allocation20 + $0x18] sm:$0xf]
        %v1557 = vld [vmem:[#allocation20 + $0x1c] sm:$0xf]
        %v1558 = vld [vmem:[#allocation22] sm:$0x1]
        %v1560 = vlaneseq
        %v1561 = vshrl.u32 %v1560, 7
        %v1562 = vsub.s32 0, %v1561
        %v1563 = vrot.slane %v1558, %v1562
        %v1573 = vunpack.c.l.b16 %v1550
        %v1574 = vunpack.c.l.b16 %v1551
        %v1575 = vunpack.c.l.b16 %v1552
        %v1576 = vunpack.c.l.b16 %v1553
        %v1577 = vunpack.c.l.b16 %v1554
        %v1578 = vunpack.c.l.b16 %v1555
        %v1579 = vunpack.c.l.b16 %v1556
        %v1580 = vunpack.c.l.b16 %v1557
        %v1581 = vpack.c.b16 %v1574, %v1573
        %v1582 = vpack.c.b16 %v1576, %v1575
        %v1583 = vpack.c.b16 %v1578, %v1577
        %v1584 = vpack.c.b16 %v1580, %v1579
        %vm1589 = vcmask 523264
        %v1591 = vsel %vm1589, %v1549, 0
        %1593 = vmatprep.subr.bf16.mxu0 0
        %1594 = vmatpush1.bf16.msra.mxu0 %v1581
        %1595 = vmatprep.subr.bf16.mxu0 0
        %1596 = vmatpush1.bf16.msra.mxu0 %v1582
        %1597 = vmatprep.subr.bf16.mxu0 0
        %1598 = vmatpush1.bf16.msra.mxu0 %v1583
        %1599 = vmatprep.subr.bf16.mxu0 0
        %1600 = vmatpush1.bf16.msra.mxu0 %v1584
        %1601 = vmatprep.subr.bf16.mxu0 0
        %1602 = vmatpush1.bf16.msra.mxu0 0
        %1603 = vmatprep.subr.bf16.mxu0 0
        %1604 = vmatpush1.bf16.msra.mxu0 0
        %1605 = vmatprep.subr.bf16.mxu0 0
        %1606 = vmatpush1.bf16.msra.mxu0 0
        %1607 = vmatprep.subr.bf16.mxu0 0
        %1608 = vmatpush1.bf16.msra.mxu0 0
        %1609 = vmatprep.subr.bf16.mxu0 0
        %1610 = vmatpush1.bf16.msra.mxu0 0
        %1611 = vmatprep.subr.bf16.mxu0 0
        %1612 = vmatpush1.bf16.msra.mxu0 0
        %1613 = vmatprep.subr.bf16.mxu0 0
        %1614 = vmatpush1.bf16.msra.mxu0 0
        %1615 = vmatprep.subr.bf16.mxu0 0
        %1616 = vmatpush1.bf16.msra.mxu0 0
        %1617 = vmatprep.subr.bf16.mxu0 0
        %1618 = vmatpush1.bf16.msra.mxu0 0
        %1619 = vmatprep.subr.bf16.mxu0 0
        %1620 = vmatpush1.bf16.msra.mxu0 0
        %1621 = vmatprep.subr.bf16.mxu0 0
        %1622 = vmatpush1.bf16.msra.mxu0 0
        %1623 = vmatprep.subr.bf16.mxu0 0
        %1624 = vmatpush1.bf16.msra.mxu0 0
        %1625 = vmatprep.mubr.bf16.mxu0 0
        %1626 = vmatmul.mubr.bf16.gmra.mrb[0].mxu0 %v1591
        %v1627 = vpop.f32.mrb[0].mxu0
        %v1628 = vadd.f32 %v1563, %v1627
        %v1629 = vpop.f32.mrb[0].mxu0
        %v1630 = vpop.f32.mrb[0].mxu0
        %v1631 = vpop.f32.mrb[0].mxu0
        %1632 = vdwg.mxu0
        %v1633 = vadd.f32 %v1472, %v1628
        %v1634 = vld [vmem:[#allocation23] sm:$0x1]
        %v1635 = vld [vmem:[#allocation25] sm:$0x1]
        %v1636 = vsel %vm872, %v1633, 0.0
        %1637 = vadd.xlane.f32.xlu0 %v1636
        %v1638 = vpop.xlane.xlu0 %1637
        %v1639 = vmul.f32 %v1638, %v1448
        %v1640 = vsub.f32 %v1633, %v1639
        %v1641 = vmul.f32 %v1640, %v1640
        %v1642 = vsel %vm872, %v1641, 0.0
        %1643 = vadd.xlane.f32.xlu0 %v1642
        %v1644 = vpop.xlane.xlu0 %1643
        %v1645 = vmul.f32 %v1644, %v1448
        %v1646 = vadd.f32 %v1645, 1e-05
        %v1647 = vrsqrt.pop %v1646
        %v1648 = vmul.f32 %v1640, %v1647
        %v1650 = vlaneseq
        %v1651 = vshrl.u32 %v1650, 7
        %v1652 = vsub.s32 0, %v1651
        %v1653 = vrot.slane %v1634, %v1652
        %v1655 = vmul.f32 %v1648, %v1653
        %v1657 = vlaneseq
        %v1658 = vshrl.u32 %v1657, 7
        %v1659 = vsub.s32 0, %v1658
        %v1660 = vrot.slane %v1635, %v1659
        %v1662 = vadd.f32 %v1655, %v1660
        %v1663 = vpack.c.bf16 %v1662, %v1662
        %s1664 = scalar_lea.vmem [#allocation8], 16
        %v1665 = vld [vmem:[%s1664] sm:$0xf]
        %v1666 = vld [vmem:[%s1664 + $0x4] sm:$0xf]
        %v1667 = vld [vmem:[%s1664 + $0x8] sm:$0xf]
        %v1668 = vld [vmem:[%s1664 + $0xc] sm:$0xf]
        %s1669 = scalar_lea.vmem [#allocation10], 1
        %v1670 = vld [vmem:[%s1669] sm:$0x1]
        %v1672 = vlaneseq
        %v1673 = vshrl.u32 %v1672, 7
        %v1674 = vsub.s32 0, %v1673
        %v1675 = vrot.slane %v1670, %v1674
        %v1681 = vunpack.c.l.b16 %v1665
        %v1682 = vunpack.c.l.b16 %v1666
        %v1683 = vunpack.c.l.b16 %v1667
        %v1684 = vunpack.c.l.b16 %v1668
        %v1685 = vpack.c.b16 %v1682, %v1681
        %v1686 = vpack.c.b16 %v1684, %v1683
        %v1690 = vsel %vm872, %v1663, 0
        %1692 = vmatprep.subr.bf16.mxu0 0
        %1693 = vmatpush1.bf16.msra.mxu0 %v1685
        %1694 = vmatprep.subr.bf16.mxu0 0
        %1695 = vmatpush1.bf16.msra.mxu0 %v1686
        %1696 = vmatprep.subr.bf16.mxu0 0
        %1697 = vmatpush1.bf16.msra.mxu0 0
        %1698 = vmatprep.subr.bf16.mxu0 0
        %1699 = vmatpush1.bf16.msra.mxu0 0
        %1700 = vmatprep.subr.bf16.mxu0 0
        %1701 = vmatpush1.bf16.msra.mxu0 0
        %1702 = vmatprep.subr.bf16.mxu0 0
        %1703 = vmatpush1.bf16.msra.mxu0 0
        %1704 = vmatprep.subr.bf16.mxu0 0
        %1705 = vmatpush1.bf16.msra.mxu0 0
        %1706 = vmatprep.subr.bf16.mxu0 0
        %1707 = vmatpush1.bf16.msra.mxu0 0
        %1708 = vmatprep.subr.bf16.mxu0 0
        %1709 = vmatpush1.bf16.msra.mxu0 0
        %1710 = vmatprep.subr.bf16.mxu0 0
        %1711 = vmatpush1.bf16.msra.mxu0 0
        %1712 = vmatprep.subr.bf16.mxu0 0
        %1713 = vmatpush1.bf16.msra.mxu0 0
        %1714 = vmatprep.subr.bf16.mxu0 0
        %1715 = vmatpush1.bf16.msra.mxu0 0
        %1716 = vmatprep.subr.bf16.mxu0 0
        %1717 = vmatpush1.bf16.msra.mxu0 0
        %1718 = vmatprep.subr.bf16.mxu0 0
        %1719 = vmatpush1.bf16.msra.mxu0 0
        %1720 = vmatprep.subr.bf16.mxu0 0
        %1721 = vmatpush1.bf16.msra.mxu0 0
        %1722 = vmatprep.subr.bf16.mxu0 0
        %1723 = vmatpush1.bf16.msra.mxu0 0
        %1724 = vmatprep.mubr.bf16.mxu0 0
        %1725 = vmatmul.mubr.bf16.gmra.mrb[0].mxu0 %v1690
        %v1726 = vpop.f32.mrb[0].mxu0
        %v1727 = vadd.f32 %v1675, %v1726
        %v1728 = vpop.f32.mrb[0].mxu0
        %v1729 = vpop.f32.mrb[0].mxu0
        %v1730 = vpop.f32.mrb[0].mxu0
        %1731 = vdwg.mxu0
        %v1732 = vpack.c.bf16 %v1727, %v1727
        %1734 = vrot.lane.b32.xlu0 %v1732, 96
        %v1735 = vpop.permute.xlu0 %1734
        %v1737 = vsel %vm920, %v1732, 0
        %v1740 = vsel %vm920, %v1735, 0
        %1742 = vmatprep.subr.bf16.mxu0 0
        %1743 = vmatpush1.bf16.xpose.msra.mxu0 %v1740
        %1744 = vmatprep.subr.bf16.mxu0 0
        %1745 = vmatpush1.bf16.xpose.msra.mxu0 0
        %1746 = vmatprep.subr.bf16.mxu0 0
        %1747 = vmatpush1.bf16.xpose.msra.mxu0 0
        %1748 = vmatprep.subr.bf16.mxu0 0
        %1749 = vmatpush1.bf16.xpose.msra.mxu0 0
        %1750 = vmatprep.subr.bf16.mxu0 0
        %1751 = vmatpush1.bf16.xpose.msra.mxu0 0
        %1752 = vmatprep.subr.bf16.mxu0 0
        %1753 = vmatpush1.bf16.xpose.msra.mxu0 0
        %1754 = vmatprep.subr.bf16.mxu0 0
        %1755 = vmatpush1.bf16.xpose.msra.mxu0 0
        %1756 = vmatprep.subr.bf16.mxu0 0
        %1757 = vmatpush1.bf16.xpose.msra.mxu0 0
        %1758 = vmatprep.subr.bf16.mxu0 0
        %1759 = vmatpush1.bf16.xpose.msra.mxu0 0
        %1760 = vmatprep.subr.bf16.mxu0 0
        %1761 = vmatpush1.bf16.xpose.msra.mxu0 0
        %1762 = vmatprep.subr.bf16.mxu0 0
        %1763 = vmatpush1.bf16.xpose.msra.mxu0 0
        %1764 = vmatprep.subr.bf16.mxu0 0
        %1765 = vmatpush1.bf16.xpose.msra.mxu0 0
        %1766 = vmatprep.subr.bf16.mxu0 0
        %1767 = vmatpush1.bf16.xpose.msra.mxu0 0
        %1768 = vmatprep.subr.bf16.mxu0 0
        %1769 = vmatpush1.bf16.xpose.msra.mxu0 0
        %1770 = vmatprep.subr.bf16.mxu0 0
        %1771 = vmatpush1.bf16.xpose.msra.mxu0 0
        %1772 = vmatprep.subr.bf16.mxu0 0
        %1773 = vmatpush1.bf16.xpose.msra.mxu0 0
        %1774 = vmatprep.mubr.bf16.mxu0 0
        %1775 = vmatmul.mubr.bf16.gmra.mrb[0].mxu0 %v1737
        %v1776 = vpop.f32.mrb[0].mxu0
        %v1777 = vadd.f32 0.0, %v1776
        %v1778 = vpop.f32.mrb[0].mxu0
        %v1779 = vpop.f32.mrb[0].mxu0
        %v1780 = vpop.f32.mrb[0].mxu0
        %1781 = vdwg.mxu0
        %v1782 = vsel %vm920, %v1777, -inf
        %1783 = vmax.xlane.f32.xlu0 %v1782
        %v1784 = vpop.xlane.xlu0 %1783
        %v1785 = vsub.f32 %v1777, %v1784
        %v1786 = vmul.f32 %v1785, 1.442695
        %v1787 = vpow.pop %v1786
        %v1788 = vsel %vm920, %v1787, 0.0
        %1789 = vadd.xlane.f32.xlu0 %v1788
        %v1790 = vpop.xlane.xlu0 %1789
        %v1791 = vrcp.pop %v1790
        %v1792 = vmul.f32 %v1787, %v1791
        %v1793 = vpack.c.bf16 %v1792, %v1792
        %1794 = vrot.lane.b32.xlu0 %v1732, 64
        %v1795 = vpop.permute.xlu0 %1794
        %v1797 = vsel %vm920, %v1793, 0
        %v1800 = vsel %vm984, %v1795, 0
        %1802 = vmatprep.subr.bf16.mxu0 0
        %1803 = vmatpush1.bf16.msra.mxu0 %v1800
        %1804 = vmatprep.subr.bf16.mxu0 0
        %1805 = vmatpush1.bf16.msra.mxu0 0
        %1806 = vmatprep.subr.bf16.mxu0 0
        %1807 = vmatpush1.bf16.msra.mxu0 0
        %1808 = vmatprep.subr.bf16.mxu0 0
        %1809 = vmatpush1.bf16.msra.mxu0 0
        %1810 = vmatprep.subr.bf16.mxu0 0
        %1811 = vmatpush1.bf16.msra.mxu0 0
        %1812 = vmatprep.subr.bf16.mxu0 0
        %1813 = vmatpush1.bf16.msra.mxu0 0
        %1814 = vmatprep.subr.bf16.mxu0 0
        %1815 = vmatpush1.bf16.msra.mxu0 0
        %1816 = vmatprep.subr.bf16.mxu0 0
        %1817 = vmatpush1.bf16.msra.mxu0 0
        %1818 = vmatprep.subr.bf16.mxu0 0
        %1819 = vmatpush1.bf16.msra.mxu0 0
        %1820 = vmatprep.subr.bf16.mxu0 0
        %1821 = vmatpush1.bf16.msra.mxu0 0
        %1822 = vmatprep.subr.bf16.mxu0 0
        %1823 = vmatpush1.bf16.msra.mxu0 0
        %1824 = vmatprep.subr.bf16.mxu0 0
        %1825 = vmatpush1.bf16.msra.mxu0 0
        %1826 = vmatprep.subr.bf16.mxu0 0
        %1827 = vmatpush1.bf16.msra.mxu0 0
        %1828 = vmatprep.subr.bf16.mxu0 0
        %1829 = vmatpush1.bf16.msra.mxu0 0
        %1830 = vmatprep.subr.bf16.mxu0 0
        %1831 = vmatpush1.bf16.msra.mxu0 0
        %1832 = vmatprep.subr.bf16.mxu0 0
        %1833 = vmatpush1.bf16.msra.mxu0 0
        %1834 = vmatprep.mubr.bf16.mxu0 0
        %1835 = vmatmul.mubr.bf16.gmra.mrb[0].mxu0 %v1797
        %v1836 = vpop.f32.mrb[0].mxu0
        %v1837 = vadd.f32 0.0, %v1836
        %v1838 = vpop.f32.mrb[0].mxu0
        %v1839 = vpop.f32.mrb[0].mxu0
        %v1840 = vpop.f32.mrb[0].mxu0
        %1841 = vdwg.mxu0
        %1842 = vrot.lane.b32.xlu0 %v1732, 120
        %v1843 = vpop.permute.xlu0 %1842
        %1844 = vrot.lane.b32.xlu0 %v1732, 88
        %v1845 = vpop.permute.xlu0 %1844
        %v1847 = vsel %vm920, %v1843, 0
        %v1850 = vsel %vm920, %v1845, 0
        %1852 = vmatprep.subr.bf16.mxu0 0
        %1853 = vmatpush1.bf16.xpose.msra.mxu0 %v1850
        %1854 = vmatprep.subr.bf16.mxu0 0
        %1855 = vmatpush1.bf16.xpose.msra.mxu0 0
        %1856 = vmatprep.subr.bf16.mxu0 0
        %1857 = vmatpush1.bf16.xpose.msra.mxu0 0
        %1858 = vmatprep.subr.bf16.mxu0 0
        %1859 = vmatpush1.bf16.xpose.msra.mxu0 0
        %1860 = vmatprep.subr.bf16.mxu0 0
        %1861 = vmatpush1.bf16.xpose.msra.mxu0 0
        %1862 = vmatprep.subr.bf16.mxu0 0
        %1863 = vmatpush1.bf16.xpose.msra.mxu0 0
        %1864 = vmatprep.subr.bf16.mxu0 0
        %1865 = vmatpush1.bf16.xpose.msra.mxu0 0
        %1866 = vmatprep.subr.bf16.mxu0 0
        %1867 = vmatpush1.bf16.xpose.msra.mxu0 0
        %1868 = vmatprep.subr.bf16.mxu0 0
        %1869 = vmatpush1.bf16.xpose.msra.mxu0 0
        %1870 = vmatprep.subr.bf16.mxu0 0
        %1871 = vmatpush1.bf16.xpose.msra.mxu0 0
        %1872 = vmatprep.subr.bf16.mxu0 0
        %1873 = vmatpush1.bf16.xpose.msra.mxu0 0
        %1874 = vmatprep.subr.bf16.mxu0 0
        %1875 = vmatpush1.bf16.xpose.msra.mxu0 0
        %1876 = vmatprep.subr.bf16.mxu0 0
        %1877 = vmatpush1.bf16.xpose.msra.mxu0 0
        %1878 = vmatprep.subr.bf16.mxu0 0
        %1879 = vmatpush1.bf16.xpose.msra.mxu0 0
        %1880 = vmatprep.subr.bf16.mxu0 0
        %1881 = vmatpush1.bf16.xpose.msra.mxu0 0
        %1882 = vmatprep.subr.bf16.mxu0 0
        %1883 = vmatpush1.bf16.xpose.msra.mxu0 0
        %1884 = vmatprep.mubr.bf16.mxu0 0
        %1885 = vmatmul.mubr.bf16.gmra.mrb[0].mxu0 %v1847
        %v1886 = vpop.f32.mrb[0].mxu0
        %v1887 = vadd.f32 0.0, %v1886
        %v1888 = vpop.f32.mrb[0].mxu0
        %v1889 = vpop.f32.mrb[0].mxu0
        %v1890 = vpop.f32.mrb[0].mxu0
        %1891 = vdwg.mxu0
        %v1892 = vsel %vm920, %v1887, -inf
        %1893 = vmax.xlane.f32.xlu0 %v1892
        %v1894 = vpop.xlane.xlu0 %1893
        %v1895 = vsub.f32 %v1887, %v1894
        %v1896 = vmul.f32 %v1895, 1.442695
        %v1897 = vpow.pop %v1896
        %v1898 = vsel %vm920, %v1897, 0.0
        %1899 = vadd.xlane.f32.xlu0 %v1898
        %v1900 = vpop.xlane.xlu0 %1899
        %v1901 = vrcp.pop %v1900
        %v1902 = vmul.f32 %v1897, %v1901
        %v1903 = vpack.c.bf16 %v1902, %v1902
        %1904 = vrot.lane.b32.xlu0 %v1732, 56
        %v1905 = vpop.permute.xlu0 %1904
        %v1907 = vsel %vm920, %v1903, 0
        %v1910 = vsel %vm984, %v1905, 0
        %1912 = vmatprep.subr.bf16.mxu0 0
        %1913 = vmatpush1.bf16.msra.mxu0 %v1910
        %1914 = vmatprep.subr.bf16.mxu0 0
        %1915 = vmatpush1.bf16.msra.mxu0 0
        %1916 = vmatprep.subr.bf16.mxu0 0
        %1917 = vmatpush1.bf16.msra.mxu0 0
        %1918 = vmatprep.subr.bf16.mxu0 0
        %1919 = vmatpush1.bf16.msra.mxu0 0
        %1920 = vmatprep.subr.bf16.mxu0 0
        %1921 = vmatpush1.bf16.msra.mxu0 0
        %1922 = vmatprep.subr.bf16.mxu0 0
        %1923 = vmatpush1.bf16.msra.mxu0 0
        %1924 = vmatprep.subr.bf16.mxu0 0
        %1925 = vmatpush1.bf16.msra.mxu0 0
        %1926 = vmatprep.subr.bf16.mxu0 0
        %1927 = vmatpush1.bf16.msra.mxu0 0
        %1928 = vmatprep.subr.bf16.mxu0 0
        %1929 = vmatpush1.bf16.msra.mxu0 0
        %1930 = vmatprep.subr.bf16.mxu0 0
        %1931 = vmatpush1.bf16.msra.mxu0 0
        %1932 = vmatprep.subr.bf16.mxu0 0
        %1933 = vmatpush1.bf16.msra.mxu0 0
        %1934 = vmatprep.subr.bf16.mxu0 0
        %1935 = vmatpush1.bf16.msra.mxu0 0
        %1936 = vmatprep.subr.bf16.mxu0 0
        %1937 = vmatpush1.bf16.msra.mxu0 0
        %1938 = vmatprep.subr.bf16.mxu0 0
        %1939 = vmatpush1.bf16.msra.mxu0 0
        %1940 = vmatprep.subr.bf16.mxu0 0
        %1941 = vmatpush1.bf16.msra.mxu0 0
        %1942 = vmatprep.subr.bf16.mxu0 0
        %1943 = vmatpush1.bf16.msra.mxu0 0
        %1944 = vmatprep.mubr.bf16.mxu0 0
        %1945 = vmatmul.mubr.bf16.gmra.mrb[0].mxu0 %v1907
        %v1946 = vpop.f32.mrb[0].mxu0
        %v1947 = vadd.f32 0.0, %v1946
        %v1948 = vpop.f32.mrb[0].mxu0
        %v1949 = vpop.f32.mrb[0].mxu0
        %v1950 = vpop.f32.mrb[0].mxu0
        %1951 = vdwg.mxu0
        %1952 = vrot.lane.b32.xlu0 %v1732, 112
        %v1953 = vpop.permute.xlu0 %1952
        %1954 = vrot.lane.b32.xlu0 %v1732, 80
        %v1955 = vpop.permute.xlu0 %1954
        %v1957 = vsel %vm920, %v1953, 0
        %v1960 = vsel %vm920, %v1955, 0
        %1962 = vmatprep.subr.bf16.mxu0 0
        %1963 = vmatpush1.bf16.xpose.msra.mxu0 %v1960
        %1964 = vmatprep.subr.bf16.mxu0 0
        %1965 = vmatpush1.bf16.xpose.msra.mxu0 0
        %1966 = vmatprep.subr.bf16.mxu0 0
        %1967 = vmatpush1.bf16.xpose.msra.mxu0 0
        %1968 = vmatprep.subr.bf16.mxu0 0
        %1969 = vmatpush1.bf16.xpose.msra.mxu0 0
        %1970 = vmatprep.subr.bf16.mxu0 0
        %1971 = vmatpush1.bf16.xpose.msra.mxu0 0
        %1972 = vmatprep.subr.bf16.mxu0 0
        %1973 = vmatpush1.bf16.xpose.msra.mxu0 0
        %1974 = vmatprep.subr.bf16.mxu0 0
        %1975 = vmatpush1.bf16.xpose.msra.mxu0 0
        %1976 = vmatprep.subr.bf16.mxu0 0
        %1977 = vmatpush1.bf16.xpose.msra.mxu0 0
        %1978 = vmatprep.subr.bf16.mxu0 0
        %1979 = vmatpush1.bf16.xpose.msra.mxu0 0
        %1980 = vmatprep.subr.bf16.mxu0 0
        %1981 = vmatpush1.bf16.xpose.msra.mxu0 0
        %1982 = vmatprep.subr.bf16.mxu0 0
        %1983 = vmatpush1.bf16.xpose.msra.mxu0 0
        %1984 = vmatprep.subr.bf16.mxu0 0
        %1985 = vmatpush1.bf16.xpose.msra.mxu0 0
        %1986 = vmatprep.subr.bf16.mxu0 0
        %1987 = vmatpush1.bf16.xpose.msra.mxu0 0
        %1988 = vmatprep.subr.bf16.mxu0 0
        %1989 = vmatpush1.bf16.xpose.msra.mxu0 0
        %1990 = vmatprep.subr.bf16.mxu0 0
        %1991 = vmatpush1.bf16.xpose.msra.mxu0 0
        %1992 = vmatprep.subr.bf16.mxu0 0
        %1993 = vmatpush1.bf16.xpose.msra.mxu0 0
        %1994 = vmatprep.mubr.bf16.mxu0 0
        %1995 = vmatmul.mubr.bf16.gmra.mrb[0].mxu0 %v1957
        %v1996 = vpop.f32.mrb[0].mxu0
        %v1997 = vadd.f32 0.0, %v1996
        %v1998 = vpop.f32.mrb[0].mxu0
        %v1999 = vpop.f32.mrb[0].mxu0
        %v2000 = vpop.f32.mrb[0].mxu0
        %2001 = vdwg.mxu0
        %v2002 = vsel %vm920, %v1997, -inf
        %2003 = vmax.xlane.f32.xlu0 %v2002
        %v2004 = vpop.xlane.xlu0 %2003
        %v2005 = vsub.f32 %v1997, %v2004
        %v2006 = vmul.f32 %v2005, 1.442695
        %v2007 = vpow.pop %v2006
        %v2008 = vsel %vm920, %v2007, 0.0
        %2009 = vadd.xlane.f32.xlu0 %v2008
        %v2010 = vpop.xlane.xlu0 %2009
        %v2011 = vrcp.pop %v2010
        %v2012 = vmul.f32 %v2007, %v2011
        %v2013 = vpack.c.bf16 %v2012, %v2012
        %2014 = vrot.lane.b32.xlu0 %v1732, 48
        %v2015 = vpop.permute.xlu0 %2014
        %v2017 = vsel %vm920, %v2013, 0
        %v2020 = vsel %vm984, %v2015, 0
        %2022 = vmatprep.subr.bf16.mxu0 0
        %2023 = vmatpush1.bf16.msra.mxu0 %v2020
        %2024 = vmatprep.subr.bf16.mxu0 0
        %2025 = vmatpush1.bf16.msra.mxu0 0
        %2026 = vmatprep.subr.bf16.mxu0 0
        %2027 = vmatpush1.bf16.msra.mxu0 0
        %2028 = vmatprep.subr.bf16.mxu0 0
        %2029 = vmatpush1.bf16.msra.mxu0 0
        %2030 = vmatprep.subr.bf16.mxu0 0
        %2031 = vmatpush1.bf16.msra.mxu0 0
        %2032 = vmatprep.subr.bf16.mxu0 0
        %2033 = vmatpush1.bf16.msra.mxu0 0
        %2034 = vmatprep.subr.bf16.mxu0 0
        %2035 = vmatpush1.bf16.msra.mxu0 0
        %2036 = vmatprep.subr.bf16.mxu0 0
        %2037 = vmatpush1.bf16.msra.mxu0 0
        %2038 = vmatprep.subr.bf16.mxu0 0
        %2039 = vmatpush1.bf16.msra.mxu0 0
        %2040 = vmatprep.subr.bf16.mxu0 0
        %2041 = vmatpush1.bf16.msra.mxu0 0
        %2042 = vmatprep.subr.bf16.mxu0 0
        %2043 = vmatpush1.bf16.msra.mxu0 0
        %2044 = vmatprep.subr.bf16.mxu0 0
        %2045 = vmatpush1.bf16.msra.mxu0 0
        %2046 = vmatprep.subr.bf16.mxu0 0
        %2047 = vmatpush1.bf16.msra.mxu0 0
        %2048 = vmatprep.subr.bf16.mxu0 0
        %2049 = vmatpush1.bf16.msra.mxu0 0
        %2050 = vmatprep.subr.bf16.mxu0 0
        %2051 = vmatpush1.bf16.msra.mxu0 0
        %2052 = vmatprep.subr.bf16.mxu0 0
        %2053 = vmatpush1.bf16.msra.mxu0 0
        %2054 = vmatprep.mubr.bf16.mxu0 0
        %2055 = vmatmul.mubr.bf16.gmra.mrb[0].mxu0 %v2017
        %v2056 = vpop.f32.mrb[0].mxu0
        %v2057 = vadd.f32 0.0, %v2056
        %v2058 = vpop.f32.mrb[0].mxu0
        %v2059 = vpop.f32.mrb[0].mxu0
        %v2060 = vpop.f32.mrb[0].mxu0
        %2061 = vdwg.mxu0
        %2062 = vrot.lane.b32.xlu0 %v1732, 104
        %v2063 = vpop.permute.xlu0 %2062
        %2064 = vrot.lane.b32.xlu0 %v1732, 72
        %v2065 = vpop.permute.xlu0 %2064
        %v2067 = vsel %vm920, %v2063, 0
        %v2070 = vsel %vm920, %v2065, 0
        %2072 = vmatprep.subr.bf16.mxu0 0
        %2073 = vmatpush1.bf16.xpose.msra.mxu0 %v2070
        %2074 = vmatprep.subr.bf16.mxu0 0
        %2075 = vmatpush1.bf16.xpose.msra.mxu0 0
        %2076 = vmatprep.subr.bf16.mxu0 0
        %2077 = vmatpush1.bf16.xpose.msra.mxu0 0
        %2078 = vmatprep.subr.bf16.mxu0 0
        %2079 = vmatpush1.bf16.xpose.msra.mxu0 0
        %2080 = vmatprep.subr.bf16.mxu0 0
        %2081 = vmatpush1.bf16.xpose.msra.mxu0 0
        %2082 = vmatprep.subr.bf16.mxu0 0
        %2083 = vmatpush1.bf16.xpose.msra.mxu0 0
        %2084 = vmatprep.subr.bf16.mxu0 0
        %2085 = vmatpush1.bf16.xpose.msra.mxu0 0
        %2086 = vmatprep.subr.bf16.mxu0 0
        %2087 = vmatpush1.bf16.xpose.msra.mxu0 0
        %2088 = vmatprep.subr.bf16.mxu0 0
        %2089 = vmatpush1.bf16.xpose.msra.mxu0 0
        %2090 = vmatprep.subr.bf16.mxu0 0
        %2091 = vmatpush1.bf16.xpose.msra.mxu0 0
        %2092 = vmatprep.subr.bf16.mxu0 0
        %2093 = vmatpush1.bf16.xpose.msra.mxu0 0
        %2094 = vmatprep.subr.bf16.mxu0 0
        %2095 = vmatpush1.bf16.xpose.msra.mxu0 0
        %2096 = vmatprep.subr.bf16.mxu0 0
        %2097 = vmatpush1.bf16.xpose.msra.mxu0 0
        %2098 = vmatprep.subr.bf16.mxu0 0
        %2099 = vmatpush1.bf16.xpose.msra.mxu0 0
        %2100 = vmatprep.subr.bf16.mxu0 0
        %2101 = vmatpush1.bf16.xpose.msra.mxu0 0
        %2102 = vmatprep.subr.bf16.mxu0 0
        %2103 = vmatpush1.bf16.xpose.msra.mxu0 0
        %2104 = vmatprep.mubr.bf16.mxu0 0
        %2105 = vmatmul.mubr.bf16.gmra.mrb[0].mxu0 %v2067
        %v2106 = vpop.f32.mrb[0].mxu0
        %v2107 = vadd.f32 0.0, %v2106
        %v2108 = vpop.f32.mrb[0].mxu0
        %v2109 = vpop.f32.mrb[0].mxu0
        %v2110 = vpop.f32.mrb[0].mxu0
        %2111 = vdwg.mxu0
        %v2112 = vsel %vm920, %v2107, -inf
        %2113 = vmax.xlane.f32.xlu0 %v2112
        %v2114 = vpop.xlane.xlu0 %2113
        %v2115 = vsub.f32 %v2107, %v2114
        %v2116 = vmul.f32 %v2115, 1.442695
        %v2117 = vpow.pop %v2116
        %v2118 = vsel %vm920, %v2117, 0.0
        %2119 = vadd.xlane.f32.xlu0 %v2118
        %v2120 = vpop.xlane.xlu0 %2119
        %v2121 = vrcp.pop %v2120
        %v2122 = vmul.f32 %v2117, %v2121
        %v2123 = vpack.c.bf16 %v2122, %v2122
        %2124 = vrot.lane.b32.xlu0 %v1732, 40
        %v2125 = vpop.permute.xlu0 %2124
        %v2127 = vsel %vm920, %v2123, 0
        %v2130 = vsel %vm984, %v2125, 0
        %2132 = vmatprep.subr.bf16.mxu0 0
        %2133 = vmatpush1.bf16.msra.mxu0 %v2130
        %2134 = vmatprep.subr.bf16.mxu0 0
        %2135 = vmatpush1.bf16.msra.mxu0 0
        %2136 = vmatprep.subr.bf16.mxu0 0
        %2137 = vmatpush1.bf16.msra.mxu0 0
        %2138 = vmatprep.subr.bf16.mxu0 0
        %2139 = vmatpush1.bf16.msra.mxu0 0
        %2140 = vmatprep.subr.bf16.mxu0 0
        %2141 = vmatpush1.bf16.msra.mxu0 0
        %2142 = vmatprep.subr.bf16.mxu0 0
        %2143 = vmatpush1.bf16.msra.mxu0 0
        %2144 = vmatprep.subr.bf16.mxu0 0
        %2145 = vmatpush1.bf16.msra.mxu0 0
        %2146 = vmatprep.subr.bf16.mxu0 0
        %2147 = vmatpush1.bf16.msra.mxu0 0
        %2148 = vmatprep.subr.bf16.mxu0 0
        %2149 = vmatpush1.bf16.msra.mxu0 0
        %2150 = vmatprep.subr.bf16.mxu0 0
        %2151 = vmatpush1.bf16.msra.mxu0 0
        %2152 = vmatprep.subr.bf16.mxu0 0
        %2153 = vmatpush1.bf16.msra.mxu0 0
        %2154 = vmatprep.subr.bf16.mxu0 0
        %2155 = vmatpush1.bf16.msra.mxu0 0
        %2156 = vmatprep.subr.bf16.mxu0 0
        %2157 = vmatpush1.bf16.msra.mxu0 0
        %2158 = vmatprep.subr.bf16.mxu0 0
        %2159 = vmatpush1.bf16.msra.mxu0 0
        %2160 = vmatprep.subr.bf16.mxu0 0
        %2161 = vmatpush1.bf16.msra.mxu0 0
        %2162 = vmatprep.subr.bf16.mxu0 0
        %2163 = vmatpush1.bf16.msra.mxu0 0
        %2164 = vmatprep.mubr.bf16.mxu0 0
        %2165 = vmatmul.mubr.bf16.gmra.mrb[0].mxu0 %v2127
        %v2166 = vpop.f32.mrb[0].mxu0
        %v2167 = vadd.f32 0.0, %v2166
        %v2168 = vpop.f32.mrb[0].mxu0
        %v2169 = vpop.f32.mrb[0].mxu0
        %v2170 = vpop.f32.mrb[0].mxu0
        %2171 = vdwg.mxu0
        %2173 = vrot.lane.b32.xlu0 %v1947, 8
        %v2174 = vpop.permute.xlu0 %2173
        %2177 = vrot.lane.b32.xlu0 %v2057, 16
        %v2178 = vpop.permute.xlu0 %2177
        %2181 = vrot.lane.b32.xlu0 %v2167, 24
        %v2182 = vpop.permute.xlu0 %2181
        %v2184 = vsel %vm920, %v1837, %v2174
        %v2185 = vsel %vm1371, %v2184, %v2178
        %v2186 = vsel %vm1373, %v2185, %v2182
        %v2187 = vpack.c.bf16 %v2186, %v2186
        %s2188 = scalar_lea.vmem [#allocation11], 16
        %v2189 = vld [vmem:[%s2188] sm:$0xf]
        %v2190 = vld [vmem:[%s2188 + $0x4] sm:$0xf]
        %v2191 = vld [vmem:[%s2188 + $0x8] sm:$0xf]
        %v2192 = vld [vmem:[%s2188 + $0xc] sm:$0xf]
        %s2193 = scalar_lea.vmem [#allocation13], 1
        %v2194 = vld [vmem:[%s2193] sm:$0x1]
        %v2196 = vlaneseq
        %v2197 = vshrl.u32 %v2196, 7
        %v2198 = vsub.s32 0, %v2197
        %v2199 = vrot.slane %v2194, %v2198
        %v2205 = vunpack.c.l.b16 %v2189
        %v2206 = vunpack.c.l.b16 %v2190
        %v2207 = vunpack.c.l.b16 %v2191
        %v2208 = vunpack.c.l.b16 %v2192
        %v2209 = vpack.c.b16 %v2206, %v2205
        %v2210 = vpack.c.b16 %v2208, %v2207
        %v2214 = vsel %vm872, %v2187, 0
        %2216 = vmatprep.subr.bf16.mxu0 0
        %2217 = vmatpush1.bf16.msra.mxu0 %v2209
        %2218 = vmatprep.subr.bf16.mxu0 0
        %2219 = vmatpush1.bf16.msra.mxu0 %v2210
        %2220 = vmatprep.subr.bf16.mxu0 0
        %2221 = vmatpush1.bf16.msra.mxu0 0
        %2222 = vmatprep.subr.bf16.mxu0 0
        %2223 = vmatpush1.bf16.msra.mxu0 0
        %2224 = vmatprep.subr.bf16.mxu0 0
        %2225 = vmatpush1.bf16.msra.mxu0 0
        %2226 = vmatprep.subr.bf16.mxu0 0
        %2227 = vmatpush1.bf16.msra.mxu0 0
        %2228 = vmatprep.subr.bf16.mxu0 0
        %2229 = vmatpush1.bf16.msra.mxu0 0
        %2230 = vmatprep.subr.bf16.mxu0 0
        %2231 = vmatpush1.bf16.msra.mxu0 0
        %2232 = vmatprep.subr.bf16.mxu0 0
        %2233 = vmatpush1.bf16.msra.mxu0 0
        %2234 = vmatprep.subr.bf16.mxu0 0
        %2235 = vmatpush1.bf16.msra.mxu0 0
        %2236 = vmatprep.subr.bf16.mxu0 0
        %2237 = vmatpush1.bf16.msra.mxu0 0
        %2238 = vmatprep.subr.bf16.mxu0 0
        %2239 = vmatpush1.bf16.msra.mxu0 0
        %2240 = vmatprep.subr.bf16.mxu0 0
        %2241 = vmatpush1.bf16.msra.mxu0 0
        %2242 = vmatprep.subr.bf16.mxu0 0
        %2243 = vmatpush1.bf16.msra.mxu0 0
        %2244 = vmatprep.subr.bf16.mxu0 0
        %2245 = vmatpush1.bf16.msra.mxu0 0
        %2246 = vmatprep.subr.bf16.mxu0 0
        %2247 = vmatpush1.bf16.msra.mxu0 0
        %2248 = vmatprep.mubr.bf16.mxu0 0
        %2249 = vmatmul.mubr.bf16.gmra.mrb[0].mxu0 %v2214
        %v2250 = vpop.f32.mrb[0].mxu0
        %v2251 = vadd.f32 %v2199, %v2250
        %v2252 = vpop.f32.mrb[0].mxu0
        %v2253 = vpop.f32.mrb[0].mxu0
        %v2254 = vpop.f32.mrb[0].mxu0
        %2255 = vdwg.mxu0
        %v2256 = vadd.f32 %v1662, %v2251
        %s2257 = scalar_lea.vmem [#allocation14], 1
        %v2258 = vld [vmem:[%s2257] sm:$0x1]
        %s2259 = scalar_lea.vmem [#allocation16], 1
        %v2260 = vld [vmem:[%s2259] sm:$0x1]
        %v2261 = vsel %vm872, %v2256, 0.0
        %2262 = vadd.xlane.f32.xlu0 %v2261
        %v2263 = vpop.xlane.xlu0 %2262
        %v2264 = vmul.f32 %v2263, %v1448
        %v2265 = vsub.f32 %v2256, %v2264
        %v2266 = vmul.f32 %v2265, %v2265
        %v2267 = vsel %vm872, %v2266, 0.0
        %2268 = vadd.xlane.f32.xlu0 %v2267
        %v2269 = vpop.xlane.xlu0 %2268
        %v2270 = vmul.f32 %v2269, %v1448
        %v2271 = vadd.f32 %v2270, 1e-05
        %v2272 = vrsqrt.pop %v2271
        %v2273 = vmul.f32 %v2265, %v2272
        %v2275 = vlaneseq
        %v2276 = vshrl.u32 %v2275, 7
        %v2277 = vsub.s32 0, %v2276
        %v2278 = vrot.slane %v2258, %v2277
        %v2280 = vmul.f32 %v2273, %v2278
        %v2282 = vlaneseq
        %v2283 = vshrl.u32 %v2282, 7
        %v2284 = vsub.s32 0, %v2283
        %v2285 = vrot.slane %v2260, %v2284
        %v2287 = vadd.f32 %v2280, %v2285
        %v2288 = vpack.c.bf16 %v2287, %v2287
        %s2289 = scalar_lea.vmem [#allocation17], 16
        %v2290 = vld [vmem:[%s2289] sm:$0xf]
        %v2291 = vld [vmem:[%s2289 + $0x4] sm:$0xf]
        %v2292 = vld [vmem:[%s2289 + $0x8] sm:$0xf]
        %v2293 = vld [vmem:[%s2289 + $0xc] sm:$0xf]
        %s2294 = scalar_lea.vmem [#allocation19], 1
        %v2295 = vld [vmem:[%s2294] sm:$0x1]
        %v2297 = vlaneseq
        %v2298 = vshrl.u32 %v2297, 7
        %v2299 = vsub.s32 0, %v2298
        %v2300 = vrot.slane %v2295, %v2299
        %v2306 = vunpack.c.l.b16 %v2290
        %v2307 = vunpack.c.l.b16 %v2291
        %v2308 = vunpack.c.l.b16 %v2292
        %v2309 = vunpack.c.l.b16 %v2293
        %v2310 = vpack.c.b16 %v2307, %v2306
        %v2311 = vpack.c.b16 %v2309, %v2308
        %v2315 = vsel %vm872, %v2288, 0
        %2317 = vmatprep.subr.bf16.mxu0 0
        %2318 = vmatpush1.bf16.msra.mxu0 %v2310
        %2319 = vmatprep.subr.bf16.mxu0 0
        %2320 = vmatpush1.bf16.msra.mxu0 %v2311
        %2321 = vmatprep.subr.bf16.mxu0 0
        %2322 = vmatpush1.bf16.msra.mxu0 0
        %2323 = vmatprep.subr.bf16.mxu0 0
        %2324 = vmatpush1.bf16.msra.mxu0 0
        %2325 = vmatprep.subr.bf16.mxu0 0
        %2326 = vmatpush1.bf16.msra.mxu0 0
        %2327 = vmatprep.subr.bf16.mxu0 0
        %2328 = vmatpush1.bf16.msra.mxu0 0
        %2329 = vmatprep.subr.bf16.mxu0 0
        %2330 = vmatpush1.bf16.msra.mxu0 0
        %2331 = vmatprep.subr.bf16.mxu0 0
        %2332 = vmatpush1.bf16.msra.mxu0 0
        %2333 = vmatprep.subr.bf16.mxu0 0
        %2334 = vmatpush1.bf16.msra.mxu0 0
        %2335 = vmatprep.subr.bf16.mxu0 0
        %2336 = vmatpush1.bf16.msra.mxu0 0
        %2337 = vmatprep.subr.bf16.mxu0 0
        %2338 = vmatpush1.bf16.msra.mxu0 0
        %2339 = vmatprep.subr.bf16.mxu0 0
        %2340 = vmatpush1.bf16.msra.mxu0 0
        %2341 = vmatprep.subr.bf16.mxu0 0
        %2342 = vmatpush1.bf16.msra.mxu0 0
        %2343 = vmatprep.subr.bf16.mxu0 0
        %2344 = vmatpush1.bf16.msra.mxu0 0
        %2345 = vmatprep.subr.bf16.mxu0 0
        %2346 = vmatpush1.bf16.msra.mxu0 0
        %2347 = vmatprep.subr.bf16.mxu0 0
        %2348 = vmatpush1.bf16.msra.mxu0 0
        %2349 = vmatprep.mubr.bf16.mxu0 0
        %2350 = vmatmul.mubr.bf16.gmra.mrb[0].mxu0 %v2315
        %v2351 = vpop.f32.mrb[0].mxu0
        %v2352 = vadd.f32 %v2300, %v2351
        %v2353 = vpop.f32.mrb[0].mxu0
        %v2354 = vpop.f32.mrb[0].mxu0
        %v2355 = vpop.f32.mrb[0].mxu0
        %2356 = vdwg.mxu0
        %v2357 = vmul.f32 %v2352, 0.5
        %v2358 = vmul.f32 %v2352, 0.044715
        %v2359 = vmul.f32 %v2358, %v2352
        %v2360 = vmul.f32 %v2359, %v2352
        %v2361 = vadd.f32 %v2352, %v2360
        %v2362 = vmul.f32 %v2361, 0.7978846
        %v2363 = vtanh.pop %v2362
        %v2364 = vadd.f32 %v2363, 1.0
        %v2365 = vmul.f32 %v2357, %v2364
        %v2366 = vpack.c.bf16 %v2365, %v2365
        %s2367 = scalar_lea.vmem [#allocation20], 32
        %v2368 = vld [vmem:[%s2367] sm:$0xf]
        %v2369 = vld [vmem:[%s2367 + $0x4] sm:$0xf]
        %v2370 = vld [vmem:[%s2367 + $0x8] sm:$0xf]
        %v2371 = vld [vmem:[%s2367 + $0xc] sm:$0xf]
        %v2372 = vld [vmem:[%s2367 + $0x10] sm:$0xf]
        %v2373 = vld [vmem:[%s2367 + $0x14] sm:$0xf]
        %v2374 = vld [vmem:[%s2367 + $0x18] sm:$0xf]
        %v2375 = vld [vmem:[%s2367 + $0x1c] sm:$0xf]
        %s2376 = scalar_lea.vmem [#allocation22], 1
        %v2377 = vld [vmem:[%s2376] sm:$0x1]
        %v2379 = vlaneseq
        %v2380 = vshrl.u32 %v2379, 7
        %v2381 = vsub.s32 0, %v2380
        %v2382 = vrot.slane %v2377, %v2381
        %v2392 = vunpack.c.l.b16 %v2368
        %v2393 = vunpack.c.l.b16 %v2369
        %v2394 = vunpack.c.l.b16 %v2370
        %v2395 = vunpack.c.l.b16 %v2371
        %v2396 = vunpack.c.l.b16 %v2372
        %v2397 = vunpack.c.l.b16 %v2373
        %v2398 = vunpack.c.l.b16 %v2374
        %v2399 = vunpack.c.l.b16 %v2375
        %v2400 = vpack.c.b16 %v2393, %v2392
        %v2401 = vpack.c.b16 %v2395, %v2394
        %v2402 = vpack.c.b16 %v2397, %v2396
        %v2403 = vpack.c.b16 %v2399, %v2398
        %v2409 = vsel %vm1589, %v2366, 0
        %2411 = vmatprep.subr.bf16.mxu0 0
        %2412 = vmatpush1.bf16.msra.mxu0 %v2400
        %2413 = vmatprep.subr.bf16.mxu0 0
        %2414 = vmatpush1.bf16.msra.mxu0 %v2401
        %2415 = vmatprep.subr.bf16.mxu0 0
        %2416 = vmatpush1.bf16.msra.mxu0 %v2402
        %2417 = vmatprep.subr.bf16.mxu0 0
        %2418 = vmatpush1.bf16.msra.mxu0 %v2403
        %2419 = vmatprep.subr.bf16.mxu0 0
        %2420 = vmatpush1.bf16.msra.mxu0 0
        %2421 = vmatprep.subr.bf16.mxu0 0
        %2422 = vmatpush1.bf16.msra.mxu0 0
        %2423 = vmatprep.subr.bf16.mxu0 0
        %2424 = vmatpush1.bf16.msra.mxu0 0
        %2425 = vmatprep.subr.bf16.mxu0 0
        %2426 = vmatpush1.bf16.msra.mxu0 0
        %2427 = vmatprep.subr.bf16.mxu0 0
        %2428 = vmatpush1.bf16.msra.mxu0 0
        %2429 = vmatprep.subr.bf16.mxu0 0
        %2430 = vmatpush1.bf16.msra.mxu0 0
        %2431 = vmatprep.subr.bf16.mxu0 0
        %2432 = vmatpush1.bf16.msra.mxu0 0
        %2433 = vmatprep.subr.bf16.mxu0 0
        %2434 = vmatpush1.bf16.msra.mxu0 0
        %2435 = vmatprep.subr.bf16.mxu0 0
        %2436 = vmatpush1.bf16.msra.mxu0 0
        %2437 = vmatprep.subr.bf16.mxu0 0
        %2438 = vmatpush1.bf16.msra.mxu0 0
        %2439 = vmatprep.subr.bf16.mxu0 0
        %2440 = vmatpush1.bf16.msra.mxu0 0
        %2441 = vmatprep.subr.bf16.mxu0 0
        %2442 = vmatpush1.bf16.msra.mxu0 0
        %2443 = vmatprep.mubr.bf16.mxu0 0
        %2444 = vmatmul.mubr.bf16.gmra.mrb[0].mxu0 %v2409
        %v2445 = vpop.f32.mrb[0].mxu0
        %v2446 = vadd.f32 %v2382, %v2445
        %v2447 = vpop.f32.mrb[0].mxu0
        %v2448 = vpop.f32.mrb[0].mxu0
        %v2449 = vpop.f32.mrb[0].mxu0
        %2450 = vdwg.mxu0
        %v2451 = vadd.f32 %v2287, %v2446
        %s2452 = scalar_lea.vmem [#allocation23], 1
        %v2453 = vld [vmem:[%s2452] sm:$0x1]
        %s2454 = scalar_lea.vmem [#allocation25], 1
        %v2455 = vld [vmem:[%s2454] sm:$0x1]
        %v2456 = vsel %vm872, %v2451, 0.0
        %2457 = vadd.xlane.f32.xlu0 %v2456
        %v2458 = vpop.xlane.xlu0 %2457
        %v2459 = vmul.f32 %v2458, %v1448
        %v2460 = vsub.f32 %v2451, %v2459
        %v2461 = vmul.f32 %v2460, %v2460
        %v2462 = vsel %vm872, %v2461, 0.0
        %2463 = vadd.xlane.f32.xlu0 %v2462
        %v2464 = vpop.xlane.xlu0 %2463
        %v2465 = vmul.f32 %v2464, %v1448
        %v2466 = vadd.f32 %v2465, 1e-05
        %v2467 = vrsqrt.pop %v2466
        %v2468 = vmul.f32 %v2460, %v2467
        %v2470 = vlaneseq
        %v2471 = vshrl.u32 %v2470, 7
        %v2472 = vsub.s32 0, %v2471
        %v2473 = vrot.slane %v2453, %v2472
        %v2475 = vmul.f32 %v2468, %v2473
        %v2477 = vlaneseq
        %v2478 = vshrl.u32 %v2477, 7
        %v2479 = vsub.s32 0, %v2478
        %v2480 = vrot.slane %v2455, %v2479
        %v2482 = vadd.f32 %v2475, %v2480
        %v2483 = vpack.c.bf16 %v2482, %v2482
        %v2484 = vld [vmem:[#allocation26] sm:$0xf]
        %v2485 = vld [vmem:[#allocation26 + $0x4] sm:$0xf]
        %v2486 = vld [vmem:[#allocation26 + $0x8] sm:$0xf]
        %v2487 = vld [vmem:[#allocation26 + $0xc] sm:$0xf]
        %v2488 = vld [vmem:[#allocation28] sm:$0x1]
        %v2490 = vlaneseq
        %v2491 = vshrl.u32 %v2490, 7
        %v2492 = vsub.s32 0, %v2491
        %v2493 = vrot.slane %v2488, %v2492
        %v2499 = vunpack.c.l.b16 %v2484
        %v2500 = vunpack.c.l.b16 %v2485
        %v2501 = vunpack.c.l.b16 %v2486
        %v2502 = vunpack.c.l.b16 %v2487
        %v2503 = vpack.c.b16 %v2500, %v2499
        %v2504 = vpack.c.b16 %v2502, %v2501
        %v2508 = vsel %vm872, %v2483, 0
        %2510 = vmatprep.subr.bf16.mxu0 0
        %2511 = vmatpush1.bf16.msra.mxu0 %v2503
        %2512 = vmatprep.subr.bf16.mxu0 0
        %2513 = vmatpush1.bf16.msra.mxu0 %v2504
        %2514 = vmatprep.subr.bf16.mxu0 0
        %2515 = vmatpush1.bf16.msra.mxu0 0
        %2516 = vmatprep.subr.bf16.mxu0 0
        %2517 = vmatpush1.bf16.msra.mxu0 0
        %2518 = vmatprep.subr.bf16.mxu0 0
        %2519 = vmatpush1.bf16.msra.mxu0 0
        %2520 = vmatprep.subr.bf16.mxu0 0
        %2521 = vmatpush1.bf16.msra.mxu0 0
        %2522 = vmatprep.subr.bf16.mxu0 0
        %2523 = vmatpush1.bf16.msra.mxu0 0
        %2524 = vmatprep.subr.bf16.mxu0 0
        %2525 = vmatpush1.bf16.msra.mxu0 0
        %2526 = vmatprep.subr.bf16.mxu0 0
        %2527 = vmatpush1.bf16.msra.mxu0 0
        %2528 = vmatprep.subr.bf16.mxu0 0
        %2529 = vmatpush1.bf16.msra.mxu0 0
        %2530 = vmatprep.subr.bf16.mxu0 0
        %2531 = vmatpush1.bf16.msra.mxu0 0
        %2532 = vmatprep.subr.bf16.mxu0 0
        %2533 = vmatpush1.bf16.msra.mxu0 0
        %2534 = vmatprep.subr.bf16.mxu0 0
        %2535 = vmatpush1.bf16.msra.mxu0 0
        %2536 = vmatprep.subr.bf16.mxu0 0
        %2537 = vmatpush1.bf16.msra.mxu0 0
        %2538 = vmatprep.subr.bf16.mxu0 0
        %2539 = vmatpush1.bf16.msra.mxu0 0
        %2540 = vmatprep.subr.bf16.mxu0 0
        %2541 = vmatpush1.bf16.msra.mxu0 0
        %2542 = vmatprep.mubr.bf16.mxu0 0
        %2543 = vmatmul.mubr.bf16.gmra.mrb[0].mxu0 %v2508
        %v2544 = vpop.f32.mrb[0].mxu0
        %v2545 = vadd.f32 %v2493, %v2544
        %v2546 = vpop.f32.mrb[0].mxu0
        %v2547 = vpop.f32.mrb[0].mxu0
        %v2548 = vpop.f32.mrb[0].mxu0
        %2549 = vdwg.mxu0
        %2550 = vst [vmem:[%s789] sm:$0xff] %v2545
        %s2551 = sand.u32 %s412, 1
        %s2552 = scalar_lea.sflag [#allocation4], %s2551
        %s2553 = sand.u32 %s412, 1
        %s2554 = smul.addr %s2553, 8
        %s2555 = scalar_lea.vmem [#allocation29], %s2554
        // Predicated region
        $region157: #{tpu_custom_call.1} parent=87 // pred_check
          %p2556 = pneg %p422
        $region158: #{tpu_custom_call.1} parent=87 // pred_check_branch
          %2558 = sbr.rel (%p2556) target = $region160
        $region159: #{tpu_custom_call.1} parent=87 // pred_region
          %s2560 = ssub.s32 128, 128
          %2561 = vsyncadd %s2552, %s2560
          %s2562 = smul.addr %s42, 128
          %s2563 = scalar_lea.hbm %s17, %s2562
          %s2565 = sshll.u32 %s2555, 4
          %s2566 = int_to_ptr.vmem [resolvable:$true] %s2565
          %2568 = dma.vmem_to_hbm [thread:$0]  %s2566, 128, %s2563, %s2552
        $region160: #{tpu_custom_call.1} parent=87 // pred_fallthru
          _
      $region88: #{tpu_custom_call.1} parent=5 // pred_fallthru
        _
      %p2569 = scmp.le.s32.totalorder 2, %s37
      // Predicated region
      $region161: #{tpu_custom_call.1} parent=5 // pred_check
        %p2570 = pneg %p2569
      $region162: #{tpu_custom_call.1} parent=5 // pred_check_branch
        %2572 = sbr.rel (%p2570) target = $region164
      $region163: #{tpu_custom_call.1} parent=5 // pred_region
        %s2573 = ssub.s32 %s37, 2
        // Predicated region
        $region165: #{tpu_custom_call.1} parent=163 // pred_check
          %p2574 = pneg %p428
        $region166: #{tpu_custom_call.1} parent=163 // pred_check_branch
          %2576 = sbr.rel (%p2574) target = $region168
        $region167: #{tpu_custom_call.1} parent=163 // pred_region
          %s2577 = sand.u32 %s413, 1
          %s2578 = scalar_lea.sflag [#allocation4], %s2577
          %s2579 = sand.u32 %s413, 1
          %s2580 = smul.addr %s2579, 8
          %s2581 = scalar_lea.vmem [#allocation29], %s2580
          %2582 = dma.done %s2578, 128
        $region168: #{tpu_custom_call.1} parent=163 // pred_fallthru
          _
      $region164: #{tpu_custom_call.1} parent=5 // pred_fallthru
        _
    $region6: #{tpu_custom_call.1} parent=1 // loop_footer
      %s41 = sadd.s32 1, %s37
    $region7: #{tpu_custom_call.1} parent=1 // loop_footer_branch
      %36 = sbr.rel target = $region3
    $region8: #{tpu_custom_call.1} parent=1 // loop_exit
      _
    %2583 = vsyncpa [#allocation3], 1
    %s2584 = scalar_lea.sflag [#allocation3], 1
    %2585 = vsyncpa %s2584, 1
    %2586 = vsyncpa [#allocation6], 1
    %2587 = vsyncpa [#allocation9], 1
    %2588 = vsyncpa [#allocation12], 1
    %2589 = vsyncpa [#allocation15], 1
    %2590 = vsyncpa [#allocation18], 1
    %2591 = vsyncpa [#allocation21], 1
    %2592 = vsyncpa [#allocation24], 1
    %2593 = vsyncpa [#allocation27], 1
    %2594 = vsyncpa [#allocation4], 1
    %s2595 = scalar_lea.sflag [#allocation4], 1
    %2596 = vsyncpa %s2595, 1

// kernel: tpu_custom_call.1
$region0: #{tpu_custom_call.1}
  #allocation0 [shape = 'u32[]', space=smem, size = 0x4, offset = 0x4, fixed_abs, tag = 'smem constant byte address 0x4 - core index']
  #allocation1 [shape = 'u32[144,128]{1,0:T(1,128)}', space=vmem, size = 0x12000, scoped, tag = 'internal scratch']
  %s0 = inlined_call_operand.hbm [shape: bf16[2,8,4], index: 0, kind: input, shape index: {}]
  %s1 = inlined_call_operand.hbm [shape: bf16[4,32], index: 1, kind: input, shape index: {}]
  %s2 = inlined_call_operand.hbm [shape: f32[1,32], index: 2, kind: input, shape index: {}]
  %s3 = inlined_call_operand.hbm [shape: bf16[2,32,96], index: 3, kind: input, shape index: {}]
  %s4 = inlined_call_operand.hbm [shape: f32[2,1,96], index: 4, kind: input, shape index: {}]
  %s5 = inlined_call_operand.hbm [shape: bf16[2,32,32], index: 5, kind: input, shape index: {}]
  %s6 = inlined_call_operand.hbm [shape: f32[2,1,32], index: 6, kind: input, shape index: {}]
  %s7 = inlined_call_operand.hbm [shape: f32[2,1,32], index: 7, kind: input, shape index: {}]
  %s8 = inlined_call_operand.hbm [shape: f32[2,1,32], index: 8, kind: input, shape index: {}]
  %s9 = inlined_call_operand.hbm [shape: bf16[2,32,64], index: 9, kind: input, shape index: {}]
  %s10 = inlined_call_operand.hbm [shape: f32[2,1,64], index: 10, kind: input, shape index: {}]
  %s11 = inlined_call_operand.hbm [shape: bf16[2,64,32], index: 11, kind: input, shape index: {}]
  %s12 = inlined_call_operand.hbm [shape: f32[2,1,32], index: 12, kind: input, shape index: {}]
  %s13 = inlined_call_operand.hbm [shape: f32[2,1,32], index: 13, kind: input, shape index: {}]
  %s14 = inlined_call_operand.hbm [shape: f32[2,1,32], index: 14, kind: input, shape index: {}]
  %s15 = inlined_call_operand.hbm [shape: bf16[32,128], index: 15, kind: input, shape index: {}]
  %s16 = inlined_call_operand.hbm [shape: f32[1,128], index: 16, kind: input, shape index: {}]
  %s17 = inlined_call_operand.hbm [shape: f32[2,8,128], index: 17, kind: output, shape index: {}]
  %s18 = sld [smem:[#allocation0]]
  $region169: #{tpu_custom_call.1} parent=0
    _
  %s20 = ssub.s32 1, %s18
  %s21 = scalar_select 0, %s20, %s18
  $region1: #{tpu_custom_call.1} parent=0
    #allocation2 [shape = 'u8[4096]{0}', space=vmem, size = 0x1000, scoped, tag = 'input window, operand 0']
    #allocation3 [shape = 's32[2]{0}', space=sflag, size = 0x8, scoped, tag = 'scoped memory for tpu_custom_call.1']
    #allocation4 [shape = 's32[2]{0}', space=sflag, size = 0x8, scoped, tag = 'scoped memory for tpu_custom_call.1']
    #allocation5 [shape = 'u8[1024]{0}', space=vmem, size = 0x400, scoped, tag = 'input window, operand 1, single buffered']
    #allocation6 [shape = 's32[1]{0}', space=sflag, size = 0x4, scoped, tag = 'scoped memory for tpu_custom_call.1']
    #allocation7 [shape = 'u8[512]{0}', space=vmem, size = 0x400, scoped, tag = 'input window, operand 2, single buffered']
    #allocation8 [shape = 'u8[16384]{0}', space=vmem, size = 0x4000, scoped, tag = 'input window, operand 3, single buffered']
    #allocation9 [shape = 's32[1]{0}', space=sflag, size = 0x4, scoped, tag = 'scoped memory for tpu_custom_call.1']
    #allocation10 [shape = 'u8[1024]{0}', space=vmem, size = 0x400, scoped, tag = 'input window, operand 4, single buffered']
    #allocation11 [shape = 'u8[16384]{0}', space=vmem, size = 0x4000, scoped, tag = 'input window, operand 5, single buffered']
    #allocation12 [shape = 's32[1]{0}', space=sflag, size = 0x4, scoped, tag = 'scoped memory for tpu_custom_call.1']
    #allocation13 [shape = 'u8[1024]{0}', space=vmem, size = 0x400, scoped, tag = 'input window, operand 6, single buffered']
    #allocation14 [shape = 'u8[1024]{0}', space=vmem, size = 0x400, scoped, tag = 'input window, operand 7, single buffered']
    #allocation15 [shape = 's32[1]{0}', space=sflag, size = 0x4, scoped, tag = 'scoped memory for tpu_custom_call.1']
    #allocation16 [shape = 'u8[1024]{0}', space=vmem, size = 0x400, scoped, tag = 'input window, operand 8, single buffered']
    #allocation17 [shape = 'u8[16384]{0}', space=vmem, size = 0x4000, scoped, tag = 'input window, operand 9, single buffered']
    #allocation18 [shape = 's32[1]{0}', space=sflag, size = 0x4, scoped, tag = 'scoped memory for tpu_custom_call.1']
    #allocation19 [shape = 'u8[1024]{0}', space=vmem, size = 0x400, scoped, tag = 'input window, operand 10, single buffered']
    #allocation20 [shape = 'u8[32768]{0}', space=vmem, size = 0x8000, scoped, tag = 'input window, operand 11, single buffered']
    #allocation21 [shape = 's32[1]{0}', space=sflag, size = 0x4, scoped, tag = 'scoped memory for tpu_custom_call.1']
    #allocation22 [shape = 'u8[1024]{0}', space=vmem, size = 0x400, scoped, tag = 'input window, operand 12, single buffered']
    #allocation23 [shape = 'u8[1024]{0}', space=vmem, size = 0x400, scoped, tag = 'input window, operand 13, single buffered']
    #allocation24 [shape = 's32[1]{0}', space=sflag, size = 0x4, scoped, tag = 'scoped memory for tpu_custom_call.1']
    #allocation25 [shape = 'u8[1024]{0}', space=vmem, size = 0x400, scoped, tag = 'input window, operand 14, single buffered']
    #allocation26 [shape = 'u8[8192]{0}', space=vmem, size = 0x2000, scoped, tag = 'input window, operand 15, single buffered']
    #allocation27 [shape = 's32[1]{0}', space=sflag, size = 0x4, scoped, tag = 'scoped memory for tpu_custom_call.1']
    #allocation28 [shape = 'u8[512]{0}', space=vmem, size = 0x400, scoped, tag = 'input window, operand 16, single buffered']
    #allocation29 [shape = 'u8[8192]{0}', space=vmem, size = 0x2000, scoped, tag = 'output window, operand 0']
    %22 = vsyncpa [#allocation3], 0
    %s23 = scalar_lea.sflag [#allocation3], 1
    %24 = vsyncpa %s23, 0
    %25 = vsyncpa [#allocation6], 0
    %26 = vsyncpa [#allocation9], 0
    %27 = vsyncpa [#allocation12], 0
    %28 = vsyncpa [#allocation15], 0
    %29 = vsyncpa [#allocation18], 0
    %30 = vsyncpa [#allocation21], 0
    %31 = vsyncpa [#allocation24], 0
    %32 = vsyncpa [#allocation27], 0
    %33 = vsyncpa [#allocation4], 0
    %s34 = scalar_lea.sflag [#allocation4], 1
    %35 = vsyncpa %s34, 0
    loop: start=0, step=1, limit=4
    $region2: #{tpu_custom_call.1} parent=1 // loop_pre_header
      _
    $region3: #{tpu_custom_call.1} parent=1 // loop_header
      %s37 = sphi 0, %s41
      %p38 = scmp.ge.s32.totalorder %s37, 4
      %s47 = sphi 0, %s49
      %s50 = sphi 0, %s47
      %s51 = sphi 0, %s50
      %s67 = sphi 0, %s51
      %s71 = sphi 0, %s71
      %s73 = sphi 0, %s71
      %s74 = sphi 0, %s73
      %s88 = sphi 0, %s74
      %s92 = sphi 0, %s92
      %s94 = sphi 0, %s92
      %s95 = sphi 0, %s94
      %s109 = sphi 0, %s95
      %s113 = sphi 0, %s113
      %s115 = sphi 0, %s113
      %s116 = sphi 0, %s115
      %s130 = sphi 0, %s116
      %s134 = sphi 0, %s134
      %s136 = sphi 0, %s134
      %s137 = sphi 0, %s136
      %s151 = sphi 0, %s137
      %s155 = sphi 0, %s155
      %s157 = sphi 0, %s155
      %s158 = sphi 0, %s157
      %s172 = sphi 0, %s158
      %s176 = sphi 0, %s176
      %s178 = sphi 0, %s176
      %s179 = sphi 0, %s178
      %s193 = sphi 0, %s179
      %s197 = sphi 0, %s197
      %s199 = sphi 0, %s197
      %s200 = sphi 0, %s199
      %s214 = sphi 0, %s200
      %s218 = sphi 0, %s218
      %s220 = sphi 0, %s218
      %s221 = sphi 0, %s220
      %s235 = sphi 0, %s221
      %s239 = sphi 0, %s239
      %s241 = sphi 0, %s239
      %s242 = sphi 0, %s241
      %s256 = sphi 0, %s242
      %s260 = sphi 0, %s260
      %s262 = sphi 0, %s260
      %s263 = sphi 0, %s262
      %s277 = sphi 0, %s263
      %s281 = sphi 0, %s281
      %s283 = sphi 0, %s281
      %s284 = sphi 0, %s283
      %s298 = sphi 0, %s284
      %s302 = sphi 0, %s302
      %s304 = sphi 0, %s302
      %s305 = sphi 0, %s304
      %s319 = sphi 0, %s305
      %s323 = sphi 0, %s323
      %s325 = sphi 0, %s323
      %s326 = sphi 0, %s325
      %s340 = sphi 0, %s326
      %s344 = sphi 0, %s344
      %s346 = sphi 0, %s344
      %s347 = sphi 0, %s346
      %s361 = sphi 0, %s347
      %s365 = sphi 0, %s365
      %s367 = sphi 0, %s365
      %s368 = sphi 0, %s367
      %s382 = sphi 0, %s368
      %s386 = sphi 0, %s386
      %s388 = sphi 0, %s386
      %s389 = sphi 0, %s388
      %s403 = sphi 0, %s389
      %s409 = sphi 0, %s411
      %s412 = sphi 0, %s409
      %s413 = sphi 0, %s412
      %s429 = sphi 0, %s413
    $region4: #{tpu_custom_call.1} parent=1 // loop_header_branch
      %40 = sbr.rel (%p38) target = $region8
    $region5: #{tpu_custom_call.1} parent=1 // loop_body
      %s42 = ssub.s32 %s37, 1
      %s43 = ssub.s32 %s37, 2
      %s44 = sadd.s32 %s37, 1
      %s45 = ssub.s32 %s37, %s44
      %p46 = scmp.eq.s32.totalorder %s45, 0
      %s48 = sadd.s32 %s47, 1
      %s49 = scalar_select %p46, %s47, %s48
      %p52 = pneg %p46
      %p53 = scmp.eq.s32.totalorder %s37, 1
      %p54 = por %p52, %p53
      %p55 = scmp.ne.s32.totalorder %s47, %s50
      %p56 = scmp.eq.s32.totalorder %s37, 0
      %p57 = por %p55, %p56
      %p58 = scmp.ne.s32.totalorder %s47, %s50
      %p59 = scmp.eq.s32.totalorder %s42, 1
      %p60 = por %p58, %p59
      %p61 = scmp.ne.s32.totalorder %s50, %s51
      %p62 = scmp.eq.s32.totalorder %s42, 0
      %p63 = por %p61, %p62
      %p64 = scmp.ne.s32.totalorder %s50, %s51
      %p65 = scmp.eq.s32.totalorder %s43, 1
      %p66 = por %p64, %p65
      %p68 = scmp.ne.s32.totalorder %s51, %s67
      %p69 = scmp.eq.s32.totalorder %s43, 0
      %p70 = por %p68, %p69
      %s72 = sadd.s32 %s71, 1
      %p75 = scmp.eq.s32.totalorder %s37, 1
      %p76 = scmp.ne.s32.totalorder %s71, %s73
      %p77 = scmp.eq.s32.totalorder %s37, 0
      %p78 = por %p76, %p77
      %p79 = scmp.ne.s32.totalorder %s71, %s73
      %p80 = scmp.eq.s32.totalorder %s42, 1
      %p81 = por %p79, %p80
      %p82 = scmp.ne.s32.totalorder %s73, %s74
      %p83 = scmp.eq.s32.totalorder %s42, 0
      %p84 = por %p82, %p83
      %p85 = scmp.ne.s32.totalorder %s73, %s74
      %p86 = scmp.eq.s32.totalorder %s43, 1
      %p87 = por %p85, %p86
      %p89 = scmp.ne.s32.totalorder %s74, %s88
      %p90 = scmp.eq.s32.totalorder %s43, 0
      %p91 = por %p89, %p90
      %s93 = sadd.s32 %s92, 1
      %p96 = scmp.eq.s32.totalorder %s37, 1
      %p97 = scmp.ne.s32.totalorder %s92, %s94
      %p98 = scmp.eq.s32.totalorder %s37, 0
      %p99 = por %p97, %p98
      %p100 = scmp.ne.s32.totalorder %s92, %s94
      %p101 = scmp.eq.s32.totalorder %s42, 1
      %p102 = por %p100, %p101
      %p103 = scmp.ne.s32.totalorder %s94, %s95
      %p104 = scmp.eq.s32.totalorder %s42, 0
      %p105 = por %p103, %p104
      %p106 = scmp.ne.s32.totalorder %s94, %s95
      %p107 = scmp.eq.s32.totalorder %s43, 1
      %p108 = por %p106, %p107
      %p110 = scmp.ne.s32.totalorder %s95, %s109
      %p111 = scmp.eq.s32.totalorder %s43, 0
      %p112 = por %p110, %p111
      %s114 = sadd.s32 %s113, 1
      %p117 = scmp.eq.s32.totalorder %s37, 1
      %p118 = scmp.ne.s32.totalorder %s113, %s115
      %p119 = scmp.eq.s32.totalorder %s37, 0
      %p120 = por %p118, %p119
      %p121 = scmp.ne.s32.totalorder %s113, %s115
      %p122 = scmp.eq.s32.totalorder %s42, 1
      %p123 = por %p121, %p122
      %p124 = scmp.ne.s32.totalorder %s115, %s116
      %p125 = scmp.eq.s32.totalorder %s42, 0
      %p126 = por %p124, %p125
      %p127 = scmp.ne.s32.totalorder %s115, %s116
      %p128 = scmp.eq.s32.totalorder %s43, 1
      %p129 = por %p127, %p128
      %p131 = scmp.ne.s32.totalorder %s116, %s130
      %p132 = scmp.eq.s32.totalorder %s43, 0
      %p133 = por %p131, %p132
      %s135 = sadd.s32 %s134, 1
      %p138 = scmp.eq.s32.totalorder %s37, 1
      %p139 = scmp.ne.s32.totalorder %s134, %s136
      %p140 = scmp.eq.s32.totalorder %s37, 0
      %p141 = por %p139, %p140
      %p142 = scmp.ne.s32.totalorder %s134, %s136
      %p143 = scmp.eq.s32.totalorder %s42, 1
      %p144 = por %p142, %p143
      %p145 = scmp.ne.s32.totalorder %s136, %s137
      %p146 = scmp.eq.s32.totalorder %s42, 0
      %p147 = por %p145, %p146
      %p148 = scmp.ne.s32.totalorder %s136, %s137
      %p149 = scmp.eq.s32.totalorder %s43, 1
      %p150 = por %p148, %p149
      %p152 = scmp.ne.s32.totalorder %s137, %s151
      %p153 = scmp.eq.s32.totalorder %s43, 0
      %p154 = por %p152, %p153
      %s156 = sadd.s32 %s155, 1
      %p159 = scmp.eq.s32.totalorder %s37, 1
      %p160 = scmp.ne.s32.totalorder %s155, %s157
      %p161 = scmp.eq.s32.totalorder %s37, 0
      %p162 = por %p160, %p161
      %p163 = scmp.ne.s32.totalorder %s155, %s157
      %p164 = scmp.eq.s32.totalorder %s42, 1
      %p165 = por %p163, %p164
      %p166 = scmp.ne.s32.totalorder %s157, %s158
      %p167 = scmp.eq.s32.totalorder %s42, 0
      %p168 = por %p166, %p167
      %p169 = scmp.ne.s32.totalorder %s157, %s158
      %p170 = scmp.eq.s32.totalorder %s43, 1
      %p171 = por %p169, %p170
      %p173 = scmp.ne.s32.totalorder %s158, %s172
      %p174 = scmp.eq.s32.totalorder %s43, 0
      %p175 = por %p173, %p174
      %s177 = sadd.s32 %s176, 1
      %p180 = scmp.eq.s32.totalorder %s37, 1
      %p181 = scmp.ne.s32.totalorder %s176, %s178
      %p182 = scmp.eq.s32.totalorder %s37, 0
      %p183 = por %p181, %p182
      %p184 = scmp.ne.s32.totalorder %s176, %s178
      %p185 = scmp.eq.s32.totalorder %s42, 1
      %p186 = por %p184, %p185
      %p187 = scmp.ne.s32.totalorder %s178, %s179
      %p188 = scmp.eq.s32.totalorder %s42, 0
      %p189 = por %p187, %p188
      %p190 = scmp.ne.s32.totalorder %s178, %s179
      %p191 = scmp.eq.s32.totalorder %s43, 1
      %p192 = por %p190, %p191
      %p194 = scmp.ne.s32.totalorder %s179, %s193
      %p195 = scmp.eq.s32.totalorder %s43, 0
      %p196 = por %p194, %p195
      %s198 = sadd.s32 %s197, 1
      %p201 = scmp.eq.s32.totalorder %s37, 1
      %p202 = scmp.ne.s32.totalorder %s197, %s199
      %p203 = scmp.eq.s32.totalorder %s37, 0
      %p204 = por %p202, %p203
      %p205 = scmp.ne.s32.totalorder %s197, %s199
      %p206 = scmp.eq.s32.totalorder %s42, 1
      %p207 = por %p205, %p206
      %p208 = scmp.ne.s32.totalorder %s199, %s200
      %p209 = scmp.eq.s32.totalorder %s42, 0
      %p210 = por %p208, %p209
      %p211 = scmp.ne.s32.totalorder %s199, %s200
      %p212 = scmp.eq.s32.totalorder %s43, 1
      %p213 = por %p211, %p212
      %p215 = scmp.ne.s32.totalorder %s200, %s214
      %p216 = scmp.eq.s32.totalorder %s43, 0
      %p217 = por %p215, %p216
      %s219 = sadd.s32 %s218, 1
      %p222 = scmp.eq.s32.totalorder %s37, 1
      %p223 = scmp.ne.s32.totalorder %s218, %s220
      %p224 = scmp.eq.s32.totalorder %s37, 0
      %p225 = por %p223, %p224
      %p226 = scmp.ne.s32.totalorder %s218, %s220
      %p227 = scmp.eq.s32.totalorder %s42, 1
      %p228 = por %p226, %p227
      %p229 = scmp.ne.s32.totalorder %s220, %s221
      %p230 = scmp.eq.s32.totalorder %s42, 0
      %p231 = por %p229, %p230
      %p232 = scmp.ne.s32.totalorder %s220, %s221
      %p233 = scmp.eq.s32.totalorder %s43, 1
      %p234 = por %p232, %p233
      %p236 = scmp.ne.s32.totalorder %s221, %s235
      %p237 = scmp.eq.s32.totalorder %s43, 0
      %p238 = por %p236, %p237
      %s240 = sadd.s32 %s239, 1
      %p243 = scmp.eq.s32.totalorder %s37, 1
      %p244 = scmp.ne.s32.totalorder %s239, %s241
      %p245 = scmp.eq.s32.totalorder %s37, 0
      %p246 = por %p244, %p245
      %p247 = scmp.ne.s32.totalorder %s239, %s241
      %p248 = scmp.eq.s32.totalorder %s42, 1
      %p249 = por %p247, %p248
      %p250 = scmp.ne.s32.totalorder %s241, %s242
      %p251 = scmp.eq.s32.totalorder %s42, 0
      %p252 = por %p250, %p251
      %p253 = scmp.ne.s32.totalorder %s241, %s242
      %p254 = scmp.eq.s32.totalorder %s43, 1
      %p255 = por %p253, %p254
      %p257 = scmp.ne.s32.totalorder %s242, %s256
      %p258 = scmp.eq.s32.totalorder %s43, 0
      %p259 = por %p257, %p258
      %s261 = sadd.s32 %s260, 1
      %p264 = scmp.eq.s32.totalorder %s37, 1
      %p265 = scmp.ne.s32.totalorder %s260, %s262
      %p266 = scmp.eq.s32.totalorder %s37, 0
      %p267 = por %p265, %p266
      %p268 = scmp.ne.s32.totalorder %s260, %s262
      %p269 = scmp.eq.s32.totalorder %s42, 1
      %p270 = por %p268, %p269
      %p271 = scmp.ne.s32.totalorder %s262, %s263
      %p272 = scmp.eq.s32.totalorder %s42, 0
      %p273 = por %p271, %p272
      %p274 = scmp.ne.s32.totalorder %s262, %s263
      %p275 = scmp.eq.s32.totalorder %s43, 1
      %p276 = por %p274, %p275
      %p278 = scmp.ne.s32.totalorder %s263, %s277
      %p279 = scmp.eq.s32.totalorder %s43, 0
      %p280 = por %p278, %p279
      %s282 = sadd.s32 %s281, 1
      %p285 = scmp.eq.s32.totalorder %s37, 1
      %p286 = scmp.ne.s32.totalorder %s281, %s283
      %p287 = scmp.eq.s32.totalorder %s37, 0
      %p288 = por %p286, %p287
      %p289 = scmp.ne.s32.totalorder %s281, %s283
      %p290 = scmp.eq.s32.totalorder %s42, 1
      %p291 = por %p289, %p290
      %p292 = scmp.ne.s32.totalorder %s283, %s284
      %p293 = scmp.eq.s32.totalorder %s42, 0
      %p294 = por %p292, %p293
      %p295 = scmp.ne.s32.totalorder %s283, %s284
      %p296 = scmp.eq.s32.totalorder %s43, 1
      %p297 = por %p295, %p296
      %p299 = scmp.ne.s32.totalorder %s284, %s298
      %p300 = scmp.eq.s32.totalorder %s43, 0
      %p301 = por %p299, %p300
      %s303 = sadd.s32 %s302, 1
      %p306 = scmp.eq.s32.totalorder %s37, 1
      %p307 = scmp.ne.s32.totalorder %s302, %s304
      %p308 = scmp.eq.s32.totalorder %s37, 0
      %p309 = por %p307, %p308
      %p310 = scmp.ne.s32.totalorder %s302, %s304
      %p311 = scmp.eq.s32.totalorder %s42, 1
      %p312 = por %p310, %p311
      %p313 = scmp.ne.s32.totalorder %s304, %s305
      %p314 = scmp.eq.s32.totalorder %s42, 0
      %p315 = por %p313, %p314
      %p316 = scmp.ne.s32.totalorder %s304, %s305
      %p317 = scmp.eq.s32.totalorder %s43, 1
      %p318 = por %p316, %p317
      %p320 = scmp.ne.s32.totalorder %s305, %s319
      %p321 = scmp.eq.s32.totalorder %s43, 0
      %p322 = por %p320, %p321
      %s324 = sadd.s32 %s323, 1
      %p327 = scmp.eq.s32.totalorder %s37, 1
      %p328 = scmp.ne.s32.totalorder %s323, %s325
      %p329 = scmp.eq.s32.totalorder %s37, 0
      %p330 = por %p328, %p329
      %p331 = scmp.ne.s32.totalorder %s323, %s325
      %p332 = scmp.eq.s32.totalorder %s42, 1
      %p333 = por %p331, %p332
      %p334 = scmp.ne.s32.totalorder %s325, %s326
      %p335 = scmp.eq.s32.totalorder %s42, 0
      %p336 = por %p334, %p335
      %p337 = scmp.ne.s32.totalorder %s325, %s326
      %p338 = scmp.eq.s32.totalorder %s43, 1
      %p339 = por %p337, %p338
      %p341 = scmp.ne.s32.totalorder %s326, %s340
      %p342 = scmp.eq.s32.totalorder %s43, 0
      %p343 = por %p341, %p342
      %s345 = sadd.s32 %s344, 1
      %p348 = scmp.eq.s32.totalorder %s37, 1
      %p349 = scmp.ne.s32.totalorder %s344, %s346
      %p350 = scmp.eq.s32.totalorder %s37, 0
      %p351 = por %p349, %p350
      %p352 = scmp.ne.s32.totalorder %s344, %s346
      %p353 = scmp.eq.s32.totalorder %s42, 1
      %p354 = por %p352, %p353
      %p355 = scmp.ne.s32.totalorder %s346, %s347
      %p356 = scmp.eq.s32.totalorder %s42, 0
      %p357 = por %p355, %p356
      %p358 = scmp.ne.s32.totalorder %s346, %s347
      %p359 = scmp.eq.s32.totalorder %s43, 1
      %p360 = por %p358, %p359
      %p362 = scmp.ne.s32.totalorder %s347, %s361
      %p363 = scmp.eq.s32.totalorder %s43, 0
      %p364 = por %p362, %p363
      %s366 = sadd.s32 %s365, 1
      %p369 = scmp.eq.s32.totalorder %s37, 1
      %p370 = scmp.ne.s32.totalorder %s365, %s367
      %p371 = scmp.eq.s32.totalorder %s37, 0
      %p372 = por %p370, %p371
      %p373 = scmp.ne.s32.totalorder %s365, %s367
      %p374 = scmp.eq.s32.totalorder %s42, 1
      %p375 = por %p373, %p374
      %p376 = scmp.ne.s32.totalorder %s367, %s368
      %p377 = scmp.eq.s32.totalorder %s42, 0
      %p378 = por %p376, %p377
      %p379 = scmp.ne.s32.totalorder %s367, %s368
      %p380 = scmp.eq.s32.totalorder %s43, 1
      %p381 = por %p379, %p380
      %p383 = scmp.ne.s32.totalorder %s368, %s382
      %p384 = scmp.eq.s32.totalorder %s43, 0
      %p385 = por %p383, %p384
      %s387 = sadd.s32 %s386, 1
      %p390 = scmp.eq.s32.totalorder %s37, 1
      %p391 = scmp.ne.s32.totalorder %s386, %s388
      %p392 = scmp.eq.s32.totalorder %s37, 0
      %p393 = por %p391, %p392
      %p394 = scmp.ne.s32.totalorder %s386, %s388
      %p395 = scmp.eq.s32.totalorder %s42, 1
      %p396 = por %p394, %p395
      %p397 = scmp.ne.s32.totalorder %s388, %s389
      %p398 = scmp.eq.s32.totalorder %s42, 0
      %p399 = por %p397, %p398
      %p400 = scmp.ne.s32.totalorder %s388, %s389
      %p401 = scmp.eq.s32.totalorder %s43, 1
      %p402 = por %p400, %p401
      %p404 = scmp.ne.s32.totalorder %s389, %s403
      %p405 = scmp.eq.s32.totalorder %s43, 0
      %p406 = por %p404, %p405
      %s407 = ssub.s32 %s37, %s44
      %p408 = scmp.eq.s32.totalorder %s407, 0
      %s410 = sadd.s32 %s409, 1
      %s411 = scalar_select %p408, %s409, %s410
      %p414 = pneg %p408
      %p415 = scmp.eq.s32.totalorder %s37, 1
      %p416 = por %p414, %p415
      %p417 = scmp.ne.s32.totalorder %s409, %s412
      %p418 = scmp.eq.s32.totalorder %s37, 0
      %p419 = por %p417, %p418
      %p420 = scmp.ne.s32.totalorder %s409, %s412
      %p421 = scmp.eq.s32.totalorder %s42, 1
      %p422 = por %p420, %p421
      %p423 = scmp.ne.s32.totalorder %s412, %s413
      %p424 = scmp.eq.s32.totalorder %s42, 0
      %p425 = por %p423, %p424
      %p426 = scmp.ne.s32.totalorder %s412, %s413
      %p427 = scmp.eq.s32.totalorder %s43, 1
      %p428 = por %p426, %p427
      %p430 = scmp.ne.s32.totalorder %s413, %s429
      %p431 = scmp.eq.s32.totalorder %s43, 0
      %p432 = por %p430, %p431
      %p433 = scmp.le.s32.totalorder 1, %s37
      %p434 = scmp.lt.s32.totalorder %s37, 3
      %p435 = pnand %p433, %p434
      %p436 = pneg %p435
      // Predicated region
      $region9: #{tpu_custom_call.1} parent=5 // pred_check
        _
      $region10: #{tpu_custom_call.1} parent=5 // pred_check_branch
        %438 = sbr.rel (%p435) target = $region12
      $region11: #{tpu_custom_call.1} parent=5 // pred_region
        %s439 = ssub.s32 %s37, 1
        // Predicated region
        $region13: #{tpu_custom_call.1} parent=11 // pred_check
          %p440 = pneg %p84
        $region14: #{tpu_custom_call.1} parent=11 // pred_check_branch
          %442 = sbr.rel (%p440) target = $region16
        $region15: #{tpu_custom_call.1} parent=11 // pred_region
          %s444 = ssub.s32 32, 32
          %445 = vsyncadd [#allocation6], %s444
          %s447 = sshll.u32 [#allocation5], 4
          %s448 = int_to_ptr.vmem [resolvable:$true] %s447
          %450 = dma.hbm_to_vmem [thread:$0]  %s1, 32, %s448, [#allocation6]
        $region16: #{tpu_custom_call.1} parent=11 // pred_fallthru
          _
        // Predicated region
        $region17: #{tpu_custom_call.1} parent=11 // pred_check
          %p451 = pneg %p105
        $region18: #{tpu_custom_call.1} parent=11 // pred_check_branch
          %453 = sbr.rel (%p451) target = $region20
        $region19: #{tpu_custom_call.1} parent=11 // pred_region
          %s455 = ssub.s32 16, 16
          %456 = vsyncadd [#allocation6], %s455
          %s458 = sshll.u32 [#allocation7], 4
          %s459 = int_to_ptr.vmem [resolvable:$true] %s458
          %461 = dma.hbm_to_vmem [thread:$0]  %s2, 16, %s459, [#allocation6]
        $region20: #{tpu_custom_call.1} parent=11 // pred_fallthru
          _
        // Predicated region
        $region21: #{tpu_custom_call.1} parent=11 // pred_check
          %p462 = pneg %p126
        $region22: #{tpu_custom_call.1} parent=11 // pred_check_branch
          %464 = sbr.rel (%p462) target = $region24
        $region23: #{tpu_custom_call.1} parent=11 // pred_region
          %s466 = ssub.s32 512, 512
          %467 = vsyncadd [#allocation9], %s466
          %s468 = sshll.u32 [#allocation8], 4
          %s469 = int_to_ptr.vmem [resolvable:$true] %s468
          %474 = dma.hbm_to_vmem [thread:$0]  %s3, 512, %s469, [#allocation9], 64, 64, 4
        $region24: #{tpu_custom_call.1} parent=11 // pred_fallthru
          _
        // Predicated region
        $region25: #{tpu_custom_call.1} parent=11 // pred_check
          %p475 = pneg %p147
        $region26: #{tpu_custom_call.1} parent=11 // pred_check_branch
          %477 = sbr.rel (%p475) target = $region28
        $region27: #{tpu_custom_call.1} parent=11 // pred_region
          %s479 = ssub.s32 32, 32
          %480 = vsyncadd [#allocation9], %s479
          %s481 = sshll.u32 [#allocation10], 4
          %s482 = int_to_ptr.vmem [resolvable:$true] %s481
          %487 = dma.hbm_to_vmem [thread:$0]  %s4, 32, %s482, [#allocation9], 16, 16, 1
        $region28: #{tpu_custom_call.1} parent=11 // pred_fallthru
          _
        // Predicated region
        $region29: #{tpu_custom_call.1} parent=11 // pred_check
          %p488 = pneg %p168
        $region30: #{tpu_custom_call.1} parent=11 // pred_check_branch
          %490 = sbr.rel (%p488) target = $region32
        $region31: #{tpu_custom_call.1} parent=11 // pred_region
          %s492 = ssub.s32 512, 512
          %493 = vsyncadd [#allocation12], %s492
          %s494 = sshll.u32 [#allocation11], 4
          %s495 = int_to_ptr.vmem [resolvable:$true] %s494
          %500 = dma.hbm_to_vmem [thread:$0]  %s5, 512, %s495, [#allocation12], 64, 64, 4
        $region32: #{tpu_custom_call.1} parent=11 // pred_fallthru
          _
        // Predicated region
        $region33: #{tpu_custom_call.1} parent=11 // pred_check
          %p501 = pneg %p189
        $region34: #{tpu_custom_call.1} parent=11 // pred_check_branch
          %503 = sbr.rel (%p501) target = $region36
        $region35: #{tpu_custom_call.1} parent=11 // pred_region
          %s505 = ssub.s32 32, 32
          %506 = vsyncadd [#allocation12], %s505
          %s507 = sshll.u32 [#allocation13], 4
          %s508 = int_to_ptr.vmem [resolvable:$true] %s507
          %513 = dma.hbm_to_vmem [thread:$0]  %s6, 32, %s508, [#allocation12], 16, 16, 1
        $region36: #{tpu_custom_call.1} parent=11 // pred_fallthru
          _
        // Predicated region
        $region37: #{tpu_custom_call.1} parent=11 // pred_check
          %p514 = pneg %p210
        $region38: #{tpu_custom_call.1} parent=11 // pred_check_branch
          %516 = sbr.rel (%p514) target = $region40
        $region39: #{tpu_custom_call.1} parent=11 // pred_region
          %s518 = ssub.s32 32, 32
          %519 = vsyncadd [#allocation15], %s518
          %s520 = sshll.u32 [#allocation14], 4
          %s521 = int_to_ptr.vmem [resolvable:$true] %s520
          %526 = dma.hbm_to_vmem [thread:$0]  %s7, 32, %s521, [#allocation15], 16, 16, 1
        $region40: #{tpu_custom_call.1} parent=11 // pred_fallthru
          _
        // Predicated region
        $region41: #{tpu_custom_call.1} parent=11 // pred_check
          %p527 = pneg %p231
        $region42: #{tpu_custom_call.1} parent=11 // pred_check_branch
          %529 = sbr.rel (%p527) target = $region44
        $region43: #{tpu_custom_call.1} parent=11 // pred_region
          %s531 = ssub.s32 32, 32
          %532 = vsyncadd [#allocation15], %s531
          %s533 = sshll.u32 [#allocation16], 4
          %s534 = int_to_ptr.vmem [resolvable:$true] %s533
          %539 = dma.hbm_to_vmem [thread:$0]  %s8, 32, %s534, [#allocation15], 16, 16, 1
        $region44: #{tpu_custom_call.1} parent=11 // pred_fallthru
          _
        // Predicated region
        $region45: #{tpu_custom_call.1} parent=11 // pred_check
          %p540 = pneg %p252
        $region46: #{tpu_custom_call.1} parent=11 // pred_check_branch
          %542 = sbr.rel (%p540) target = $region48
        $region47: #{tpu_custom_call.1} parent=11 // pred_region
          %s544 = ssub.s32 512, 512
          %545 = vsyncadd [#allocation18], %s544
          %s546 = sshll.u32 [#allocation17], 4
          %s547 = int_to_ptr.vmem [resolvable:$true] %s546
          %552 = dma.hbm_to_vmem [thread:$0]  %s9, 512, %s547, [#allocation18], 64, 64, 4
        $region48: #{tpu_custom_call.1} parent=11 // pred_fallthru
          _
        // Predicated region
        $region49: #{tpu_custom_call.1} parent=11 // pred_check
          %p553 = pneg %p273
        $region50: #{tpu_custom_call.1} parent=11 // pred_check_branch
          %555 = sbr.rel (%p553) target = $region52
        $region51: #{tpu_custom_call.1} parent=11 // pred_region
          %s557 = ssub.s32 32, 32
          %558 = vsyncadd [#allocation18], %s557
          %s559 = sshll.u32 [#allocation19], 4
          %s560 = int_to_ptr.vmem [resolvable:$true] %s559
          %565 = dma.hbm_to_vmem [thread:$0]  %s10, 32, %s560, [#allocation18], 16, 16, 1
        $region52: #{tpu_custom_call.1} parent=11 // pred_fallthru
          _
        // Predicated region
        $region53: #{tpu_custom_call.1} parent=11 // pred_check
          %p566 = pneg %p294
        $region54: #{tpu_custom_call.1} parent=11 // pred_check_branch
          %568 = sbr.rel (%p566) target = $region56
        $region55: #{tpu_custom_call.1} parent=11 // pred_region
          %s570 = ssub.s32 1024, 1024
          %571 = vsyncadd [#allocation21], %s570
          %s572 = sshll.u32 [#allocation20], 4
          %s573 = int_to_ptr.vmem [resolvable:$true] %s572
          %578 = dma.hbm_to_vmem [thread:$0]  %s11, 1024, %s573, [#allocation21], 64, 64, 4
        $region56: #{tpu_custom_call.1} parent=11 // pred_fallthru
          _
        // Predicated region
        $region57: #{tpu_custom_call.1} parent=11 // pred_check
          %p579 = pneg %p315
        $region58: #{tpu_custom_call.1} parent=11 // pred_check_branch
          %581 = sbr.rel (%p579) target = $region60
        $region59: #{tpu_custom_call.1} parent=11 // pred_region
          %s583 = ssub.s32 32, 32
          %584 = vsyncadd [#allocation21], %s583
          %s585 = sshll.u32 [#allocation22], 4
          %s586 = int_to_ptr.vmem [resolvable:$true] %s585
          %591 = dma.hbm_to_vmem [thread:$0]  %s12, 32, %s586, [#allocation21], 16, 16, 1
        $region60: #{tpu_custom_call.1} parent=11 // pred_fallthru
          _
        // Predicated region
        $region61: #{tpu_custom_call.1} parent=11 // pred_check
          %p592 = pneg %p336
        $region62: #{tpu_custom_call.1} parent=11 // pred_check_branch
          %594 = sbr.rel (%p592) target = $region64
        $region63: #{tpu_custom_call.1} parent=11 // pred_region
          %s596 = ssub.s32 32, 32
          %597 = vsyncadd [#allocation24], %s596
          %s598 = sshll.u32 [#allocation23], 4
          %s599 = int_to_ptr.vmem [resolvable:$true] %s598
          %604 = dma.hbm_to_vmem [thread:$0]  %s13, 32, %s599, [#allocation24], 16, 16, 1
        $region64: #{tpu_custom_call.1} parent=11 // pred_fallthru
          _
        // Predicated region
        $region65: #{tpu_custom_call.1} parent=11 // pred_check
          %p605 = pneg %p357
        $region66: #{tpu_custom_call.1} parent=11 // pred_check_branch
          %607 = sbr.rel (%p605) target = $region68
        $region67: #{tpu_custom_call.1} parent=11 // pred_region
          %s609 = ssub.s32 32, 32
          %610 = vsyncadd [#allocation24], %s609
          %s611 = sshll.u32 [#allocation25], 4
          %s612 = int_to_ptr.vmem [resolvable:$true] %s611
          %617 = dma.hbm_to_vmem [thread:$0]  %s14, 32, %s612, [#allocation24], 16, 16, 1
        $region68: #{tpu_custom_call.1} parent=11 // pred_fallthru
          _
        // Predicated region
        $region69: #{tpu_custom_call.1} parent=11 // pred_check
          %p618 = pneg %p378
        $region70: #{tpu_custom_call.1} parent=11 // pred_check_branch
          %620 = sbr.rel (%p618) target = $region72
        $region71: #{tpu_custom_call.1} parent=11 // pred_region
          %s622 = ssub.s32 256, 256
          %623 = vsyncadd [#allocation27], %s622
          %s624 = sshll.u32 [#allocation26], 4
          %s625 = int_to_ptr.vmem [resolvable:$true] %s624
          %630 = dma.hbm_to_vmem [thread:$0]  %s15, 256, %s625, [#allocation27], 64, 64, 4
        $region72: #{tpu_custom_call.1} parent=11 // pred_fallthru
          _
        // Predicated region
        $region73: #{tpu_custom_call.1} parent=11 // pred_check
          %p631 = pneg %p399
        $region74: #{tpu_custom_call.1} parent=11 // pred_check_branch
          %633 = sbr.rel (%p631) target = $region76
        $region75: #{tpu_custom_call.1} parent=11 // pred_region
          %s635 = ssub.s32 16, 16
          %636 = vsyncadd [#allocation27], %s635
          %s638 = sshll.u32 [#allocation28], 4
          %s639 = int_to_ptr.vmem [resolvable:$true] %s638
          %641 = dma.hbm_to_vmem [thread:$0]  %s16, 16, %s639, [#allocation27]
        $region76: #{tpu_custom_call.1} parent=11 // pred_fallthru
          _
      $region12: #{tpu_custom_call.1} parent=5 // pred_fallthru
        _
      %p642 = scmp.lt.s32.totalorder %s37, 2
      // Predicated region
      $region77: #{tpu_custom_call.1} parent=5 // pred_check
        %p643 = pneg %p642
      $region78: #{tpu_custom_call.1} parent=5 // pred_check_branch
        %645 = sbr.rel (%p643) target = $region80
      $region79: #{tpu_custom_call.1} parent=5 // pred_region
        // Predicated region
        $region81: #{tpu_custom_call.1} parent=79 // pred_check
          %p646 = pneg %p57
        $region82: #{tpu_custom_call.1} parent=79 // pred_check_branch
          %648 = sbr.rel (%p646) target = $region84
        $region83: #{tpu_custom_call.1} parent=79 // pred_region
          %s649 = sand.u32 %s47, 1
          %s650 = scalar_lea.sflag [#allocation3], %s649
          %s651 = sand.u32 %s47, 1
          %s652 = smul.addr %s651, 4
          %s653 = scalar_lea.vmem [#allocation2], %s652
          %s655 = ssub.s32 64, 64
          %656 = vsyncadd %s650, %s655
          %s657 = smul.addr %s37, 64
          %s658 = scalar_lea.hbm %s0, %s657
          %s660 = sshll.u32 %s653, 4
          %s661 = int_to_ptr.vmem [resolvable:$true] %s660
          %663 = dma.hbm_to_vmem [thread:$0]  %s658, 64, %s661, %s650
        $region84: #{tpu_custom_call.1} parent=79 // pred_fallthru
          _
      $region80: #{tpu_custom_call.1} parent=5 // pred_fallthru
        _
      %p664 = scmp.le.s32.totalorder 1, %s37
      %p665 = scmp.lt.s32.totalorder %s37, 3
      %p666 = pnand %p664, %p665
      %p667 = pneg %p666
      // Predicated region
      $region85: #{tpu_custom_call.1} parent=5 // pred_check
        _
      $region86: #{tpu_custom_call.1} parent=5 // pred_check_branch
        %669 = sbr.rel (%p666) target = $region88
      $region87: #{tpu_custom_call.1} parent=5 // pred_region
        %s670 = ssub.s32 %s37, 1
        %s671 = sand.u32 %s50, 1
        %s672 = scalar_lea.sflag [#allocation3], %s671
        %s673 = sand.u32 %s50, 1
        %s674 = smul.addr %s673, 4
        %s675 = scalar_lea.vmem [#allocation2], %s674
        // Predicated region
        $region89: #{tpu_custom_call.1} parent=87 // pred_check
          %p676 = pneg %p63
        $region90: #{tpu_custom_call.1} parent=87 // pred_check_branch
          %678 = sbr.rel (%p676) target = $region92
        $region91: #{tpu_custom_call.1} parent=87 // pred_region
          %679 = dma.done %s672, 64
        $region92: #{tpu_custom_call.1} parent=87 // pred_fallthru
          _
        // Predicated region
        $region93: #{tpu_custom_call.1} parent=87 // pred_check
          %p680 = pneg %p84
        $region94: #{tpu_custom_call.1} parent=87 // pred_check_branch
          %682 = sbr.rel (%p680) target = $region96
        $region95: #{tpu_custom_call.1} parent=87 // pred_region
          %683 = dma.done [#allocation6], 32
        $region96: #{tpu_custom_call.1} parent=87 // pred_fallthru
          _
        // Predicated region
        $region97: #{tpu_custom_call.1} parent=87 // pred_check
          %p684 = pneg %p105
        $region98: #{tpu_custom_call.1} parent=87 // pred_check_branch
          %686 = sbr.rel (%p684) target = $region100
        $region99: #{tpu_custom_call.1} parent=87 // pred_region
          %687 = dma.done [#allocation6], 16
        $region100: #{tpu_custom_call.1} parent=87 // pred_fallthru
          _
        // Predicated region
        $region101: #{tpu_custom_call.1} parent=87 // pred_check
          %p688 = pneg %p126
        $region102: #{tpu_custom_call.1} parent=87 // pred_check_branch
          %690 = sbr.rel (%p688) target = $region104
        $region103: #{tpu_custom_call.1} parent=87 // pred_region
          %691 = dma.done [#allocation9], 512
        $region104: #{tpu_custom_call.1} parent=87 // pred_fallthru
          _
        // Predicated region
        $region105: #{tpu_custom_call.1} parent=87 // pred_check
          %p692 = pneg %p147
        $region106: #{tpu_custom_call.1} parent=87 // pred_check_branch
          %694 = sbr.rel (%p692) target = $region108
        $region107: #{tpu_custom_call.1} parent=87 // pred_region
          %695 = dma.done [#allocation9], 32
        $region108: #{tpu_custom_call.1} parent=87 // pred_fallthru
          _
        // Predicated region
        $region109: #{tpu_custom_call.1} parent=87 // pred_check
          %p696 = pneg %p168
        $region110: #{tpu_custom_call.1} parent=87 // pred_check_branch
          %698 = sbr.rel (%p696) target = $region112
        $region111: #{tpu_custom_call.1} parent=87 // pred_region
          %699 = dma.done [#allocation12], 512
        $region112: #{tpu_custom_call.1} parent=87 // pred_fallthru
          _
        // Predicated region
        $region113: #{tpu_custom_call.1} parent=87 // pred_check
          %p700 = pneg %p189
        $region114: #{tpu_custom_call.1} parent=87 // pred_check_branch
          %702 = sbr.rel (%p700) target = $region116
        $region115: #{tpu_custom_call.1} parent=87 // pred_region
          %703 = dma.done [#allocation12], 32
        $region116: #{tpu_custom_call.1} parent=87 // pred_fallthru
          _
        // Predicated region
        $region117: #{tpu_custom_call.1} parent=87 // pred_check
          %p704 = pneg %p210
        $region118: #{tpu_custom_call.1} parent=87 // pred_check_branch
          %706 = sbr.rel (%p704) target = $region120
        $region119: #{tpu_custom_call.1} parent=87 // pred_region
          %707 = dma.done [#allocation15], 32
        $region120: #{tpu_custom_call.1} parent=87 // pred_fallthru
          _
        // Predicated region
        $region121: #{tpu_custom_call.1} parent=87 // pred_check
          %p708 = pneg %p231
        $region122: #{tpu_custom_call.1} parent=87 // pred_check_branch
          %710 = sbr.rel (%p708) target = $region124
        $region123: #{tpu_custom_call.1} parent=87 // pred_region
          %711 = dma.done [#allocation15], 32
        $region124: #{tpu_custom_call.1} parent=87 // pred_fallthru
          _
        // Predicated region
        $region125: #{tpu_custom_call.1} parent=87 // pred_check
          %p712 = pneg %p252
        $region126: #{tpu_custom_call.1} parent=87 // pred_check_branch
          %714 = sbr.rel (%p712) target = $region128
        $region127: #{tpu_custom_call.1} parent=87 // pred_region
          %715 = dma.done [#allocation18], 512
        $region128: #{tpu_custom_call.1} parent=87 // pred_fallthru
          _
        // Predicated region
        $region129: #{tpu_custom_call.1} parent=87 // pred_check
          %p716 = pneg %p273
        $region130: #{tpu_custom_call.1} parent=87 // pred_check_branch
          %718 = sbr.rel (%p716) target = $region132
        $region131: #{tpu_custom_call.1} parent=87 // pred_region
          %719 = dma.done [#allocation18], 32
        $region132: #{tpu_custom_call.1} parent=87 // pred_fallthru
          _
        // Predicated region
        $region133: #{tpu_custom_call.1} parent=87 // pred_check
          %p720 = pneg %p294
        $region134: #{tpu_custom_call.1} parent=87 // pred_check_branch
          %722 = sbr.rel (%p720) target = $region136
        $region135: #{tpu_custom_call.1} parent=87 // pred_region
          %723 = dma.done [#allocation21], 1024
        $region136: #{tpu_custom_call.1} parent=87 // pred_fallthru
          _
        // Predicated region
        $region137: #{tpu_custom_call.1} parent=87 // pred_check
          %p724 = pneg %p315
        $region138: #{tpu_custom_call.1} parent=87 // pred_check_branch
          %726 = sbr.rel (%p724) target = $region140
        $region139: #{tpu_custom_call.1} parent=87 // pred_region
          %727 = dma.done [#allocation21], 32
        $region140: #{tpu_custom_call.1} parent=87 // pred_fallthru
          _
        // Predicated region
        $region141: #{tpu_custom_call.1} parent=87 // pred_check
          %p728 = pneg %p336
        $region142: #{tpu_custom_call.1} parent=87 // pred_check_branch
          %730 = sbr.rel (%p728) target = $region144
        $region143: #{tpu_custom_call.1} parent=87 // pred_region
          %731 = dma.done [#allocation24], 32
        $region144: #{tpu_custom_call.1} parent=87 // pred_fallthru
          _
        // Predicated region
        $region145: #{tpu_custom_call.1} parent=87 // pred_check
          %p732 = pneg %p357
        $region146: #{tpu_custom_call.1} parent=87 // pred_check_branch
          %734 = sbr.rel (%p732) target = $region148
        $region147: #{tpu_custom_call.1} parent=87 // pred_region
          %735 = dma.done [#allocation24], 32
        $region148: #{tpu_custom_call.1} parent=87 // pred_fallthru
          _
        // Predicated region
        $region149: #{tpu_custom_call.1} parent=87 // pred_check
          %p736 = pneg %p378
        $region150: #{tpu_custom_call.1} parent=87 // pred_check_branch
          %738 = sbr.rel (%p736) target = $region152
        $region151: #{tpu_custom_call.1} parent=87 // pred_region
          %739 = dma.done [#allocation27], 256
        $region152: #{tpu_custom_call.1} parent=87 // pred_fallthru
          _
        // Predicated region
        $region153: #{tpu_custom_call.1} parent=87 // pred_check
          %p740 = pneg %p399
        $region154: #{tpu_custom_call.1} parent=87 // pred_check_branch
          %742 = sbr.rel (%p740) target = $region156
        $region155: #{tpu_custom_call.1} parent=87 // pred_region
          %743 = dma.done [#allocation27], 16
        $region156: #{tpu_custom_call.1} parent=87 // pred_fallthru
          _
        %s744 = sand.u32 %s50, 1
        %s745 = scalar_lea.sflag [#allocation3], %s744
        %s746 = sand.u32 %s50, 1
        %s747 = smul.addr %s746, 4
        %s748 = scalar_lea.vmem [#allocation2], %s747
        %p749 = pneg %p63
        %p750 = pneg %p60
        %p751 = pneg %p84
        %p752 = pneg %p81
        %p753 = pneg %p105
        %p754 = pneg %p102
        %p755 = pneg %p126
        %p756 = pneg %p123
        %p757 = pneg %p147
        %p758 = pneg %p144
        %p759 = pneg %p168
        %p760 = pneg %p165
        %p761 = pneg %p189
        %p762 = pneg %p186
        %p763 = pneg %p210
        %p764 = pneg %p207
        %p765 = pneg %p231
        %p766 = pneg %p228
        %p767 = pneg %p252
        %p768 = pneg %p249
        %p769 = pneg %p273
        %p770 = pneg %p270
        %p771 = pneg %p294
        %p772 = pneg %p291
        %p773 = pneg %p315
        %p774 = pneg %p312
        %p775 = pneg %p336
        %p776 = pneg %p333
        %p777 = pneg %p357
        %p778 = pneg %p354
        %p779 = pneg %p378
        %p780 = pneg %p375
        %p781 = pneg %p399
        %p782 = pneg %p396
        %p783 = pneg %p425
        %p784 = pneg %p422
        %s785 = sand.u32 %s412, 1
        %s786 = scalar_lea.sflag [#allocation4], %s785
        %s787 = sand.u32 %s412, 1
        %s788 = smul.addr %s787, 8
        %s789 = scalar_lea.vmem [#allocation29], %s788
        %v791 = vld [vmem:[%s675] sm:$0xf]
        %v792 = vld [vmem:[#allocation5] sm:$0x3]
        %v793 = vld [vmem:[#allocation7] sm:$0x1]
        %v795 = vlaneseq
        %v796 = vshrl.u32 %v795, 7
        %v797 = vsub.s32 0, %v796
        %v798 = vrot.slane %v793, %v797
        %vm800 = vcmask 31744
        %v802 = vsel %vm800, %v791, 0
        %vm804 = vcmask 1041408
        %v806 = vsel %vm804, %v792, 0
        %808 = vmatprep.subr.bf16.mxu0 0
        %809 = vmatpush1.bf16.msra.mxu0 %v806
        %810 = vmatprep.subr.bf16.mxu0 0
        %811 = vmatpush1.bf16.msra.mxu0 0
        %812 = vmatprep.subr.bf16.mxu0 0
        %813 = vmatpush1.bf16.msra.mxu0 0
        %814 = vmatprep.subr.bf16.mxu0 0
        %815 = vmatpush1.bf16.msra.mxu0 0
        %816 = vmatprep.subr.bf16.mxu0 0
        %817 = vmatpush1.bf16.msra.mxu0 0
        %818 = vmatprep.subr.bf16.mxu0 0
        %819 = vmatpush1.bf16.msra.mxu0 0
        %820 = vmatprep.subr.bf16.mxu0 0
        %821 = vmatpush1.bf16.msra.mxu0 0
        %822 = vmatprep.subr.bf16.mxu0 0
        %823 = vmatpush1.bf16.msra.mxu0 0
        %824 = vmatprep.subr.bf16.mxu0 0
        %825 = vmatpush1.bf16.msra.mxu0 0
        %826 = vmatprep.subr.bf16.mxu0 0
        %827 = vmatpush1.bf16.msra.mxu0 0
        %828 = vmatprep.subr.bf16.mxu0 0
        %829 = vmatpush1.bf16.msra.mxu0 0
        %830 = vmatprep.subr.bf16.mxu0 0
        %831 = vmatpush1.bf16.msra.mxu0 0
        %832 = vmatprep.subr.bf16.mxu0 0
        %833 = vmatpush1.bf16.msra.mxu0 0
        %834 = vmatprep.subr.bf16.mxu0 0
        %835 = vmatpush1.bf16.msra.mxu0 0
        %836 = vmatprep.subr.bf16.mxu0 0
        %837 = vmatpush1.bf16.msra.mxu0 0
        %838 = vmatprep.subr.bf16.mxu0 0
        %839 = vmatpush1.bf16.msra.mxu0 0
        %840 = vmatprep.mubr.bf16.mxu0 0
        %841 = vmatmul.mubr.bf16.gmra.mrb[0].mxu0 %v802
        %v842 = vpop.f32.mrb[0].mxu0
        %v843 = vadd.f32 %v798, %v842
        %v844 = vpop.f32.mrb[0].mxu0
        %v845 = vpop.f32.mrb[0].mxu0
        %v846 = vpop.f32.mrb[0].mxu0
        %847 = vdwg.mxu0
        %v848 = vpack.c.bf16 %v843, %v843
        %v849 = vld [vmem:[#allocation8] sm:$0xf]
        %v850 = vld [vmem:[#allocation8 + $0x4] sm:$0xf]
        %v851 = vld [vmem:[#allocation8 + $0x8] sm:$0xf]
        %v852 = vld [vmem:[#allocation8 + $0xc] sm:$0xf]
        %v853 = vld [vmem:[#allocation10] sm:$0x1]
        %v855 = vlaneseq
        %v856 = vshrl.u32 %v855, 7
        %v857 = vsub.s32 0, %v856
        %v858 = vrot.slane %v853, %v857
        %v864 = vunpack.c.l.b16 %v849
        %v865 = vunpack.c.l.b16 %v850
        %v866 = vunpack.c.l.b16 %v851
        %v867 = vunpack.c.l.b16 %v852
        %v868 = vpack.c.b16 %v865, %v864
        %v869 = vpack.c.b16 %v867, %v866
        %vm872 = vcmask 261120
        %v874 = vsel %vm872, %v848, 0
        %876 = vmatprep.subr.bf16.mxu0 0
        %877 = vmatpush1.bf16.msra.mxu0 %v868
        %878 = vmatprep.subr.bf16.mxu0 0
        %879 = vmatpush1.bf16.msra.mxu0 %v869
        %880 = vmatprep.subr.bf16.mxu0 0
        %881 = vmatpush1.bf16.msra.mxu0 0
        %882 = vmatprep.subr.bf16.mxu0 0
        %883 = vmatpush1.bf16.msra.mxu0 0
        %884 = vmatprep.subr.bf16.mxu0 0
        %885 = vmatpush1.bf16.msra.mxu0 0
        %886 = vmatprep.subr.bf16.mxu0 0
        %887 = vmatpush1.bf16.msra.mxu0 0
        %888 = vmatprep.subr.bf16.mxu0 0
        %889 = vmatpush1.bf16.msra.mxu0 0
        %890 = vmatprep.subr.bf16.mxu0 0
        %891 = vmatpush1.bf16.msra.mxu0 0
        %892 = vmatprep.subr.bf16.mxu0 0
        %893 = vmatpush1.bf16.msra.mxu0 0
        %894 = vmatprep.subr.bf16.mxu0 0
        %895 = vmatpush1.bf16.msra.mxu0 0
        %896 = vmatprep.subr.bf16.mxu0 0
        %897 = vmatpush1.bf16.msra.mxu0 0
        %898 = vmatprep.subr.bf16.mxu0 0
        %899 = vmatpush1.bf16.msra.mxu0 0
        %900 = vmatprep.subr.bf16.mxu0 0
        %901 = vmatpush1.bf16.msra.mxu0 0
        %902 = vmatprep.subr.bf16.mxu0 0
        %903 = vmatpush1.bf16.msra.mxu0 0
        %904 = vmatprep.subr.bf16.mxu0 0
        %905 = vmatpush1.bf16.msra.mxu0 0
        %906 = vmatprep.subr.bf16.mxu0 0
        %907 = vmatpush1.bf16.msra.mxu0 0
        %908 = vmatprep.mubr.bf16.mxu0 0
        %909 = vmatmul.mubr.bf16.gmra.mrb[0].mxu0 %v874
        %v910 = vpop.f32.mrb[0].mxu0
        %v911 = vadd.f32 %v858, %v910
        %v912 = vpop.f32.mrb[0].mxu0
        %v913 = vpop.f32.mrb[0].mxu0
        %v914 = vpop.f32.mrb[0].mxu0
        %915 = vdwg.mxu0
        %v916 = vpack.c.bf16 %v911, %v911
        %918 = vrot.lane.b32.xlu0 %v916, 96
        %v919 = vpop.permute.xlu0 %918
        %vm920 = vcmask 64512
        %v922 = vsel %vm920, %v916, 0
        %v925 = vsel %vm920, %v919, 0
        %927 = vmatprep.subr.bf16.mxu0 0
        %928 = vmatpush1.bf16.xpose.msra.mxu0 %v925
        %929 = vmatprep.subr.bf16.mxu0 0
        %930 = vmatpush1.bf16.xpose.msra.mxu0 0
        %931 = vmatprep.subr.bf16.mxu0 0
        %932 = vmatpush1.bf16.xpose.msra.mxu0 0
        %933 = vmatprep.subr.bf16.mxu0 0
        %934 = vmatpush1.bf16.xpose.msra.mxu0 0
        %935 = vmatprep.subr.bf16.mxu0 0
        %936 = vmatpush1.bf16.xpose.msra.mxu0 0
        %937 = vmatprep.subr.bf16.mxu0 0
        %938 = vmatpush1.bf16.xpose.msra.mxu0 0
        %939 = vmatprep.subr.bf16.mxu0 0
        %940 = vmatpush1.bf16.xpose.msra.mxu0 0
        %941 = vmatprep.subr.bf16.mxu0 0
        %942 = vmatpush1.bf16.xpose.msra.mxu0 0
        %943 = vmatprep.subr.bf16.mxu0 0
        %944 = vmatpush1.bf16.xpose.msra.mxu0 0
        %945 = vmatprep.subr.bf16.mxu0 0
        %946 = vmatpush1.bf16.xpose.msra.mxu0 0
        %947 = vmatprep.subr.bf16.mxu0 0
        %948 = vmatpush1.bf16.xpose.msra.mxu0 0
        %949 = vmatprep.subr.bf16.mxu0 0
        %950 = vmatpush1.bf16.xpose.msra.mxu0 0
        %951 = vmatprep.subr.bf16.mxu0 0
        %952 = vmatpush1.bf16.xpose.msra.mxu0 0
        %953 = vmatprep.subr.bf16.mxu0 0
        %954 = vmatpush1.bf16.xpose.msra.mxu0 0
        %955 = vmatprep.subr.bf16.mxu0 0
        %956 = vmatpush1.bf16.xpose.msra.mxu0 0
        %957 = vmatprep.subr.bf16.mxu0 0
        %958 = vmatpush1.bf16.xpose.msra.mxu0 0
        %959 = vmatprep.mubr.bf16.mxu0 0
        %960 = vmatmul.mubr.bf16.gmra.mrb[0].mxu0 %v922
        %v961 = vpop.f32.mrb[0].mxu0
        %v962 = vadd.f32 0.0, %v961
        %v963 = vpop.f32.mrb[0].mxu0
        %v964 = vpop.f32.mrb[0].mxu0
        %v965 = vpop.f32.mrb[0].mxu0
        %966 = vdwg.mxu0
        %v967 = vsel %vm920, %v962, -inf
        %968 = vmax.xlane.f32.xlu0 %v967
        %v969 = vpop.xlane.xlu0 %968
        %v970 = vsub.f32 %v962, %v969
        %v971 = vmul.f32 %v970, 1.442695
        %v972 = vpow.pop %v971
        %v973 = vsel %vm920, %v972, 0.0
        %974 = vadd.xlane.f32.xlu0 %v973
        %v975 = vpop.xlane.xlu0 %974
        %v976 = vrcp.pop %v975
        %v977 = vmul.f32 %v972, %v976
        %v978 = vpack.c.bf16 %v977, %v977
        %979 = vrot.lane.b32.xlu0 %v916, 64
        %v980 = vpop.permute.xlu0 %979
        %v982 = vsel %vm920, %v978, 0
        %vm984 = vcmask 1043456
        %v986 = vsel %vm984, %v980, 0
        %988 = vmatprep.subr.bf16.mxu0 0
        %989 = vmatpush1.bf16.msra.mxu0 %v986
        %990 = vmatprep.subr.bf16.mxu0 0
        %991 = vmatpush1.bf16.msra.mxu0 0
        %992 = vmatprep.subr.bf16.mxu0 0
        %993 = vmatpush1.bf16.msra.mxu0 0
        %994 = vmatprep.subr.bf16.mxu0 0
        %995 = vmatpush1.bf16.msra.mxu0 0
        %996 = vmatprep.subr.bf16.mxu0 0
        %997 = vmatpush1.bf16.msra.mxu0 0
        %998 = vmatprep.subr.bf16.mxu0 0
        %999 = vmatpush1.bf16.msra.mxu0 0
        %1000 = vmatprep.subr.bf16.mxu0 0
        %1001 = vmatpush1.bf16.msra.mxu0 0
        %1002 = vmatprep.subr.bf16.mxu0 0
        %1003 = vmatpush1.bf16.msra.mxu0 0
        %1004 = vmatprep.subr.bf16.mxu0 0
        %1005 = vmatpush1.bf16.msra.mxu0 0
        %1006 = vmatprep.subr.bf16.mxu0 0
        %1007 = vmatpush1.bf16.msra.mxu0 0
        %1008 = vmatprep.subr.bf16.mxu0 0
        %1009 = vmatpush1.bf16.msra.mxu0 0
        %1010 = vmatprep.subr.bf16.mxu0 0
        %1011 = vmatpush1.bf16.msra.mxu0 0
        %1012 = vmatprep.subr.bf16.mxu0 0
        %1013 = vmatpush1.bf16.msra.mxu0 0
        %1014 = vmatprep.subr.bf16.mxu0 0
        %1015 = vmatpush1.bf16.msra.mxu0 0
        %1016 = vmatprep.subr.bf16.mxu0 0
        %1017 = vmatpush1.bf16.msra.mxu0 0
        %1018 = vmatprep.subr.bf16.mxu0 0
        %1019 = vmatpush1.bf16.msra.mxu0 0
        %1020 = vmatprep.mubr.bf16.mxu0 0
        %1021 = vmatmul.mubr.bf16.gmra.mrb[0].mxu0 %v982
        %v1022 = vpop.f32.mrb[0].mxu0
        %v1023 = vadd.f32 0.0, %v1022
        %v1024 = vpop.f32.mrb[0].mxu0
        %v1025 = vpop.f32.mrb[0].mxu0
        %v1026 = vpop.f32.mrb[0].mxu0
        %1027 = vdwg.mxu0
        %1028 = vrot.lane.b32.xlu0 %v916, 120
        %v1029 = vpop.permute.xlu0 %1028
        %1030 = vrot.lane.b32.xlu0 %v916, 88
        %v1031 = vpop.permute.xlu0 %1030
        %v1033 = vsel %vm920, %v1029, 0
        %v1036 = vsel %vm920, %v1031, 0
        %1038 = vmatprep.subr.bf16.mxu0 0
        %1039 = vmatpush1.bf16.xpose.msra.mxu0 %v1036
        %1040 = vmatprep.subr.bf16.mxu0 0
        %1041 = vmatpush1.bf16.xpose.msra.mxu0 0
        %1042 = vmatprep.subr.bf16.mxu0 0
        %1043 = vmatpush1.bf16.xpose.msra.mxu0 0
        %1044 = vmatprep.subr.bf16.mxu0 0
        %1045 = vmatpush1.bf16.xpose.msra.mxu0 0
        %1046 = vmatprep.subr.bf16.mxu0 0
        %1047 = vmatpush1.bf16.xpose.msra.mxu0 0
        %1048 = vmatprep.subr.bf16.mxu0 0
        %1049 = vmatpush1.bf16.xpose.msra.mxu0 0
        %1050 = vmatprep.subr.bf16.mxu0 0
        %1051 = vmatpush1.bf16.xpose.msra.mxu0 0
        %1052 = vmatprep.subr.bf16.mxu0 0
        %1053 = vmatpush1.bf16.xpose.msra.mxu0 0
        %1054 = vmatprep.subr.bf16.mxu0 0
        %1055 = vmatpush1.bf16.xpose.msra.mxu0 0
        %1056 = vmatprep.subr.bf16.mxu0 0
        %1057 = vmatpush1.bf16.xpose.msra.mxu0 0
        %1058 = vmatprep.subr.bf16.mxu0 0
        %1059 = vmatpush1.bf16.xpose.msra.mxu0 0
        %1060 = vmatprep.subr.bf16.mxu0 0
        %1061 = vmatpush1.bf16.xpose.msra.mxu0 0
        %1062 = vmatprep.subr.bf16.mxu0 0
        %1063 = vmatpush1.bf16.xpose.msra.mxu0 0
        %1064 = vmatprep.subr.bf16.mxu0 0
        %1065 = vmatpush1.bf16.xpose.msra.mxu0 0
        %1066 = vmatprep.subr.bf16.mxu0 0
        %1067 = vmatpush1.bf16.xpose.msra.mxu0 0
        %1068 = vmatprep.subr.bf16.mxu0 0
        %1069 = vmatpush1.bf16.xpose.msra.mxu0 0
        %1070 = vmatprep.mubr.bf16.mxu0 0
        %1071 = vmatmul.mubr.bf16.gmra.mrb[0].mxu0 %v1033
        %v1072 = vpop.f32.mrb[0].mxu0
        %v1073 = vadd.f32 0.0, %v1072
        %v1074 = vpop.f32.mrb[0].mxu0
        %v1075 = vpop.f32.mrb[0].mxu0
        %v1076 = vpop.f32.mrb[0].mxu0
        %1077 = vdwg.mxu0
        %v1078 = vsel %vm920, %v1073, -inf
        %1079 = vmax.xlane.f32.xlu0 %v1078
        %v1080 = vpop.xlane.xlu0 %1079
        %v1081 = vsub.f32 %v1073, %v1080
        %v1082 = vmul.f32 %v1081, 1.442695
        %v1083 = vpow.pop %v1082
        %v1084 = vsel %vm920, %v1083, 0.0
        %1085 = vadd.xlane.f32.xlu0 %v1084
        %v1086 = vpop.xlane.xlu0 %1085
        %v1087 = vrcp.pop %v1086
        %v1088 = vmul.f32 %v1083, %v1087
        %v1089 = vpack.c.bf16 %v1088, %v1088
        %1090 = vrot.lane.b32.xlu0 %v916, 56
        %v1091 = vpop.permute.xlu0 %1090
        %v1093 = vsel %vm920, %v1089, 0
        %v1096 = vsel %vm984, %v1091, 0
        %1098 = vmatprep.subr.bf16.mxu0 0
        %1099 = vmatpush1.bf16.msra.mxu0 %v1096
        %1100 = vmatprep.subr.bf16.mxu0 0
        %1101 = vmatpush1.bf16.msra.mxu0 0
        %1102 = vmatprep.subr.bf16.mxu0 0
        %1103 = vmatpush1.bf16.msra.mxu0 0
        %1104 = vmatprep.subr.bf16.mxu0 0
        %1105 = vmatpush1.bf16.msra.mxu0 0
        %1106 = vmatprep.subr.bf16.mxu0 0
        %1107 = vmatpush1.bf16.msra.mxu0 0
        %1108 = vmatprep.subr.bf16.mxu0 0
        %1109 = vmatpush1.bf16.msra.mxu0 0
        %1110 = vmatprep.subr.bf16.mxu0 0
        %1111 = vmatpush1.bf16.msra.mxu0 0
        %1112 = vmatprep.subr.bf16.mxu0 0
        %1113 = vmatpush1.bf16.msra.mxu0 0
        %1114 = vmatprep.subr.bf16.mxu0 0
        %1115 = vmatpush1.bf16.msra.mxu0 0
        %1116 = vmatprep.subr.bf16.mxu0 0
        %1117 = vmatpush1.bf16.msra.mxu0 0
        %1118 = vmatprep.subr.bf16.mxu0 0
        %1119 = vmatpush1.bf16.msra.mxu0 0
        %1120 = vmatprep.subr.bf16.mxu0 0
        %1121 = vmatpush1.bf16.msra.mxu0 0
        %1122 = vmatprep.subr.bf16.mxu0 0
        %1123 = vmatpush1.bf16.msra.mxu0 0
        %1124 = vmatprep.subr.bf16.mxu0 0
        %1125 = vmatpush1.bf16.msra.mxu0 0
        %1126 = vmatprep.subr.bf16.mxu0 0
        %1127 = vmatpush1.bf16.msra.mxu0 0
        %1128 = vmatprep.subr.bf16.mxu0 0
        %1129 = vmatpush1.bf16.msra.mxu0 0
        %1130 = vmatprep.mubr.bf16.mxu0 0
        %1131 = vmatmul.mubr.bf16.gmra.mrb[0].mxu0 %v1093
        %v1132 = vpop.f32.mrb[0].mxu0
        %v1133 = vadd.f32 0.0, %v1132
        %v1134 = vpop.f32.mrb[0].mxu0
        %v1135 = vpop.f32.mrb[0].mxu0
        %v1136 = vpop.f32.mrb[0].mxu0
        %1137 = vdwg.mxu0
        %1138 = vrot.lane.b32.xlu0 %v916, 112
        %v1139 = vpop.permute.xlu0 %1138
        %1140 = vrot.lane.b32.xlu0 %v916, 80
        %v1141 = vpop.permute.xlu0 %1140
        %v1143 = vsel %vm920, %v1139, 0
        %v1146 = vsel %vm920, %v1141, 0
        %1148 = vmatprep.subr.bf16.mxu0 0
        %1149 = vmatpush1.bf16.xpose.msra.mxu0 %v1146
        %1150 = vmatprep.subr.bf16.mxu0 0
        %1151 = vmatpush1.bf16.xpose.msra.mxu0 0
        %1152 = vmatprep.subr.bf16.mxu0 0
        %1153 = vmatpush1.bf16.xpose.msra.mxu0 0
        %1154 = vmatprep.subr.bf16.mxu0 0
        %1155 = vmatpush1.bf16.xpose.msra.mxu0 0
        %1156 = vmatprep.subr.bf16.mxu0 0
        %1157 = vmatpush1.bf16.xpose.msra.mxu0 0
        %1158 = vmatprep.subr.bf16.mxu0 0
        %1159 = vmatpush1.bf16.xpose.msra.mxu0 0
        %1160 = vmatprep.subr.bf16.mxu0 0
        %1161 = vmatpush1.bf16.xpose.msra.mxu0 0
        %1162 = vmatprep.subr.bf16.mxu0 0
        %1163 = vmatpush1.bf16.xpose.msra.mxu0 0
        %1164 = vmatprep.subr.bf16.mxu0 0
        %1165 = vmatpush1.bf16.xpose.msra.mxu0 0
        %1166 = vmatprep.subr.bf16.mxu0 0
        %1167 = vmatpush1.bf16.xpose.msra.mxu0 0
        %1168 = vmatprep.subr.bf16.mxu0 0
        %1169 = vmatpush1.bf16.xpose.msra.mxu0 0
        %1170 = vmatprep.subr.bf16.mxu0 0
        %1171 = vmatpush1.bf16.xpose.msra.mxu0 0
        %1172 = vmatprep.subr.bf16.mxu0 0
        %1173 = vmatpush1.bf16.xpose.msra.mxu0 0
        %1174 = vmatprep.subr.bf16.mxu0 0
        %1175 = vmatpush1.bf16.xpose.msra.mxu0 0
        %1176 = vmatprep.subr.bf16.mxu0 0
        %1177 = vmatpush1.bf16.xpose.msra.mxu0 0
        %1178 = vmatprep.subr.bf16.mxu0 0
        %1179 = vmatpush1.bf16.xpose.msra.mxu0 0
        %1180 = vmatprep.mubr.bf16.mxu0 0
        %1181 = vmatmul.mubr.bf16.gmra.mrb[0].mxu0 %v1143
        %v1182 = vpop.f32.mrb[0].mxu0
        %v1183 = vadd.f32 0.0, %v1182
        %v1184 = vpop.f32.mrb[0].mxu0
        %v1185 = vpop.f32.mrb[0].mxu0
        %v1186 = vpop.f32.mrb[0].mxu0
        %1187 = vdwg.mxu0
        %v1188 = vsel %vm920, %v1183, -inf
        %1189 = vmax.xlane.f32.xlu0 %v1188
        %v1190 = vpop.xlane.xlu0 %1189
        %v1191 = vsub.f32 %v1183, %v1190
        %v1192 = vmul.f32 %v1191, 1.442695
        %v1193 = vpow.pop %v1192
        %v1194 = vsel %vm920, %v1193, 0.0
        %1195 = vadd.xlane.f32.xlu0 %v1194
        %v1196 = vpop.xlane.xlu0 %1195
        %v1197 = vrcp.pop %v1196
        %v1198 = vmul.f32 %v1193, %v1197
        %v1199 = vpack.c.bf16 %v1198, %v1198
        %1200 = vrot.lane.b32.xlu0 %v916, 48
        %v1201 = vpop.permute.xlu0 %1200
        %v1203 = vsel %vm920, %v1199, 0
        %v1206 = vsel %vm984, %v1201, 0
        %1208 = vmatprep.subr.bf16.mxu0 0
        %1209 = vmatpush1.bf16.msra.mxu0 %v1206
        %1210 = vmatprep.subr.bf16.mxu0 0
        %1211 = vmatpush1.bf16.msra.mxu0 0
        %1212 = vmatprep.subr.bf16.mxu0 0
        %1213 = vmatpush1.bf16.msra.mxu0 0
        %1214 = vmatprep.subr.bf16.mxu0 0
        %1215 = vmatpush1.bf16.msra.mxu0 0
        %1216 = vmatprep.subr.bf16.mxu0 0
        %1217 = vmatpush1.bf16.msra.mxu0 0
        %1218 = vmatprep.subr.bf16.mxu0 0
        %1219 = vmatpush1.bf16.msra.mxu0 0
        %1220 = vmatprep.subr.bf16.mxu0 0
        %1221 = vmatpush1.bf16.msra.mxu0 0
        %1222 = vmatprep.subr.bf16.mxu0 0
        %1223 = vmatpush1.bf16.msra.mxu0 0
        %1224 = vmatprep.subr.bf16.mxu0 0
        %1225 = vmatpush1.bf16.msra.mxu0 0
        %1226 = vmatprep.subr.bf16.mxu0 0
        %1227 = vmatpush1.bf16.msra.mxu0 0
        %1228 = vmatprep.subr.bf16.mxu0 0
        %1229 = vmatpush1.bf16.msra.mxu0 0
        %1230 = vmatprep.subr.bf16.mxu0 0
        %1231 = vmatpush1.bf16.msra.mxu0 0
        %1232 = vmatprep.subr.bf16.mxu0 0
        %1233 = vmatpush1.bf16.msra.mxu0 0
        %1234 = vmatprep.subr.bf16.mxu0 0
        %1235 = vmatpush1.bf16.msra.mxu0 0
        %1236 = vmatprep.subr.bf16.mxu0 0
        %1237 = vmatpush1.bf16.msra.mxu0 0
        %1238 = vmatprep.subr.bf16.mxu0 0
        %1239 = vmatpush1.bf16.msra.mxu0 0
        %1240 = vmatprep.mubr.bf16.mxu0 0
        %1241 = vmatmul.mubr.bf16.gmra.mrb[0].mxu0 %v1203
        %v1242 = vpop.f32.mrb[0].mxu0
        %v1243 = vadd.f32 0.0, %v1242
        %v1244 = vpop.f32.mrb[0].mxu0
        %v1245 = vpop.f32.mrb[0].mxu0
        %v1246 = vpop.f32.mrb[0].mxu0
        %1247 = vdwg.mxu0
        %1248 = vrot.lane.b32.xlu0 %v916, 104
        %v1249 = vpop.permute.xlu0 %1248
        %1250 = vrot.lane.b32.xlu0 %v916, 72
        %v1251 = vpop.permute.xlu0 %1250
        %v1253 = vsel %vm920, %v1249, 0
        %v1256 = vsel %vm920, %v1251, 0
        %1258 = vmatprep.subr.bf16.mxu0 0
        %1259 = vmatpush1.bf16.xpose.msra.mxu0 %v1256
        %1260 = vmatprep.subr.bf16.mxu0 0
        %1261 = vmatpush1.bf16.xpose.msra.mxu0 0
        %1262 = vmatprep.subr.bf16.mxu0 0
        %1263 = vmatpush1.bf16.xpose.msra.mxu0 0
        %1264 = vmatprep.subr.bf16.mxu0 0
        %1265 = vmatpush1.bf16.xpose.msra.mxu0 0
        %1266 = vmatprep.subr.bf16.mxu0 0
        %1267 = vmatpush1.bf16.xpose.msra.mxu0 0
        %1268 = vmatprep.subr.bf16.mxu0 0
        %1269 = vmatpush1.bf16.xpose.msra.mxu0 0
        %1270 = vmatprep.subr.bf16.mxu0 0
        %1271 = vmatpush1.bf16.xpose.msra.mxu0 0
        %1272 = vmatprep.subr.bf16.mxu0 0
        %1273 = vmatpush1.bf16.xpose.msra.mxu0 0
        %1274 = vmatprep.subr.bf16.mxu0 0
        %1275 = vmatpush1.bf16.xpose.msra.mxu0 0
        %1276 = vmatprep.subr.bf16.mxu0 0
        %1277 = vmatpush1.bf16.xpose.msra.mxu0 0
        %1278 = vmatprep.subr.bf16.mxu0 0
        %1279 = vmatpush1.bf16.xpose.msra.mxu0 0
        %1280 = vmatprep.subr.bf16.mxu0 0
        %1281 = vmatpush1.bf16.xpose.msra.mxu0 0
        %1282 = vmatprep.subr.bf16.mxu0 0
        %1283 = vmatpush1.bf16.xpose.msra.mxu0 0
        %1284 = vmatprep.subr.bf16.mxu0 0
        %1285 = vmatpush1.bf16.xpose.msra.mxu0 0
        %1286 = vmatprep.subr.bf16.mxu0 0
        %1287 = vmatpush1.bf16.xpose.msra.mxu0 0
        %1288 = vmatprep.subr.bf16.mxu0 0
        %1289 = vmatpush1.bf16.xpose.msra.mxu0 0
        %1290 = vmatprep.mubr.bf16.mxu0 0
        %1291 = vmatmul.mubr.bf16.gmra.mrb[0].mxu0 %v1253
        %v1292 = vpop.f32.mrb[0].mxu0
        %v1293 = vadd.f32 0.0, %v1292
        %v1294 = vpop.f32.mrb[0].mxu0
        %v1295 = vpop.f32.mrb[0].mxu0
        %v1296 = vpop.f32.mrb[0].mxu0
        %1297 = vdwg.mxu0
        %v1298 = vsel %vm920, %v1293, -inf
        %1299 = vmax.xlane.f32.xlu0 %v1298
        %v1300 = vpop.xlane.xlu0 %1299
        %v1301 = vsub.f32 %v1293, %v1300
        %v1302 = vmul.f32 %v1301, 1.442695
        %v1303 = vpow.pop %v1302
        %v1304 = vsel %vm920, %v1303, 0.0
        %1305 = vadd.xlane.f32.xlu0 %v1304
        %v1306 = vpop.xlane.xlu0 %1305
        %v1307 = vrcp.pop %v1306
        %v1308 = vmul.f32 %v1303, %v1307
        %v1309 = vpack.c.bf16 %v1308, %v1308
        %1310 = vrot.lane.b32.xlu0 %v916, 40
        %v1311 = vpop.permute.xlu0 %1310
        %v1313 = vsel %vm920, %v1309, 0
        %v1316 = vsel %vm984, %v1311, 0
        %1318 = vmatprep.subr.bf16.mxu0 0
        %1319 = vmatpush1.bf16.msra.mxu0 %v1316
        %1320 = vmatprep.subr.bf16.mxu0 0
        %1321 = vmatpush1.bf16.msra.mxu0 0
        %1322 = vmatprep.subr.bf16.mxu0 0
        %1323 = vmatpush1.bf16.msra.mxu0 0
        %1324 = vmatprep.subr.bf16.mxu0 0
        %1325 = vmatpush1.bf16.msra.mxu0 0
        %1326 = vmatprep.subr.bf16.mxu0 0
        %1327 = vmatpush1.bf16.msra.mxu0 0
        %1328 = vmatprep.subr.bf16.mxu0 0
        %1329 = vmatpush1.bf16.msra.mxu0 0
        %1330 = vmatprep.subr.bf16.mxu0 0
        %1331 = vmatpush1.bf16.msra.mxu0 0
        %1332 = vmatprep.subr.bf16.mxu0 0
        %1333 = vmatpush1.bf16.msra.mxu0 0
        %1334 = vmatprep.subr.bf16.mxu0 0
        %1335 = vmatpush1.bf16.msra.mxu0 0
        %1336 = vmatprep.subr.bf16.mxu0 0
        %1337 = vmatpush1.bf16.msra.mxu0 0
        %1338 = vmatprep.subr.bf16.mxu0 0
        %1339 = vmatpush1.bf16.msra.mxu0 0
        %1340 = vmatprep.subr.bf16.mxu0 0
        %1341 = vmatpush1.bf16.msra.mxu0 0
        %1342 = vmatprep.subr.bf16.mxu0 0
        %1343 = vmatpush1.bf16.msra.mxu0 0
        %1344 = vmatprep.subr.bf16.mxu0 0
        %1345 = vmatpush1.bf16.msra.mxu0 0
        %1346 = vmatprep.subr.bf16.mxu0 0
        %1347 = vmatpush1.bf16.msra.mxu0 0
        %1348 = vmatprep.subr.bf16.mxu0 0
        %1349 = vmatpush1.bf16.msra.mxu0 0
        %1350 = vmatprep.mubr.bf16.mxu0 0
        %1351 = vmatmul.mubr.bf16.gmra.mrb[0].mxu0 %v1313
        %v1352 = vpop.f32.mrb[0].mxu0
        %v1353 = vadd.f32 0.0, %v1352
        %v1354 = vpop.f32.mrb[0].mxu0
        %v1355 = vpop.f32.mrb[0].mxu0
        %v1356 = vpop.f32.mrb[0].mxu0
        %1357 = vdwg.mxu0
        %1359 = vrot.lane.b32.xlu0 %v1133, 8
        %v1360 = vpop.permute.xlu0 %1359
        %1363 = vrot.lane.b32.xlu0 %v1243, 16
        %v1364 = vpop.permute.xlu0 %1363
        %1367 = vrot.lane.b32.xlu0 %v1353, 24
        %v1368 = vpop.permute.xlu0 %1367
        %v1370 = vsel %vm920, %v1023, %v1360
        %vm1371 = vcmask 130048
        %v1372 = vsel %vm1371, %v1370, %v1364
        %vm1373 = vcmask 195584
        %v1374 = vsel %vm1373, %v1372, %v1368
        %v1375 = vpack.c.bf16 %v1374, %v1374
        %v1376 = vld [vmem:[#allocation11] sm:$0xf]
        %v1377 = vld [vmem:[#allocation11 + $0x4] sm:$0xf]
        %v1378 = vld [vmem:[#allocation11 + $0x8] sm:$0xf]
        %v1379 = vld [vmem:[#allocation11 + $0xc] sm:$0xf]
        %v1380 = vld [vmem:[#allocation13] sm:$0x1]
        %v1382 = vlaneseq
        %v1383 = vshrl.u32 %v1382, 7
        %v1384 = vsub.s32 0, %v1383
        %v1385 = vrot.slane %v1380, %v1384
        %v1391 = vunpack.c.l.b16 %v1376
        %v1392 = vunpack.c.l.b16 %v1377
        %v1393 = vunpack.c.l.b16 %v1378
        %v1394 = vunpack.c.l.b16 %v1379
        %v1395 = vpack.c.b16 %v1392, %v1391
        %v1396 = vpack.c.b16 %v1394, %v1393
        %v1400 = vsel %vm872, %v1375, 0
        %1402 = vmatprep.subr.bf16.mxu0 0
        %1403 = vmatpush1.bf16.msra.mxu0 %v1395
        %1404 = vmatprep.subr.bf16.mxu0 0
        %1405 = vmatpush1.bf16.msra.mxu0 %v1396
        %1406 = vmatprep.subr.bf16.mxu0 0
        %1407 = vmatpush1.bf16.msra.mxu0 0
        %1408 = vmatprep.subr.bf16.mxu0 0
        %1409 = vmatpush1.bf16.msra.mxu0 0
        %1410 = vmatprep.subr.bf16.mxu0 0
        %1411 = vmatpush1.bf16.msra.mxu0 0
        %1412 = vmatprep.subr.bf16.mxu0 0
        %1413 = vmatpush1.bf16.msra.mxu0 0
        %1414 = vmatprep.subr.bf16.mxu0 0
        %1415 = vmatpush1.bf16.msra.mxu0 0
        %1416 = vmatprep.subr.bf16.mxu0 0
        %1417 = vmatpush1.bf16.msra.mxu0 0
        %1418 = vmatprep.subr.bf16.mxu0 0
        %1419 = vmatpush1.bf16.msra.mxu0 0
        %1420 = vmatprep.subr.bf16.mxu0 0
        %1421 = vmatpush1.bf16.msra.mxu0 0
        %1422 = vmatprep.subr.bf16.mxu0 0
        %1423 = vmatpush1.bf16.msra.mxu0 0
        %1424 = vmatprep.subr.bf16.mxu0 0
        %1425 = vmatpush1.bf16.msra.mxu0 0
        %1426 = vmatprep.subr.bf16.mxu0 0
        %1427 = vmatpush1.bf16.msra.mxu0 0
        %1428 = vmatprep.subr.bf16.mxu0 0
        %1429 = vmatpush1.bf16.msra.mxu0 0
        %1430 = vmatprep.subr.bf16.mxu0 0
        %1431 = vmatpush1.bf16.msra.mxu0 0
        %1432 = vmatprep.subr.bf16.mxu0 0
        %1433 = vmatpush1.bf16.msra.mxu0 0
        %1434 = vmatprep.mubr.bf16.mxu0 0
        %1435 = vmatmul.mubr.bf16.gmra.mrb[0].mxu0 %v1400
        %v1436 = vpop.f32.mrb[0].mxu0
        %v1437 = vadd.f32 %v1385, %v1436
        %v1438 = vpop.f32.mrb[0].mxu0
        %v1439 = vpop.f32.mrb[0].mxu0
        %v1440 = vpop.f32.mrb[0].mxu0
        %1441 = vdwg.mxu0
        %v1442 = vadd.f32 %v843, %v1437
        %v1443 = vld [vmem:[#allocation14] sm:$0x1]
        %v1444 = vld [vmem:[#allocation16] sm:$0x1]
        %v1445 = vsel %vm872, %v1442, 0.0
        %1446 = vadd.xlane.f32.xlu0 %v1445
        %v1447 = vpop.xlane.xlu0 %1446
        %v1448 = vrcp.pop 32.0
        %v1449 = vmul.f32 %v1447, %v1448
        %v1450 = vsub.f32 %v1442, %v1449
        %v1451 = vmul.f32 %v1450, %v1450
        %v1452 = vsel %vm872, %v1451, 0.0
        %1453 = vadd.xlane.f32.xlu0 %v1452
        %v1454 = vpop.xlane.xlu0 %1453
        %v1455 = vmul.f32 %v1454, %v1448
        %v1456 = vadd.f32 %v1455, 1e-05
        %v1457 = vrsqrt.pop %v1456
        %v1458 = vmul.f32 %v1450, %v1457
        %v1460 = vlaneseq
        %v1461 = vshrl.u32 %v1460, 7
        %v1462 = vsub.s32 0, %v1461
        %v1463 = vrot.slane %v1443, %v1462
        %v1465 = vmul.f32 %v1458, %v1463
        %v1467 = vlaneseq
        %v1468 = vshrl.u32 %v1467, 7
        %v1469 = vsub.s32 0, %v1468
        %v1470 = vrot.slane %v1444, %v1469
        %v1472 = vadd.f32 %v1465, %v1470
        %v1473 = vpack.c.bf16 %v1472, %v1472
        %v1474 = vld [vmem:[#allocation17] sm:$0xf]
        %v1475 = vld [vmem:[#allocation17 + $0x4] sm:$0xf]
        %v1476 = vld [vmem:[#allocation17 + $0x8] sm:$0xf]
        %v1477 = vld [vmem:[#allocation17 + $0xc] sm:$0xf]
        %v1478 = vld [vmem:[#allocation19] sm:$0x1]
        %v1480 = vlaneseq
        %v1481 = vshrl.u32 %v1480, 7
        %v1482 = vsub.s32 0, %v1481
        %v1483 = vrot.slane %v1478, %v1482
        %v1489 = vunpack.c.l.b16 %v1474
        %v1490 = vunpack.c.l.b16 %v1475
        %v1491 = vunpack.c.l.b16 %v1476
        %v1492 = vunpack.c.l.b16 %v1477
        %v1493 = vpack.c.b16 %v1490, %v1489
        %v1494 = vpack.c.b16 %v1492, %v1491
        %v1498 = vsel %vm872, %v1473, 0
        %1500 = vmatprep.subr.bf16.mxu0 0
        %1501 = vmatpush1.bf16.msra.mxu0 %v1493
        %1502 = vmatprep.subr.bf16.mxu0 0
        %1503 = vmatpush1.bf16.msra.mxu0 %v1494
        %1504 = vmatprep.subr.bf16.mxu0 0
        %1505 = vmatpush1.bf16.msra.mxu0 0
        %1506 = vmatprep.subr.bf16.mxu0 0
        %1507 = vmatpush1.bf16.msra.mxu0 0
        %1508 = vmatprep.subr.bf16.mxu0 0
        %1509 = vmatpush1.bf16.msra.mxu0 0
        %1510 = vmatprep.subr.bf16.mxu0 0
        %1511 = vmatpush1.bf16.msra.mxu0 0
        %1512 = vmatprep.subr.bf16.mxu0 0
        %1513 = vmatpush1.bf16.msra.mxu0 0
        %1514 = vmatprep.subr.bf16.mxu0 0
        %1515 = vmatpush1.bf16.msra.mxu0 0
        %1516 = vmatprep.subr.bf16.mxu0 0
        %1517 = vmatpush1.bf16.msra.mxu0 0
        %1518 = vmatprep.subr.bf16.mxu0 0
        %1519 = vmatpush1.bf16.msra.mxu0 0
        %1520 = vmatprep.subr.bf16.mxu0 0
        %1521 = vmatpush1.bf16.msra.mxu0 0
        %1522 = vmatprep.subr.bf16.mxu0 0
        %1523 = vmatpush1.bf16.msra.mxu0 0
        %1524 = vmatprep.subr.bf16.mxu0 0
        %1525 = vmatpush1.bf16.msra.mxu0 0
        %1526 = vmatprep.subr.bf16.mxu0 0
        %1527 = vmatpush1.bf16.msra.mxu0 0
        %1528 = vmatprep.subr.bf16.mxu0 0
        %1529 = vmatpush1.bf16.msra.mxu0 0
        %1530 = vmatprep.subr.bf16.mxu0 0
        %1531 = vmatpush1.bf16.msra.mxu0 0
        %1532 = vmatprep.mubr.bf16.mxu0 0
        %1533 = vmatmul.mubr.bf16.gmra.mrb[0].mxu0 %v1498
        %v1534 = vpop.f32.mrb[0].mxu0
        %v1535 = vadd.f32 %v1483, %v1534
        %v1536 = vpop.f32.mrb[0].mxu0
        %v1537 = vpop.f32.mrb[0].mxu0
        %v1538 = vpop.f32.mrb[0].mxu0
        %1539 = vdwg.mxu0
        %v1540 = vmul.f32 %v1535, 0.5
        %v1541 = vmul.f32 %v1535, 0.044715
        %v1542 = vmul.f32 %v1541, %v1535
        %v1543 = vmul.f32 %v1542, %v1535
        %v1544 = vadd.f32 %v1535, %v1543
        %v1545 = vmul.f32 %v1544, 0.7978846
        %v1546 = vtanh.pop %v1545
        %v1547 = vadd.f32 %v1546, 1.0
        %v1548 = vmul.f32 %v1540, %v1547
        %v1549 = vpack.c.bf16 %v1548, %v1548
        %v1550 = vld [vmem:[#allocation20] sm:$0xf]
        %v1551 = vld [vmem:[#allocation20 + $0x4] sm:$0xf]
        %v1552 = vld [vmem:[#allocation20 + $0x8] sm:$0xf]
        %v1553 = vld [vmem:[#allocation20 + $0xc] sm:$0xf]
        %v1554 = vld [vmem:[#allocation20 + $0x10] sm:$0xf]
        %v1555 = vld [vmem:[#allocation20 + $0x14] sm:$0xf]
        %v1556 = vld [vmem:[#allocation20 + $0x18] sm:$0xf]
        %v1557 = vld [vmem:[#allocation20 + $0x1c] sm:$0xf]
        %v1558 = vld [vmem:[#allocation22] sm:$0x1]
        %v1560 = vlaneseq
        %v1561 = vshrl.u32 %v1560, 7
        %v1562 = vsub.s32 0, %v1561
        %v1563 = vrot.slane %v1558, %v1562
        %v1573 = vunpack.c.l.b16 %v1550
        %v1574 = vunpack.c.l.b16 %v1551
        %v1575 = vunpack.c.l.b16 %v1552
        %v1576 = vunpack.c.l.b16 %v1553
        %v1577 = vunpack.c.l.b16 %v1554
        %v1578 = vunpack.c.l.b16 %v1555
        %v1579 = vunpack.c.l.b16 %v1556
        %v1580 = vunpack.c.l.b16 %v1557
        %v1581 = vpack.c.b16 %v1574, %v1573
        %v1582 = vpack.c.b16 %v1576, %v1575
        %v1583 = vpack.c.b16 %v1578, %v1577
        %v1584 = vpack.c.b16 %v1580, %v1579
        %vm1589 = vcmask 523264
        %v1591 = vsel %vm1589, %v1549, 0
        %1593 = vmatprep.subr.bf16.mxu0 0
        %1594 = vmatpush1.bf16.msra.mxu0 %v1581
        %1595 = vmatprep.subr.bf16.mxu0 0
        %1596 = vmatpush1.bf16.msra.mxu0 %v1582
        %1597 = vmatprep.subr.bf16.mxu0 0
        %1598 = vmatpush1.bf16.msra.mxu0 %v1583
        %1599 = vmatprep.subr.bf16.mxu0 0
        %1600 = vmatpush1.bf16.msra.mxu0 %v1584
        %1601 = vmatprep.subr.bf16.mxu0 0
        %1602 = vmatpush1.bf16.msra.mxu0 0
        %1603 = vmatprep.subr.bf16.mxu0 0
        %1604 = vmatpush1.bf16.msra.mxu0 0
        %1605 = vmatprep.subr.bf16.mxu0 0
        %1606 = vmatpush1.bf16.msra.mxu0 0
        %1607 = vmatprep.subr.bf16.mxu0 0
        %1608 = vmatpush1.bf16.msra.mxu0 0
        %1609 = vmatprep.subr.bf16.mxu0 0
        %1610 = vmatpush1.bf16.msra.mxu0 0
        %1611 = vmatprep.subr.bf16.mxu0 0
        %1612 = vmatpush1.bf16.msra.mxu0 0
        %1613 = vmatprep.subr.bf16.mxu0 0
        %1614 = vmatpush1.bf16.msra.mxu0 0
        %1615 = vmatprep.subr.bf16.mxu0 0
        %1616 = vmatpush1.bf16.msra.mxu0 0
        %1617 = vmatprep.subr.bf16.mxu0 0
        %1618 = vmatpush1.bf16.msra.mxu0 0
        %1619 = vmatprep.subr.bf16.mxu0 0
        %1620 = vmatpush1.bf16.msra.mxu0 0
        %1621 = vmatprep.subr.bf16.mxu0 0
        %1622 = vmatpush1.bf16.msra.mxu0 0
        %1623 = vmatprep.subr.bf16.mxu0 0
        %1624 = vmatpush1.bf16.msra.mxu0 0
        %1625 = vmatprep.mubr.bf16.mxu0 0
        %1626 = vmatmul.mubr.bf16.gmra.mrb[0].mxu0 %v1591
        %v1627 = vpop.f32.mrb[0].mxu0
        %v1628 = vadd.f32 %v1563, %v1627
        %v1629 = vpop.f32.mrb[0].mxu0
        %v1630 = vpop.f32.mrb[0].mxu0
        %v1631 = vpop.f32.mrb[0].mxu0
        %1632 = vdwg.mxu0
        %v1633 = vadd.f32 %v1472, %v1628
        %v1634 = vld [vmem:[#allocation23] sm:$0x1]
        %v1635 = vld [vmem:[#allocation25] sm:$0x1]
        %v1636 = vsel %vm872, %v1633, 0.0
        %1637 = vadd.xlane.f32.xlu0 %v1636
        %v1638 = vpop.xlane.xlu0 %1637
        %v1639 = vmul.f32 %v1638, %v1448
        %v1640 = vsub.f32 %v1633, %v1639
        %v1641 = vmul.f32 %v1640, %v1640
        %v1642 = vsel %vm872, %v1641, 0.0
        %1643 = vadd.xlane.f32.xlu0 %v1642
        %v1644 = vpop.xlane.xlu0 %1643
        %v1645 = vmul.f32 %v1644, %v1448
        %v1646 = vadd.f32 %v1645, 1e-05
        %v1647 = vrsqrt.pop %v1646
        %v1648 = vmul.f32 %v1640, %v1647
        %v1650 = vlaneseq
        %v1651 = vshrl.u32 %v1650, 7
        %v1652 = vsub.s32 0, %v1651
        %v1653 = vrot.slane %v1634, %v1652
        %v1655 = vmul.f32 %v1648, %v1653
        %v1657 = vlaneseq
        %v1658 = vshrl.u32 %v1657, 7
        %v1659 = vsub.s32 0, %v1658
        %v1660 = vrot.slane %v1635, %v1659
        %v1662 = vadd.f32 %v1655, %v1660
        %v1663 = vpack.c.bf16 %v1662, %v1662
        %s1664 = scalar_lea.vmem [#allocation8], 16
        %v1665 = vld [vmem:[%s1664] sm:$0xf]
        %v1666 = vld [vmem:[%s1664 + $0x4] sm:$0xf]
        %v1667 = vld [vmem:[%s1664 + $0x8] sm:$0xf]
        %v1668 = vld [vmem:[%s1664 + $0xc] sm:$0xf]
        %s1669 = scalar_lea.vmem [#allocation10], 1
        %v1670 = vld [vmem:[%s1669] sm:$0x1]
        %v1672 = vlaneseq
        %v1673 = vshrl.u32 %v1672, 7
        %v1674 = vsub.s32 0, %v1673
        %v1675 = vrot.slane %v1670, %v1674
        %v1681 = vunpack.c.l.b16 %v1665
        %v1682 = vunpack.c.l.b16 %v1666
        %v1683 = vunpack.c.l.b16 %v1667
        %v1684 = vunpack.c.l.b16 %v1668
        %v1685 = vpack.c.b16 %v1682, %v1681
        %v1686 = vpack.c.b16 %v1684, %v1683
        %v1690 = vsel %vm872, %v1663, 0
        %1692 = vmatprep.subr.bf16.mxu0 0
        %1693 = vmatpush1.bf16.msra.mxu0 %v1685
        %1694 = vmatprep.subr.bf16.mxu0 0
        %1695 = vmatpush1.bf16.msra.mxu0 %v1686
        %1696 = vmatprep.subr.bf16.mxu0 0
        %1697 = vmatpush1.bf16.msra.mxu0 0
        %1698 = vmatprep.subr.bf16.mxu0 0
        %1699 = vmatpush1.bf16.msra.mxu0 0
        %1700 = vmatprep.subr.bf16.mxu0 0
        %1701 = vmatpush1.bf16.msra.mxu0 0
        %1702 = vmatprep.subr.bf16.mxu0 0
        %1703 = vmatpush1.bf16.msra.mxu0 0
        %1704 = vmatprep.subr.bf16.mxu0 0
        %1705 = vmatpush1.bf16.msra.mxu0 0
        %1706 = vmatprep.subr.bf16.mxu0 0
        %1707 = vmatpush1.bf16.msra.mxu0 0
        %1708 = vmatprep.subr.bf16.mxu0 0
        %1709 = vmatpush1.bf16.msra.mxu0 0
        %1710 = vmatprep.subr.bf16.mxu0 0
        %1711 = vmatpush1.bf16.msra.mxu0 0
        %1712 = vmatprep.subr.bf16.mxu0 0
        %1713 = vmatpush1.bf16.msra.mxu0 0
        %1714 = vmatprep.subr.bf16.mxu0 0
        %1715 = vmatpush1.bf16.msra.mxu0 0
        %1716 = vmatprep.subr.bf16.mxu0 0
        %1717 = vmatpush1.bf16.msra.mxu0 0
        %1718 = vmatprep.subr.bf16.mxu0 0
        %1719 = vmatpush1.bf16.msra.mxu0 0
        %1720 = vmatprep.subr.bf16.mxu0 0
        %1721 = vmatpush1.bf16.msra.mxu0 0
        %1722 = vmatprep.subr.bf16.mxu0 0
        %1723 = vmatpush1.bf16.msra.mxu0 0
        %1724 = vmatprep.mubr.bf16.mxu0 0
        %1725 = vmatmul.mubr.bf16.gmra.mrb[0].mxu0 %v1690
        %v1726 = vpop.f32.mrb[0].mxu0
        %v1727 = vadd.f32 %v1675, %v1726
        %v1728 = vpop.f32.mrb[0].mxu0
        %v1729 = vpop.f32.mrb[0].mxu0
        %v1730 = vpop.f32.mrb[0].mxu0
        %1731 = vdwg.mxu0
        %v1732 = vpack.c.bf16 %v1727, %v1727
        %1734 = vrot.lane.b32.xlu0 %v1732, 96
        %v1735 = vpop.permute.xlu0 %1734
        %v1737 = vsel %vm920, %v1732, 0
        %v1740 = vsel %vm920, %v1735, 0
        %1742 = vmatprep.subr.bf16.mxu0 0
        %1743 = vmatpush1.bf16.xpose.msra.mxu0 %v1740
        %1744 = vmatprep.subr.bf16.mxu0 0
        %1745 = vmatpush1.bf16.xpose.msra.mxu0 0
        %1746 = vmatprep.subr.bf16.mxu0 0
        %1747 = vmatpush1.bf16.xpose.msra.mxu0 0
        %1748 = vmatprep.subr.bf16.mxu0 0
        %1749 = vmatpush1.bf16.xpose.msra.mxu0 0
        %1750 = vmatprep.subr.bf16.mxu0 0
        %1751 = vmatpush1.bf16.xpose.msra.mxu0 0
        %1752 = vmatprep.subr.bf16.mxu0 0
        %1753 = vmatpush1.bf16.xpose.msra.mxu0 0
        %1754 = vmatprep.subr.bf16.mxu0 0
        %1755 = vmatpush1.bf16.xpose.msra.mxu0 0
        %1756 = vmatprep.subr.bf16.mxu0 0
        %1757 = vmatpush1.bf16.xpose.msra.mxu0 0
        %1758 = vmatprep.subr.bf16.mxu0 0
        %1759 = vmatpush1.bf16.xpose.msra.mxu0 0
        %1760 = vmatprep.subr.bf16.mxu0 0
        %1761 = vmatpush1.bf16.xpose.msra.mxu0 0
        %1762 = vmatprep.subr.bf16.mxu0 0
        %1763 = vmatpush1.bf16.xpose.msra.mxu0 0
        %1764 = vmatprep.subr.bf16.mxu0 0
        %1765 = vmatpush1.bf16.xpose.msra.mxu0 0
        %1766 = vmatprep.subr.bf16.mxu0 0
        %1767 = vmatpush1.bf16.xpose.msra.mxu0 0
        %1768 = vmatprep.subr.bf16.mxu0 0
        %1769 = vmatpush1.bf16.xpose.msra.mxu0 0
        %1770 = vmatprep.subr.bf16.mxu0 0
        %1771 = vmatpush1.bf16.xpose.msra.mxu0 0
        %1772 = vmatprep.subr.bf16.mxu0 0
        %1773 = vmatpush1.bf16.xpose.msra.mxu0 0
        %1774 = vmatprep.mubr.bf16.mxu0 0
        %1775 = vmatmul.mubr.bf16.gmra.mrb[0].mxu0 %v1737
        %v1776 = vpop.f32.mrb[0].mxu0
        %v1777 = vadd.f32 0.0, %v1776
        %v1778 = vpop.f32.mrb[0].mxu0
        %v1779 = vpop.f32.mrb[0].mxu0
        %v1780 = vpop.f32.mrb[0].mxu0
        %1781 = vdwg.mxu0
        %v1782 = vsel %vm920, %v1777, -inf
        %1783 = vmax.xlane.f32.xlu0 %v1782
        %v1784 = vpop.xlane.xlu0 %1783
        %v1785 = vsub.f32 %v1777, %v1784
        %v1786 = vmul.f32 %v1785, 1.442695
        %v1787 = vpow.pop %v1786
        %v1788 = vsel %vm920, %v1787, 0.0
        %1789 = vadd.xlane.f32.xlu0 %v1788
        %v1790 = vpop.xlane.xlu0 %1789
        %v1791 = vrcp.pop %v1790
        %v1792 = vmul.f32 %v1787, %v1791
        %v1793 = vpack.c.bf16 %v1792, %v1792
        %1794 = vrot.lane.b32.xlu0 %v1732, 64
        %v1795 = vpop.permute.xlu0 %1794
        %v1797 = vsel %vm920, %v1793, 0
        %v1800 = vsel %vm984, %v1795, 0
        %1802 = vmatprep.subr.bf16.mxu0 0
        %1803 = vmatpush1.bf16.msra.mxu0 %v1800
        %1804 = vmatprep.subr.bf16.mxu0 0
        %1805 = vmatpush1.bf16.msra.mxu0 0
        %1806 = vmatprep.subr.bf16.mxu0 0
        %1807 = vmatpush1.bf16.msra.mxu0 0
        %1808 = vmatprep.subr.bf16.mxu0 0
        %1809 = vmatpush1.bf16.msra.mxu0 0
        %1810 = vmatprep.subr.bf16.mxu0 0
        %1811 = vmatpush1.bf16.msra.mxu0 0
        %1812 = vmatprep.subr.bf16.mxu0 0
        %1813 = vmatpush1.bf16.msra.mxu0 0
        %1814 = vmatprep.subr.bf16.mxu0 0
        %1815 = vmatpush1.bf16.msra.mxu0 0
        %1816 = vmatprep.subr.bf16.mxu0 0
        %1817 = vmatpush1.bf16.msra.mxu0 0
        %1818 = vmatprep.subr.bf16.mxu0 0
        %1819 = vmatpush1.bf16.msra.mxu0 0
        %1820 = vmatprep.subr.bf16.mxu0 0
        %1821 = vmatpush1.bf16.msra.mxu0 0
        %1822 = vmatprep.subr.bf16.mxu0 0
        %1823 = vmatpush1.bf16.msra.mxu0 0
        %1824 = vmatprep.subr.bf16.mxu0 0
        %1825 = vmatpush1.bf16.msra.mxu0 0
        %1826 = vmatprep.subr.bf16.mxu0 0
        %1827 = vmatpush1.bf16.msra.mxu0 0
        %1828 = vmatprep.subr.bf16.mxu0 0
        %1829 = vmatpush1.bf16.msra.mxu0 0
        %1830 = vmatprep.subr.bf16.mxu0 0
        %1831 = vmatpush1.bf16.msra.mxu0 0
        %1832 = vmatprep.subr.bf16.mxu0 0
        %1833 = vmatpush1.bf16.msra.mxu0 0
        %1834 = vmatprep.mubr.bf16.mxu0 0
        %1835 = vmatmul.mubr.bf16.gmra.mrb[0].mxu0 %v1797
        %v1836 = vpop.f32.mrb[0].mxu0
        %v1837 = vadd.f32 0.0, %v1836
        %v1838 = vpop.f32.mrb[0].mxu0
        %v1839 = vpop.f32.mrb[0].mxu0
        %v1840 = vpop.f32.mrb[0].mxu0
        %1841 = vdwg.mxu0
        %1842 = vrot.lane.b32.xlu0 %v1732, 120
        %v1843 = vpop.permute.xlu0 %1842
        %1844 = vrot.lane.b32.xlu0 %v1732, 88
        %v1845 = vpop.permute.xlu0 %1844
        %v1847 = vsel %vm920, %v1843, 0
        %v1850 = vsel %vm920, %v1845, 0
        %1852 = vmatprep.subr.bf16.mxu0 0
        %1853 = vmatpush1.bf16.xpose.msra.mxu0 %v1850
        %1854 = vmatprep.subr.bf16.mxu0 0
        %1855 = vmatpush1.bf16.xpose.msra.mxu0 0
        %1856 = vmatprep.subr.bf16.mxu0 0
        %1857 = vmatpush1.bf16.xpose.msra.mxu0 0
        %1858 = vmatprep.subr.bf16.mxu0 0
        %1859 = vmatpush1.bf16.xpose.msra.mxu0 0
        %1860 = vmatprep.subr.bf16.mxu0 0
        %1861 = vmatpush1.bf16.xpose.msra.mxu0 0
        %1862 = vmatprep.subr.bf16.mxu0 0
        %1863 = vmatpush1.bf16.xpose.msra.mxu0 0
        %1864 = vmatprep.subr.bf16.mxu0 0
        %1865 = vmatpush1.bf16.xpose.msra.mxu0 0
        %1866 = vmatprep.subr.bf16.mxu0 0
        %1867 = vmatpush1.bf16.xpose.msra.mxu0 0
        %1868 = vmatprep.subr.bf16.mxu0 0
        %1869 = vmatpush1.bf16.xpose.msra.mxu0 0
        %1870 = vmatprep.subr.bf16.mxu0 0
        %1871 = vmatpush1.bf16.xpose.msra.mxu0 0
        %1872 = vmatprep.subr.bf16.mxu0 0
        %1873 = vmatpush1.bf16.xpose.msra.mxu0 0
        %1874 = vmatprep.subr.bf16.mxu0 0
        %1875 = vmatpush1.bf16.xpose.msra.mxu0 0
        %1876 = vmatprep.subr.bf16.mxu0 0
        %1877 = vmatpush1.bf16.xpose.msra.mxu0 0
        %1878 = vmatprep.subr.bf16.mxu0 0
        %1879 = vmatpush1.bf16.xpose.msra.mxu0 0
        %1880 = vmatprep.subr.bf16.mxu0 0
        %1881 = vmatpush1.bf16.xpose.msra.mxu0 0
        %1882 = vmatprep.subr.bf16.mxu0 0
        %1883 = vmatpush1.bf16.xpose.msra.mxu0 0
        %1884 = vmatprep.mubr.bf16.mxu0 0
        %1885 = vmatmul.mubr.bf16.gmra.mrb[0].mxu0 %v1847
        %v1886 = vpop.f32.mrb[0].mxu0
        %v1887 = vadd.f32 0.0, %v1886
        %v1888 = vpop.f32.mrb[0].mxu0
        %v1889 = vpop.f32.mrb[0].mxu0
        %v1890 = vpop.f32.mrb[0].mxu0
        %1891 = vdwg.mxu0
        %v1892 = vsel %vm920, %v1887, -inf
        %1893 = vmax.xlane.f32.xlu0 %v1892
        %v1894 = vpop.xlane.xlu0 %1893
        %v1895 = vsub.f32 %v1887, %v1894
        %v1896 = vmul.f32 %v1895, 1.442695
        %v1897 = vpow.pop %v1896
        %v1898 = vsel %vm920, %v1897, 0.0
        %1899 = vadd.xlane.f32.xlu0 %v1898
        %v1900 = vpop.xlane.xlu0 %1899
        %v1901 = vrcp.pop %v1900
        %v1902 = vmul.f32 %v1897, %v1901
        %v1903 = vpack.c.bf16 %v1902, %v1902
        %1904 = vrot.lane.b32.xlu0 %v1732, 56
        %v1905 = vpop.permute.xlu0 %1904
        %v1907 = vsel %vm920, %v1903, 0
        %v1910 = vsel %vm984, %v1905, 0
        %1912 = vmatprep.subr.bf16.mxu0 0
        %1913 = vmatpush1.bf16.msra.mxu0 %v1910
        %1914 = vmatprep.subr.bf16.mxu0 0
        %1915 = vmatpush1.bf16.msra.mxu0 0
        %1916 = vmatprep.subr.bf16.mxu0 0
        %1917 = vmatpush1.bf16.msra.mxu0 0
        %1918 = vmatprep.subr.bf16.mxu0 0
        %1919 = vmatpush1.bf16.msra.mxu0 0
        %1920 = vmatprep.subr.bf16.mxu0 0
        %1921 = vmatpush1.bf16.msra.mxu0 0
        %1922 = vmatprep.subr.bf16.mxu0 0
        %1923 = vmatpush1.bf16.msra.mxu0 0
        %1924 = vmatprep.subr.bf16.mxu0 0
        %1925 = vmatpush1.bf16.msra.mxu0 0
        %1926 = vmatprep.subr.bf16.mxu0 0
        %1927 = vmatpush1.bf16.msra.mxu0 0
        %1928 = vmatprep.subr.bf16.mxu0 0
        %1929 = vmatpush1.bf16.msra.mxu0 0
        %1930 = vmatprep.subr.bf16.mxu0 0
        %1931 = vmatpush1.bf16.msra.mxu0 0
        %1932 = vmatprep.subr.bf16.mxu0 0
        %1933 = vmatpush1.bf16.msra.mxu0 0
        %1934 = vmatprep.subr.bf16.mxu0 0
        %1935 = vmatpush1.bf16.msra.mxu0 0
        %1936 = vmatprep.subr.bf16.mxu0 0
        %1937 = vmatpush1.bf16.msra.mxu0 0
        %1938 = vmatprep.subr.bf16.mxu0 0
        %1939 = vmatpush1.bf16.msra.mxu0 0
        %1940 = vmatprep.subr.bf16.mxu0 0
        %1941 = vmatpush1.bf16.msra.mxu0 0
        %1942 = vmatprep.subr.bf16.mxu0 0
        %1943 = vmatpush1.bf16.msra.mxu0 0
        %1944 = vmatprep.mubr.bf16.mxu0 0
        %1945 = vmatmul.mubr.bf16.gmra.mrb[0].mxu0 %v1907
        %v1946 = vpop.f32.mrb[0].mxu0
        %v1947 = vadd.f32 0.0, %v1946
        %v1948 = vpop.f32.mrb[0].mxu0
        %v1949 = vpop.f32.mrb[0].mxu0
        %v1950 = vpop.f32.mrb[0].mxu0
        %1951 = vdwg.mxu0
        %1952 = vrot.lane.b32.xlu0 %v1732, 112
        %v1953 = vpop.permute.xlu0 %1952
        %1954 = vrot.lane.b32.xlu0 %v1732, 80
        %v1955 = vpop.permute.xlu0 %1954
        %v1957 = vsel %vm920, %v1953, 0
        %v1960 = vsel %vm920, %v1955, 0
        %1962 = vmatprep.subr.bf16.mxu0 0
        %1963 = vmatpush1.bf16.xpose.msra.mxu0 %v1960
        %1964 = vmatprep.subr.bf16.mxu0 0
        %1965 = vmatpush1.bf16.xpose.msra.mxu0 0
        %1966 = vmatprep.subr.bf16.mxu0 0
        %1967 = vmatpush1.bf16.xpose.msra.mxu0 0
        %1968 = vmatprep.subr.bf16.mxu0 0
        %1969 = vmatpush1.bf16.xpose.msra.mxu0 0
        %1970 = vmatprep.subr.bf16.mxu0 0
        %1971 = vmatpush1.bf16.xpose.msra.mxu0 0
        %1972 = vmatprep.subr.bf16.mxu0 0
        %1973 = vmatpush1.bf16.xpose.msra.mxu0 0
        %1974 = vmatprep.subr.bf16.mxu0 0
        %1975 = vmatpush1.bf16.xpose.msra.mxu0 0
        %1976 = vmatprep.subr.bf16.mxu0 0
        %1977 = vmatpush1.bf16.xpose.msra.mxu0 0
        %1978 = vmatprep.subr.bf16.mxu0 0
        %1979 = vmatpush1.bf16.xpose.msra.mxu0 0
        %1980 = vmatprep.subr.bf16.mxu0 0
        %1981 = vmatpush1.bf16.xpose.msra.mxu0 0
        %1982 = vmatprep.subr.bf16.mxu0 0
        %1983 = vmatpush1.bf16.xpose.msra.mxu0 0
        %1984 = vmatprep.subr.bf16.mxu0 0
        %1985 = vmatpush1.bf16.xpose.msra.mxu0 0
        %1986 = vmatprep.subr.bf16.mxu0 0
        %1987 = vmatpush1.bf16.xpose.msra.mxu0 0
        %1988 = vmatprep.subr.bf16.mxu0 0
        %1989 = vmatpush1.bf16.xpose.msra.mxu0 0
        %1990 = vmatprep.subr.bf16.mxu0 0
        %1991 = vmatpush1.bf16.xpose.msra.mxu0 0
        %1992 = vmatprep.subr.bf16.mxu0 0
        %1993 = vmatpush1.bf16.xpose.msra.mxu0 0
        %1994 = vmatprep.mubr.bf16.mxu0 0
        %1995 = vmatmul.mubr.bf16.gmra.mrb[0].mxu0 %v1957
        %v1996 = vpop.f32.mrb[0].mxu0
        %v1997 = vadd.f32 0.0, %v1996
        %v1998 = vpop.f32.mrb[0].mxu0
        %v1999 = vpop.f32.mrb[0].mxu0
        %v2000 = vpop.f32.mrb[0].mxu0
        %2001 = vdwg.mxu0
        %v2002 = vsel %vm920, %v1997, -inf
        %2003 = vmax.xlane.f32.xlu0 %v2002
        %v2004 = vpop.xlane.xlu0 %2003
        %v2005 = vsub.f32 %v1997, %v2004
        %v2006 = vmul.f32 %v2005, 1.442695
        %v2007 = vpow.pop %v2006
        %v2008 = vsel %vm920, %v2007, 0.0
        %2009 = vadd.xlane.f32.xlu0 %v2008
        %v2010 = vpop.xlane.xlu0 %2009
        %v2011 = vrcp.pop %v2010
        %v2012 = vmul.f32 %v2007, %v2011
        %v2013 = vpack.c.bf16 %v2012, %v2012
        %2014 = vrot.lane.b32.xlu0 %v1732, 48
        %v2015 = vpop.permute.xlu0 %2014
        %v2017 = vsel %vm920, %v2013, 0
        %v2020 = vsel %vm984, %v2015, 0
        %2022 = vmatprep.subr.bf16.mxu0 0
        %2023 = vmatpush1.bf16.msra.mxu0 %v2020
        %2024 = vmatprep.subr.bf16.mxu0 0
        %2025 = vmatpush1.bf16.msra.mxu0 0
        %2026 = vmatprep.subr.bf16.mxu0 0
        %2027 = vmatpush1.bf16.msra.mxu0 0
        %2028 = vmatprep.subr.bf16.mxu0 0
        %2029 = vmatpush1.bf16.msra.mxu0 0
        %2030 = vmatprep.subr.bf16.mxu0 0
        %2031 = vmatpush1.bf16.msra.mxu0 0
        %2032 = vmatprep.subr.bf16.mxu0 0
        %2033 = vmatpush1.bf16.msra.mxu0 0
        %2034 = vmatprep.subr.bf16.mxu0 0
        %2035 = vmatpush1.bf16.msra.mxu0 0
        %2036 = vmatprep.subr.bf16.mxu0 0
        %2037 = vmatpush1.bf16.msra.mxu0 0
        %2038 = vmatprep.subr.bf16.mxu0 0
        %2039 = vmatpush1.bf16.msra.mxu0 0
        %2040 = vmatprep.subr.bf16.mxu0 0
        %2041 = vmatpush1.bf16.msra.mxu0 0
        %2042 = vmatprep.subr.bf16.mxu0 0
        %2043 = vmatpush1.bf16.msra.mxu0 0
        %2044 = vmatprep.subr.bf16.mxu0 0
        %2045 = vmatpush1.bf16.msra.mxu0 0
        %2046 = vmatprep.subr.bf16.mxu0 0
        %2047 = vmatpush1.bf16.msra.mxu0 0
        %2048 = vmatprep.subr.bf16.mxu0 0
        %2049 = vmatpush1.bf16.msra.mxu0 0
        %2050 = vmatprep.subr.bf16.mxu0 0
        %2051 = vmatpush1.bf16.msra.mxu0 0
        %2052 = vmatprep.subr.bf16.mxu0 0
        %2053 = vmatpush1.bf16.msra.mxu0 0
        %2054 = vmatprep.mubr.bf16.mxu0 0
        %2055 = vmatmul.mubr.bf16.gmra.mrb[0].mxu0 %v2017
        %v2056 = vpop.f32.mrb[0].mxu0
        %v2057 = vadd.f32 0.0, %v2056
        %v2058 = vpop.f32.mrb[0].mxu0
        %v2059 = vpop.f32.mrb[0].mxu0
        %v2060 = vpop.f32.mrb[0].mxu0
        %2061 = vdwg.mxu0
        %2062 = vrot.lane.b32.xlu0 %v1732, 104
        %v2063 = vpop.permute.xlu0 %2062
        %2064 = vrot.lane.b32.xlu0 %v1732, 72
        %v2065 = vpop.permute.xlu0 %2064
        %v2067 = vsel %vm920, %v2063, 0
        %v2070 = vsel %vm920, %v2065, 0
        %2072 = vmatprep.subr.bf16.mxu0 0
        %2073 = vmatpush1.bf16.xpose.msra.mxu0 %v2070
        %2074 = vmatprep.subr.bf16.mxu0 0
        %2075 = vmatpush1.bf16.xpose.msra.mxu0 0
        %2076 = vmatprep.subr.bf16.mxu0 0
        %2077 = vmatpush1.bf16.xpose.msra.mxu0 0
        %2078 = vmatprep.subr.bf16.mxu0 0
        %2079 = vmatpush1.bf16.xpose.msra.mxu0 0
        %2080 = vmatprep.subr.bf16.mxu0 0
        %2081 = vmatpush1.bf16.xpose.msra.mxu0 0
        %2082 = vmatprep.subr.bf16.mxu0 0
        %2083 = vmatpush1.bf16.xpose.msra.mxu0 0
        %2084 = vmatprep.subr.bf16.mxu0 0
        %2085 = vmatpush1.bf16.xpose.msra.mxu0 0
        %2086 = vmatprep.subr.bf16.mxu0 0
        %2087 = vmatpush1.bf16.xpose.msra.mxu0 0
        %2088 = vmatprep.subr.bf16.mxu0 0
        %2089 = vmatpush1.bf16.xpose.msra.mxu0 0
        %2090 = vmatprep.subr.bf16.mxu0 0
        %2091 = vmatpush1.bf16.xpose.msra.mxu0 0
        %2092 = vmatprep.subr.bf16.mxu0 0
        %2093 = vmatpush1.bf16.xpose.msra.mxu0 0
        %2094 = vmatprep.subr.bf16.mxu0 0
        %2095 = vmatpush1.bf16.xpose.msra.mxu0 0
        %2096 = vmatprep.subr.bf16.mxu0 0
        %2097 = vmatpush1.bf16.xpose.msra.mxu0 0
        %2098 = vmatprep.subr.bf16.mxu0 0
        %2099 = vmatpush1.bf16.xpose.msra.mxu0 0
        %2100 = vmatprep.subr.bf16.mxu0 0
        %2101 = vmatpush1.bf16.xpose.msra.mxu0 0
        %2102 = vmatprep.subr.bf16.mxu0 0
        %2103 = vmatpush1.bf16.xpose.msra.mxu0 0
        %2104 = vmatprep.mubr.bf16.mxu0 0
        %2105 = vmatmul.mubr.bf16.gmra.mrb[0].mxu0 %v2067
        %v2106 = vpop.f32.mrb[0].mxu0
        %v2107 = vadd.f32 0.0, %v2106
        %v2108 = vpop.f32.mrb[0].mxu0
        %v2109 = vpop.f32.mrb[0].mxu0
        %v2110 = vpop.f32.mrb[0].mxu0
        %2111 = vdwg.mxu0
        %v2112 = vsel %vm920, %v2107, -inf
        %2113 = vmax.xlane.f32.xlu0 %v2112
        %v2114 = vpop.xlane.xlu0 %2113
        %v2115 = vsub.f32 %v2107, %v2114
        %v2116 = vmul.f32 %v2115, 1.442695
        %v2117 = vpow.pop %v2116
        %v2118 = vsel %vm920, %v2117, 0.0
        %2119 = vadd.xlane.f32.xlu0 %v2118
        %v2120 = vpop.xlane.xlu0 %2119
        %v2121 = vrcp.pop %v2120
        %v2122 = vmul.f32 %v2117, %v2121
        %v2123 = vpack.c.bf16 %v2122, %v2122
        %2124 = vrot.lane.b32.xlu0 %v1732, 40
        %v2125 = vpop.permute.xlu0 %2124
        %v2127 = vsel %vm920, %v2123, 0
        %v2130 = vsel %vm984, %v2125, 0
        %2132 = vmatprep.subr.bf16.mxu0 0
        %2133 = vmatpush1.bf16.msra.mxu0 %v2130
        %2134 = vmatprep.subr.bf16.mxu0 0
        %2135 = vmatpush1.bf16.msra.mxu0 0
        %2136 = vmatprep.subr.bf16.mxu0 0
        %2137 = vmatpush1.bf16.msra.mxu0 0
        %2138 = vmatprep.subr.bf16.mxu0 0
        %2139 = vmatpush1.bf16.msra.mxu0 0
        %2140 = vmatprep.subr.bf16.mxu0 0
        %2141 = vmatpush1.bf16.msra.mxu0 0
        %2142 = vmatprep.subr.bf16.mxu0 0
        %2143 = vmatpush1.bf16.msra.mxu0 0
        %2144 = vmatprep.subr.bf16.mxu0 0
        %2145 = vmatpush1.bf16.msra.mxu0 0
        %2146 = vmatprep.subr.bf16.mxu0 0
        %2147 = vmatpush1.bf16.msra.mxu0 0
        %2148 = vmatprep.subr.bf16.mxu0 0
        %2149 = vmatpush1.bf16.msra.mxu0 0
        %2150 = vmatprep.subr.bf16.mxu0 0
        %2151 = vmatpush1.bf16.msra.mxu0 0
        %2152 = vmatprep.subr.bf16.mxu0 0
        %2153 = vmatpush1.bf16.msra.mxu0 0
        %2154 = vmatprep.subr.bf16.mxu0 0
        %2155 = vmatpush1.bf16.msra.mxu0 0
        %2156 = vmatprep.subr.bf16.mxu0 0
        %2157 = vmatpush1.bf16.msra.mxu0 0
        %2158 = vmatprep.subr.bf16.mxu0 0
        %2159 = vmatpush1.bf16.msra.mxu0 0
        %2160 = vmatprep.subr.bf16.mxu0 0
        %2161 = vmatpush1.bf16.msra.mxu0 0
        %2162 = vmatprep.subr.bf16.mxu0 0
        %2163 = vmatpush1.bf16.msra.mxu0 0
        %2164 = vmatprep.mubr.bf16.mxu0 0
        %2165 = vmatmul.mubr.bf16.gmra.mrb[0].mxu0 %v2127
        %v2166 = vpop.f32.mrb[0].mxu0
        %v2167 = vadd.f32 0.0, %v2166
        %v2168 = vpop.f32.mrb[0].mxu0
        %v2169 = vpop.f32.mrb[0].mxu0
        %v2170 = vpop.f32.mrb[0].mxu0
        %2171 = vdwg.mxu0
        %2173 = vrot.lane.b32.xlu0 %v1947, 8
        %v2174 = vpop.permute.xlu0 %2173
        %2177 = vrot.lane.b32.xlu0 %v2057, 16
        %v2178 = vpop.permute.xlu0 %2177
        %2181 = vrot.lane.b32.xlu0 %v2167, 24
        %v2182 = vpop.permute.xlu0 %2181
        %v2184 = vsel %vm920, %v1837, %v2174
        %v2185 = vsel %vm1371, %v2184, %v2178
        %v2186 = vsel %vm1373, %v2185, %v2182
        %v2187 = vpack.c.bf16 %v2186, %v2186
        %s2188 = scalar_lea.vmem [#allocation11], 16
        %v2189 = vld [vmem:[%s2188] sm:$0xf]
        %v2190 = vld [vmem:[%s2188 + $0x4] sm:$0xf]
        %v2191 = vld [vmem:[%s2188 + $0x8] sm:$0xf]
        %v2192 = vld [vmem:[%s2188 + $0xc] sm:$0xf]
        %s2193 = scalar_lea.vmem [#allocation13], 1
        %v2194 = vld [vmem:[%s2193] sm:$0x1]
        %v2196 = vlaneseq
        %v2197 = vshrl.u32 %v2196, 7
        %v2198 = vsub.s32 0, %v2197
        %v2199 = vrot.slane %v2194, %v2198
        %v2205 = vunpack.c.l.b16 %v2189
        %v2206 = vunpack.c.l.b16 %v2190
        %v2207 = vunpack.c.l.b16 %v2191
        %v2208 = vunpack.c.l.b16 %v2192
        %v2209 = vpack.c.b16 %v2206, %v2205
        %v2210 = vpack.c.b16 %v2208, %v2207
        %v2214 = vsel %vm872, %v2187, 0
        %2216 = vmatprep.subr.bf16.mxu0 0
        %2217 = vmatpush1.bf16.msra.mxu0 %v2209
        %2218 = vmatprep.subr.bf16.mxu0 0
        %2219 = vmatpush1.bf16.msra.mxu0 %v2210
        %2220 = vmatprep.subr.bf16.mxu0 0
        %2221 = vmatpush1.bf16.msra.mxu0 0
        %2222 = vmatprep.subr.bf16.mxu0 0
        %2223 = vmatpush1.bf16.msra.mxu0 0
        %2224 = vmatprep.subr.bf16.mxu0 0
        %2225 = vmatpush1.bf16.msra.mxu0 0
        %2226 = vmatprep.subr.bf16.mxu0 0
        %2227 = vmatpush1.bf16.msra.mxu0 0
        %2228 = vmatprep.subr.bf16.mxu0 0
        %2229 = vmatpush1.bf16.msra.mxu0 0
        %2230 = vmatprep.subr.bf16.mxu0 0
        %2231 = vmatpush1.bf16.msra.mxu0 0
        %2232 = vmatprep.subr.bf16.mxu0 0
        %2233 = vmatpush1.bf16.msra.mxu0 0
        %2234 = vmatprep.subr.bf16.mxu0 0
        %2235 = vmatpush1.bf16.msra.mxu0 0
        %2236 = vmatprep.subr.bf16.mxu0 0
        %2237 = vmatpush1.bf16.msra.mxu0 0
        %2238 = vmatprep.subr.bf16.mxu0 0
        %2239 = vmatpush1.bf16.msra.mxu0 0
        %2240 = vmatprep.subr.bf16.mxu0 0
        %2241 = vmatpush1.bf16.msra.mxu0 0
        %2242 = vmatprep.subr.bf16.mxu0 0
        %2243 = vmatpush1.bf16.msra.mxu0 0
        %2244 = vmatprep.subr.bf16.mxu0 0
        %2245 = vmatpush1.bf16.msra.mxu0 0
        %2246 = vmatprep.subr.bf16.mxu0 0
        %2247 = vmatpush1.bf16.msra.mxu0 0
        %2248 = vmatprep.mubr.bf16.mxu0 0
        %2249 = vmatmul.mubr.bf16.gmra.mrb[0].mxu0 %v2214
        %v2250 = vpop.f32.mrb[0].mxu0
        %v2251 = vadd.f32 %v2199, %v2250
        %v2252 = vpop.f32.mrb[0].mxu0
        %v2253 = vpop.f32.mrb[0].mxu0
        %v2254 = vpop.f32.mrb[0].mxu0
        %2255 = vdwg.mxu0
        %v2256 = vadd.f32 %v1662, %v2251
        %s2257 = scalar_lea.vmem [#allocation14], 1
        %v2258 = vld [vmem:[%s2257] sm:$0x1]
        %s2259 = scalar_lea.vmem [#allocation16], 1
        %v2260 = vld [vmem:[%s2259] sm:$0x1]
        %v2261 = vsel %vm872, %v2256, 0.0
        %2262 = vadd.xlane.f32.xlu0 %v2261
        %v2263 = vpop.xlane.xlu0 %2262
        %v2264 = vmul.f32 %v2263, %v1448
        %v2265 = vsub.f32 %v2256, %v2264
        %v2266 = vmul.f32 %v2265, %v2265
        %v2267 = vsel %vm872, %v2266, 0.0
        %2268 = vadd.xlane.f32.xlu0 %v2267
        %v2269 = vpop.xlane.xlu0 %2268
        %v2270 = vmul.f32 %v2269, %v1448
        %v2271 = vadd.f32 %v2270, 1e-05
        %v2272 = vrsqrt.pop %v2271
        %v2273 = vmul.f32 %v2265, %v2272
        %v2275 = vlaneseq
        %v2276 = vshrl.u32 %v2275, 7
        %v2277 = vsub.s32 0, %v2276
        %v2278 = vrot.slane %v2258, %v2277
        %v2280 = vmul.f32 %v2273, %v2278
        %v2282 = vlaneseq
        %v2283 = vshrl.u32 %v2282, 7
        %v2284 = vsub.s32 0, %v2283
        %v2285 = vrot.slane %v2260, %v2284
        %v2287 = vadd.f32 %v2280, %v2285
        %v2288 = vpack.c.bf16 %v2287, %v2287
        %s2289 = scalar_lea.vmem [#allocation17], 16
        %v2290 = vld [vmem:[%s2289] sm:$0xf]
        %v2291 = vld [vmem:[%s2289 + $0x4] sm:$0xf]
        %v2292 = vld [vmem:[%s2289 + $0x8] sm:$0xf]
        %v2293 = vld [vmem:[%s2289 + $0xc] sm:$0xf]
        %s2294 = scalar_lea.vmem [#allocation19], 1
        %v2295 = vld [vmem:[%s2294] sm:$0x1]
        %v2297 = vlaneseq
        %v2298 = vshrl.u32 %v2297, 7
        %v2299 = vsub.s32 0, %v2298
        %v2300 = vrot.slane %v2295, %v2299
        %v2306 = vunpack.c.l.b16 %v2290
        %v2307 = vunpack.c.l.b16 %v2291
        %v2308 = vunpack.c.l.b16 %v2292
        %v2309 = vunpack.c.l.b16 %v2293
        %v2310 = vpack.c.b16 %v2307, %v2306
        %v2311 = vpack.c.b16 %v2309, %v2308
        %v2315 = vsel %vm872, %v2288, 0
        %2317 = vmatprep.subr.bf16.mxu0 0
        %2318 = vmatpush1.bf16.msra.mxu0 %v2310
        %2319 = vmatprep.subr.bf16.mxu0 0
        %2320 = vmatpush1.bf16.msra.mxu0 %v2311
        %2321 = vmatprep.subr.bf16.mxu0 0
        %2322 = vmatpush1.bf16.msra.mxu0 0
        %2323 = vmatprep.subr.bf16.mxu0 0
        %2324 = vmatpush1.bf16.msra.mxu0 0
        %2325 = vmatprep.subr.bf16.mxu0 0
        %2326 = vmatpush1.bf16.msra.mxu0 0
        %2327 = vmatprep.subr.bf16.mxu0 0
        %2328 = vmatpush1.bf16.msra.mxu0 0
        %2329 = vmatprep.subr.bf16.mxu0 0
        %2330 = vmatpush1.bf16.msra.mxu0 0
        %2331 = vmatprep.subr.bf16.mxu0 0
        %2332 = vmatpush1.bf16.msra.mxu0 0
        %2333 = vmatprep.subr.bf16.mxu0 0
        %2334 = vmatpush1.bf16.msra.mxu0 0
        %2335 = vmatprep.subr.bf16.mxu0 0
        %2336 = vmatpush1.bf16.msra.mxu0 0
        %2337 = vmatprep.subr.bf16.mxu0 0
        %2338 = vmatpush1.bf16.msra.mxu0 0
        %2339 = vmatprep.subr.bf16.mxu0 0
        %2340 = vmatpush1.bf16.msra.mxu0 0
        %2341 = vmatprep.subr.bf16.mxu0 0
        %2342 = vmatpush1.bf16.msra.mxu0 0
        %2343 = vmatprep.subr.bf16.mxu0 0
        %2344 = vmatpush1.bf16.msra.mxu0 0
        %2345 = vmatprep.subr.bf16.mxu0 0
        %2346 = vmatpush1.bf16.msra.mxu0 0
        %2347 = vmatprep.subr.bf16.mxu0 0
        %2348 = vmatpush1.bf16.msra.mxu0 0
        %2349 = vmatprep.mubr.bf16.mxu0 0
        %2350 = vmatmul.mubr.bf16.gmra.mrb[0].mxu0 %v2315
        %v2351 = vpop.f32.mrb[0].mxu0
        %v2352 = vadd.f32 %v2300, %v2351
        %v2353 = vpop.f32.mrb[0].mxu0
        %v2354 = vpop.f32.mrb[0].mxu0
        %v2355 = vpop.f32.mrb[0].mxu0
        %2356 = vdwg.mxu0
        %v2357 = vmul.f32 %v2352, 0.5
        %v2358 = vmul.f32 %v2352, 0.044715
        %v2359 = vmul.f32 %v2358, %v2352
        %v2360 = vmul.f32 %v2359, %v2352
        %v2361 = vadd.f32 %v2352, %v2360
        %v2362 = vmul.f32 %v2361, 0.7978846
        %v2363 = vtanh.pop %v2362
        %v2364 = vadd.f32 %v2363, 1.0
        %v2365 = vmul.f32 %v2357, %v2364
        %v2366 = vpack.c.bf16 %v2365, %v2365
        %s2367 = scalar_lea.vmem [#allocation20], 32
        %v2368 = vld [vmem:[%s2367] sm:$0xf]
        %v2369 = vld [vmem:[%s2367 + $0x4] sm:$0xf]
        %v2370 = vld [vmem:[%s2367 + $0x8] sm:$0xf]
        %v2371 = vld [vmem:[%s2367 + $0xc] sm:$0xf]
        %v2372 = vld [vmem:[%s2367 + $0x10] sm:$0xf]
        %v2373 = vld [vmem:[%s2367 + $0x14] sm:$0xf]
        %v2374 = vld [vmem:[%s2367 + $0x18] sm:$0xf]
        %v2375 = vld [vmem:[%s2367 + $0x1c] sm:$0xf]
        %s2376 = scalar_lea.vmem [#allocation22], 1
        %v2377 = vld [vmem:[%s2376] sm:$0x1]
        %v2379 = vlaneseq
        %v2380 = vshrl.u32 %v2379, 7
        %v2381 = vsub.s32 0, %v2380
        %v2382 = vrot.slane %v2377, %v2381
        %v2392 = vunpack.c.l.b16 %v2368
        %v2393 = vunpack.c.l.b16 %v2369
        %v2394 = vunpack.c.l.b16 %v2370
        %v2395 = vunpack.c.l.b16 %v2371
        %v2396 = vunpack.c.l.b16 %v2372
        %v2397 = vunpack.c.l.b16 %v2373
        %v2398 = vunpack.c.l.b16 %v2374
        %v2399 = vunpack.c.l.b16 %v2375
        %v2400 = vpack.c.b16 %v2393, %v2392
        %v2401 = vpack.c.b16 %v2395, %v2394
        %v2402 = vpack.c.b16 %v2397, %v2396
        %v2403 = vpack.c.b16 %v2399, %v2398
        %v2409 = vsel %vm1589, %v2366, 0
        %2411 = vmatprep.subr.bf16.mxu0 0
        %2412 = vmatpush1.bf16.msra.mxu0 %v2400
        %2413 = vmatprep.subr.bf16.mxu0 0
        %2414 = vmatpush1.bf16.msra.mxu0 %v2401
        %2415 = vmatprep.subr.bf16.mxu0 0
        %2416 = vmatpush1.bf16.msra.mxu0 %v2402
        %2417 = vmatprep.subr.bf16.mxu0 0
        %2418 = vmatpush1.bf16.msra.mxu0 %v2403
        %2419 = vmatprep.subr.bf16.mxu0 0
        %2420 = vmatpush1.bf16.msra.mxu0 0
        %2421 = vmatprep.subr.bf16.mxu0 0
        %2422 = vmatpush1.bf16.msra.mxu0 0
        %2423 = vmatprep.subr.bf16.mxu0 0
        %2424 = vmatpush1.bf16.msra.mxu0 0
        %2425 = vmatprep.subr.bf16.mxu0 0
        %2426 = vmatpush1.bf16.msra.mxu0 0
        %2427 = vmatprep.subr.bf16.mxu0 0
        %2428 = vmatpush1.bf16.msra.mxu0 0
        %2429 = vmatprep.subr.bf16.mxu0 0
        %2430 = vmatpush1.bf16.msra.mxu0 0
        %2431 = vmatprep.subr.bf16.mxu0 0
        %2432 = vmatpush1.bf16.msra.mxu0 0
        %2433 = vmatprep.subr.bf16.mxu0 0
        %2434 = vmatpush1.bf16.msra.mxu0 0
        %2435 = vmatprep.subr.bf16.mxu0 0
        %2436 = vmatpush1.bf16.msra.mxu0 0
        %2437 = vmatprep.subr.bf16.mxu0 0
        %2438 = vmatpush1.bf16.msra.mxu0 0
        %2439 = vmatprep.subr.bf16.mxu0 0
        %2440 = vmatpush1.bf16.msra.mxu0 0
        %2441 = vmatprep.subr.bf16.mxu0 0
        %2442 = vmatpush1.bf16.msra.mxu0 0
        %2443 = vmatprep.mubr.bf16.mxu0 0
        %2444 = vmatmul.mubr.bf16.gmra.mrb[0].mxu0 %v2409
        %v2445 = vpop.f32.mrb[0].mxu0
        %v2446 = vadd.f32 %v2382, %v2445
        %v2447 = vpop.f32.mrb[0].mxu0
        %v2448 = vpop.f32.mrb[0].mxu0
        %v2449 = vpop.f32.mrb[0].mxu0
        %2450 = vdwg.mxu0
        %v2451 = vadd.f32 %v2287, %v2446
        %s2452 = scalar_lea.vmem [#allocation23], 1
        %v2453 = vld [vmem:[%s2452] sm:$0x1]
        %s2454 = scalar_lea.vmem [#allocation25], 1
        %v2455 = vld [vmem:[%s2454] sm:$0x1]
        %v2456 = vsel %vm872, %v2451, 0.0
        %2457 = vadd.xlane.f32.xlu0 %v2456
        %v2458 = vpop.xlane.xlu0 %2457
        %v2459 = vmul.f32 %v2458, %v1448
        %v2460 = vsub.f32 %v2451, %v2459
        %v2461 = vmul.f32 %v2460, %v2460
        %v2462 = vsel %vm872, %v2461, 0.0
        %2463 = vadd.xlane.f32.xlu0 %v2462
        %v2464 = vpop.xlane.xlu0 %2463
        %v2465 = vmul.f32 %v2464, %v1448
        %v2466 = vadd.f32 %v2465, 1e-05
        %v2467 = vrsqrt.pop %v2466
        %v2468 = vmul.f32 %v2460, %v2467
        %v2470 = vlaneseq
        %v2471 = vshrl.u32 %v2470, 7
        %v2472 = vsub.s32 0, %v2471
        %v2473 = vrot.slane %v2453, %v2472
        %v2475 = vmul.f32 %v2468, %v2473
        %v2477 = vlaneseq
        %v2478 = vshrl.u32 %v2477, 7
        %v2479 = vsub.s32 0, %v2478
        %v2480 = vrot.slane %v2455, %v2479
        %v2482 = vadd.f32 %v2475, %v2480
        %v2483 = vpack.c.bf16 %v2482, %v2482
        %v2484 = vld [vmem:[#allocation26] sm:$0xf]
        %v2485 = vld [vmem:[#allocation26 + $0x4] sm:$0xf]
        %v2486 = vld [vmem:[#allocation26 + $0x8] sm:$0xf]
        %v2487 = vld [vmem:[#allocation26 + $0xc] sm:$0xf]
        %v2488 = vld [vmem:[#allocation28] sm:$0x1]
        %v2490 = vlaneseq
        %v2491 = vshrl.u32 %v2490, 7
        %v2492 = vsub.s32 0, %v2491
        %v2493 = vrot.slane %v2488, %v2492
        %v2499 = vunpack.c.l.b16 %v2484
        %v2500 = vunpack.c.l.b16 %v2485
        %v2501 = vunpack.c.l.b16 %v2486
        %v2502 = vunpack.c.l.b16 %v2487
        %v2503 = vpack.c.b16 %v2500, %v2499
        %v2504 = vpack.c.b16 %v2502, %v2501
        %v2508 = vsel %vm872, %v2483, 0
        %2510 = vmatprep.subr.bf16.mxu0 0
        %2511 = vmatpush1.bf16.msra.mxu0 %v2503
        %2512 = vmatprep.subr.bf16.mxu0 0
        %2513 = vmatpush1.bf16.msra.mxu0 %v2504
        %2514 = vmatprep.subr.bf16.mxu0 0
        %2515 = vmatpush1.bf16.msra.mxu0 0
        %2516 = vmatprep.subr.bf16.mxu0 0
        %2517 = vmatpush1.bf16.msra.mxu0 0
        %2518 = vmatprep.subr.bf16.mxu0 0
        %2519 = vmatpush1.bf16.msra.mxu0 0
        %2520 = vmatprep.subr.bf16.mxu0 0
        %2521 = vmatpush1.bf16.msra.mxu0 0
        %2522 = vmatprep.subr.bf16.mxu0 0
        %2523 = vmatpush1.bf16.msra.mxu0 0
        %2524 = vmatprep.subr.bf16.mxu0 0
        %2525 = vmatpush1.bf16.msra.mxu0 0
        %2526 = vmatprep.subr.bf16.mxu0 0
        %2527 = vmatpush1.bf16.msra.mxu0 0
        %2528 = vmatprep.subr.bf16.mxu0 0
        %2529 = vmatpush1.bf16.msra.mxu0 0
        %2530 = vmatprep.subr.bf16.mxu0 0
        %2531 = vmatpush1.bf16.msra.mxu0 0
        %2532 = vmatprep.subr.bf16.mxu0 0
        %2533 = vmatpush1.bf16.msra.mxu0 0
        %2534 = vmatprep.subr.bf16.mxu0 0
        %2535 = vmatpush1.bf16.msra.mxu0 0
        %2536 = vmatprep.subr.bf16.mxu0 0
        %2537 = vmatpush1.bf16.msra.mxu0 0
        %2538 = vmatprep.subr.bf16.mxu0 0
        %2539 = vmatpush1.bf16.msra.mxu0 0
        %2540 = vmatprep.subr.bf16.mxu0 0
        %2541 = vmatpush1.bf16.msra.mxu0 0
        %2542 = vmatprep.mubr.bf16.mxu0 0
        %2543 = vmatmul.mubr.bf16.gmra.mrb[0].mxu0 %v2508
        %v2544 = vpop.f32.mrb[0].mxu0
        %v2545 = vadd.f32 %v2493, %v2544
        %v2546 = vpop.f32.mrb[0].mxu0
        %v2547 = vpop.f32.mrb[0].mxu0
        %v2548 = vpop.f32.mrb[0].mxu0
        %2549 = vdwg.mxu0
        %2550 = vst [vmem:[%s789] sm:$0xff] %v2545
        %s2551 = sand.u32 %s412, 1
        %s2552 = scalar_lea.sflag [#allocation4], %s2551
        %s2553 = sand.u32 %s412, 1
        %s2554 = smul.addr %s2553, 8
        %s2555 = scalar_lea.vmem [#allocation29], %s2554
        // Predicated region
        $region157: #{tpu_custom_call.1} parent=87 // pred_check
          %p2556 = pneg %p422
        $region158: #{tpu_custom_call.1} parent=87 // pred_check_branch
          %2558 = sbr.rel (%p2556) target = $region160
        $region159: #{tpu_custom_call.1} parent=87 // pred_region
          %s2560 = ssub.s32 128, 128
          %2561 = vsyncadd %s2552, %s2560
          %s2562 = smul.addr %s42, 128
          %s2563 = scalar_lea.hbm %s17, %s2562
          %s2565 = sshll.u32 %s2555, 4
          %s2566 = int_to_ptr.vmem [resolvable:$true] %s2565
          %2568 = dma.vmem_to_hbm [thread:$0]  %s2566, 128, %s2563, %s2552
        $region160: #{tpu_custom_call.1} parent=87 // pred_fallthru
          _
      $region88: #{tpu_custom_call.1} parent=5 // pred_fallthru
        _
      %p2569 = scmp.le.s32.totalorder 2, %s37
      // Predicated region
      $region161: #{tpu_custom_call.1} parent=5 // pred_check
        %p2570 = pneg %p2569
      $region162: #{tpu_custom_call.1} parent=5 // pred_check_branch
        %2572 = sbr.rel (%p2570) target = $region164
      $region163: #{tpu_custom_call.1} parent=5 // pred_region
        %s2573 = ssub.s32 %s37, 2
        // Predicated region
        $region165: #{tpu_custom_call.1} parent=163 // pred_check
          %p2574 = pneg %p428
        $region166: #{tpu_custom_call.1} parent=163 // pred_check_branch
          %2576 = sbr.rel (%p2574) target = $region168
        $region167: #{tpu_custom_call.1} parent=163 // pred_region
          %s2577 = sand.u32 %s413, 1
          %s2578 = scalar_lea.sflag [#allocation4], %s2577
          %s2579 = sand.u32 %s413, 1
          %s2580 = smul.addr %s2579, 8
          %s2581 = scalar_lea.vmem [#allocation29], %s2580
          %2582 = dma.done %s2578, 128
        $region168: #{tpu_custom_call.1} parent=163 // pred_fallthru
          _
      $region164: #{tpu_custom_call.1} parent=5 // pred_fallthru
        _
    $region6: #{tpu_custom_call.1} parent=1 // loop_footer
      %s41 = sadd.s32 1, %s37
    $region7: #{tpu_custom_call.1} parent=1 // loop_footer_branch
      %36 = sbr.rel target = $region3
    $region8: #{tpu_custom_call.1} parent=1 // loop_exit
      _
    %2583 = vsyncpa [#allocation3], 1
    %s2584 = scalar_lea.sflag [#allocation3], 1
    %2585 = vsyncpa %s2584, 1
    %2586 = vsyncpa [#allocation6], 1
    %2587 = vsyncpa [#allocation9], 1
    %2588 = vsyncpa [#allocation12], 1
    %2589 = vsyncpa [#allocation15], 1
    %2590 = vsyncpa [#allocation18], 1
    %2591 = vsyncpa [#allocation21], 1
    %2592 = vsyncpa [#allocation24], 1
    %2593 = vsyncpa [#allocation27], 1
    %2594 = vsyncpa [#allocation4], 1
    %s2595 = scalar_lea.sflag [#allocation4], 1
    %2596 = vsyncpa %s2595, 1

</llo_original>
